<compile_context>
chip_gen: v7x
topology: tpu7x:2x2x1
jax: 0.10.0
libtpu: 0.0.40
codegen_flags: <defaults>
</compile_context>

<pallas_src>
import functools

import jax
import jax.numpy as jnp
from jax import lax
from jax.experimental import pallas as pl
from jax.experimental.pallas import tpu as pltpu


# ---------------------------------------------------------------------------
# Helpers: padding to TPU-friendly shapes.
# ---------------------------------------------------------------------------
def _round_up(x, m):
    return ((x + m - 1) // m) * m


def _pad_gates(w_t, hid_dim, hid_pad):
    """w_t: (In, 4H) with PyTorch gate order [i|f|g|o] along the last dim.
    Pads each gate block from H to H_pad so every gate is lane-aligned."""
    if hid_pad == hid_dim:
        return w_t
    blocks = [w_t[:, g * hid_dim:(g + 1) * hid_dim] for g in range(4)]
    blocks = [jnp.pad(b, ((0, 0), (0, hid_pad - hid_dim))) for b in blocks]
    return jnp.concatenate(blocks, axis=-1)


# ---------------------------------------------------------------------------
# Fused Pallas kernel: all LSTM layers, whole sequence, single grid step.
# ---------------------------------------------------------------------------
def _encoder_lstm_kernel(*refs, n_layers):
    # refs = (x, [w_ih, w_hh, b] * n_layers, out, h_n, c_n, ix_scr, h_scr, c_scr)
    x_ref = refs[0]
    w_refs = refs[1:1 + 3 * n_layers]
    out_ref, hn_ref, cn_ref = refs[1 + 3 * n_layers: 4 + 3 * n_layers]
    ix_scr, h_scr, c_scr = refs[4 + 3 * n_layers:]

    S = out_ref.shape[0]
    Bp, Hp = h_scr.shape

    for layer in range(n_layers):
        wih_ref = w_refs[3 * layer + 0]      # (Din_pad, 4*Hp)  bf16
        whh_ref = w_refs[3 * layer + 1]      # (Hp,      4*Hp)  bf16
        b_ref = w_refs[3 * layer + 2]        # (1,       4*Hp)  f32

        # --- Hoisted input projection: one big MXU matmul for the whole
        # sequence instead of S tiny matmuls inside the recurrence.
        # Layer 0 reads the embedded input; later layers read the previous
        # layer's output directly from the (VMEM-resident) output block.
        src = x_ref[...] if layer == 0 else out_ref[...]
        din = src.shape[-1]
        ix = jnp.dot(src.reshape(S * Bp, din).astype(wih_ref.dtype),
                     wih_ref[...],
                     preferred_element_type=jnp.float32) + b_ref[...]
        ix_scr[...] = ix.reshape(S, Bp, 4 * Hp)

        # --- Reset recurrent state (zeros, like torch.nn.LSTM default h0/c0).
        h_scr[...] = jnp.zeros_like(h_scr)
        c_scr[...] = jnp.zeros_like(c_scr)

        # --- Recurrence: only h @ W_hh is truly sequential work now.
        def step(t, carry):
            h_prev = h_scr[...]
            c_prev = c_scr[...]
            gates = ix_scr[t] + jnp.dot(h_prev.astype(whh_ref.dtype),
                                        whh_ref[...],
                                        preferred_element_type=jnp.float32)
            # Gate slices are lane-aligned views (each gate block is Hp, a
            # multiple of 128).  PyTorch gate order [i | f | g | o].
            i_g = jax.nn.sigmoid(gates[:, 0 * Hp:1 * Hp])
            f_g = jax.nn.sigmoid(gates[:, 1 * Hp:2 * Hp])
            g_g = jnp.tanh(gates[:, 2 * Hp:3 * Hp])
            o_g = jax.nn.sigmoid(gates[:, 3 * Hp:4 * Hp])
            c_new = f_g * c_prev + i_g * g_g
            h_new = o_g * jnp.tanh(c_new)
            h_scr[...] = h_new
            c_scr[...] = c_new
            out_ref[t] = h_new.astype(out_ref.dtype)   # lane-dense (Bp, Hp) store
            return carry

        lax.fori_loop(0, S, step, 0, unroll=True)

        # --- Final (h, c) written once per layer (not every time step).
        hn_ref[layer] = h_scr[...]
        cn_ref[layer] = c_scr[...]


# ---------------------------------------------------------------------------
# One-time parameter preparation (transpose, bias fusion, gate/lane padding).
# ---------------------------------------------------------------------------
def prepare_encoder_params(params, n_layers, matmul_dtype=jnp.bfloat16):
    emb = params["embedding"]
    E = emb.shape[1]
    H = params["w_hh_l0"].shape[1]
    Hp = _round_up(H, 128)
    Ep = _round_up(E, 128)

    layers = []
    for layer in range(n_layers):
        w_ih = params[f"w_ih_l{layer}"]                  # (4H, In)
        w_hh = params[f"w_hh_l{layer}"]                  # (4H, H)
        b = params[f"b_ih_l{layer}"] + params[f"b_hh_l{layer}"]   # (4H,)
        in_dim = w_ih.shape[1]
        in_pad = Ep if layer == 0 else Hp

        wih_t = _pad_gates(w_ih.T, H, Hp)                # (In,  4Hp)
        wih_t = jnp.pad(wih_t, ((0, in_pad - in_dim), (0, 0)))
        whh_t = _pad_gates(w_hh.T, H, Hp)                # (H,   4Hp)
        whh_t = jnp.pad(whh_t, ((0, Hp - H), (0, 0)))
        b_p = _pad_gates(b.reshape(1, 4 * H), H, Hp)     # (1,   4Hp)

        layers.append((wih_t.astype(matmul_dtype),
                       whh_t.astype(matmul_dtype),
                       b_p.astype(jnp.float32)))

    return {"embedding": emb, "layers": layers,
            "hid_dim": H, "hid_pad": Hp, "emb_dim": E, "emb_pad": Ep}


# ---------------------------------------------------------------------------
# Encoder forward (embedding gather = glue; all LSTM layers = one Pallas call).
# ---------------------------------------------------------------------------
def encoder_forward(src, prep, n_layers):
    # Embedding lookup (glue); dropout is identity in eval mode.
    # TODO(synk): training-mode dropout (stochastic) is not implemented; it
    # would need pltpu.prng_* based masking.
    x = prep["embedding"][src]                       # (S, B, E) f32
    S, B, E = x.shape
    H, Hp, Ep = prep["hid_dim"], prep["hid_pad"], prep["emb_pad"]
    Bp = _round_up(B, 8)                             # f32 sublane multiple
    x_p = jnp.pad(x, ((0, 0), (0, Bp - B), (0, Ep - E)))

    weights = []
    in_specs = [pl.BlockSpec((S, Bp, Ep), lambda i: (0, 0, 0))]
    for (wih, whh, b) in prep["layers"]:
        weights += [wih, whh, b]
        in_specs += [
            pl.BlockSpec(wih.shape, lambda i: (0, 0)),
            pl.BlockSpec(whh.shape, lambda i: (0, 0)),
            pl.BlockSpec(b.shape, lambda i: (0, 0)),
        ]

    kernel = functools.partial(_encoder_lstm_kernel, n_layers=n_layers)

    out, h_n, c_n = pl.pallas_call(
        kernel,
        out_shape=(
            jax.ShapeDtypeStruct((S, Bp, Hp), jnp.float32),
            jax.ShapeDtypeStruct((n_layers, Bp, Hp), jnp.float32),
            jax.ShapeDtypeStruct((n_layers, Bp, Hp), jnp.float32),
        ),
        grid_spec=pltpu.PrefetchScalarGridSpec(
            num_scalar_prefetch=0,
            grid=(1,),                               # single grid step; all
            in_specs=in_specs,                       # loops live in-kernel
            out_specs=(
                pl.BlockSpec((S, Bp, Hp), lambda i: (0, 0, 0)),
                pl.BlockSpec((n_layers, Bp, Hp), lambda i: (0, 0, 0)),
                pl.BlockSpec((n_layers, Bp, Hp), lambda i: (0, 0, 0)),
            ),
            scratch_shapes=[
                pltpu.VMEM((S, Bp, 4 * Hp), jnp.float32),  # hoisted x@W_ih + b
                pltpu.VMEM((Bp, Hp), jnp.float32),         # h state
                pltpu.VMEM((Bp, Hp), jnp.float32),         # c state
            ],
        ),
        compiler_params=pltpu.CompilerParams(
            dimension_semantics=("arbitrary",),
            # NOTE: at real sizes on v7x (64 MiB VMEM) also set
            # vmem_limit_bytes and single-buffer the constant weight blocks
            # (pipeline_mode=pl.Buffered(1)); unnecessary at these shapes.
        ),
    )(x_p, *weights)

    # Strip the batch / hidden padding back off.
    hidden = h_n[:, :B, :H]                          # (n_layers, B, H)
    cell = c_n[:, :B, :H]                            # (n_layers, B, H)
    output = out[:, :B, :H]                          # (S, B, H)
    return hidden, cell, output                      # matches PyTorch order


# ---------------------------------------------------------------------------
# Pure-JAX reference (for correctness sanity checks).
# ---------------------------------------------------------------------------
def encoder_forward_ref(src, params, n_layers, matmul_dtype=jnp.float32):
    x = params["embedding"][src]
    hiddens, cells = [], []
    for layer in range(n_layers):
        w_ih = params[f"w_ih_l{layer}"].T.astype(matmul_dtype)   # (In, 4H)
        w_hh = params[f"w_hh_l{layer}"].T.astype(matmul_dtype)   # (H, 4H)
        b = (params[f"b_ih_l{layer}"] + params[f"b_hh_l{layer}"]).astype(jnp.float32)
        H = w_hh.shape[0]
        B = x.shape[1]

        def step(carry, x_t):
            h, c = carry
            gates = (jnp.dot(x_t.astype(matmul_dtype), w_ih,
                             preferred_element_type=jnp.float32)
                     + jnp.dot(h.astype(matmul_dtype), w_hh,
                               preferred_element_type=jnp.float32)
                     + b)
            i = jax.nn.sigmoid(gates[:, 0 * H:1 * H])
            f = jax.nn.sigmoid(gates[:, 1 * H:2 * H])
            g = jnp.tanh(gates[:, 2 * H:3 * H])
            o = jax.nn.sigmoid(gates[:, 3 * H:4 * H])
            c_new = f * c + i * g
            h_new = o * jnp.tanh(c_new)
            return (h_new, c_new), h_new

        init = (jnp.zeros((B, H), jnp.float32), jnp.zeros((B, H), jnp.float32))
        (h_n, c_n), out = lax.scan(step, init, x)
        x = out
        hiddens.append(h_n)
        cells.append(c_n)
    return jnp.stack(hiddens), jnp.stack(cells), x


# ---------------------------------------------------------------------------
# Parameter construction (deterministic, PyTorch-like init).
# ---------------------------------------------------------------------------
def make_params(key, input_dim, emb_dim, hid_dim, n_layers):
    params = {}
    k_emb, key = jax.random.split(key)
    params["embedding"] = jax.random.normal(
        k_emb, (input_dim, emb_dim), jnp.float32)          # N(0,1), like nn.Embedding
    bound = 1.0 / jnp.sqrt(hid_dim)
    for layer in range(n_layers):
        in_dim = emb_dim if layer == 0 else hid_dim
        for name, shape in [
            (f"w_ih_l{layer}", (4 * hid_dim, in_dim)),
            (f"w_hh_l{layer}", (4 * hid_dim, hid_dim)),
            (f"b_ih_l{layer}", (4 * hid_dim,)),
            (f"b_hh_l{layer}", (4 * hid_dim,)),
        ]:
            k, key = jax.random.split(key)
            params[name] = jax.random.uniform(
                k, shape, jnp.float32, minval=-bound, maxval=bound)
    return params


if __name__ == "__main__":
    INPUT_DIM = 50     # vocab size
    EMB_DIM = 32
    HID_DIM = 32
    N_LAYERS = 2
    SEQ_LEN = 8
    BATCH = 4

    key = jax.random.PRNGKey(0)
    k_src, k_params = jax.random.split(key)

    src = jax.random.randint(k_src, (SEQ_LEN, BATCH), 0, INPUT_DIM, jnp.int32)
    params = make_params(k_params, INPUT_DIM, EMB_DIM, HID_DIM, N_LAYERS)

    # Weight prep (transpose / pad / bias fusion / bf16 cast) done ONCE.
    prep = prepare_encoder_params(params, N_LAYERS, matmul_dtype=jnp.bfloat16)

    hidden, cell, output = encoder_forward(src, prep, N_LAYERS)
    jax.block_until_ready((hidden, cell, output))

    assert hidden.shape == (N_LAYERS, BATCH, HID_DIM)
    assert cell.shape == (N_LAYERS, BATCH, HID_DIM)
    assert output.shape == (SEQ_LEN, BATCH, HID_DIM)

    # Tight check against a reference that uses the same bf16 matmul inputs.
    h_ref, c_ref, o_ref = encoder_forward_ref(
        src, params, N_LAYERS, matmul_dtype=jnp.bfloat16)
    assert jnp.allclose(hidden, h_ref, atol=2e-3), "hidden mismatch (bf16 ref)"
    assert jnp.allclose(cell, c_ref, atol=2e-3), "cell mismatch (bf16 ref)"
    assert jnp.allclose(output, o_ref, atol=2e-3), "output mismatch (bf16 ref)"

    # Loose semantic check against a full-f32 reference.
    h32, c32, o32 = encoder_forward_ref(src, params, N_LAYERS, jnp.float32)
    assert jnp.allclose(hidden, h32, atol=1e-1)
    assert jnp.allclose(cell, c32, atol=1e-1)
    assert jnp.allclose(output, o32, atol=1e-1)

    print("KERNEL_OK")
</pallas_src>

<mosaic_0001>
module attributes {stable_mosaic.version = 11 : i64} {
  func.func @_encoder_lstm_kernel(%arg0: i32, %arg1: memref<8x8x128xf32, #tpu.memory_space<vmem>>, %arg2: memref<128x512xbf16, #tpu.memory_space<vmem>>, %arg3: memref<128x512xbf16, #tpu.memory_space<vmem>>, %arg4: memref<1x512xf32, #tpu.memory_space<vmem>>, %arg5: memref<128x512xbf16, #tpu.memory_space<vmem>>, %arg6: memref<128x512xbf16, #tpu.memory_space<vmem>>, %arg7: memref<1x512xf32, #tpu.memory_space<vmem>>, %arg8: memref<8x8x128xf32, #tpu.memory_space<vmem>>, %arg9: memref<2x8x128xf32, #tpu.memory_space<vmem>>, %arg10: memref<2x8x128xf32, #tpu.memory_space<vmem>>, %arg11: memref<8x8x512xf32, #tpu.memory_space<vmem>>, %arg12: memref<8x128xf32, #tpu.memory_space<vmem>>, %arg13: memref<8x128xf32, #tpu.memory_space<vmem>>) attributes {dimension_semantics = [#tpu.dimension_semantics<arbitrary>], iteration_bounds = array<i64: 1>, scalar_prefetch = 0 : i64, scratch_operands = 3 : i64, tpu.core_type = #tpu.core_type<tc>, window_params = [{pipeline_mode = #tpu.pipeline_mode<synchronous>, transform_indices = @transform_0, window_bounds = array<i64: 8, 8, 128>}, {pipeline_mode = #tpu.pipeline_mode<synchronous>, transform_indices = @transform_1, window_bounds = array<i64: 128, 512>}, {pipeline_mode = #tpu.pipeline_mode<synchronous>, transform_indices = @transform_2, window_bounds = array<i64: 128, 512>}, {pipeline_mode = #tpu.pipeline_mode<synchronous>, transform_indices = @transform_3, window_bounds = array<i64: 1, 512>}, {pipeline_mode = #tpu.pipeline_mode<synchronous>, transform_indices = @transform_4, window_bounds = array<i64: 128, 512>}, {pipeline_mode = #tpu.pipeline_mode<synchronous>, transform_indices = @transform_5, window_bounds = array<i64: 128, 512>}, {pipeline_mode = #tpu.pipeline_mode<synchronous>, transform_indices = @transform_6, window_bounds = array<i64: 1, 512>}, {pipeline_mode = #tpu.pipeline_mode<synchronous>, transform_indices = @transform_7, window_bounds = array<i64: 8, 8, 128>}, {pipeline_mode = #tpu.pipeline_mode<synchronous>, transform_indices = @transform_8, window_bounds = array<i64: 2, 8, 128>}, {pipeline_mode = #tpu.pipeline_mode<synchronous>, transform_indices = @transform_9, window_bounds = array<i64: 2, 8, 128>}]} {
    %c0 = arith.constant 0 : index
    %c0_0 = arith.constant 0 : index
    %c0_1 = arith.constant 0 : index
    %0 = vector.load %arg1[%c0, %c0_0, %c0_1] : memref<8x8x128xf32, #tpu.memory_space<vmem>>, vector<8x8x128xf32>
    %1 = vector.shape_cast %0 : vector<8x8x128xf32> to vector<64x128xf32>
    %2 = arith.truncf %1 : vector<64x128xf32> to vector<64x128xbf16>
    %c0_2 = arith.constant 0 : index
    %c0_3 = arith.constant 0 : index
    %3 = vector.load %arg2[%c0_2, %c0_3] : memref<128x512xbf16, #tpu.memory_space<vmem>>, vector<128x512xbf16>
    %cst = arith.constant dense<0.000000e+00> : vector<64x512xf32>
    %4 = tpu.matmul %2, %3, %cst {dimension_numbers = #tpu.dot_dimension_numbers<[1], [0], [0], [1], [0, 0, 1, 1], [], []>} : vector<64x128xbf16>, vector<128x512xbf16>, vector<64x512xf32> -> vector<64x512xf32>
    %c0_4 = arith.constant 0 : index
    %c0_5 = arith.constant 0 : index
    %5 = vector.load %arg4[%c0_4, %c0_5] : memref<1x512xf32, #tpu.memory_space<vmem>>, vector<1x512xf32>
    %6 = vector.broadcast %5 : vector<1x512xf32> to vector<64x512xf32>
    %7 = arith.addf %4, %6 : vector<64x512xf32>
    %8 = vector.shape_cast %7 : vector<64x512xf32> to vector<8x8x512xf32>
    %c0_6 = arith.constant 0 : index
    %c0_7 = arith.constant 0 : index
    %c0_8 = arith.constant 0 : index
    %9 = vector.load %arg11[%c0_6, %c0_7, %c0_8] : memref<8x8x512xf32, #tpu.memory_space<vmem>>, vector<8x8x512xf32>
    tpu.vector_store %arg11[%c0_6, %c0_7, %c0_8], %8 {strides = array<i32>} : memref<8x8x512xf32, #tpu.memory_space<vmem>>, vector<8x8x512xf32>,
    %cst_9 = arith.constant 0.000000e+00 : f32
    %10 = vector.broadcast %cst_9 : f32 to vector<8x128xf32>
    %c0_10 = arith.constant 0 : index
    %c0_11 = arith.constant 0 : index
    %11 = vector.load %arg12[%c0_10, %c0_11] : memref<8x128xf32, #tpu.memory_space<vmem>>, vector<8x128xf32>
    tpu.vector_store %arg12[%c0_10, %c0_11], %10 {strides = array<i32>} : memref<8x128xf32, #tpu.memory_space<vmem>>, vector<8x128xf32>,
    %cst_12 = arith.constant 0.000000e+00 : f32
    %12 = vector.broadcast %cst_12 : f32 to vector<8x128xf32>
    %c0_13 = arith.constant 0 : index
    %c0_14 = arith.constant 0 : index
    %13 = vector.load %arg13[%c0_13, %c0_14] : memref<8x128xf32, #tpu.memory_space<vmem>>, vector<8x128xf32>
    tpu.vector_store %arg13[%c0_13, %c0_14], %12 {strides = array<i32>} : memref<8x128xf32, #tpu.memory_space<vmem>>, vector<8x128xf32>,
    %c0_i32 = arith.constant 0 : i32
    %c0_15 = arith.constant 0 : index
    %c0_16 = arith.constant 0 : index
    %14 = vector.load %arg12[%c0_15, %c0_16] : memref<8x128xf32, #tpu.memory_space<vmem>>, vector<8x128xf32>
    %c0_17 = arith.constant 0 : index
    %c0_18 = arith.constant 0 : index
    %15 = vector.load %arg13[%c0_17, %c0_18] : memref<8x128xf32, #tpu.memory_space<vmem>>, vector<8x128xf32>
    %16 = arith.index_cast %c0_i32 : i32 to index
    %c0_19 = arith.constant 0 : index
    %c0_20 = arith.constant 0 : index
    %17 = vector.load %arg11[%16, %c0_19, %c0_20] : memref<8x8x512xf32, #tpu.memory_space<vmem>>, vector<1x8x512xf32>
    %18 = vector.shape_cast %17 : vector<1x8x512xf32> to vector<8x512xf32>
    %19 = arith.truncf %14 : vector<8x128xf32> to vector<8x128xbf16>
    %c0_21 = arith.constant 0 : index
    %c0_22 = arith.constant 0 : index
    %20 = vector.load %arg3[%c0_21, %c0_22] : memref<128x512xbf16, #tpu.memory_space<vmem>>, vector<128x512xbf16>
    %cst_23 = arith.constant dense<0.000000e+00> : vector<8x512xf32>
    %21 = tpu.matmul %19, %20, %cst_23 {dimension_numbers = #tpu.dot_dimension_numbers<[1], [0], [0], [1], [0, 0, 1, 1], [], []>} : vector<8x128xbf16>, vector<128x512xbf16>, vector<8x512xf32> -> vector<8x512xf32>
    %22 = arith.addf %18, %21 : vector<8x512xf32>
    %23 = vector.extract_strided_slice %22 {offsets = [0, 0], sizes = [8, 128], strides = [1, 1]} : vector<8x512xf32> to vector<8x128xf32>
    %24 = arith.negf %23 : vector<8x128xf32>
    %25 = math.exp %24 : vector<8x128xf32>
    %cst_24 = arith.constant 1.000000e+00 : f32
    %26 = vector.broadcast %cst_24 : f32 to vector<8x128xf32>
    %27 = arith.addf %26, %25 : vector<8x128xf32>
    %28 = arith.divf %26, %27 : vector<8x128xf32>
    %29 = vector.extract_strided_slice %22 {offsets = [0, 128], sizes = [8, 128], strides = [1, 1]} : vector<8x512xf32> to vector<8x128xf32>
    %30 = arith.negf %29 : vector<8x128xf32>
    %31 = math.exp %30 : vector<8x128xf32>
    %cst_25 = arith.constant 1.000000e+00 : f32
    %32 = vector.broadcast %cst_25 : f32 to vector<8x128xf32>
    %33 = arith.addf %32, %31 : vector<8x128xf32>
    %34 = arith.divf %32, %33 : vector<8x128xf32>
    %35 = vector.extract_strided_slice %22 {offsets = [0, 256], sizes = [8, 128], strides = [1, 1]} : vector<8x512xf32> to vector<8x128xf32>
    %36 = math.tanh %35 : vector<8x128xf32>
    %37 = vector.extract_strided_slice %22 {offsets = [0, 384], sizes = [8, 128], strides = [1, 1]} : vector<8x512xf32> to vector<8x128xf32>
    %38 = arith.negf %37 : vector<8x128xf32>
    %39 = math.exp %38 : vector<8x128xf32>
    %cst_26 = arith.constant 1.000000e+00 : f32
    %40 = vector.broadcast %cst_26 : f32 to vector<8x128xf32>
    %41 = arith.addf %40, %39 : vector<8x128xf32>
    %42 = arith.divf %40, %41 : vector<8x128xf32>
    %43 = arith.mulf %34, %15 : vector<8x128xf32>
    %44 = arith.mulf %28, %36 : vector<8x128xf32>
    %45 = arith.addf %43, %44 : vector<8x128xf32>
    %46 = math.tanh %45 : vector<8x128xf32>
    %47 = arith.mulf %42, %46 : vector<8x128xf32>
    %c0_27 = arith.constant 0 : index
    %c0_28 = arith.constant 0 : index
    %48 = vector.load %arg12[%c0_27, %c0_28] : memref<8x128xf32, #tpu.memory_space<vmem>>, vector<8x128xf32>
    tpu.vector_store %arg12[%c0_27, %c0_28], %47 {strides = array<i32>} : memref<8x128xf32, #tpu.memory_space<vmem>>, vector<8x128xf32>,
    %c0_29 = arith.constant 0 : index
    %c0_30 = arith.constant 0 : index
    %49 = vector.load %arg13[%c0_29, %c0_30] : memref<8x128xf32, #tpu.memory_space<vmem>>, vector<8x128xf32>
    tpu.vector_store %arg13[%c0_29, %c0_30], %45 {strides = array<i32>} : memref<8x128xf32, #tpu.memory_space<vmem>>, vector<8x128xf32>,
    %50 = arith.index_cast %c0_i32 : i32 to index
    %c0_31 = arith.constant 0 : index
    %c0_32 = arith.constant 0 : index
    %51 = vector.load %arg8[%50, %c0_31, %c0_32] : memref<8x8x128xf32, #tpu.memory_space<vmem>>, vector<1x8x128xf32>
    %52 = vector.shape_cast %51 : vector<1x8x128xf32> to vector<8x128xf32>
    %53 = vector.shape_cast %47 : vector<8x128xf32> to vector<1x8x128xf32>
    tpu.vector_store %arg8[%50, %c0_31, %c0_32], %53 {strides = array<i32>} : memref<8x8x128xf32, #tpu.memory_space<vmem>>, vector<1x8x128xf32>,
    %c1_i32 = arith.constant 1 : i32
    %c0_33 = arith.constant 0 : index
    %c0_34 = arith.constant 0 : index
    %54 = vector.load %arg12[%c0_33, %c0_34] : memref<8x128xf32, #tpu.memory_space<vmem>>, vector<8x128xf32>
    %c0_35 = arith.constant 0 : index
    %c0_36 = arith.constant 0 : index
    %55 = vector.load %arg13[%c0_35, %c0_36] : memref<8x128xf32, #tpu.memory_space<vmem>>, vector<8x128xf32>
    %56 = arith.index_cast %c1_i32 : i32 to index
    %c0_37 = arith.constant 0 : index
    %c0_38 = arith.constant 0 : index
    %57 = vector.load %arg11[%56, %c0_37, %c0_38] : memref<8x8x512xf32, #tpu.memory_space<vmem>>, vector<1x8x512xf32>
    %58 = vector.shape_cast %57 : vector<1x8x512xf32> to vector<8x512xf32>
    %59 = arith.truncf %54 : vector<8x128xf32> to vector<8x128xbf16>
    %c0_39 = arith.constant 0 : index
    %c0_40 = arith.constant 0 : index
    %60 = vector.load %arg3[%c0_39, %c0_40] : memref<128x512xbf16, #tpu.memory_space<vmem>>, vector<128x512xbf16>
    %cst_41 = arith.constant dense<0.000000e+00> : vector<8x512xf32>
    %61 = tpu.matmul %59, %60, %cst_41 {dimension_numbers = #tpu.dot_dimension_numbers<[1], [0], [0], [1], [0, 0, 1, 1], [], []>} : vector<8x128xbf16>, vector<128x512xbf16>, vector<8x512xf32> -> vector<8x512xf32>
    %62 = arith.addf %58, %61 : vector<8x512xf32>
    %63 = vector.extract_strided_slice %62 {offsets = [0, 0], sizes = [8, 128], strides = [1, 1]} : vector<8x512xf32> to vector<8x128xf32>
    %64 = arith.negf %63 : vector<8x128xf32>
    %65 = math.exp %64 : vector<8x128xf32>
    %cst_42 = arith.constant 1.000000e+00 : f32
    %66 = vector.broadcast %cst_42 : f32 to vector<8x128xf32>
    %67 = arith.addf %66, %65 : vector<8x128xf32>
    %68 = arith.divf %66, %67 : vector<8x128xf32>
    %69 = vector.extract_strided_slice %62 {offsets = [0, 128], sizes = [8, 128], strides = [1, 1]} : vector<8x512xf32> to vector<8x128xf32>
    %70 = arith.negf %69 : vector<8x128xf32>
    %71 = math.exp %70 : vector<8x128xf32>
    %cst_43 = arith.constant 1.000000e+00 : f32
    %72 = vector.broadcast %cst_43 : f32 to vector<8x128xf32>
    %73 = arith.addf %72, %71 : vector<8x128xf32>
    %74 = arith.divf %72, %73 : vector<8x128xf32>
    %75 = vector.extract_strided_slice %62 {offsets = [0, 256], sizes = [8, 128], strides = [1, 1]} : vector<8x512xf32> to vector<8x128xf32>
    %76 = math.tanh %75 : vector<8x128xf32>
    %77 = vector.extract_strided_slice %62 {offsets = [0, 384], sizes = [8, 128], strides = [1, 1]} : vector<8x512xf32> to vector<8x128xf32>
    %78 = arith.negf %77 : vector<8x128xf32>
    %79 = math.exp %78 : vector<8x128xf32>
    %cst_44 = arith.constant 1.000000e+00 : f32
    %80 = vector.broadcast %cst_44 : f32 to vector<8x128xf32>
    %81 = arith.addf %80, %79 : vector<8x128xf32>
    %82 = arith.divf %80, %81 : vector<8x128xf32>
    %83 = arith.mulf %74, %55 : vector<8x128xf32>
    %84 = arith.mulf %68, %76 : vector<8x128xf32>
    %85 = arith.addf %83, %84 : vector<8x128xf32>
    %86 = math.tanh %85 : vector<8x128xf32>
    %87 = arith.mulf %82, %86 : vector<8x128xf32>
    %c0_45 = arith.constant 0 : index
    %c0_46 = arith.constant 0 : index
    %88 = vector.load %arg12[%c0_45, %c0_46] : memref<8x128xf32, #tpu.memory_space<vmem>>, vector<8x128xf32>
    tpu.vector_store %arg12[%c0_45, %c0_46], %87 {strides = array<i32>} : memref<8x128xf32, #tpu.memory_space<vmem>>, vector<8x128xf32>,
    %c0_47 = arith.constant 0 : index
    %c0_48 = arith.constant 0 : index
    %89 = vector.load %arg13[%c0_47, %c0_48] : memref<8x128xf32, #tpu.memory_space<vmem>>, vector<8x128xf32>
    tpu.vector_store %arg13[%c0_47, %c0_48], %85 {strides = array<i32>} : memref<8x128xf32, #tpu.memory_space<vmem>>, vector<8x128xf32>,
    %90 = arith.index_cast %c1_i32 : i32 to index
    %c0_49 = arith.constant 0 : index
    %c0_50 = arith.constant 0 : index
    %91 = vector.load %arg8[%90, %c0_49, %c0_50] : memref<8x8x128xf32, #tpu.memory_space<vmem>>, vector<1x8x128xf32>
    %92 = vector.shape_cast %91 : vector<1x8x128xf32> to vector<8x128xf32>
    %93 = vector.shape_cast %87 : vector<8x128xf32> to vector<1x8x128xf32>
    tpu.vector_store %arg8[%90, %c0_49, %c0_50], %93 {strides = array<i32>} : memref<8x8x128xf32, #tpu.memory_space<vmem>>, vector<1x8x128xf32>,
    %c2_i32 = arith.constant 2 : i32
    %c0_51 = arith.constant 0 : index
    %c0_52 = arith.constant 0 : index
    %94 = vector.load %arg12[%c0_51, %c0_52] : memref<8x128xf32, #tpu.memory_space<vmem>>, vector<8x128xf32>
    %c0_53 = arith.constant 0 : index
    %c0_54 = arith.constant 0 : index
    %95 = vector.load %arg13[%c0_53, %c0_54] : memref<8x128xf32, #tpu.memory_space<vmem>>, vector<8x128xf32>
    %96 = arith.index_cast %c2_i32 : i32 to index
    %c0_55 = arith.constant 0 : index
    %c0_56 = arith.constant 0 : index
    %97 = vector.load %arg11[%96, %c0_55, %c0_56] : memref<8x8x512xf32, #tpu.memory_space<vmem>>, vector<1x8x512xf32>
    %98 = vector.shape_cast %97 : vector<1x8x512xf32> to vector<8x512xf32>
    %99 = arith.truncf %94 : vector<8x128xf32> to vector<8x128xbf16>
    %c0_57 = arith.constant 0 : index
    %c0_58 = arith.constant 0 : index
    %100 = vector.load %arg3[%c0_57, %c0_58] : memref<128x512xbf16, #tpu.memory_space<vmem>>, vector<128x512xbf16>
    %cst_59 = arith.constant dense<0.000000e+00> : vector<8x512xf32>
    %101 = tpu.matmul %99, %100, %cst_59 {dimension_numbers = #tpu.dot_dimension_numbers<[1], [0], [0], [1], [0, 0, 1, 1], [], []>} : vector<8x128xbf16>, vector<128x512xbf16>, vector<8x512xf32> -> vector<8x512xf32>
    %102 = arith.addf %98, %101 : vector<8x512xf32>
    %103 = vector.extract_strided_slice %102 {offsets = [0, 0], sizes = [8, 128], strides = [1, 1]} : vector<8x512xf32> to vector<8x128xf32>
    %104 = arith.negf %103 : vector<8x128xf32>
    %105 = math.exp %104 : vector<8x128xf32>
    %cst_60 = arith.constant 1.000000e+00 : f32
    %106 = vector.broadcast %cst_60 : f32 to vector<8x128xf32>
    %107 = arith.addf %106, %105 : vector<8x128xf32>
    %108 = arith.divf %106, %107 : vector<8x128xf32>
    %109 = vector.extract_strided_slice %102 {offsets = [0, 128], sizes = [8, 128], strides = [1, 1]} : vector<8x512xf32> to vector<8x128xf32>
    %110 = arith.negf %109 : vector<8x128xf32>
    %111 = math.exp %110 : vector<8x128xf32>
    %cst_61 = arith.constant 1.000000e+00 : f32
    %112 = vector.broadcast %cst_61 : f32 to vector<8x128xf32>
    %113 = arith.addf %112, %111 : vector<8x128xf32>
    %114 = arith.divf %112, %113 : vector<8x128xf32>
    %115 = vector.extract_strided_slice %102 {offsets = [0, 256], sizes = [8, 128], strides = [1, 1]} : vector<8x512xf32> to vector<8x128xf32>
    %116 = math.tanh %115 : vector<8x128xf32>
    %117 = vector.extract_strided_slice %102 {offsets = [0, 384], sizes = [8, 128], strides = [1, 1]} : vector<8x512xf32> to vector<8x128xf32>
    %118 = arith.negf %117 : vector<8x128xf32>
    %119 = math.exp %118 : vector<8x128xf32>
    %cst_62 = arith.constant 1.000000e+00 : f32
    %120 = vector.broadcast %cst_62 : f32 to vector<8x128xf32>
    %121 = arith.addf %120, %119 : vector<8x128xf32>
    %122 = arith.divf %120, %121 : vector<8x128xf32>
    %123 = arith.mulf %114, %95 : vector<8x128xf32>
    %124 = arith.mulf %108, %116 : vector<8x128xf32>
    %125 = arith.addf %123, %124 : vector<8x128xf32>
    %126 = math.tanh %125 : vector<8x128xf32>
    %127 = arith.mulf %122, %126 : vector<8x128xf32>
    %c0_63 = arith.constant 0 : index
    %c0_64 = arith.constant 0 : index
    %128 = vector.load %arg12[%c0_63, %c0_64] : memref<8x128xf32, #tpu.memory_space<vmem>>, vector<8x128xf32>
    tpu.vector_store %arg12[%c0_63, %c0_64], %127 {strides = array<i32>} : memref<8x128xf32, #tpu.memory_space<vmem>>, vector<8x128xf32>,
    %c0_65 = arith.constant 0 : index
    %c0_66 = arith.constant 0 : index
    %129 = vector.load %arg13[%c0_65, %c0_66] : memref<8x128xf32, #tpu.memory_space<vmem>>, vector<8x128xf32>
    tpu.vector_store %arg13[%c0_65, %c0_66], %125 {strides = array<i32>} : memref<8x128xf32, #tpu.memory_space<vmem>>, vector<8x128xf32>,
    %130 = arith.index_cast %c2_i32 : i32 to index
    %c0_67 = arith.constant 0 : index
    %c0_68 = arith.constant 0 : index
    %131 = vector.load %arg8[%130, %c0_67, %c0_68] : memref<8x8x128xf32, #tpu.memory_space<vmem>>, vector<1x8x128xf32>
    %132 = vector.shape_cast %131 : vector<1x8x128xf32> to vector<8x128xf32>
    %133 = vector.shape_cast %127 : vector<8x128xf32> to vector<1x8x128xf32>
    tpu.vector_store %arg8[%130, %c0_67, %c0_68], %133 {strides = array<i32>} : memref<8x8x128xf32, #tpu.memory_space<vmem>>, vector<1x8x128xf32>,
    %c3_i32 = arith.constant 3 : i32
    %c0_69 = arith.constant 0 : index
    %c0_70 = arith.constant 0 : index
    %134 = vector.load %arg12[%c0_69, %c0_70] : memref<8x128xf32, #tpu.memory_space<vmem>>, vector<8x128xf32>
    %c0_71 = arith.constant 0 : index
    %c0_72 = arith.constant 0 : index
    %135 = vector.load %arg13[%c0_71, %c0_72] : memref<8x128xf32, #tpu.memory_space<vmem>>, vector<8x128xf32>
    %136 = arith.index_cast %c3_i32 : i32 to index
    %c0_73 = arith.constant 0 : index
    %c0_74 = arith.constant 0 : index
    %137 = vector.load %arg11[%136, %c0_73, %c0_74] : memref<8x8x512xf32, #tpu.memory_space<vmem>>, vector<1x8x512xf32>
    %138 = vector.shape_cast %137 : vector<1x8x512xf32> to vector<8x512xf32>
    %139 = arith.truncf %134 : vector<8x128xf32> to vector<8x128xbf16>
    %c0_75 = arith.constant 0 : index
    %c0_76 = arith.constant 0 : index
    %140 = vector.load %arg3[%c0_75, %c0_76] : memref<128x512xbf16, #tpu.memory_space<vmem>>, vector<128x512xbf16>
    %cst_77 = arith.constant dense<0.000000e+00> : vector<8x512xf32>
    %141 = tpu.matmul %139, %140, %cst_77 {dimension_numbers = #tpu.dot_dimension_numbers<[1], [0], [0], [1], [0, 0, 1, 1], [], []>} : vector<8x128xbf16>, vector<128x512xbf16>, vector<8x512xf32> -> vector<8x512xf32>
    %142 = arith.addf %138, %141 : vector<8x512xf32>
    %143 = vector.extract_strided_slice %142 {offsets = [0, 0], sizes = [8, 128], strides = [1, 1]} : vector<8x512xf32> to vector<8x128xf32>
    %144 = arith.negf %143 : vector<8x128xf32>
    %145 = math.exp %144 : vector<8x128xf32>
    %cst_78 = arith.constant 1.000000e+00 : f32
    %146 = vector.broadcast %cst_78 : f32 to vector<8x128xf32>
    %147 = arith.addf %146, %145 : vector<8x128xf32>
    %148 = arith.divf %146, %147 : vector<8x128xf32>
    %149 = vector.extract_strided_slice %142 {offsets = [0, 128], sizes = [8, 128], strides = [1, 1]} : vector<8x512xf32> to vector<8x128xf32>
    %150 = arith.negf %149 : vector<8x128xf32>
    %151 = math.exp %150 : vector<8x128xf32>
    %cst_79 = arith.constant 1.000000e+00 : f32
    %152 = vector.broadcast %cst_79 : f32 to vector<8x128xf32>
    %153 = arith.addf %152, %151 : vector<8x128xf32>
    %154 = arith.divf %152, %153 : vector<8x128xf32>
    %155 = vector.extract_strided_slice %142 {offsets = [0, 256], sizes = [8, 128], strides = [1, 1]} : vector<8x512xf32> to vector<8x128xf32>
    %156 = math.tanh %155 : vector<8x128xf32>
    %157 = vector.extract_strided_slice %142 {offsets = [0, 384], sizes = [8, 128], strides = [1, 1]} : vector<8x512xf32> to vector<8x128xf32>
    %158 = arith.negf %157 : vector<8x128xf32>
    %159 = math.exp %158 : vector<8x128xf32>
    %cst_80 = arith.constant 1.000000e+00 : f32
    %160 = vector.broadcast %cst_80 : f32 to vector<8x128xf32>
    %161 = arith.addf %160, %159 : vector<8x128xf32>
    %162 = arith.divf %160, %161 : vector<8x128xf32>
    %163 = arith.mulf %154, %135 : vector<8x128xf32>
    %164 = arith.mulf %148, %156 : vector<8x128xf32>
    %165 = arith.addf %163, %164 : vector<8x128xf32>
    %166 = math.tanh %165 : vector<8x128xf32>
    %167 = arith.mulf %162, %166 : vector<8x128xf32>
    %c0_81 = arith.constant 0 : index
    %c0_82 = arith.constant 0 : index
    %168 = vector.load %arg12[%c0_81, %c0_82] : memref<8x128xf32, #tpu.memory_space<vmem>>, vector<8x128xf32>
    tpu.vector_store %arg12[%c0_81, %c0_82], %167 {strides = array<i32>} : memref<8x128xf32, #tpu.memory_space<vmem>>, vector<8x128xf32>,
    %c0_83 = arith.constant 0 : index
    %c0_84 = arith.constant 0 : index
    %169 = vector.load %arg13[%c0_83, %c0_84] : memref<8x128xf32, #tpu.memory_space<vmem>>, vector<8x128xf32>
    tpu.vector_store %arg13[%c0_83, %c0_84], %165 {strides = array<i32>} : memref<8x128xf32, #tpu.memory_space<vmem>>, vector<8x128xf32>,
    %170 = arith.index_cast %c3_i32 : i32 to index
    %c0_85 = arith.constant 0 : index
    %c0_86 = arith.constant 0 : index
    %171 = vector.load %arg8[%170, %c0_85, %c0_86] : memref<8x8x128xf32, #tpu.memory_space<vmem>>, vector<1x8x128xf32>
    %172 = vector.shape_cast %171 : vector<1x8x128xf32> to vector<8x128xf32>
    %173 = vector.shape_cast %167 : vector<8x128xf32> to vector<1x8x128xf32>
    tpu.vector_store %arg8[%170, %c0_85, %c0_86], %173 {strides = array<i32>} : memref<8x8x128xf32, #tpu.memory_space<vmem>>, vector<1x8x128xf32>,
    %c4_i32 = arith.constant 4 : i32
    %c0_87 = arith.constant 0 : index
    %c0_88 = arith.constant 0 : index
    %174 = vector.load %arg12[%c0_87, %c0_88] : memref<8x128xf32, #tpu.memory_space<vmem>>, vector<8x128xf32>
    %c0_89 = arith.constant 0 : index
    %c0_90 = arith.constant 0 : index
    %175 = vector.load %arg13[%c0_89, %c0_90] : memref<8x128xf32, #tpu.memory_space<vmem>>, vector<8x128xf32>
    %176 = arith.index_cast %c4_i32 : i32 to index
    %c0_91 = arith.constant 0 : index
    %c0_92 = arith.constant 0 : index
    %177 = vector.load %arg11[%176, %c0_91, %c0_92] : memref<8x8x512xf32, #tpu.memory_space<vmem>>, vector<1x8x512xf32>
    %178 = vector.shape_cast %177 : vector<1x8x512xf32> to vector<8x512xf32>
    %179 = arith.truncf %174 : vector<8x128xf32> to vector<8x128xbf16>
    %c0_93 = arith.constant 0 : index
    %c0_94 = arith.constant 0 : index
    %180 = vector.load %arg3[%c0_93, %c0_94] : memref<128x512xbf16, #tpu.memory_space<vmem>>, vector<128x512xbf16>
    %cst_95 = arith.constant dense<0.000000e+00> : vector<8x512xf32>
    %181 = tpu.matmul %179, %180, %cst_95 {dimension_numbers = #tpu.dot_dimension_numbers<[1], [0], [0], [1], [0, 0, 1, 1], [], []>} : vector<8x128xbf16>, vector<128x512xbf16>, vector<8x512xf32> -> vector<8x512xf32>
    %182 = arith.addf %178, %181 : vector<8x512xf32>
    %183 = vector.extract_strided_slice %182 {offsets = [0, 0], sizes = [8, 128], strides = [1, 1]} : vector<8x512xf32> to vector<8x128xf32>
    %184 = arith.negf %183 : vector<8x128xf32>
    %185 = math.exp %184 : vector<8x128xf32>
    %cst_96 = arith.constant 1.000000e+00 : f32
    %186 = vector.broadcast %cst_96 : f32 to vector<8x128xf32>
    %187 = arith.addf %186, %185 : vector<8x128xf32>
    %188 = arith.divf %186, %187 : vector<8x128xf32>
    %189 = vector.extract_strided_slice %182 {offsets = [0, 128], sizes = [8, 128], strides = [1, 1]} : vector<8x512xf32> to vector<8x128xf32>
    %190 = arith.negf %189 : vector<8x128xf32>
    %191 = math.exp %190 : vector<8x128xf32>
    %cst_97 = arith.constant 1.000000e+00 : f32
    %192 = vector.broadcast %cst_97 : f32 to vector<8x128xf32>
    %193 = arith.addf %192, %191 : vector<8x128xf32>
    %194 = arith.divf %192, %193 : vector<8x128xf32>
    %195 = vector.extract_strided_slice %182 {offsets = [0, 256], sizes = [8, 128], strides = [1, 1]} : vector<8x512xf32> to vector<8x128xf32>
    %196 = math.tanh %195 : vector<8x128xf32>
    %197 = vector.extract_strided_slice %182 {offsets = [0, 384], sizes = [8, 128], strides = [1, 1]} : vector<8x512xf32> to vector<8x128xf32>
    %198 = arith.negf %197 : vector<8x128xf32>
    %199 = math.exp %198 : vector<8x128xf32>
    %cst_98 = arith.constant 1.000000e+00 : f32
    %200 = vector.broadcast %cst_98 : f32 to vector<8x128xf32>
    %201 = arith.addf %200, %199 : vector<8x128xf32>
    %202 = arith.divf %200, %201 : vector<8x128xf32>
    %203 = arith.mulf %194, %175 : vector<8x128xf32>
    %204 = arith.mulf %188, %196 : vector<8x128xf32>
    %205 = arith.addf %203, %204 : vector<8x128xf32>
    %206 = math.tanh %205 : vector<8x128xf32>
    %207 = arith.mulf %202, %206 : vector<8x128xf32>
    %c0_99 = arith.constant 0 : index
    %c0_100 = arith.constant 0 : index
    %208 = vector.load %arg12[%c0_99, %c0_100] : memref<8x128xf32, #tpu.memory_space<vmem>>, vector<8x128xf32>
    tpu.vector_store %arg12[%c0_99, %c0_100], %207 {strides = array<i32>} : memref<8x128xf32, #tpu.memory_space<vmem>>, vector<8x128xf32>,
    %c0_101 = arith.constant 0 : index
    %c0_102 = arith.constant 0 : index
    %209 = vector.load %arg13[%c0_101, %c0_102] : memref<8x128xf32, #tpu.memory_space<vmem>>, vector<8x128xf32>
    tpu.vector_store %arg13[%c0_101, %c0_102], %205 {strides = array<i32>} : memref<8x128xf32, #tpu.memory_space<vmem>>, vector<8x128xf32>,
    %210 = arith.index_cast %c4_i32 : i32 to index
    %c0_103 = arith.constant 0 : index
    %c0_104 = arith.constant 0 : index
    %211 = vector.load %arg8[%210, %c0_103, %c0_104] : memref<8x8x128xf32, #tpu.memory_space<vmem>>, vector<1x8x128xf32>
    %212 = vector.shape_cast %211 : vector<1x8x128xf32> to vector<8x128xf32>
    %213 = vector.shape_cast %207 : vector<8x128xf32> to vector<1x8x128xf32>
    tpu.vector_store %arg8[%210, %c0_103, %c0_104], %213 {strides = array<i32>} : memref<8x8x128xf32, #tpu.memory_space<vmem>>, vector<1x8x128xf32>,
    %c5_i32 = arith.constant 5 : i32
    %c0_105 = arith.constant 0 : index
    %c0_106 = arith.constant 0 : index
    %214 = vector.load %arg12[%c0_105, %c0_106] : memref<8x128xf32, #tpu.memory_space<vmem>>, vector<8x128xf32>
    %c0_107 = arith.constant 0 : index
    %c0_108 = arith.constant 0 : index
    %215 = vector.load %arg13[%c0_107, %c0_108] : memref<8x128xf32, #tpu.memory_space<vmem>>, vector<8x128xf32>
    %216 = arith.index_cast %c5_i32 : i32 to index
    %c0_109 = arith.constant 0 : index
    %c0_110 = arith.constant 0 : index
    %217 = vector.load %arg11[%216, %c0_109, %c0_110] : memref<8x8x512xf32, #tpu.memory_space<vmem>>, vector<1x8x512xf32>
    %218 = vector.shape_cast %217 : vector<1x8x512xf32> to vector<8x512xf32>
    %219 = arith.truncf %214 : vector<8x128xf32> to vector<8x128xbf16>
    %c0_111 = arith.constant 0 : index
    %c0_112 = arith.constant 0 : index
    %220 = vector.load %arg3[%c0_111, %c0_112] : memref<128x512xbf16, #tpu.memory_space<vmem>>, vector<128x512xbf16>
    %cst_113 = arith.constant dense<0.000000e+00> : vector<8x512xf32>
    %221 = tpu.matmul %219, %220, %cst_113 {dimension_numbers = #tpu.dot_dimension_numbers<[1], [0], [0], [1], [0, 0, 1, 1], [], []>} : vector<8x128xbf16>, vector<128x512xbf16>, vector<8x512xf32> -> vector<8x512xf32>
    %222 = arith.addf %218, %221 : vector<8x512xf32>
    %223 = vector.extract_strided_slice %222 {offsets = [0, 0], sizes = [8, 128], strides = [1, 1]} : vector<8x512xf32> to vector<8x128xf32>
    %224 = arith.negf %223 : vector<8x128xf32>
    %225 = math.exp %224 : vector<8x128xf32>
    %cst_114 = arith.constant 1.000000e+00 : f32
    %226 = vector.broadcast %cst_114 : f32 to vector<8x128xf32>
    %227 = arith.addf %226, %225 : vector<8x128xf32>
    %228 = arith.divf %226, %227 : vector<8x128xf32>
    %229 = vector.extract_strided_slice %222 {offsets = [0, 128], sizes = [8, 128], strides = [1, 1]} : vector<8x512xf32> to vector<8x128xf32>
    %230 = arith.negf %229 : vector<8x128xf32>
    %231 = math.exp %230 : vector<8x128xf32>
    %cst_115 = arith.constant 1.000000e+00 : f32
    %232 = vector.broadcast %cst_115 : f32 to vector<8x128xf32>
    %233 = arith.addf %232, %231 : vector<8x128xf32>
    %234 = arith.divf %232, %233 : vector<8x128xf32>
    %235 = vector.extract_strided_slice %222 {offsets = [0, 256], sizes = [8, 128], strides = [1, 1]} : vector<8x512xf32> to vector<8x128xf32>
    %236 = math.tanh %235 : vector<8x128xf32>
    %237 = vector.extract_strided_slice %222 {offsets = [0, 384], sizes = [8, 128], strides = [1, 1]} : vector<8x512xf32> to vector<8x128xf32>
    %238 = arith.negf %237 : vector<8x128xf32>
    %239 = math.exp %238 : vector<8x128xf32>
    %cst_116 = arith.constant 1.000000e+00 : f32
    %240 = vector.broadcast %cst_116 : f32 to vector<8x128xf32>
    %241 = arith.addf %240, %239 : vector<8x128xf32>
    %242 = arith.divf %240, %241 : vector<8x128xf32>
    %243 = arith.mulf %234, %215 : vector<8x128xf32>
    %244 = arith.mulf %228, %236 : vector<8x128xf32>
    %245 = arith.addf %243, %244 : vector<8x128xf32>
    %246 = math.tanh %245 : vector<8x128xf32>
    %247 = arith.mulf %242, %246 : vector<8x128xf32>
    %c0_117 = arith.constant 0 : index
    %c0_118 = arith.constant 0 : index
    %248 = vector.load %arg12[%c0_117, %c0_118] : memref<8x128xf32, #tpu.memory_space<vmem>>, vector<8x128xf32>
    tpu.vector_store %arg12[%c0_117, %c0_118], %247 {strides = array<i32>} : memref<8x128xf32, #tpu.memory_space<vmem>>, vector<8x128xf32>,
    %c0_119 = arith.constant 0 : index
    %c0_120 = arith.constant 0 : index
    %249 = vector.load %arg13[%c0_119, %c0_120] : memref<8x128xf32, #tpu.memory_space<vmem>>, vector<8x128xf32>
    tpu.vector_store %arg13[%c0_119, %c0_120], %245 {strides = array<i32>} : memref<8x128xf32, #tpu.memory_space<vmem>>, vector<8x128xf32>,
    %250 = arith.index_cast %c5_i32 : i32 to index
    %c0_121 = arith.constant 0 : index
    %c0_122 = arith.constant 0 : index
    %251 = vector.load %arg8[%250, %c0_121, %c0_122] : memref<8x8x128xf32, #tpu.memory_space<vmem>>, vector<1x8x128xf32>
    %252 = vector.shape_cast %251 : vector<1x8x128xf32> to vector<8x128xf32>
    %253 = vector.shape_cast %247 : vector<8x128xf32> to vector<1x8x128xf32>
    tpu.vector_store %arg8[%250, %c0_121, %c0_122], %253 {strides = array<i32>} : memref<8x8x128xf32, #tpu.memory_space<vmem>>, vector<1x8x128xf32>,
    %c6_i32 = arith.constant 6 : i32
    %c0_123 = arith.constant 0 : index
    %c0_124 = arith.constant 0 : index
    %254 = vector.load %arg12[%c0_123, %c0_124] : memref<8x128xf32, #tpu.memory_space<vmem>>, vector<8x128xf32>
    %c0_125 = arith.constant 0 : index
    %c0_126 = arith.constant 0 : index
    %255 = vector.load %arg13[%c0_125, %c0_126] : memref<8x128xf32, #tpu.memory_space<vmem>>, vector<8x128xf32>
    %256 = arith.index_cast %c6_i32 : i32 to index
    %c0_127 = arith.constant 0 : index
    %c0_128 = arith.constant 0 : index
    %257 = vector.load %arg11[%256, %c0_127, %c0_128] : memref<8x8x512xf32, #tpu.memory_space<vmem>>, vector<1x8x512xf32>
    %258 = vector.shape_cast %257 : vector<1x8x512xf32> to vector<8x512xf32>
    %259 = arith.truncf %254 : vector<8x128xf32> to vector<8x128xbf16>
    %c0_129 = arith.constant 0 : index
    %c0_130 = arith.constant 0 : index
    %260 = vector.load %arg3[%c0_129, %c0_130] : memref<128x512xbf16, #tpu.memory_space<vmem>>, vector<128x512xbf16>
    %cst_131 = arith.constant dense<0.000000e+00> : vector<8x512xf32>
    %261 = tpu.matmul %259, %260, %cst_131 {dimension_numbers = #tpu.dot_dimension_numbers<[1], [0], [0], [1], [0, 0, 1, 1], [], []>} : vector<8x128xbf16>, vector<128x512xbf16>, vector<8x512xf32> -> vector<8x512xf32>
    %262 = arith.addf %258, %261 : vector<8x512xf32>
    %263 = vector.extract_strided_slice %262 {offsets = [0, 0], sizes = [8, 128], strides = [1, 1]} : vector<8x512xf32> to vector<8x128xf32>
    %264 = arith.negf %263 : vector<8x128xf32>
    %265 = math.exp %264 : vector<8x128xf32>
    %cst_132 = arith.constant 1.000000e+00 : f32
    %266 = vector.broadcast %cst_132 : f32 to vector<8x128xf32>
    %267 = arith.addf %266, %265 : vector<8x128xf32>
    %268 = arith.divf %266, %267 : vector<8x128xf32>
    %269 = vector.extract_strided_slice %262 {offsets = [0, 128], sizes = [8, 128], strides = [1, 1]} : vector<8x512xf32> to vector<8x128xf32>
    %270 = arith.negf %269 : vector<8x128xf32>
    %271 = math.exp %270 : vector<8x128xf32>
    %cst_133 = arith.constant 1.000000e+00 : f32
    %272 = vector.broadcast %cst_133 : f32 to vector<8x128xf32>
    %273 = arith.addf %272, %271 : vector<8x128xf32>
    %274 = arith.divf %272, %273 : vector<8x128xf32>
    %275 = vector.extract_strided_slice %262 {offsets = [0, 256], sizes = [8, 128], strides = [1, 1]} : vector<8x512xf32> to vector<8x128xf32>
    %276 = math.tanh %275 : vector<8x128xf32>
    %277 = vector.extract_strided_slice %262 {offsets = [0, 384], sizes = [8, 128], strides = [1, 1]} : vector<8x512xf32> to vector<8x128xf32>
    %278 = arith.negf %277 : vector<8x128xf32>
    %279 = math.exp %278 : vector<8x128xf32>
    %cst_134 = arith.constant 1.000000e+00 : f32
    %280 = vector.broadcast %cst_134 : f32 to vector<8x128xf32>
    %281 = arith.addf %280, %279 : vector<8x128xf32>
    %282 = arith.divf %280, %281 : vector<8x128xf32>
    %283 = arith.mulf %274, %255 : vector<8x128xf32>
    %284 = arith.mulf %268, %276 : vector<8x128xf32>
    %285 = arith.addf %283, %284 : vector<8x128xf32>
    %286 = math.tanh %285 : vector<8x128xf32>
    %287 = arith.mulf %282, %286 : vector<8x128xf32>
    %c0_135 = arith.constant 0 : index
    %c0_136 = arith.constant 0 : index
    %288 = vector.load %arg12[%c0_135, %c0_136] : memref<8x128xf32, #tpu.memory_space<vmem>>, vector<8x128xf32>
    tpu.vector_store %arg12[%c0_135, %c0_136], %287 {strides = array<i32>} : memref<8x128xf32, #tpu.memory_space<vmem>>, vector<8x128xf32>,
    %c0_137 = arith.constant 0 : index
    %c0_138 = arith.constant 0 : index
    %289 = vector.load %arg13[%c0_137, %c0_138] : memref<8x128xf32, #tpu.memory_space<vmem>>, vector<8x128xf32>
    tpu.vector_store %arg13[%c0_137, %c0_138], %285 {strides = array<i32>} : memref<8x128xf32, #tpu.memory_space<vmem>>, vector<8x128xf32>,
    %290 = arith.index_cast %c6_i32 : i32 to index
    %c0_139 = arith.constant 0 : index
    %c0_140 = arith.constant 0 : index
    %291 = vector.load %arg8[%290, %c0_139, %c0_140] : memref<8x8x128xf32, #tpu.memory_space<vmem>>, vector<1x8x128xf32>
    %292 = vector.shape_cast %291 : vector<1x8x128xf32> to vector<8x128xf32>
    %293 = vector.shape_cast %287 : vector<8x128xf32> to vector<1x8x128xf32>
    tpu.vector_store %arg8[%290, %c0_139, %c0_140], %293 {strides = array<i32>} : memref<8x8x128xf32, #tpu.memory_space<vmem>>, vector<1x8x128xf32>,
    %c7_i32 = arith.constant 7 : i32
    %c0_141 = arith.constant 0 : index
    %c0_142 = arith.constant 0 : index
    %294 = vector.load %arg12[%c0_141, %c0_142] : memref<8x128xf32, #tpu.memory_space<vmem>>, vector<8x128xf32>
    %c0_143 = arith.constant 0 : index
    %c0_144 = arith.constant 0 : index
    %295 = vector.load %arg13[%c0_143, %c0_144] : memref<8x128xf32, #tpu.memory_space<vmem>>, vector<8x128xf32>
    %296 = arith.index_cast %c7_i32 : i32 to index
    %c0_145 = arith.constant 0 : index
    %c0_146 = arith.constant 0 : index
    %297 = vector.load %arg11[%296, %c0_145, %c0_146] : memref<8x8x512xf32, #tpu.memory_space<vmem>>, vector<1x8x512xf32>
    %298 = vector.shape_cast %297 : vector<1x8x512xf32> to vector<8x512xf32>
    %299 = arith.truncf %294 : vector<8x128xf32> to vector<8x128xbf16>
    %c0_147 = arith.constant 0 : index
    %c0_148 = arith.constant 0 : index
    %300 = vector.load %arg3[%c0_147, %c0_148] : memref<128x512xbf16, #tpu.memory_space<vmem>>, vector<128x512xbf16>
    %cst_149 = arith.constant dense<0.000000e+00> : vector<8x512xf32>
    %301 = tpu.matmul %299, %300, %cst_149 {dimension_numbers = #tpu.dot_dimension_numbers<[1], [0], [0], [1], [0, 0, 1, 1], [], []>} : vector<8x128xbf16>, vector<128x512xbf16>, vector<8x512xf32> -> vector<8x512xf32>
    %302 = arith.addf %298, %301 : vector<8x512xf32>
    %303 = vector.extract_strided_slice %302 {offsets = [0, 0], sizes = [8, 128], strides = [1, 1]} : vector<8x512xf32> to vector<8x128xf32>
    %304 = arith.negf %303 : vector<8x128xf32>
    %305 = math.exp %304 : vector<8x128xf32>
    %cst_150 = arith.constant 1.000000e+00 : f32
    %306 = vector.broadcast %cst_150 : f32 to vector<8x128xf32>
    %307 = arith.addf %306, %305 : vector<8x128xf32>
    %308 = arith.divf %306, %307 : vector<8x128xf32>
    %309 = vector.extract_strided_slice %302 {offsets = [0, 128], sizes = [8, 128], strides = [1, 1]} : vector<8x512xf32> to vector<8x128xf32>
    %310 = arith.negf %309 : vector<8x128xf32>
    %311 = math.exp %310 : vector<8x128xf32>
    %cst_151 = arith.constant 1.000000e+00 : f32
    %312 = vector.broadcast %cst_151 : f32 to vector<8x128xf32>
    %313 = arith.addf %312, %311 : vector<8x128xf32>
    %314 = arith.divf %312, %313 : vector<8x128xf32>
    %315 = vector.extract_strided_slice %302 {offsets = [0, 256], sizes = [8, 128], strides = [1, 1]} : vector<8x512xf32> to vector<8x128xf32>
    %316 = math.tanh %315 : vector<8x128xf32>
    %317 = vector.extract_strided_slice %302 {offsets = [0, 384], sizes = [8, 128], strides = [1, 1]} : vector<8x512xf32> to vector<8x128xf32>
    %318 = arith.negf %317 : vector<8x128xf32>
    %319 = math.exp %318 : vector<8x128xf32>
    %cst_152 = arith.constant 1.000000e+00 : f32
    %320 = vector.broadcast %cst_152 : f32 to vector<8x128xf32>
    %321 = arith.addf %320, %319 : vector<8x128xf32>
    %322 = arith.divf %320, %321 : vector<8x128xf32>
    %323 = arith.mulf %314, %295 : vector<8x128xf32>
    %324 = arith.mulf %308, %316 : vector<8x128xf32>
    %325 = arith.addf %323, %324 : vector<8x128xf32>
    %326 = math.tanh %325 : vector<8x128xf32>
    %327 = arith.mulf %322, %326 : vector<8x128xf32>
    %c0_153 = arith.constant 0 : index
    %c0_154 = arith.constant 0 : index
    %328 = vector.load %arg12[%c0_153, %c0_154] : memref<8x128xf32, #tpu.memory_space<vmem>>, vector<8x128xf32>
    tpu.vector_store %arg12[%c0_153, %c0_154], %327 {strides = array<i32>} : memref<8x128xf32, #tpu.memory_space<vmem>>, vector<8x128xf32>,
    %c0_155 = arith.constant 0 : index
    %c0_156 = arith.constant 0 : index
    %329 = vector.load %arg13[%c0_155, %c0_156] : memref<8x128xf32, #tpu.memory_space<vmem>>, vector<8x128xf32>
    tpu.vector_store %arg13[%c0_155, %c0_156], %325 {strides = array<i32>} : memref<8x128xf32, #tpu.memory_space<vmem>>, vector<8x128xf32>,
    %330 = arith.index_cast %c7_i32 : i32 to index
    %c0_157 = arith.constant 0 : index
    %c0_158 = arith.constant 0 : index
    %331 = vector.load %arg8[%330, %c0_157, %c0_158] : memref<8x8x128xf32, #tpu.memory_space<vmem>>, vector<1x8x128xf32>
    %332 = vector.shape_cast %331 : vector<1x8x128xf32> to vector<8x128xf32>
    %333 = vector.shape_cast %327 : vector<8x128xf32> to vector<1x8x128xf32>
    tpu.vector_store %arg8[%330, %c0_157, %c0_158], %333 {strides = array<i32>} : memref<8x8x128xf32, #tpu.memory_space<vmem>>, vector<1x8x128xf32>,
    %c8_i32 = arith.constant 8 : i32
    %c0_159 = arith.constant 0 : index
    %c0_160 = arith.constant 0 : index
    %334 = vector.load %arg12[%c0_159, %c0_160] : memref<8x128xf32, #tpu.memory_space<vmem>>, vector<8x128xf32>
    %c0_161 = arith.constant 0 : index
    %c0_162 = arith.constant 0 : index
    %c0_163 = arith.constant 0 : index
    %335 = vector.load %arg9[%c0_161, %c0_162, %c0_163] : memref<2x8x128xf32, #tpu.memory_space<vmem>>, vector<1x8x128xf32>
    %336 = vector.shape_cast %335 : vector<1x8x128xf32> to vector<8x128xf32>
    %337 = vector.shape_cast %334 : vector<8x128xf32> to vector<1x8x128xf32>
    tpu.vector_store %arg9[%c0_161, %c0_162, %c0_163], %337 {strides = array<i32>} : memref<2x8x128xf32, #tpu.memory_space<vmem>>, vector<1x8x128xf32>,
    %c0_164 = arith.constant 0 : index
    %c0_165 = arith.constant 0 : index
    %338 = vector.load %arg13[%c0_164, %c0_165] : memref<8x128xf32, #tpu.memory_space<vmem>>, vector<8x128xf32>
    %c0_166 = arith.constant 0 : index
    %c0_167 = arith.constant 0 : index
    %c0_168 = arith.constant 0 : index
    %339 = vector.load %arg10[%c0_166, %c0_167, %c0_168] : memref<2x8x128xf32, #tpu.memory_space<vmem>>, vector<1x8x128xf32>
    %340 = vector.shape_cast %339 : vector<1x8x128xf32> to vector<8x128xf32>
    %341 = vector.shape_cast %338 : vector<8x128xf32> to vector<1x8x128xf32>
    tpu.vector_store %arg10[%c0_166, %c0_167, %c0_168], %341 {strides = array<i32>} : memref<2x8x128xf32, #tpu.memory_space<vmem>>, vector<1x8x128xf32>,
    %c0_169 = arith.constant 0 : index
    %c0_170 = arith.constant 0 : index
    %c0_171 = arith.constant 0 : index
    %342 = vector.load %arg8[%c0_169, %c0_170, %c0_171] : memref<8x8x128xf32, #tpu.memory_space<vmem>>, vector<8x8x128xf32>
    %343 = vector.shape_cast %342 : vector<8x8x128xf32> to vector<64x128xf32>
    %344 = arith.truncf %343 : vector<64x128xf32> to vector<64x128xbf16>
    %c0_172 = arith.constant 0 : index
    %c0_173 = arith.constant 0 : index
    %345 = vector.load %arg5[%c0_172, %c0_173] : memref<128x512xbf16, #tpu.memory_space<vmem>>, vector<128x512xbf16>
    %cst_174 = arith.constant dense<0.000000e+00> : vector<64x512xf32>
    %346 = tpu.matmul %344, %345, %cst_174 {dimension_numbers = #tpu.dot_dimension_numbers<[1], [0], [0], [1], [0, 0, 1, 1], [], []>} : vector<64x128xbf16>, vector<128x512xbf16>, vector<64x512xf32> -> vector<64x512xf32>
    %c0_175 = arith.constant 0 : index
    %c0_176 = arith.constant 0 : index
    %347 = vector.load %arg7[%c0_175, %c0_176] : memref<1x512xf32, #tpu.memory_space<vmem>>, vector<1x512xf32>
    %348 = vector.broadcast %347 : vector<1x512xf32> to vector<64x512xf32>
    %349 = arith.addf %346, %348 : vector<64x512xf32>
    %350 = vector.shape_cast %349 : vector<64x512xf32> to vector<8x8x512xf32>
    %c0_177 = arith.constant 0 : index
    %c0_178 = arith.constant 0 : index
    %c0_179 = arith.constant 0 : index
    %351 = vector.load %arg11[%c0_177, %c0_178, %c0_179] : memref<8x8x512xf32, #tpu.memory_space<vmem>>, vector<8x8x512xf32>
    tpu.vector_store %arg11[%c0_177, %c0_178, %c0_179], %350 {strides = array<i32>} : memref<8x8x512xf32, #tpu.memory_space<vmem>>, vector<8x8x512xf32>,
    %cst_180 = arith.constant 0.000000e+00 : f32
    %352 = vector.broadcast %cst_180 : f32 to vector<8x128xf32>
    %c0_181 = arith.constant 0 : index
    %c0_182 = arith.constant 0 : index
    %353 = vector.load %arg12[%c0_181, %c0_182] : memref<8x128xf32, #tpu.memory_space<vmem>>, vector<8x128xf32>
    tpu.vector_store %arg12[%c0_181, %c0_182], %352 {strides = array<i32>} : memref<8x128xf32, #tpu.memory_space<vmem>>, vector<8x128xf32>,
    %cst_183 = arith.constant 0.000000e+00 : f32
    %354 = vector.broadcast %cst_183 : f32 to vector<8x128xf32>
    %c0_184 = arith.constant 0 : index
    %c0_185 = arith.constant 0 : index
    %355 = vector.load %arg13[%c0_184, %c0_185] : memref<8x128xf32, #tpu.memory_space<vmem>>, vector<8x128xf32>
    tpu.vector_store %arg13[%c0_184, %c0_185], %354 {strides = array<i32>} : memref<8x128xf32, #tpu.memory_space<vmem>>, vector<8x128xf32>,
    %c0_i32_186 = arith.constant 0 : i32
    %c0_187 = arith.constant 0 : index
    %c0_188 = arith.constant 0 : index
    %356 = vector.load %arg12[%c0_187, %c0_188] : memref<8x128xf32, #tpu.memory_space<vmem>>, vector<8x128xf32>
    %c0_189 = arith.constant 0 : index
    %c0_190 = arith.constant 0 : index
    %357 = vector.load %arg13[%c0_189, %c0_190] : memref<8x128xf32, #tpu.memory_space<vmem>>, vector<8x128xf32>
    %358 = arith.index_cast %c0_i32_186 : i32 to index
    %c0_191 = arith.constant 0 : index
    %c0_192 = arith.constant 0 : index
    %359 = vector.load %arg11[%358, %c0_191, %c0_192] : memref<8x8x512xf32, #tpu.memory_space<vmem>>, vector<1x8x512xf32>
    %360 = vector.shape_cast %359 : vector<1x8x512xf32> to vector<8x512xf32>
    %361 = arith.truncf %356 : vector<8x128xf32> to vector<8x128xbf16>
    %c0_193 = arith.constant 0 : index
    %c0_194 = arith.constant 0 : index
    %362 = vector.load %arg6[%c0_193, %c0_194] : memref<128x512xbf16, #tpu.memory_space<vmem>>, vector<128x512xbf16>
    %cst_195 = arith.constant dense<0.000000e+00> : vector<8x512xf32>
    %363 = tpu.matmul %361, %362, %cst_195 {dimension_numbers = #tpu.dot_dimension_numbers<[1], [0], [0], [1], [0, 0, 1, 1], [], []>} : vector<8x128xbf16>, vector<128x512xbf16>, vector<8x512xf32> -> vector<8x512xf32>
    %364 = arith.addf %360, %363 : vector<8x512xf32>
    %365 = vector.extract_strided_slice %364 {offsets = [0, 0], sizes = [8, 128], strides = [1, 1]} : vector<8x512xf32> to vector<8x128xf32>
    %366 = arith.negf %365 : vector<8x128xf32>
    %367 = math.exp %366 : vector<8x128xf32>
    %cst_196 = arith.constant 1.000000e+00 : f32
    %368 = vector.broadcast %cst_196 : f32 to vector<8x128xf32>
    %369 = arith.addf %368, %367 : vector<8x128xf32>
    %370 = arith.divf %368, %369 : vector<8x128xf32>
    %371 = vector.extract_strided_slice %364 {offsets = [0, 128], sizes = [8, 128], strides = [1, 1]} : vector<8x512xf32> to vector<8x128xf32>
    %372 = arith.negf %371 : vector<8x128xf32>
    %373 = math.exp %372 : vector<8x128xf32>
    %cst_197 = arith.constant 1.000000e+00 : f32
    %374 = vector.broadcast %cst_197 : f32 to vector<8x128xf32>
    %375 = arith.addf %374, %373 : vector<8x128xf32>
    %376 = arith.divf %374, %375 : vector<8x128xf32>
    %377 = vector.extract_strided_slice %364 {offsets = [0, 256], sizes = [8, 128], strides = [1, 1]} : vector<8x512xf32> to vector<8x128xf32>
    %378 = math.tanh %377 : vector<8x128xf32>
    %379 = vector.extract_strided_slice %364 {offsets = [0, 384], sizes = [8, 128], strides = [1, 1]} : vector<8x512xf32> to vector<8x128xf32>
    %380 = arith.negf %379 : vector<8x128xf32>
    %381 = math.exp %380 : vector<8x128xf32>
    %cst_198 = arith.constant 1.000000e+00 : f32
    %382 = vector.broadcast %cst_198 : f32 to vector<8x128xf32>
    %383 = arith.addf %382, %381 : vector<8x128xf32>
    %384 = arith.divf %382, %383 : vector<8x128xf32>
    %385 = arith.mulf %376, %357 : vector<8x128xf32>
    %386 = arith.mulf %370, %378 : vector<8x128xf32>
    %387 = arith.addf %385, %386 : vector<8x128xf32>
    %388 = math.tanh %387 : vector<8x128xf32>
    %389 = arith.mulf %384, %388 : vector<8x128xf32>
    %c0_199 = arith.constant 0 : index
    %c0_200 = arith.constant 0 : index
    %390 = vector.load %arg12[%c0_199, %c0_200] : memref<8x128xf32, #tpu.memory_space<vmem>>, vector<8x128xf32>
    tpu.vector_store %arg12[%c0_199, %c0_200], %389 {strides = array<i32>} : memref<8x128xf32, #tpu.memory_space<vmem>>, vector<8x128xf32>,
    %c0_201 = arith.constant 0 : index
    %c0_202 = arith.constant 0 : index
    %391 = vector.load %arg13[%c0_201, %c0_202] : memref<8x128xf32, #tpu.memory_space<vmem>>, vector<8x128xf32>
    tpu.vector_store %arg13[%c0_201, %c0_202], %387 {strides = array<i32>} : memref<8x128xf32, #tpu.memory_space<vmem>>, vector<8x128xf32>,
    %392 = arith.index_cast %c0_i32_186 : i32 to index
    %c0_203 = arith.constant 0 : index
    %c0_204 = arith.constant 0 : index
    %393 = vector.load %arg8[%392, %c0_203, %c0_204] : memref<8x8x128xf32, #tpu.memory_space<vmem>>, vector<1x8x128xf32>
    %394 = vector.shape_cast %393 : vector<1x8x128xf32> to vector<8x128xf32>
    %395 = vector.shape_cast %389 : vector<8x128xf32> to vector<1x8x128xf32>
    tpu.vector_store %arg8[%392, %c0_203, %c0_204], %395 {strides = array<i32>} : memref<8x8x128xf32, #tpu.memory_space<vmem>>, vector<1x8x128xf32>,
    %c1_i32_205 = arith.constant 1 : i32
    %c0_206 = arith.constant 0 : index
    %c0_207 = arith.constant 0 : index
    %396 = vector.load %arg12[%c0_206, %c0_207] : memref<8x128xf32, #tpu.memory_space<vmem>>, vector<8x128xf32>
    %c0_208 = arith.constant 0 : index
    %c0_209 = arith.constant 0 : index
    %397 = vector.load %arg13[%c0_208, %c0_209] : memref<8x128xf32, #tpu.memory_space<vmem>>, vector<8x128xf32>
    %398 = arith.index_cast %c1_i32_205 : i32 to index
    %c0_210 = arith.constant 0 : index
    %c0_211 = arith.constant 0 : index
    %399 = vector.load %arg11[%398, %c0_210, %c0_211] : memref<8x8x512xf32, #tpu.memory_space<vmem>>, vector<1x8x512xf32>
    %400 = vector.shape_cast %399 : vector<1x8x512xf32> to vector<8x512xf32>
    %401 = arith.truncf %396 : vector<8x128xf32> to vector<8x128xbf16>
    %c0_212 = arith.constant 0 : index
    %c0_213 = arith.constant 0 : index
    %402 = vector.load %arg6[%c0_212, %c0_213] : memref<128x512xbf16, #tpu.memory_space<vmem>>, vector<128x512xbf16>
    %cst_214 = arith.constant dense<0.000000e+00> : vector<8x512xf32>
    %403 = tpu.matmul %401, %402, %cst_214 {dimension_numbers = #tpu.dot_dimension_numbers<[1], [0], [0], [1], [0, 0, 1, 1], [], []>} : vector<8x128xbf16>, vector<128x512xbf16>, vector<8x512xf32> -> vector<8x512xf32>
    %404 = arith.addf %400, %403 : vector<8x512xf32>
    %405 = vector.extract_strided_slice %404 {offsets = [0, 0], sizes = [8, 128], strides = [1, 1]} : vector<8x512xf32> to vector<8x128xf32>
    %406 = arith.negf %405 : vector<8x128xf32>
    %407 = math.exp %406 : vector<8x128xf32>
    %cst_215 = arith.constant 1.000000e+00 : f32
    %408 = vector.broadcast %cst_215 : f32 to vector<8x128xf32>
    %409 = arith.addf %408, %407 : vector<8x128xf32>
    %410 = arith.divf %408, %409 : vector<8x128xf32>
    %411 = vector.extract_strided_slice %404 {offsets = [0, 128], sizes = [8, 128], strides = [1, 1]} : vector<8x512xf32> to vector<8x128xf32>
    %412 = arith.negf %411 : vector<8x128xf32>
    %413 = math.exp %412 : vector<8x128xf32>
    %cst_216 = arith.constant 1.000000e+00 : f32
    %414 = vector.broadcast %cst_216 : f32 to vector<8x128xf32>
    %415 = arith.addf %414, %413 : vector<8x128xf32>
    %416 = arith.divf %414, %415 : vector<8x128xf32>
    %417 = vector.extract_strided_slice %404 {offsets = [0, 256], sizes = [8, 128], strides = [1, 1]} : vector<8x512xf32> to vector<8x128xf32>
    %418 = math.tanh %417 : vector<8x128xf32>
    %419 = vector.extract_strided_slice %404 {offsets = [0, 384], sizes = [8, 128], strides = [1, 1]} : vector<8x512xf32> to vector<8x128xf32>
    %420 = arith.negf %419 : vector<8x128xf32>
    %421 = math.exp %420 : vector<8x128xf32>
    %cst_217 = arith.constant 1.000000e+00 : f32
    %422 = vector.broadcast %cst_217 : f32 to vector<8x128xf32>
    %423 = arith.addf %422, %421 : vector<8x128xf32>
    %424 = arith.divf %422, %423 : vector<8x128xf32>
    %425 = arith.mulf %416, %397 : vector<8x128xf32>
    %426 = arith.mulf %410, %418 : vector<8x128xf32>
    %427 = arith.addf %425, %426 : vector<8x128xf32>
    %428 = math.tanh %427 : vector<8x128xf32>
    %429 = arith.mulf %424, %428 : vector<8x128xf32>
    %c0_218 = arith.constant 0 : index
    %c0_219 = arith.constant 0 : index
    %430 = vector.load %arg12[%c0_218, %c0_219] : memref<8x128xf32, #tpu.memory_space<vmem>>, vector<8x128xf32>
    tpu.vector_store %arg12[%c0_218, %c0_219], %429 {strides = array<i32>} : memref<8x128xf32, #tpu.memory_space<vmem>>, vector<8x128xf32>,
    %c0_220 = arith.constant 0 : index
    %c0_221 = arith.constant 0 : index
    %431 = vector.load %arg13[%c0_220, %c0_221] : memref<8x128xf32, #tpu.memory_space<vmem>>, vector<8x128xf32>
    tpu.vector_store %arg13[%c0_220, %c0_221], %427 {strides = array<i32>} : memref<8x128xf32, #tpu.memory_space<vmem>>, vector<8x128xf32>,
    %432 = arith.index_cast %c1_i32_205 : i32 to index
    %c0_222 = arith.constant 0 : index
    %c0_223 = arith.constant 0 : index
    %433 = vector.load %arg8[%432, %c0_222, %c0_223] : memref<8x8x128xf32, #tpu.memory_space<vmem>>, vector<1x8x128xf32>
    %434 = vector.shape_cast %433 : vector<1x8x128xf32> to vector<8x128xf32>
    %435 = vector.shape_cast %429 : vector<8x128xf32> to vector<1x8x128xf32>
    tpu.vector_store %arg8[%432, %c0_222, %c0_223], %435 {strides = array<i32>} : memref<8x8x128xf32, #tpu.memory_space<vmem>>, vector<1x8x128xf32>,
    %c2_i32_224 = arith.constant 2 : i32
    %c0_225 = arith.constant 0 : index
    %c0_226 = arith.constant 0 : index
    %436 = vector.load %arg12[%c0_225, %c0_226] : memref<8x128xf32, #tpu.memory_space<vmem>>, vector<8x128xf32>
    %c0_227 = arith.constant 0 : index
    %c0_228 = arith.constant 0 : index
    %437 = vector.load %arg13[%c0_227, %c0_228] : memref<8x128xf32, #tpu.memory_space<vmem>>, vector<8x128xf32>
    %438 = arith.index_cast %c2_i32_224 : i32 to index
    %c0_229 = arith.constant 0 : index
    %c0_230 = arith.constant 0 : index
    %439 = vector.load %arg11[%438, %c0_229, %c0_230] : memref<8x8x512xf32, #tpu.memory_space<vmem>>, vector<1x8x512xf32>
    %440 = vector.shape_cast %439 : vector<1x8x512xf32> to vector<8x512xf32>
    %441 = arith.truncf %436 : vector<8x128xf32> to vector<8x128xbf16>
    %c0_231 = arith.constant 0 : index
    %c0_232 = arith.constant 0 : index
    %442 = vector.load %arg6[%c0_231, %c0_232] : memref<128x512xbf16, #tpu.memory_space<vmem>>, vector<128x512xbf16>
    %cst_233 = arith.constant dense<0.000000e+00> : vector<8x512xf32>
    %443 = tpu.matmul %441, %442, %cst_233 {dimension_numbers = #tpu.dot_dimension_numbers<[1], [0], [0], [1], [0, 0, 1, 1], [], []>} : vector<8x128xbf16>, vector<128x512xbf16>, vector<8x512xf32> -> vector<8x512xf32>
    %444 = arith.addf %440, %443 : vector<8x512xf32>
    %445 = vector.extract_strided_slice %444 {offsets = [0, 0], sizes = [8, 128], strides = [1, 1]} : vector<8x512xf32> to vector<8x128xf32>
    %446 = arith.negf %445 : vector<8x128xf32>
    %447 = math.exp %446 : vector<8x128xf32>
    %cst_234 = arith.constant 1.000000e+00 : f32
    %448 = vector.broadcast %cst_234 : f32 to vector<8x128xf32>
    %449 = arith.addf %448, %447 : vector<8x128xf32>
    %450 = arith.divf %448, %449 : vector<8x128xf32>
    %451 = vector.extract_strided_slice %444 {offsets = [0, 128], sizes = [8, 128], strides = [1, 1]} : vector<8x512xf32> to vector<8x128xf32>
    %452 = arith.negf %451 : vector<8x128xf32>
    %453 = math.exp %452 : vector<8x128xf32>
    %cst_235 = arith.constant 1.000000e+00 : f32
    %454 = vector.broadcast %cst_235 : f32 to vector<8x128xf32>
    %455 = arith.addf %454, %453 : vector<8x128xf32>
    %456 = arith.divf %454, %455 : vector<8x128xf32>
    %457 = vector.extract_strided_slice %444 {offsets = [0, 256], sizes = [8, 128], strides = [1, 1]} : vector<8x512xf32> to vector<8x128xf32>
    %458 = math.tanh %457 : vector<8x128xf32>
    %459 = vector.extract_strided_slice %444 {offsets = [0, 384], sizes = [8, 128], strides = [1, 1]} : vector<8x512xf32> to vector<8x128xf32>
    %460 = arith.negf %459 : vector<8x128xf32>
    %461 = math.exp %460 : vector<8x128xf32>
    %cst_236 = arith.constant 1.000000e+00 : f32
    %462 = vector.broadcast %cst_236 : f32 to vector<8x128xf32>
    %463 = arith.addf %462, %461 : vector<8x128xf32>
    %464 = arith.divf %462, %463 : vector<8x128xf32>
    %465 = arith.mulf %456, %437 : vector<8x128xf32>
    %466 = arith.mulf %450, %458 : vector<8x128xf32>
    %467 = arith.addf %465, %466 : vector<8x128xf32>
    %468 = math.tanh %467 : vector<8x128xf32>
    %469 = arith.mulf %464, %468 : vector<8x128xf32>
    %c0_237 = arith.constant 0 : index
    %c0_238 = arith.constant 0 : index
    %470 = vector.load %arg12[%c0_237, %c0_238] : memref<8x128xf32, #tpu.memory_space<vmem>>, vector<8x128xf32>
    tpu.vector_store %arg12[%c0_237, %c0_238], %469 {strides = array<i32>} : memref<8x128xf32, #tpu.memory_space<vmem>>, vector<8x128xf32>,
    %c0_239 = arith.constant 0 : index
    %c0_240 = arith.constant 0 : index
    %471 = vector.load %arg13[%c0_239, %c0_240] : memref<8x128xf32, #tpu.memory_space<vmem>>, vector<8x128xf32>
    tpu.vector_store %arg13[%c0_239, %c0_240], %467 {strides = array<i32>} : memref<8x128xf32, #tpu.memory_space<vmem>>, vector<8x128xf32>,
    %472 = arith.index_cast %c2_i32_224 : i32 to index
    %c0_241 = arith.constant 0 : index
    %c0_242 = arith.constant 0 : index
    %473 = vector.load %arg8[%472, %c0_241, %c0_242] : memref<8x8x128xf32, #tpu.memory_space<vmem>>, vector<1x8x128xf32>
    %474 = vector.shape_cast %473 : vector<1x8x128xf32> to vector<8x128xf32>
    %475 = vector.shape_cast %469 : vector<8x128xf32> to vector<1x8x128xf32>
    tpu.vector_store %arg8[%472, %c0_241, %c0_242], %475 {strides = array<i32>} : memref<8x8x128xf32, #tpu.memory_space<vmem>>, vector<1x8x128xf32>,
    %c3_i32_243 = arith.constant 3 : i32
    %c0_244 = arith.constant 0 : index
    %c0_245 = arith.constant 0 : index
    %476 = vector.load %arg12[%c0_244, %c0_245] : memref<8x128xf32, #tpu.memory_space<vmem>>, vector<8x128xf32>
    %c0_246 = arith.constant 0 : index
    %c0_247 = arith.constant 0 : index
    %477 = vector.load %arg13[%c0_246, %c0_247] : memref<8x128xf32, #tpu.memory_space<vmem>>, vector<8x128xf32>
    %478 = arith.index_cast %c3_i32_243 : i32 to index
    %c0_248 = arith.constant 0 : index
    %c0_249 = arith.constant 0 : index
    %479 = vector.load %arg11[%478, %c0_248, %c0_249] : memref<8x8x512xf32, #tpu.memory_space<vmem>>, vector<1x8x512xf32>
    %480 = vector.shape_cast %479 : vector<1x8x512xf32> to vector<8x512xf32>
    %481 = arith.truncf %476 : vector<8x128xf32> to vector<8x128xbf16>
    %c0_250 = arith.constant 0 : index
    %c0_251 = arith.constant 0 : index
    %482 = vector.load %arg6[%c0_250, %c0_251] : memref<128x512xbf16, #tpu.memory_space<vmem>>, vector<128x512xbf16>
    %cst_252 = arith.constant dense<0.000000e+00> : vector<8x512xf32>
    %483 = tpu.matmul %481, %482, %cst_252 {dimension_numbers = #tpu.dot_dimension_numbers<[1], [0], [0], [1], [0, 0, 1, 1], [], []>} : vector<8x128xbf16>, vector<128x512xbf16>, vector<8x512xf32> -> vector<8x512xf32>
    %484 = arith.addf %480, %483 : vector<8x512xf32>
    %485 = vector.extract_strided_slice %484 {offsets = [0, 0], sizes = [8, 128], strides = [1, 1]} : vector<8x512xf32> to vector<8x128xf32>
    %486 = arith.negf %485 : vector<8x128xf32>
    %487 = math.exp %486 : vector<8x128xf32>
    %cst_253 = arith.constant 1.000000e+00 : f32
    %488 = vector.broadcast %cst_253 : f32 to vector<8x128xf32>
    %489 = arith.addf %488, %487 : vector<8x128xf32>
    %490 = arith.divf %488, %489 : vector<8x128xf32>
    %491 = vector.extract_strided_slice %484 {offsets = [0, 128], sizes = [8, 128], strides = [1, 1]} : vector<8x512xf32> to vector<8x128xf32>
    %492 = arith.negf %491 : vector<8x128xf32>
    %493 = math.exp %492 : vector<8x128xf32>
    %cst_254 = arith.constant 1.000000e+00 : f32
    %494 = vector.broadcast %cst_254 : f32 to vector<8x128xf32>
    %495 = arith.addf %494, %493 : vector<8x128xf32>
    %496 = arith.divf %494, %495 : vector<8x128xf32>
    %497 = vector.extract_strided_slice %484 {offsets = [0, 256], sizes = [8, 128], strides = [1, 1]} : vector<8x512xf32> to vector<8x128xf32>
    %498 = math.tanh %497 : vector<8x128xf32>
    %499 = vector.extract_strided_slice %484 {offsets = [0, 384], sizes = [8, 128], strides = [1, 1]} : vector<8x512xf32> to vector<8x128xf32>
    %500 = arith.negf %499 : vector<8x128xf32>
    %501 = math.exp %500 : vector<8x128xf32>
    %cst_255 = arith.constant 1.000000e+00 : f32
    %502 = vector.broadcast %cst_255 : f32 to vector<8x128xf32>
    %503 = arith.addf %502, %501 : vector<8x128xf32>
    %504 = arith.divf %502, %503 : vector<8x128xf32>
    %505 = arith.mulf %496, %477 : vector<8x128xf32>
    %506 = arith.mulf %490, %498 : vector<8x128xf32>
    %507 = arith.addf %505, %506 : vector<8x128xf32>
    %508 = math.tanh %507 : vector<8x128xf32>
    %509 = arith.mulf %504, %508 : vector<8x128xf32>
    %c0_256 = arith.constant 0 : index
    %c0_257 = arith.constant 0 : index
    %510 = vector.load %arg12[%c0_256, %c0_257] : memref<8x128xf32, #tpu.memory_space<vmem>>, vector<8x128xf32>
    tpu.vector_store %arg12[%c0_256, %c0_257], %509 {strides = array<i32>} : memref<8x128xf32, #tpu.memory_space<vmem>>, vector<8x128xf32>,
    %c0_258 = arith.constant 0 : index
    %c0_259 = arith.constant 0 : index
    %511 = vector.load %arg13[%c0_258, %c0_259] : memref<8x128xf32, #tpu.memory_space<vmem>>, vector<8x128xf32>
    tpu.vector_store %arg13[%c0_258, %c0_259], %507 {strides = array<i32>} : memref<8x128xf32, #tpu.memory_space<vmem>>, vector<8x128xf32>,
    %512 = arith.index_cast %c3_i32_243 : i32 to index
    %c0_260 = arith.constant 0 : index
    %c0_261 = arith.constant 0 : index
    %513 = vector.load %arg8[%512, %c0_260, %c0_261] : memref<8x8x128xf32, #tpu.memory_space<vmem>>, vector<1x8x128xf32>
    %514 = vector.shape_cast %513 : vector<1x8x128xf32> to vector<8x128xf32>
    %515 = vector.shape_cast %509 : vector<8x128xf32> to vector<1x8x128xf32>
    tpu.vector_store %arg8[%512, %c0_260, %c0_261], %515 {strides = array<i32>} : memref<8x8x128xf32, #tpu.memory_space<vmem>>, vector<1x8x128xf32>,
    %c4_i32_262 = arith.constant 4 : i32
    %c0_263 = arith.constant 0 : index
    %c0_264 = arith.constant 0 : index
    %516 = vector.load %arg12[%c0_263, %c0_264] : memref<8x128xf32, #tpu.memory_space<vmem>>, vector<8x128xf32>
    %c0_265 = arith.constant 0 : index
    %c0_266 = arith.constant 0 : index
    %517 = vector.load %arg13[%c0_265, %c0_266] : memref<8x128xf32, #tpu.memory_space<vmem>>, vector<8x128xf32>
    %518 = arith.index_cast %c4_i32_262 : i32 to index
    %c0_267 = arith.constant 0 : index
    %c0_268 = arith.constant 0 : index
    %519 = vector.load %arg11[%518, %c0_267, %c0_268] : memref<8x8x512xf32, #tpu.memory_space<vmem>>, vector<1x8x512xf32>
    %520 = vector.shape_cast %519 : vector<1x8x512xf32> to vector<8x512xf32>
    %521 = arith.truncf %516 : vector<8x128xf32> to vector<8x128xbf16>
    %c0_269 = arith.constant 0 : index
    %c0_270 = arith.constant 0 : index
    %522 = vector.load %arg6[%c0_269, %c0_270] : memref<128x512xbf16, #tpu.memory_space<vmem>>, vector<128x512xbf16>
    %cst_271 = arith.constant dense<0.000000e+00> : vector<8x512xf32>
    %523 = tpu.matmul %521, %522, %cst_271 {dimension_numbers = #tpu.dot_dimension_numbers<[1], [0], [0], [1], [0, 0, 1, 1], [], []>} : vector<8x128xbf16>, vector<128x512xbf16>, vector<8x512xf32> -> vector<8x512xf32>
    %524 = arith.addf %520, %523 : vector<8x512xf32>
    %525 = vector.extract_strided_slice %524 {offsets = [0, 0], sizes = [8, 128], strides = [1, 1]} : vector<8x512xf32> to vector<8x128xf32>
    %526 = arith.negf %525 : vector<8x128xf32>
    %527 = math.exp %526 : vector<8x128xf32>
    %cst_272 = arith.constant 1.000000e+00 : f32
    %528 = vector.broadcast %cst_272 : f32 to vector<8x128xf32>
    %529 = arith.addf %528, %527 : vector<8x128xf32>
    %530 = arith.divf %528, %529 : vector<8x128xf32>
    %531 = vector.extract_strided_slice %524 {offsets = [0, 128], sizes = [8, 128], strides = [1, 1]} : vector<8x512xf32> to vector<8x128xf32>
    %532 = arith.negf %531 : vector<8x128xf32>
    %533 = math.exp %532 : vector<8x128xf32>
    %cst_273 = arith.constant 1.000000e+00 : f32
    %534 = vector.broadcast %cst_273 : f32 to vector<8x128xf32>
    %535 = arith.addf %534, %533 : vector<8x128xf32>
    %536 = arith.divf %534, %535 : vector<8x128xf32>
    %537 = vector.extract_strided_slice %524 {offsets = [0, 256], sizes = [8, 128], strides = [1, 1]} : vector<8x512xf32> to vector<8x128xf32>
    %538 = math.tanh %537 : vector<8x128xf32>
    %539 = vector.extract_strided_slice %524 {offsets = [0, 384], sizes = [8, 128], strides = [1, 1]} : vector<8x512xf32> to vector<8x128xf32>
    %540 = arith.negf %539 : vector<8x128xf32>
    %541 = math.exp %540 : vector<8x128xf32>
    %cst_274 = arith.constant 1.000000e+00 : f32
    %542 = vector.broadcast %cst_274 : f32 to vector<8x128xf32>
    %543 = arith.addf %542, %541 : vector<8x128xf32>
    %544 = arith.divf %542, %543 : vector<8x128xf32>
    %545 = arith.mulf %536, %517 : vector<8x128xf32>
    %546 = arith.mulf %530, %538 : vector<8x128xf32>
    %547 = arith.addf %545, %546 : vector<8x128xf32>
    %548 = math.tanh %547 : vector<8x128xf32>
    %549 = arith.mulf %544, %548 : vector<8x128xf32>
    %c0_275 = arith.constant 0 : index
    %c0_276 = arith.constant 0 : index
    %550 = vector.load %arg12[%c0_275, %c0_276] : memref<8x128xf32, #tpu.memory_space<vmem>>, vector<8x128xf32>
    tpu.vector_store %arg12[%c0_275, %c0_276], %549 {strides = array<i32>} : memref<8x128xf32, #tpu.memory_space<vmem>>, vector<8x128xf32>,
    %c0_277 = arith.constant 0 : index
    %c0_278 = arith.constant 0 : index
    %551 = vector.load %arg13[%c0_277, %c0_278] : memref<8x128xf32, #tpu.memory_space<vmem>>, vector<8x128xf32>
    tpu.vector_store %arg13[%c0_277, %c0_278], %547 {strides = array<i32>} : memref<8x128xf32, #tpu.memory_space<vmem>>, vector<8x128xf32>,
    %552 = arith.index_cast %c4_i32_262 : i32 to index
    %c0_279 = arith.constant 0 : index
    %c0_280 = arith.constant 0 : index
    %553 = vector.load %arg8[%552, %c0_279, %c0_280] : memref<8x8x128xf32, #tpu.memory_space<vmem>>, vector<1x8x128xf32>
    %554 = vector.shape_cast %553 : vector<1x8x128xf32> to vector<8x128xf32>
    %555 = vector.shape_cast %549 : vector<8x128xf32> to vector<1x8x128xf32>
    tpu.vector_store %arg8[%552, %c0_279, %c0_280], %555 {strides = array<i32>} : memref<8x8x128xf32, #tpu.memory_space<vmem>>, vector<1x8x128xf32>,
    %c5_i32_281 = arith.constant 5 : i32
    %c0_282 = arith.constant 0 : index
    %c0_283 = arith.constant 0 : index
    %556 = vector.load %arg12[%c0_282, %c0_283] : memref<8x128xf32, #tpu.memory_space<vmem>>, vector<8x128xf32>
    %c0_284 = arith.constant 0 : index
    %c0_285 = arith.constant 0 : index
    %557 = vector.load %arg13[%c0_284, %c0_285] : memref<8x128xf32, #tpu.memory_space<vmem>>, vector<8x128xf32>
    %558 = arith.index_cast %c5_i32_281 : i32 to index
    %c0_286 = arith.constant 0 : index
    %c0_287 = arith.constant 0 : index
    %559 = vector.load %arg11[%558, %c0_286, %c0_287] : memref<8x8x512xf32, #tpu.memory_space<vmem>>, vector<1x8x512xf32>
    %560 = vector.shape_cast %559 : vector<1x8x512xf32> to vector<8x512xf32>
    %561 = arith.truncf %556 : vector<8x128xf32> to vector<8x128xbf16>
    %c0_288 = arith.constant 0 : index
    %c0_289 = arith.constant 0 : index
    %562 = vector.load %arg6[%c0_288, %c0_289] : memref<128x512xbf16, #tpu.memory_space<vmem>>, vector<128x512xbf16>
    %cst_290 = arith.constant dense<0.000000e+00> : vector<8x512xf32>
    %563 = tpu.matmul %561, %562, %cst_290 {dimension_numbers = #tpu.dot_dimension_numbers<[1], [0], [0], [1], [0, 0, 1, 1], [], []>} : vector<8x128xbf16>, vector<128x512xbf16>, vector<8x512xf32> -> vector<8x512xf32>
    %564 = arith.addf %560, %563 : vector<8x512xf32>
    %565 = vector.extract_strided_slice %564 {offsets = [0, 0], sizes = [8, 128], strides = [1, 1]} : vector<8x512xf32> to vector<8x128xf32>
    %566 = arith.negf %565 : vector<8x128xf32>
    %567 = math.exp %566 : vector<8x128xf32>
    %cst_291 = arith.constant 1.000000e+00 : f32
    %568 = vector.broadcast %cst_291 : f32 to vector<8x128xf32>
    %569 = arith.addf %568, %567 : vector<8x128xf32>
    %570 = arith.divf %568, %569 : vector<8x128xf32>
    %571 = vector.extract_strided_slice %564 {offsets = [0, 128], sizes = [8, 128], strides = [1, 1]} : vector<8x512xf32> to vector<8x128xf32>
    %572 = arith.negf %571 : vector<8x128xf32>
    %573 = math.exp %572 : vector<8x128xf32>
    %cst_292 = arith.constant 1.000000e+00 : f32
    %574 = vector.broadcast %cst_292 : f32 to vector<8x128xf32>
    %575 = arith.addf %574, %573 : vector<8x128xf32>
    %576 = arith.divf %574, %575 : vector<8x128xf32>
    %577 = vector.extract_strided_slice %564 {offsets = [0, 256], sizes = [8, 128], strides = [1, 1]} : vector<8x512xf32> to vector<8x128xf32>
    %578 = math.tanh %577 : vector<8x128xf32>
    %579 = vector.extract_strided_slice %564 {offsets = [0, 384], sizes = [8, 128], strides = [1, 1]} : vector<8x512xf32> to vector<8x128xf32>
    %580 = arith.negf %579 : vector<8x128xf32>
    %581 = math.exp %580 : vector<8x128xf32>
    %cst_293 = arith.constant 1.000000e+00 : f32
    %582 = vector.broadcast %cst_293 : f32 to vector<8x128xf32>
    %583 = arith.addf %582, %581 : vector<8x128xf32>
    %584 = arith.divf %582, %583 : vector<8x128xf32>
    %585 = arith.mulf %576, %557 : vector<8x128xf32>
    %586 = arith.mulf %570, %578 : vector<8x128xf32>
    %587 = arith.addf %585, %586 : vector<8x128xf32>
    %588 = math.tanh %587 : vector<8x128xf32>
    %589 = arith.mulf %584, %588 : vector<8x128xf32>
    %c0_294 = arith.constant 0 : index
    %c0_295 = arith.constant 0 : index
    %590 = vector.load %arg12[%c0_294, %c0_295] : memref<8x128xf32, #tpu.memory_space<vmem>>, vector<8x128xf32>
    tpu.vector_store %arg12[%c0_294, %c0_295], %589 {strides = array<i32>} : memref<8x128xf32, #tpu.memory_space<vmem>>, vector<8x128xf32>,
    %c0_296 = arith.constant 0 : index
    %c0_297 = arith.constant 0 : index
    %591 = vector.load %arg13[%c0_296, %c0_297] : memref<8x128xf32, #tpu.memory_space<vmem>>, vector<8x128xf32>
    tpu.vector_store %arg13[%c0_296, %c0_297], %587 {strides = array<i32>} : memref<8x128xf32, #tpu.memory_space<vmem>>, vector<8x128xf32>,
    %592 = arith.index_cast %c5_i32_281 : i32 to index
    %c0_298 = arith.constant 0 : index
    %c0_299 = arith.constant 0 : index
    %593 = vector.load %arg8[%592, %c0_298, %c0_299] : memref<8x8x128xf32, #tpu.memory_space<vmem>>, vector<1x8x128xf32>
    %594 = vector.shape_cast %593 : vector<1x8x128xf32> to vector<8x128xf32>
    %595 = vector.shape_cast %589 : vector<8x128xf32> to vector<1x8x128xf32>
    tpu.vector_store %arg8[%592, %c0_298, %c0_299], %595 {strides = array<i32>} : memref<8x8x128xf32, #tpu.memory_space<vmem>>, vector<1x8x128xf32>,
    %c6_i32_300 = arith.constant 6 : i32
    %c0_301 = arith.constant 0 : index
    %c0_302 = arith.constant 0 : index
    %596 = vector.load %arg12[%c0_301, %c0_302] : memref<8x128xf32, #tpu.memory_space<vmem>>, vector<8x128xf32>
    %c0_303 = arith.constant 0 : index
    %c0_304 = arith.constant 0 : index
    %597 = vector.load %arg13[%c0_303, %c0_304] : memref<8x128xf32, #tpu.memory_space<vmem>>, vector<8x128xf32>
    %598 = arith.index_cast %c6_i32_300 : i32 to index
    %c0_305 = arith.constant 0 : index
    %c0_306 = arith.constant 0 : index
    %599 = vector.load %arg11[%598, %c0_305, %c0_306] : memref<8x8x512xf32, #tpu.memory_space<vmem>>, vector<1x8x512xf32>
    %600 = vector.shape_cast %599 : vector<1x8x512xf32> to vector<8x512xf32>
    %601 = arith.truncf %596 : vector<8x128xf32> to vector<8x128xbf16>
    %c0_307 = arith.constant 0 : index
    %c0_308 = arith.constant 0 : index
    %602 = vector.load %arg6[%c0_307, %c0_308] : memref<128x512xbf16, #tpu.memory_space<vmem>>, vector<128x512xbf16>
    %cst_309 = arith.constant dense<0.000000e+00> : vector<8x512xf32>
    %603 = tpu.matmul %601, %602, %cst_309 {dimension_numbers = #tpu.dot_dimension_numbers<[1], [0], [0], [1], [0, 0, 1, 1], [], []>} : vector<8x128xbf16>, vector<128x512xbf16>, vector<8x512xf32> -> vector<8x512xf32>
    %604 = arith.addf %600, %603 : vector<8x512xf32>
    %605 = vector.extract_strided_slice %604 {offsets = [0, 0], sizes = [8, 128], strides = [1, 1]} : vector<8x512xf32> to vector<8x128xf32>
    %606 = arith.negf %605 : vector<8x128xf32>
    %607 = math.exp %606 : vector<8x128xf32>
    %cst_310 = arith.constant 1.000000e+00 : f32
    %608 = vector.broadcast %cst_310 : f32 to vector<8x128xf32>
    %609 = arith.addf %608, %607 : vector<8x128xf32>
    %610 = arith.divf %608, %609 : vector<8x128xf32>
    %611 = vector.extract_strided_slice %604 {offsets = [0, 128], sizes = [8, 128], strides = [1, 1]} : vector<8x512xf32> to vector<8x128xf32>
    %612 = arith.negf %611 : vector<8x128xf32>
    %613 = math.exp %612 : vector<8x128xf32>
    %cst_311 = arith.constant 1.000000e+00 : f32
    %614 = vector.broadcast %cst_311 : f32 to vector<8x128xf32>
    %615 = arith.addf %614, %613 : vector<8x128xf32>
    %616 = arith.divf %614, %615 : vector<8x128xf32>
    %617 = vector.extract_strided_slice %604 {offsets = [0, 256], sizes = [8, 128], strides = [1, 1]} : vector<8x512xf32> to vector<8x128xf32>
    %618 = math.tanh %617 : vector<8x128xf32>
    %619 = vector.extract_strided_slice %604 {offsets = [0, 384], sizes = [8, 128], strides = [1, 1]} : vector<8x512xf32> to vector<8x128xf32>
    %620 = arith.negf %619 : vector<8x128xf32>
    %621 = math.exp %620 : vector<8x128xf32>
    %cst_312 = arith.constant 1.000000e+00 : f32
    %622 = vector.broadcast %cst_312 : f32 to vector<8x128xf32>
    %623 = arith.addf %622, %621 : vector<8x128xf32>
    %624 = arith.divf %622, %623 : vector<8x128xf32>
    %625 = arith.mulf %616, %597 : vector<8x128xf32>
    %626 = arith.mulf %610, %618 : vector<8x128xf32>
    %627 = arith.addf %625, %626 : vector<8x128xf32>
    %628 = math.tanh %627 : vector<8x128xf32>
    %629 = arith.mulf %624, %628 : vector<8x128xf32>
    %c0_313 = arith.constant 0 : index
    %c0_314 = arith.constant 0 : index
    %630 = vector.load %arg12[%c0_313, %c0_314] : memref<8x128xf32, #tpu.memory_space<vmem>>, vector<8x128xf32>
    tpu.vector_store %arg12[%c0_313, %c0_314], %629 {strides = array<i32>} : memref<8x128xf32, #tpu.memory_space<vmem>>, vector<8x128xf32>,
    %c0_315 = arith.constant 0 : index
    %c0_316 = arith.constant 0 : index
    %631 = vector.load %arg13[%c0_315, %c0_316] : memref<8x128xf32, #tpu.memory_space<vmem>>, vector<8x128xf32>
    tpu.vector_store %arg13[%c0_315, %c0_316], %627 {strides = array<i32>} : memref<8x128xf32, #tpu.memory_space<vmem>>, vector<8x128xf32>,
    %632 = arith.index_cast %c6_i32_300 : i32 to index
    %c0_317 = arith.constant 0 : index
    %c0_318 = arith.constant 0 : index
    %633 = vector.load %arg8[%632, %c0_317, %c0_318] : memref<8x8x128xf32, #tpu.memory_space<vmem>>, vector<1x8x128xf32>
    %634 = vector.shape_cast %633 : vector<1x8x128xf32> to vector<8x128xf32>
    %635 = vector.shape_cast %629 : vector<8x128xf32> to vector<1x8x128xf32>
    tpu.vector_store %arg8[%632, %c0_317, %c0_318], %635 {strides = array<i32>} : memref<8x8x128xf32, #tpu.memory_space<vmem>>, vector<1x8x128xf32>,
    %c7_i32_319 = arith.constant 7 : i32
    %c0_320 = arith.constant 0 : index
    %c0_321 = arith.constant 0 : index
    %636 = vector.load %arg12[%c0_320, %c0_321] : memref<8x128xf32, #tpu.memory_space<vmem>>, vector<8x128xf32>
    %c0_322 = arith.constant 0 : index
    %c0_323 = arith.constant 0 : index
    %637 = vector.load %arg13[%c0_322, %c0_323] : memref<8x128xf32, #tpu.memory_space<vmem>>, vector<8x128xf32>
    %638 = arith.index_cast %c7_i32_319 : i32 to index
    %c0_324 = arith.constant 0 : index
    %c0_325 = arith.constant 0 : index
    %639 = vector.load %arg11[%638, %c0_324, %c0_325] : memref<8x8x512xf32, #tpu.memory_space<vmem>>, vector<1x8x512xf32>
    %640 = vector.shape_cast %639 : vector<1x8x512xf32> to vector<8x512xf32>
    %641 = arith.truncf %636 : vector<8x128xf32> to vector<8x128xbf16>
    %c0_326 = arith.constant 0 : index
    %c0_327 = arith.constant 0 : index
    %642 = vector.load %arg6[%c0_326, %c0_327] : memref<128x512xbf16, #tpu.memory_space<vmem>>, vector<128x512xbf16>
    %cst_328 = arith.constant dense<0.000000e+00> : vector<8x512xf32>
    %643 = tpu.matmul %641, %642, %cst_328 {dimension_numbers = #tpu.dot_dimension_numbers<[1], [0], [0], [1], [0, 0, 1, 1], [], []>} : vector<8x128xbf16>, vector<128x512xbf16>, vector<8x512xf32> -> vector<8x512xf32>
    %644 = arith.addf %640, %643 : vector<8x512xf32>
    %645 = vector.extract_strided_slice %644 {offsets = [0, 0], sizes = [8, 128], strides = [1, 1]} : vector<8x512xf32> to vector<8x128xf32>
    %646 = arith.negf %645 : vector<8x128xf32>
    %647 = math.exp %646 : vector<8x128xf32>
    %cst_329 = arith.constant 1.000000e+00 : f32
    %648 = vector.broadcast %cst_329 : f32 to vector<8x128xf32>
    %649 = arith.addf %648, %647 : vector<8x128xf32>
    %650 = arith.divf %648, %649 : vector<8x128xf32>
    %651 = vector.extract_strided_slice %644 {offsets = [0, 128], sizes = [8, 128], strides = [1, 1]} : vector<8x512xf32> to vector<8x128xf32>
    %652 = arith.negf %651 : vector<8x128xf32>
    %653 = math.exp %652 : vector<8x128xf32>
    %cst_330 = arith.constant 1.000000e+00 : f32
    %654 = vector.broadcast %cst_330 : f32 to vector<8x128xf32>
    %655 = arith.addf %654, %653 : vector<8x128xf32>
    %656 = arith.divf %654, %655 : vector<8x128xf32>
    %657 = vector.extract_strided_slice %644 {offsets = [0, 256], sizes = [8, 128], strides = [1, 1]} : vector<8x512xf32> to vector<8x128xf32>
    %658 = math.tanh %657 : vector<8x128xf32>
    %659 = vector.extract_strided_slice %644 {offsets = [0, 384], sizes = [8, 128], strides = [1, 1]} : vector<8x512xf32> to vector<8x128xf32>
    %660 = arith.negf %659 : vector<8x128xf32>
    %661 = math.exp %660 : vector<8x128xf32>
    %cst_331 = arith.constant 1.000000e+00 : f32
    %662 = vector.broadcast %cst_331 : f32 to vector<8x128xf32>
    %663 = arith.addf %662, %661 : vector<8x128xf32>
    %664 = arith.divf %662, %663 : vector<8x128xf32>
    %665 = arith.mulf %656, %637 : vector<8x128xf32>
    %666 = arith.mulf %650, %658 : vector<8x128xf32>
    %667 = arith.addf %665, %666 : vector<8x128xf32>
    %668 = math.tanh %667 : vector<8x128xf32>
    %669 = arith.mulf %664, %668 : vector<8x128xf32>
    %c0_332 = arith.constant 0 : index
    %c0_333 = arith.constant 0 : index
    %670 = vector.load %arg12[%c0_332, %c0_333] : memref<8x128xf32, #tpu.memory_space<vmem>>, vector<8x128xf32>
    tpu.vector_store %arg12[%c0_332, %c0_333], %669 {strides = array<i32>} : memref<8x128xf32, #tpu.memory_space<vmem>>, vector<8x128xf32>,
    %c0_334 = arith.constant 0 : index
    %c0_335 = arith.constant 0 : index
    %671 = vector.load %arg13[%c0_334, %c0_335] : memref<8x128xf32, #tpu.memory_space<vmem>>, vector<8x128xf32>
    tpu.vector_store %arg13[%c0_334, %c0_335], %667 {strides = array<i32>} : memref<8x128xf32, #tpu.memory_space<vmem>>, vector<8x128xf32>,
    %672 = arith.index_cast %c7_i32_319 : i32 to index
    %c0_336 = arith.constant 0 : index
    %c0_337 = arith.constant 0 : index
    %673 = vector.load %arg8[%672, %c0_336, %c0_337] : memref<8x8x128xf32, #tpu.memory_space<vmem>>, vector<1x8x128xf32>
    %674 = vector.shape_cast %673 : vector<1x8x128xf32> to vector<8x128xf32>
    %675 = vector.shape_cast %669 : vector<8x128xf32> to vector<1x8x128xf32>
    tpu.vector_store %arg8[%672, %c0_336, %c0_337], %675 {strides = array<i32>} : memref<8x8x128xf32, #tpu.memory_space<vmem>>, vector<1x8x128xf32>,
    %c8_i32_338 = arith.constant 8 : i32
    %c0_339 = arith.constant 0 : index
    %c0_340 = arith.constant 0 : index
    %676 = vector.load %arg12[%c0_339, %c0_340] : memref<8x128xf32, #tpu.memory_space<vmem>>, vector<8x128xf32>
    %c1 = arith.constant 1 : index
    %c0_341 = arith.constant 0 : index
    %c0_342 = arith.constant 0 : index
    %677 = vector.load %arg9[%c1, %c0_341, %c0_342] : memref<2x8x128xf32, #tpu.memory_space<vmem>>, vector<1x8x128xf32>
    %678 = vector.shape_cast %677 : vector<1x8x128xf32> to vector<8x128xf32>
    %679 = vector.shape_cast %676 : vector<8x128xf32> to vector<1x8x128xf32>
    tpu.vector_store %arg9[%c1, %c0_341, %c0_342], %679 {strides = array<i32>} : memref<2x8x128xf32, #tpu.memory_space<vmem>>, vector<1x8x128xf32>,
    %c0_343 = arith.constant 0 : index
    %c0_344 = arith.constant 0 : index
    %680 = vector.load %arg13[%c0_343, %c0_344] : memref<8x128xf32, #tpu.memory_space<vmem>>, vector<8x128xf32>
    %c1_345 = arith.constant 1 : index
    %c0_346 = arith.constant 0 : index
    %c0_347 = arith.constant 0 : index
    %681 = vector.load %arg10[%c1_345, %c0_346, %c0_347] : memref<2x8x128xf32, #tpu.memory_space<vmem>>, vector<1x8x128xf32>
    %682 = vector.shape_cast %681 : vector<1x8x128xf32> to vector<8x128xf32>
    %683 = vector.shape_cast %680 : vector<8x128xf32> to vector<1x8x128xf32>
    tpu.vector_store %arg10[%c1_345, %c0_346, %c0_347], %683 {strides = array<i32>} : memref<2x8x128xf32, #tpu.memory_space<vmem>>, vector<1x8x128xf32>,
    return
  }
  func.func @transform_0(%arg0: i32) -> (i32, i32, i32) {
    %c0_i32 = arith.constant 0 : i32
    %c0_i32_0 = arith.constant 0 : i32
    %c0_i32_1 = arith.constant 0 : i32
    %c0_i32_2 = arith.constant 0 : i32
    return %c0_i32, %c0_i32_0, %c0_i32_1 : i32, i32, i32
  }
  func.func @transform_1(%arg0: i32) -> (i32, i32) {
    %c0_i32 = arith.constant 0 : i32
    %c0_i32_0 = arith.constant 0 : i32
    %c0_i32_1 = arith.constant 0 : i32
    return %c0_i32, %c0_i32_0 : i32, i32
  }
  func.func @transform_2(%arg0: i32) -> (i32, i32) {
    %c0_i32 = arith.constant 0 : i32
    %c0_i32_0 = arith.constant 0 : i32
    %c0_i32_1 = arith.constant 0 : i32
    return %c0_i32, %c0_i32_0 : i32, i32
  }
  func.func @transform_3(%arg0: i32) -> (i32, i32) {
    %c0_i32 = arith.constant 0 : i32
    %c0_i32_0 = arith.constant 0 : i32
    %c0_i32_1 = arith.constant 0 : i32
    return %c0_i32, %c0_i32_0 : i32, i32
  }
  func.func @transform_4(%arg0: i32) -> (i32, i32) {
    %c0_i32 = arith.constant 0 : i32
    %c0_i32_0 = arith.constant 0 : i32
    %c0_i32_1 = arith.constant 0 : i32
    return %c0_i32, %c0_i32_0 : i32, i32
  }
  func.func @transform_5(%arg0: i32) -> (i32, i32) {
    %c0_i32 = arith.constant 0 : i32
    %c0_i32_0 = arith.constant 0 : i32
    %c0_i32_1 = arith.constant 0 : i32
    return %c0_i32, %c0_i32_0 : i32, i32
  }
  func.func @transform_6(%arg0: i32) -> (i32, i32) {
    %c0_i32 = arith.constant 0 : i32
    %c0_i32_0 = arith.constant 0 : i32
    %c0_i32_1 = arith.constant 0 : i32
    return %c0_i32, %c0_i32_0 : i32, i32
  }
  func.func @transform_7(%arg0: i32) -> (i32, i32, i32) {
    %c0_i32 = arith.constant 0 : i32
    %c0_i32_0 = arith.constant 0 : i32
    %c0_i32_1 = arith.constant 0 : i32
    %c0_i32_2 = arith.constant 0 : i32
    return %c0_i32, %c0_i32_0, %c0_i32_1 : i32, i32, i32
  }
  func.func @transform_8(%arg0: i32) -> (i32, i32, i32) {
    %c0_i32 = arith.constant 0 : i32
    %c0_i32_0 = arith.constant 0 : i32
    %c0_i32_1 = arith.constant 0 : i32
    %c0_i32_2 = arith.constant 0 : i32
    return %c0_i32, %c0_i32_0, %c0_i32_1 : i32, i32, i32
  }
  func.func @transform_9(%arg0: i32) -> (i32, i32, i32) {
    %c0_i32 = arith.constant 0 : i32
    %c0_i32_0 = arith.constant 0 : i32
    %c0_i32_1 = arith.constant 0 : i32
    %c0_i32_2 = arith.constant 0 : i32
    return %c0_i32, %c0_i32_0, %c0_i32_1 : i32, i32, i32
  }
}

</mosaic_0001>

<llo_original>
// kernel: tpu_custom_call.1
$region0: #{tpu_custom_call.1}
  #allocation0 [shape = 'u32[]', space=smem, size = 0x4, offset = 0x4, fixed_abs, tag = 'smem constant byte address 0x4 - core index']
  #allocation1 [shape = 'u32[144,128]{1,0:T(1,128)}', space=vmem, size = 0x12000, scoped, tag = 'internal scratch']
  #allocation2 [shape = 'f32[8,8,512]{2,1,0:T(8,128)}', space=vmem, size = 0x20000, scoped, tag = 'scratch operand']
  #allocation3 [shape = 'f32[8,128]{1,0:T(8,128)}', space=vmem, size = 0x1000, scoped, tag = 'scratch operand']
  #allocation4 [shape = 'f32[8,128]{1,0:T(8,128)}', space=vmem, size = 0x1000, scoped, tag = 'scratch operand']
  %s0 = inlined_call_operand.hbm [shape: f32[8,8,128], index: 0, kind: input, shape index: {}]
  %s1 = inlined_call_operand.hbm [shape: bf16[128,512], index: 1, kind: input, shape index: {}]
  %s2 = inlined_call_operand.hbm [shape: bf16[128,512], index: 2, kind: input, shape index: {}]
  %s3 = inlined_call_operand.vmem [shape: f32[1,512], index: 3, kind: input, shape index: {}]
  %s4 = inlined_call_operand.hbm [shape: bf16[128,512], index: 4, kind: input, shape index: {}]
  %s5 = inlined_call_operand.hbm [shape: bf16[128,512], index: 5, kind: input, shape index: {}]
  %s6 = inlined_call_operand.vmem [shape: f32[1,512], index: 6, kind: input, shape index: {}]
  %s7 = inlined_call_operand.hbm [shape: f32[8,8,128], index: 7, kind: output, shape index: {0}]
  %s8 = inlined_call_operand.hbm [shape: f32[2,8,128], index: 8, kind: output, shape index: {1}]
  %s9 = inlined_call_operand.hbm [shape: f32[2,8,128], index: 9, kind: output, shape index: {2}]
  %10 = xla_tuple %s7, %s8, %s9
  %s11 = sld [smem:[#allocation0]]
  $region74: #{tpu_custom_call.1} parent=0
    _
  %s13 = ssub.s32 1, %s11
  %s14 = scalar_select 0, %s13, %s11
  $region1: #{tpu_custom_call.1} parent=0
    #allocation5 [shape = 'u8[32768]{0}', space=vmem, size = 0x8000, scoped, tag = 'input window, operand 0, single buffered']
    #allocation6 [shape = 's32[1]{0}', space=sflag, size = 0x4, scoped, tag = 'scoped memory for tpu_custom_call.1']
    #allocation7 [shape = 's32[1]{0}', space=sflag, size = 0x4, scoped, tag = 'scoped memory for tpu_custom_call.1']
    #allocation8 [shape = 'u8[131072]{0}', space=vmem, size = 0x20000, scoped, tag = 'input window, operand 1, single buffered']
    #allocation9 [shape = 's32[1]{0}', space=sflag, size = 0x4, scoped, tag = 'scoped memory for tpu_custom_call.1']
    #allocation10 [shape = 'u8[131072]{0}', space=vmem, size = 0x20000, scoped, tag = 'input window, operand 2, single buffered']
    #allocation11 [shape = 'u8[131072]{0}', space=vmem, size = 0x20000, scoped, tag = 'input window, operand 4, single buffered']
    #allocation12 [shape = 's32[1]{0}', space=sflag, size = 0x4, scoped, tag = 'scoped memory for tpu_custom_call.1']
    #allocation13 [shape = 'u8[131072]{0}', space=vmem, size = 0x20000, scoped, tag = 'input window, operand 5, single buffered']
    #allocation14 [shape = 'u8[32768]{0}', space=vmem, size = 0x8000, scoped, tag = 'output window, operand 0, single buffered']
    #allocation15 [shape = 'u8[8192]{0}', space=vmem, size = 0x2000, scoped, tag = 'output window, operand 1, single buffered']
    #allocation16 [shape = 's32[1]{0}', space=sflag, size = 0x4, scoped, tag = 'scoped memory for tpu_custom_call.1']
    #allocation17 [shape = 'u8[8192]{0}', space=vmem, size = 0x2000, scoped, tag = 'output window, operand 2, single buffered']
    %15 = vsyncpa [#allocation6], 0
    %16 = vsyncpa [#allocation9], 0
    %17 = vsyncpa [#allocation12], 0
    %18 = vsyncpa [#allocation7], 0
    %19 = vsyncpa [#allocation16], 0
    // Predicated region
    $region2: #{tpu_custom_call.1} parent=1 // pred_check
      _
    $region3: #{tpu_custom_call.1} parent=1 // pred_check_branch
      %21 = sbr.rel (0) target = $region5
    $region4: #{tpu_custom_call.1} parent=1 // pred_region
      %s23 = ssub.s32 1024, 1024
      %24 = vsyncadd [#allocation6], %s23
      %s25 = sshll.u32 [#allocation5], 4
      %s26 = int_to_ptr.vmem [resolvable:$true] %s25
      %31 = dma.hbm_to_vmem [thread:$0]  %s0, 1024, %s26, [#allocation6], 128, 128, 8
    $region5: #{tpu_custom_call.1} parent=1 // pred_fallthru
      _
    // Predicated region
    $region6: #{tpu_custom_call.1} parent=1 // pred_check
      _
    $region7: #{tpu_custom_call.1} parent=1 // pred_check_branch
      %33 = sbr.rel (0) target = $region9
    $region8: #{tpu_custom_call.1} parent=1 // pred_region
      %s35 = ssub.s32 4096, 4096
      %36 = vsyncadd [#allocation9], %s35
      %s37 = sshll.u32 [#allocation8], 4
      %s38 = int_to_ptr.vmem [resolvable:$true] %s37
      %43 = dma.hbm_to_vmem [thread:$0]  %s1, 4096, %s38, [#allocation9], 256, 256, 16
    $region9: #{tpu_custom_call.1} parent=1 // pred_fallthru
      _
    // Predicated region
    $region10: #{tpu_custom_call.1} parent=1 // pred_check
      _
    $region11: #{tpu_custom_call.1} parent=1 // pred_check_branch
      %45 = sbr.rel (0) target = $region13
    $region12: #{tpu_custom_call.1} parent=1 // pred_region
      %s47 = ssub.s32 4096, 4096
      %48 = vsyncadd [#allocation9], %s47
      %s49 = sshll.u32 [#allocation10], 4
      %s50 = int_to_ptr.vmem [resolvable:$true] %s49
      %55 = dma.hbm_to_vmem [thread:$0]  %s2, 4096, %s50, [#allocation9], 256, 256, 16
    $region13: #{tpu_custom_call.1} parent=1 // pred_fallthru
      _
    // Predicated region
    $region14: #{tpu_custom_call.1} parent=1 // pred_check
      _
    $region15: #{tpu_custom_call.1} parent=1 // pred_check_branch
      %57 = sbr.rel (0) target = $region17
    $region16: #{tpu_custom_call.1} parent=1 // pred_region
      _
    $region17: #{tpu_custom_call.1} parent=1 // pred_fallthru
      _
    // Predicated region
    $region18: #{tpu_custom_call.1} parent=1 // pred_check
      _
    $region19: #{tpu_custom_call.1} parent=1 // pred_check_branch
      %59 = sbr.rel (0) target = $region21
    $region20: #{tpu_custom_call.1} parent=1 // pred_region
      %s61 = ssub.s32 4096, 4096
      %62 = vsyncadd [#allocation12], %s61
      %s63 = sshll.u32 [#allocation11], 4
      %s64 = int_to_ptr.vmem [resolvable:$true] %s63
      %69 = dma.hbm_to_vmem [thread:$0]  %s4, 4096, %s64, [#allocation12], 256, 256, 16
    $region21: #{tpu_custom_call.1} parent=1 // pred_fallthru
      _
    // Predicated region
    $region22: #{tpu_custom_call.1} parent=1 // pred_check
      _
    $region23: #{tpu_custom_call.1} parent=1 // pred_check_branch
      %71 = sbr.rel (0) target = $region25
    $region24: #{tpu_custom_call.1} parent=1 // pred_region
      %s73 = ssub.s32 4096, 4096
      %74 = vsyncadd [#allocation12], %s73
      %s75 = sshll.u32 [#allocation13], 4
      %s76 = int_to_ptr.vmem [resolvable:$true] %s75
      %81 = dma.hbm_to_vmem [thread:$0]  %s5, 4096, %s76, [#allocation12], 256, 256, 16
    $region25: #{tpu_custom_call.1} parent=1 // pred_fallthru
      _
    // Predicated region
    $region26: #{tpu_custom_call.1} parent=1 // pred_check
      _
    $region27: #{tpu_custom_call.1} parent=1 // pred_check_branch
      %83 = sbr.rel (0) target = $region29
    $region28: #{tpu_custom_call.1} parent=1 // pred_region
      _
    $region29: #{tpu_custom_call.1} parent=1 // pred_fallthru
      _
    // Predicated region
    $region30: #{tpu_custom_call.1} parent=1 // pred_check
      _
    $region31: #{tpu_custom_call.1} parent=1 // pred_check_branch
      %85 = sbr.rel (0) target = $region33
    $region32: #{tpu_custom_call.1} parent=1 // pred_region
      %86 = dma.done [#allocation6], 1024
    $region33: #{tpu_custom_call.1} parent=1 // pred_fallthru
      _
    // Predicated region
    $region34: #{tpu_custom_call.1} parent=1 // pred_check
      _
    $region35: #{tpu_custom_call.1} parent=1 // pred_check_branch
      %88 = sbr.rel (0) target = $region37
    $region36: #{tpu_custom_call.1} parent=1 // pred_region
      %89 = dma.done [#allocation9], 4096
    $region37: #{tpu_custom_call.1} parent=1 // pred_fallthru
      _
    // Predicated region
    $region38: #{tpu_custom_call.1} parent=1 // pred_check
      _
    $region39: #{tpu_custom_call.1} parent=1 // pred_check_branch
      %91 = sbr.rel (0) target = $region41
    $region40: #{tpu_custom_call.1} parent=1 // pred_region
      %92 = dma.done [#allocation9], 4096
    $region41: #{tpu_custom_call.1} parent=1 // pred_fallthru
      _
    // Predicated region
    $region42: #{tpu_custom_call.1} parent=1 // pred_check
      _
    $region43: #{tpu_custom_call.1} parent=1 // pred_check_branch
      %94 = sbr.rel (0) target = $region45
    $region44: #{tpu_custom_call.1} parent=1 // pred_region
      %95 = dma.done [#allocation12], 4096
    $region45: #{tpu_custom_call.1} parent=1 // pred_fallthru
      _
    // Predicated region
    $region46: #{tpu_custom_call.1} parent=1 // pred_check
      _
    $region47: #{tpu_custom_call.1} parent=1 // pred_check_branch
      %97 = sbr.rel (0) target = $region49
    $region48: #{tpu_custom_call.1} parent=1 // pred_region
      %98 = dma.done [#allocation12], 4096
    $region49: #{tpu_custom_call.1} parent=1 // pred_fallthru
      _
    %v100 = vld [vmem:[#allocation5] sm:$0xff]
    %v101 = vld [vmem:[#allocation5 + $0x8] sm:$0xff]
    %v102 = vld [vmem:[#allocation5 + $0x10] sm:$0xff]
    %v103 = vld [vmem:[#allocation5 + $0x18] sm:$0xff]
    %v104 = vld [vmem:[#allocation5 + $0x20] sm:$0xff]
    %v105 = vld [vmem:[#allocation5 + $0x28] sm:$0xff]
    %v106 = vld [vmem:[#allocation5 + $0x30] sm:$0xff]
    %v107 = vld [vmem:[#allocation5 + $0x38] sm:$0xff]
    %v108 = vpack.c.bf16 %v101, %v100
    %v109 = vpack.c.bf16 %v103, %v102
    %v110 = vpack.c.bf16 %v105, %v104
    %v111 = vpack.c.bf16 %v107, %v106
    %v112 = vld [vmem:[#allocation8] sm:$0xff]
    %v113 = vld [vmem:[#allocation8 + $0x8] sm:$0xff]
    %v114 = vld [vmem:[#allocation8 + $0x10] sm:$0xff]
    %v115 = vld [vmem:[#allocation8 + $0x18] sm:$0xff]
    %v116 = vld [vmem:[#allocation8 + $0x20] sm:$0xff]
    %v117 = vld [vmem:[#allocation8 + $0x28] sm:$0xff]
    %v118 = vld [vmem:[#allocation8 + $0x30] sm:$0xff]
    %v119 = vld [vmem:[#allocation8 + $0x38] sm:$0xff]
    %v120 = vld [vmem:[#allocation8 + $0x40] sm:$0xff]
    %v121 = vld [vmem:[#allocation8 + $0x48] sm:$0xff]
    %v122 = vld [vmem:[#allocation8 + $0x50] sm:$0xff]
    %v123 = vld [vmem:[#allocation8 + $0x58] sm:$0xff]
    %v124 = vld [vmem:[#allocation8 + $0x60] sm:$0xff]
    %v125 = vld [vmem:[#allocation8 + $0x68] sm:$0xff]
    %v126 = vld [vmem:[#allocation8 + $0x70] sm:$0xff]
    %v127 = vld [vmem:[#allocation8 + $0x78] sm:$0xff]
    %v128 = vld [vmem:[#allocation8 + $0x80] sm:$0xff]
    %v129 = vld [vmem:[#allocation8 + $0x88] sm:$0xff]
    %v130 = vld [vmem:[#allocation8 + $0x90] sm:$0xff]
    %v131 = vld [vmem:[#allocation8 + $0x98] sm:$0xff]
    %v132 = vld [vmem:[#allocation8 + $0xa0] sm:$0xff]
    %v133 = vld [vmem:[#allocation8 + $0xa8] sm:$0xff]
    %v134 = vld [vmem:[#allocation8 + $0xb0] sm:$0xff]
    %v135 = vld [vmem:[#allocation8 + $0xb8] sm:$0xff]
    %v136 = vld [vmem:[#allocation8 + $0xc0] sm:$0xff]
    %v137 = vld [vmem:[#allocation8 + $0xc8] sm:$0xff]
    %v138 = vld [vmem:[#allocation8 + $0xd0] sm:$0xff]
    %v139 = vld [vmem:[#allocation8 + $0xd8] sm:$0xff]
    %v140 = vld [vmem:[#allocation8 + $0xe0] sm:$0xff]
    %v141 = vld [vmem:[#allocation8 + $0xe8] sm:$0xff]
    %v142 = vld [vmem:[#allocation8 + $0xf0] sm:$0xff]
    %v143 = vld [vmem:[#allocation8 + $0xf8] sm:$0xff]
    %v144 = vld [vmem:[%s3] sm:$0xf]
    %v146 = vlaneseq
    %v147 = vshrl.u32 %v146, 7
    %v148 = vsub.s32 0, %v147
    %v149 = vrot.slane %v144, %v148
    %v150 = vlaneseq
    %v151 = vshrl.u32 %v150, 7
    %v152 = vsub.s32 1, %v151
    %v153 = vrot.slane %v144, %v152
    %v154 = vlaneseq
    %v155 = vshrl.u32 %v154, 7
    %v156 = vsub.s32 2, %v155
    %v157 = vrot.slane %v144, %v156
    %v158 = vlaneseq
    %v159 = vshrl.u32 %v158, 7
    %v160 = vsub.s32 3, %v159
    %v161 = vrot.slane %v144, %v160
    %v198 = vunpack.c.l.b16 %v112
    %v199 = vunpack.c.h.b16 %v112
    %v200 = vunpack.c.l.b16 %v113
    %v201 = vunpack.c.h.b16 %v113
    %v202 = vunpack.c.l.b16 %v114
    %v203 = vunpack.c.h.b16 %v114
    %v204 = vunpack.c.l.b16 %v115
    %v205 = vunpack.c.h.b16 %v115
    %v206 = vunpack.c.l.b16 %v116
    %v207 = vunpack.c.h.b16 %v116
    %v208 = vunpack.c.l.b16 %v117
    %v209 = vunpack.c.h.b16 %v117
    %v210 = vunpack.c.l.b16 %v118
    %v211 = vunpack.c.h.b16 %v118
    %v212 = vunpack.c.l.b16 %v119
    %v213 = vunpack.c.h.b16 %v119
    %v214 = vunpack.c.l.b16 %v120
    %v215 = vunpack.c.h.b16 %v120
    %v216 = vunpack.c.l.b16 %v121
    %v217 = vunpack.c.h.b16 %v121
    %v218 = vunpack.c.l.b16 %v122
    %v219 = vunpack.c.h.b16 %v122
    %v220 = vunpack.c.l.b16 %v123
    %v221 = vunpack.c.h.b16 %v123
    %v222 = vunpack.c.l.b16 %v124
    %v223 = vunpack.c.h.b16 %v124
    %v224 = vunpack.c.l.b16 %v125
    %v225 = vunpack.c.h.b16 %v125
    %v226 = vunpack.c.l.b16 %v126
    %v227 = vunpack.c.h.b16 %v126
    %v228 = vunpack.c.l.b16 %v127
    %v229 = vunpack.c.h.b16 %v127
    %v230 = vunpack.c.l.b16 %v128
    %v231 = vunpack.c.h.b16 %v128
    %v232 = vunpack.c.l.b16 %v129
    %v233 = vunpack.c.h.b16 %v129
    %v234 = vunpack.c.l.b16 %v130
    %v235 = vunpack.c.h.b16 %v130
    %v236 = vunpack.c.l.b16 %v131
    %v237 = vunpack.c.h.b16 %v131
    %v238 = vunpack.c.l.b16 %v132
    %v239 = vunpack.c.h.b16 %v132
    %v240 = vunpack.c.l.b16 %v133
    %v241 = vunpack.c.h.b16 %v133
    %v242 = vunpack.c.l.b16 %v134
    %v243 = vunpack.c.h.b16 %v134
    %v244 = vunpack.c.l.b16 %v135
    %v245 = vunpack.c.h.b16 %v135
    %v246 = vunpack.c.l.b16 %v136
    %v247 = vunpack.c.h.b16 %v136
    %v248 = vunpack.c.l.b16 %v137
    %v249 = vunpack.c.h.b16 %v137
    %v250 = vunpack.c.l.b16 %v138
    %v251 = vunpack.c.h.b16 %v138
    %v252 = vunpack.c.l.b16 %v139
    %v253 = vunpack.c.h.b16 %v139
    %v254 = vunpack.c.l.b16 %v140
    %v255 = vunpack.c.h.b16 %v140
    %v256 = vunpack.c.l.b16 %v141
    %v257 = vunpack.c.h.b16 %v141
    %v258 = vunpack.c.l.b16 %v142
    %v259 = vunpack.c.h.b16 %v142
    %v260 = vunpack.c.l.b16 %v143
    %v261 = vunpack.c.h.b16 %v143
    %v262 = vpack.c.b16 %v202, %v198
    %v263 = vpack.c.b16 %v203, %v199
    %v264 = vpack.c.b16 %v204, %v200
    %v265 = vpack.c.b16 %v205, %v201
    %v266 = vpack.c.b16 %v210, %v206
    %v267 = vpack.c.b16 %v211, %v207
    %v268 = vpack.c.b16 %v212, %v208
    %v269 = vpack.c.b16 %v213, %v209
    %v270 = vpack.c.b16 %v218, %v214
    %v271 = vpack.c.b16 %v219, %v215
    %v272 = vpack.c.b16 %v220, %v216
    %v273 = vpack.c.b16 %v221, %v217
    %v274 = vpack.c.b16 %v226, %v222
    %v275 = vpack.c.b16 %v227, %v223
    %v276 = vpack.c.b16 %v228, %v224
    %v277 = vpack.c.b16 %v229, %v225
    %v278 = vpack.c.b16 %v234, %v230
    %v279 = vpack.c.b16 %v235, %v231
    %v280 = vpack.c.b16 %v236, %v232
    %v281 = vpack.c.b16 %v237, %v233
    %v282 = vpack.c.b16 %v242, %v238
    %v283 = vpack.c.b16 %v243, %v239
    %v284 = vpack.c.b16 %v244, %v240
    %v285 = vpack.c.b16 %v245, %v241
    %v286 = vpack.c.b16 %v250, %v246
    %v287 = vpack.c.b16 %v251, %v247
    %v288 = vpack.c.b16 %v252, %v248
    %v289 = vpack.c.b16 %v253, %v249
    %v290 = vpack.c.b16 %v258, %v254
    %v291 = vpack.c.b16 %v259, %v255
    %v292 = vpack.c.b16 %v260, %v256
    %v293 = vpack.c.b16 %v261, %v257
    %326 = vmatprep.subr.bf16.mxu0 %v263
    %327 = vmatpush1.bf16.msra.mxu0 %v262
    %328 = vmatprep.subr.bf16.mxu0 %v267
    %329 = vmatpush1.bf16.msra.mxu0 %v266
    %330 = vmatprep.subr.bf16.mxu0 %v271
    %331 = vmatpush1.bf16.msra.mxu0 %v270
    %332 = vmatprep.subr.bf16.mxu0 %v275
    %333 = vmatpush1.bf16.msra.mxu0 %v274
    %334 = vmatprep.subr.bf16.mxu0 %v279
    %335 = vmatpush1.bf16.msra.mxu0 %v278
    %336 = vmatprep.subr.bf16.mxu0 %v283
    %337 = vmatpush1.bf16.msra.mxu0 %v282
    %338 = vmatprep.subr.bf16.mxu0 %v287
    %339 = vmatpush1.bf16.msra.mxu0 %v286
    %340 = vmatprep.subr.bf16.mxu0 %v291
    %341 = vmatpush1.bf16.msra.mxu0 %v290
    %342 = vmatprep.subr.bf16.mxu0 0
    %343 = vmatpush1.bf16.msra.mxu0 0
    %344 = vmatprep.subr.bf16.mxu0 0
    %345 = vmatpush1.bf16.msra.mxu0 0
    %346 = vmatprep.subr.bf16.mxu0 0
    %347 = vmatpush1.bf16.msra.mxu0 0
    %348 = vmatprep.subr.bf16.mxu0 0
    %349 = vmatpush1.bf16.msra.mxu0 0
    %350 = vmatprep.subr.bf16.mxu0 0
    %351 = vmatpush1.bf16.msra.mxu0 0
    %352 = vmatprep.subr.bf16.mxu0 0
    %353 = vmatpush1.bf16.msra.mxu0 0
    %354 = vmatprep.subr.bf16.mxu0 0
    %355 = vmatpush1.bf16.msra.mxu0 0
    %356 = vmatprep.subr.bf16.mxu0 0
    %357 = vmatpush1.bf16.msra.mxu0 0
    %358 = vmatprep.mubr.bf16.mxu0 0
    %359 = vmatmul.mubr.bf16.gmra.mrb[0].mxu0 %v108
    %v360 = vpop.f32.mrb[0].mxu0
    %v361 = vadd.f32 %v149, %v360
    %v362 = vpop.f32.mrb[0].mxu0
    %v363 = vadd.f32 %v153, %v362
    %v364 = vpop.f32.mrb[0].mxu0
    %v365 = vadd.f32 %v149, %v364
    %v366 = vpop.f32.mrb[0].mxu0
    %v367 = vadd.f32 %v153, %v366
    %368 = vmatprep.mubr.bf16.mxu0 0
    %369 = vmatmul.mubr.bf16.gmra.mrb[0].mxu0 %v109
    %v370 = vpop.f32.mrb[0].mxu0
    %v371 = vadd.f32 %v149, %v370
    %v372 = vpop.f32.mrb[0].mxu0
    %v373 = vadd.f32 %v153, %v372
    %v374 = vpop.f32.mrb[0].mxu0
    %v375 = vadd.f32 %v149, %v374
    %v376 = vpop.f32.mrb[0].mxu0
    %v377 = vadd.f32 %v153, %v376
    %378 = vmatprep.mubr.bf16.mxu0 0
    %379 = vmatmul.mubr.bf16.gmra.mrb[0].mxu0 %v110
    %v380 = vpop.f32.mrb[0].mxu0
    %v381 = vadd.f32 %v149, %v380
    %v382 = vpop.f32.mrb[0].mxu0
    %v383 = vadd.f32 %v153, %v382
    %v384 = vpop.f32.mrb[0].mxu0
    %v385 = vadd.f32 %v149, %v384
    %v386 = vpop.f32.mrb[0].mxu0
    %v387 = vadd.f32 %v153, %v386
    %388 = vmatprep.mubr.bf16.mxu0 0
    %389 = vmatmul.mubr.bf16.gmra.mrb[0].mxu0 %v111
    %v390 = vpop.f32.mrb[0].mxu0
    %v391 = vadd.f32 %v149, %v390
    %v392 = vpop.f32.mrb[0].mxu0
    %v393 = vadd.f32 %v153, %v392
    %v394 = vpop.f32.mrb[0].mxu0
    %v395 = vadd.f32 %v149, %v394
    %v396 = vpop.f32.mrb[0].mxu0
    %v397 = vadd.f32 %v153, %v396
    %398 = vdwg.mxu0
    %399 = vmatprep.subr.bf16.mxu0 %v265
    %400 = vmatpush1.bf16.msra.mxu0 %v264
    %401 = vmatprep.subr.bf16.mxu0 %v269
    %402 = vmatpush1.bf16.msra.mxu0 %v268
    %403 = vmatprep.subr.bf16.mxu0 %v273
    %404 = vmatpush1.bf16.msra.mxu0 %v272
    %405 = vmatprep.subr.bf16.mxu0 %v277
    %406 = vmatpush1.bf16.msra.mxu0 %v276
    %407 = vmatprep.subr.bf16.mxu0 %v281
    %408 = vmatpush1.bf16.msra.mxu0 %v280
    %409 = vmatprep.subr.bf16.mxu0 %v285
    %410 = vmatpush1.bf16.msra.mxu0 %v284
    %411 = vmatprep.subr.bf16.mxu0 %v289
    %412 = vmatpush1.bf16.msra.mxu0 %v288
    %413 = vmatprep.subr.bf16.mxu0 %v293
    %414 = vmatpush1.bf16.msra.mxu0 %v292
    %415 = vmatprep.subr.bf16.mxu0 0
    %416 = vmatpush1.bf16.msra.mxu0 0
    %417 = vmatprep.subr.bf16.mxu0 0
    %418 = vmatpush1.bf16.msra.mxu0 0
    %419 = vmatprep.subr.bf16.mxu0 0
    %420 = vmatpush1.bf16.msra.mxu0 0
    %421 = vmatprep.subr.bf16.mxu0 0
    %422 = vmatpush1.bf16.msra.mxu0 0
    %423 = vmatprep.subr.bf16.mxu0 0
    %424 = vmatpush1.bf16.msra.mxu0 0
    %425 = vmatprep.subr.bf16.mxu0 0
    %426 = vmatpush1.bf16.msra.mxu0 0
    %427 = vmatprep.subr.bf16.mxu0 0
    %428 = vmatpush1.bf16.msra.mxu0 0
    %429 = vmatprep.subr.bf16.mxu0 0
    %430 = vmatpush1.bf16.msra.mxu0 0
    %431 = vmatprep.mubr.bf16.mxu0 0
    %432 = vmatmul.mubr.bf16.gmra.mrb[0].mxu0 %v108
    %v433 = vpop.f32.mrb[0].mxu0
    %v434 = vadd.f32 %v157, %v433
    %v435 = vpop.f32.mrb[0].mxu0
    %v436 = vadd.f32 %v161, %v435
    %v437 = vpop.f32.mrb[0].mxu0
    %v438 = vadd.f32 %v157, %v437
    %v439 = vpop.f32.mrb[0].mxu0
    %v440 = vadd.f32 %v161, %v439
    %441 = vmatprep.mubr.bf16.mxu0 0
    %442 = vmatmul.mubr.bf16.gmra.mrb[0].mxu0 %v109
    %v443 = vpop.f32.mrb[0].mxu0
    %v444 = vadd.f32 %v157, %v443
    %v445 = vpop.f32.mrb[0].mxu0
    %v446 = vadd.f32 %v161, %v445
    %v447 = vpop.f32.mrb[0].mxu0
    %v448 = vadd.f32 %v157, %v447
    %v449 = vpop.f32.mrb[0].mxu0
    %v450 = vadd.f32 %v161, %v449
    %451 = vmatprep.mubr.bf16.mxu0 0
    %452 = vmatmul.mubr.bf16.gmra.mrb[0].mxu0 %v110
    %v453 = vpop.f32.mrb[0].mxu0
    %v454 = vadd.f32 %v157, %v453
    %v455 = vpop.f32.mrb[0].mxu0
    %v456 = vadd.f32 %v161, %v455
    %v457 = vpop.f32.mrb[0].mxu0
    %v458 = vadd.f32 %v157, %v457
    %v459 = vpop.f32.mrb[0].mxu0
    %v460 = vadd.f32 %v161, %v459
    %461 = vmatprep.mubr.bf16.mxu0 0
    %462 = vmatmul.mubr.bf16.gmra.mrb[0].mxu0 %v111
    %v463 = vpop.f32.mrb[0].mxu0
    %v464 = vadd.f32 %v157, %v463
    %v465 = vpop.f32.mrb[0].mxu0
    %v466 = vadd.f32 %v161, %v465
    %v467 = vpop.f32.mrb[0].mxu0
    %v468 = vadd.f32 %v157, %v467
    %v469 = vpop.f32.mrb[0].mxu0
    %v470 = vadd.f32 %v161, %v469
    %471 = vdwg.mxu0
    %472 = vst [vmem:[#allocation2] sm:$0xff] %v361
    %473 = vst [vmem:[#allocation2 + $0x8] sm:$0xff] %v363
    %474 = vst [vmem:[#allocation2 + $0x10] sm:$0xff] %v434
    %475 = vst [vmem:[#allocation2 + $0x18] sm:$0xff] %v436
    %476 = vst [vmem:[#allocation2 + $0x20] sm:$0xff] %v365
    %477 = vst [vmem:[#allocation2 + $0x28] sm:$0xff] %v367
    %478 = vst [vmem:[#allocation2 + $0x30] sm:$0xff] %v438
    %479 = vst [vmem:[#allocation2 + $0x38] sm:$0xff] %v440
    %480 = vst [vmem:[#allocation2 + $0x40] sm:$0xff] %v371
    %481 = vst [vmem:[#allocation2 + $0x48] sm:$0xff] %v373
    %482 = vst [vmem:[#allocation2 + $0x50] sm:$0xff] %v444
    %483 = vst [vmem:[#allocation2 + $0x58] sm:$0xff] %v446
    %484 = vst [vmem:[#allocation2 + $0x60] sm:$0xff] %v375
    %485 = vst [vmem:[#allocation2 + $0x68] sm:$0xff] %v377
    %486 = vst [vmem:[#allocation2 + $0x70] sm:$0xff] %v448
    %487 = vst [vmem:[#allocation2 + $0x78] sm:$0xff] %v450
    %488 = vst [vmem:[#allocation2 + $0x80] sm:$0xff] %v381
    %489 = vst [vmem:[#allocation2 + $0x88] sm:$0xff] %v383
    %490 = vst [vmem:[#allocation2 + $0x90] sm:$0xff] %v454
    %491 = vst [vmem:[#allocation2 + $0x98] sm:$0xff] %v456
    %492 = vst [vmem:[#allocation2 + $0xa0] sm:$0xff] %v385
    %493 = vst [vmem:[#allocation2 + $0xa8] sm:$0xff] %v387
    %494 = vst [vmem:[#allocation2 + $0xb0] sm:$0xff] %v458
    %495 = vst [vmem:[#allocation2 + $0xb8] sm:$0xff] %v460
    %496 = vst [vmem:[#allocation2 + $0xc0] sm:$0xff] %v391
    %497 = vst [vmem:[#allocation2 + $0xc8] sm:$0xff] %v393
    %498 = vst [vmem:[#allocation2 + $0xd0] sm:$0xff] %v464
    %499 = vst [vmem:[#allocation2 + $0xd8] sm:$0xff] %v466
    %500 = vst [vmem:[#allocation2 + $0xe0] sm:$0xff] %v395
    %501 = vst [vmem:[#allocation2 + $0xe8] sm:$0xff] %v397
    %502 = vst [vmem:[#allocation2 + $0xf0] sm:$0xff] %v468
    %503 = vst [vmem:[#allocation2 + $0xf8] sm:$0xff] %v470
    %504 = vst [vmem:[#allocation3] sm:$0xff] 0.0
    %505 = vst [vmem:[#allocation4] sm:$0xff] 0.0
    %v506 = vld [vmem:[#allocation3] sm:$0xff]
    %v507 = vld [vmem:[#allocation4] sm:$0xff]
    %v508 = vld [vmem:[#allocation2] sm:$0xff]
    %v509 = vld [vmem:[#allocation2 + $0x8] sm:$0xff]
    %v510 = vld [vmem:[#allocation2 + $0x10] sm:$0xff]
    %v511 = vld [vmem:[#allocation2 + $0x18] sm:$0xff]
    %v512 = vpack.c.bf16 %v506, %v506
    %v513 = vld [vmem:[#allocation10] sm:$0xff]
    %v514 = vld [vmem:[#allocation10 + $0x8] sm:$0xff]
    %v515 = vld [vmem:[#allocation10 + $0x10] sm:$0xff]
    %v516 = vld [vmem:[#allocation10 + $0x18] sm:$0xff]
    %v517 = vld [vmem:[#allocation10 + $0x20] sm:$0xff]
    %v518 = vld [vmem:[#allocation10 + $0x28] sm:$0xff]
    %v519 = vld [vmem:[#allocation10 + $0x30] sm:$0xff]
    %v520 = vld [vmem:[#allocation10 + $0x38] sm:$0xff]
    %v521 = vld [vmem:[#allocation10 + $0x40] sm:$0xff]
    %v522 = vld [vmem:[#allocation10 + $0x48] sm:$0xff]
    %v523 = vld [vmem:[#allocation10 + $0x50] sm:$0xff]
    %v524 = vld [vmem:[#allocation10 + $0x58] sm:$0xff]
    %v525 = vld [vmem:[#allocation10 + $0x60] sm:$0xff]
    %v526 = vld [vmem:[#allocation10 + $0x68] sm:$0xff]
    %v527 = vld [vmem:[#allocation10 + $0x70] sm:$0xff]
    %v528 = vld [vmem:[#allocation10 + $0x78] sm:$0xff]
    %v529 = vld [vmem:[#allocation10 + $0x80] sm:$0xff]
    %v530 = vld [vmem:[#allocation10 + $0x88] sm:$0xff]
    %v531 = vld [vmem:[#allocation10 + $0x90] sm:$0xff]
    %v532 = vld [vmem:[#allocation10 + $0x98] sm:$0xff]
    %v533 = vld [vmem:[#allocation10 + $0xa0] sm:$0xff]
    %v534 = vld [vmem:[#allocation10 + $0xa8] sm:$0xff]
    %v535 = vld [vmem:[#allocation10 + $0xb0] sm:$0xff]
    %v536 = vld [vmem:[#allocation10 + $0xb8] sm:$0xff]
    %v537 = vld [vmem:[#allocation10 + $0xc0] sm:$0xff]
    %v538 = vld [vmem:[#allocation10 + $0xc8] sm:$0xff]
    %v539 = vld [vmem:[#allocation10 + $0xd0] sm:$0xff]
    %v540 = vld [vmem:[#allocation10 + $0xd8] sm:$0xff]
    %v541 = vld [vmem:[#allocation10 + $0xe0] sm:$0xff]
    %v542 = vld [vmem:[#allocation10 + $0xe8] sm:$0xff]
    %v543 = vld [vmem:[#allocation10 + $0xf0] sm:$0xff]
    %v544 = vld [vmem:[#allocation10 + $0xf8] sm:$0xff]
    %v577 = vunpack.c.l.b16 %v513
    %v578 = vunpack.c.h.b16 %v513
    %v579 = vunpack.c.l.b16 %v514
    %v580 = vunpack.c.h.b16 %v514
    %v581 = vunpack.c.l.b16 %v515
    %v582 = vunpack.c.h.b16 %v515
    %v583 = vunpack.c.l.b16 %v516
    %v584 = vunpack.c.h.b16 %v516
    %v585 = vunpack.c.l.b16 %v517
    %v586 = vunpack.c.h.b16 %v517
    %v587 = vunpack.c.l.b16 %v518
    %v588 = vunpack.c.h.b16 %v518
    %v589 = vunpack.c.l.b16 %v519
    %v590 = vunpack.c.h.b16 %v519
    %v591 = vunpack.c.l.b16 %v520
    %v592 = vunpack.c.h.b16 %v520
    %v593 = vunpack.c.l.b16 %v521
    %v594 = vunpack.c.h.b16 %v521
    %v595 = vunpack.c.l.b16 %v522
    %v596 = vunpack.c.h.b16 %v522
    %v597 = vunpack.c.l.b16 %v523
    %v598 = vunpack.c.h.b16 %v523
    %v599 = vunpack.c.l.b16 %v524
    %v600 = vunpack.c.h.b16 %v524
    %v601 = vunpack.c.l.b16 %v525
    %v602 = vunpack.c.h.b16 %v525
    %v603 = vunpack.c.l.b16 %v526
    %v604 = vunpack.c.h.b16 %v526
    %v605 = vunpack.c.l.b16 %v527
    %v606 = vunpack.c.h.b16 %v527
    %v607 = vunpack.c.l.b16 %v528
    %v608 = vunpack.c.h.b16 %v528
    %v609 = vunpack.c.l.b16 %v529
    %v610 = vunpack.c.h.b16 %v529
    %v611 = vunpack.c.l.b16 %v530
    %v612 = vunpack.c.h.b16 %v530
    %v613 = vunpack.c.l.b16 %v531
    %v614 = vunpack.c.h.b16 %v531
    %v615 = vunpack.c.l.b16 %v532
    %v616 = vunpack.c.h.b16 %v532
    %v617 = vunpack.c.l.b16 %v533
    %v618 = vunpack.c.h.b16 %v533
    %v619 = vunpack.c.l.b16 %v534
    %v620 = vunpack.c.h.b16 %v534
    %v621 = vunpack.c.l.b16 %v535
    %v622 = vunpack.c.h.b16 %v535
    %v623 = vunpack.c.l.b16 %v536
    %v624 = vunpack.c.h.b16 %v536
    %v625 = vunpack.c.l.b16 %v537
    %v626 = vunpack.c.h.b16 %v537
    %v627 = vunpack.c.l.b16 %v538
    %v628 = vunpack.c.h.b16 %v538
    %v629 = vunpack.c.l.b16 %v539
    %v630 = vunpack.c.h.b16 %v539
    %v631 = vunpack.c.l.b16 %v540
    %v632 = vunpack.c.h.b16 %v540
    %v633 = vunpack.c.l.b16 %v541
    %v634 = vunpack.c.h.b16 %v541
    %v635 = vunpack.c.l.b16 %v542
    %v636 = vunpack.c.h.b16 %v542
    %v637 = vunpack.c.l.b16 %v543
    %v638 = vunpack.c.h.b16 %v543
    %v639 = vunpack.c.l.b16 %v544
    %v640 = vunpack.c.h.b16 %v544
    %v641 = vpack.c.b16 %v581, %v577
    %v642 = vpack.c.b16 %v582, %v578
    %v643 = vpack.c.b16 %v583, %v579
    %v644 = vpack.c.b16 %v584, %v580
    %v645 = vpack.c.b16 %v589, %v585
    %v646 = vpack.c.b16 %v590, %v586
    %v647 = vpack.c.b16 %v591, %v587
    %v648 = vpack.c.b16 %v592, %v588
    %v649 = vpack.c.b16 %v597, %v593
    %v650 = vpack.c.b16 %v598, %v594
    %v651 = vpack.c.b16 %v599, %v595
    %v652 = vpack.c.b16 %v600, %v596
    %v653 = vpack.c.b16 %v605, %v601
    %v654 = vpack.c.b16 %v606, %v602
    %v655 = vpack.c.b16 %v607, %v603
    %v656 = vpack.c.b16 %v608, %v604
    %v657 = vpack.c.b16 %v613, %v609
    %v658 = vpack.c.b16 %v614, %v610
    %v659 = vpack.c.b16 %v615, %v611
    %v660 = vpack.c.b16 %v616, %v612
    %v661 = vpack.c.b16 %v621, %v617
    %v662 = vpack.c.b16 %v622, %v618
    %v663 = vpack.c.b16 %v623, %v619
    %v664 = vpack.c.b16 %v624, %v620
    %v665 = vpack.c.b16 %v629, %v625
    %v666 = vpack.c.b16 %v630, %v626
    %v667 = vpack.c.b16 %v631, %v627
    %v668 = vpack.c.b16 %v632, %v628
    %v669 = vpack.c.b16 %v637, %v633
    %v670 = vpack.c.b16 %v638, %v634
    %v671 = vpack.c.b16 %v639, %v635
    %v672 = vpack.c.b16 %v640, %v636
    %705 = vmatprep.subr.bf16.mxu0 %v642
    %706 = vmatpush1.bf16.msra.mxu0 %v641
    %707 = vmatprep.subr.bf16.mxu0 %v646
    %708 = vmatpush1.bf16.msra.mxu0 %v645
    %709 = vmatprep.subr.bf16.mxu0 %v650
    %710 = vmatpush1.bf16.msra.mxu0 %v649
    %711 = vmatprep.subr.bf16.mxu0 %v654
    %712 = vmatpush1.bf16.msra.mxu0 %v653
    %713 = vmatprep.subr.bf16.mxu0 %v658
    %714 = vmatpush1.bf16.msra.mxu0 %v657
    %715 = vmatprep.subr.bf16.mxu0 %v662
    %716 = vmatpush1.bf16.msra.mxu0 %v661
    %717 = vmatprep.subr.bf16.mxu0 %v666
    %718 = vmatpush1.bf16.msra.mxu0 %v665
    %719 = vmatprep.subr.bf16.mxu0 %v670
    %720 = vmatpush1.bf16.msra.mxu0 %v669
    %721 = vmatprep.subr.bf16.mxu0 0
    %722 = vmatpush1.bf16.msra.mxu0 0
    %723 = vmatprep.subr.bf16.mxu0 0
    %724 = vmatpush1.bf16.msra.mxu0 0
    %725 = vmatprep.subr.bf16.mxu0 0
    %726 = vmatpush1.bf16.msra.mxu0 0
    %727 = vmatprep.subr.bf16.mxu0 0
    %728 = vmatpush1.bf16.msra.mxu0 0
    %729 = vmatprep.subr.bf16.mxu0 0
    %730 = vmatpush1.bf16.msra.mxu0 0
    %731 = vmatprep.subr.bf16.mxu0 0
    %732 = vmatpush1.bf16.msra.mxu0 0
    %733 = vmatprep.subr.bf16.mxu0 0
    %734 = vmatpush1.bf16.msra.mxu0 0
    %735 = vmatprep.subr.bf16.mxu0 0
    %736 = vmatpush1.bf16.msra.mxu0 0
    %737 = vmatprep.mubr.bf16.mxu0 0
    %738 = vmatmul.mubr.bf16.gmra.mrb[0].mxu0 %v512
    %v739 = vpop.f32.mrb[0].mxu0
    %v740 = vadd.f32 0.0, %v739
    %v741 = vpop.f32.mrb[0].mxu0
    %v742 = vadd.f32 0.0, %v741
    %v743 = vpop.f32.mrb[0].mxu0
    %v744 = vpop.f32.mrb[0].mxu0
    %745 = vdwg.mxu0
    %746 = vmatprep.subr.bf16.mxu0 %v644
    %747 = vmatpush1.bf16.msra.mxu0 %v643
    %748 = vmatprep.subr.bf16.mxu0 %v648
    %749 = vmatpush1.bf16.msra.mxu0 %v647
    %750 = vmatprep.subr.bf16.mxu0 %v652
    %751 = vmatpush1.bf16.msra.mxu0 %v651
    %752 = vmatprep.subr.bf16.mxu0 %v656
    %753 = vmatpush1.bf16.msra.mxu0 %v655
    %754 = vmatprep.subr.bf16.mxu0 %v660
    %755 = vmatpush1.bf16.msra.mxu0 %v659
    %756 = vmatprep.subr.bf16.mxu0 %v664
    %757 = vmatpush1.bf16.msra.mxu0 %v663
    %758 = vmatprep.subr.bf16.mxu0 %v668
    %759 = vmatpush1.bf16.msra.mxu0 %v667
    %760 = vmatprep.subr.bf16.mxu0 %v672
    %761 = vmatpush1.bf16.msra.mxu0 %v671
    %762 = vmatprep.subr.bf16.mxu0 0
    %763 = vmatpush1.bf16.msra.mxu0 0
    %764 = vmatprep.subr.bf16.mxu0 0
    %765 = vmatpush1.bf16.msra.mxu0 0
    %766 = vmatprep.subr.bf16.mxu0 0
    %767 = vmatpush1.bf16.msra.mxu0 0
    %768 = vmatprep.subr.bf16.mxu0 0
    %769 = vmatpush1.bf16.msra.mxu0 0
    %770 = vmatprep.subr.bf16.mxu0 0
    %771 = vmatpush1.bf16.msra.mxu0 0
    %772 = vmatprep.subr.bf16.mxu0 0
    %773 = vmatpush1.bf16.msra.mxu0 0
    %774 = vmatprep.subr.bf16.mxu0 0
    %775 = vmatpush1.bf16.msra.mxu0 0
    %776 = vmatprep.subr.bf16.mxu0 0
    %777 = vmatpush1.bf16.msra.mxu0 0
    %778 = vmatprep.mubr.bf16.mxu0 0
    %779 = vmatmul.mubr.bf16.gmra.mrb[0].mxu0 %v512
    %v780 = vpop.f32.mrb[0].mxu0
    %v781 = vadd.f32 0.0, %v780
    %v782 = vpop.f32.mrb[0].mxu0
    %v783 = vadd.f32 0.0, %v782
    %v784 = vpop.f32.mrb[0].mxu0
    %v785 = vpop.f32.mrb[0].mxu0
    %786 = vdwg.mxu0
    %v787 = vadd.f32 %v508, %v740
    %v788 = vadd.f32 %v509, %v742
    %v789 = vadd.f32 %v510, %v781
    %v790 = vadd.f32 %v511, %v783
    %v791 = vxor.u32 %v787, 2147483648
    %v792 = vmul.f32 %v791, 1.442695
    %v793 = vpow.pop %v792
    %v794 = vadd.f32 %v793, 1.0
    %v795 = vrcp.pop %v794
    %v796 = vmul.f32 1.0, %v795
    %v797 = vxor.u32 %v788, 2147483648
    %v798 = vmul.f32 %v797, 1.442695
    %v799 = vpow.pop %v798
    %v800 = vadd.f32 %v799, 1.0
    %v801 = vrcp.pop %v800
    %v802 = vmul.f32 1.0, %v801
    %v803 = vtanh.pop %v789
    %v804 = vxor.u32 %v790, 2147483648
    %v805 = vmul.f32 %v804, 1.442695
    %v806 = vpow.pop %v805
    %v807 = vadd.f32 %v806, 1.0
    %v808 = vrcp.pop %v807
    %v809 = vmul.f32 1.0, %v808
    %v810 = vmul.f32 %v802, %v507
    %v811 = vmul.f32 %v796, %v803
    %v812 = vadd.f32 %v810, %v811
    %v813 = vtanh.pop %v812
    %v814 = vmul.f32 %v809, %v813
    %815 = vst [vmem:[#allocation3] sm:$0xff] %v814
    %816 = vst [vmem:[#allocation4] sm:$0xff] %v812
    %817 = vst [vmem:[#allocation14] sm:$0xff] %v814
    %v818 = vld [vmem:[#allocation3] sm:$0xff]
    %v819 = vld [vmem:[#allocation4] sm:$0xff]
    %s820 = scalar_lea.vmem [#allocation2], 32
    %v821 = vld [vmem:[%s820] sm:$0xff]
    %v822 = vld [vmem:[%s820 + $0x8] sm:$0xff]
    %v823 = vld [vmem:[%s820 + $0x10] sm:$0xff]
    %v824 = vld [vmem:[%s820 + $0x18] sm:$0xff]
    %v825 = vpack.c.bf16 %v818, %v818
    %v826 = vld [vmem:[#allocation10] sm:$0xff]
    %v827 = vld [vmem:[#allocation10 + $0x8] sm:$0xff]
    %v828 = vld [vmem:[#allocation10 + $0x10] sm:$0xff]
    %v829 = vld [vmem:[#allocation10 + $0x18] sm:$0xff]
    %v830 = vld [vmem:[#allocation10 + $0x20] sm:$0xff]
    %v831 = vld [vmem:[#allocation10 + $0x28] sm:$0xff]
    %v832 = vld [vmem:[#allocation10 + $0x30] sm:$0xff]
    %v833 = vld [vmem:[#allocation10 + $0x38] sm:$0xff]
    %v834 = vld [vmem:[#allocation10 + $0x40] sm:$0xff]
    %v835 = vld [vmem:[#allocation10 + $0x48] sm:$0xff]
    %v836 = vld [vmem:[#allocation10 + $0x50] sm:$0xff]
    %v837 = vld [vmem:[#allocation10 + $0x58] sm:$0xff]
    %v838 = vld [vmem:[#allocation10 + $0x60] sm:$0xff]
    %v839 = vld [vmem:[#allocation10 + $0x68] sm:$0xff]
    %v840 = vld [vmem:[#allocation10 + $0x70] sm:$0xff]
    %v841 = vld [vmem:[#allocation10 + $0x78] sm:$0xff]
    %v842 = vld [vmem:[#allocation10 + $0x80] sm:$0xff]
    %v843 = vld [vmem:[#allocation10 + $0x88] sm:$0xff]
    %v844 = vld [vmem:[#allocation10 + $0x90] sm:$0xff]
    %v845 = vld [vmem:[#allocation10 + $0x98] sm:$0xff]
    %v846 = vld [vmem:[#allocation10 + $0xa0] sm:$0xff]
    %v847 = vld [vmem:[#allocation10 + $0xa8] sm:$0xff]
    %v848 = vld [vmem:[#allocation10 + $0xb0] sm:$0xff]
    %v849 = vld [vmem:[#allocation10 + $0xb8] sm:$0xff]
    %v850 = vld [vmem:[#allocation10 + $0xc0] sm:$0xff]
    %v851 = vld [vmem:[#allocation10 + $0xc8] sm:$0xff]
    %v852 = vld [vmem:[#allocation10 + $0xd0] sm:$0xff]
    %v853 = vld [vmem:[#allocation10 + $0xd8] sm:$0xff]
    %v854 = vld [vmem:[#allocation10 + $0xe0] sm:$0xff]
    %v855 = vld [vmem:[#allocation10 + $0xe8] sm:$0xff]
    %v856 = vld [vmem:[#allocation10 + $0xf0] sm:$0xff]
    %v857 = vld [vmem:[#allocation10 + $0xf8] sm:$0xff]
    %v890 = vunpack.c.l.b16 %v826
    %v891 = vunpack.c.h.b16 %v826
    %v892 = vunpack.c.l.b16 %v827
    %v893 = vunpack.c.h.b16 %v827
    %v894 = vunpack.c.l.b16 %v828
    %v895 = vunpack.c.h.b16 %v828
    %v896 = vunpack.c.l.b16 %v829
    %v897 = vunpack.c.h.b16 %v829
    %v898 = vunpack.c.l.b16 %v830
    %v899 = vunpack.c.h.b16 %v830
    %v900 = vunpack.c.l.b16 %v831
    %v901 = vunpack.c.h.b16 %v831
    %v902 = vunpack.c.l.b16 %v832
    %v903 = vunpack.c.h.b16 %v832
    %v904 = vunpack.c.l.b16 %v833
    %v905 = vunpack.c.h.b16 %v833
    %v906 = vunpack.c.l.b16 %v834
    %v907 = vunpack.c.h.b16 %v834
    %v908 = vunpack.c.l.b16 %v835
    %v909 = vunpack.c.h.b16 %v835
    %v910 = vunpack.c.l.b16 %v836
    %v911 = vunpack.c.h.b16 %v836
    %v912 = vunpack.c.l.b16 %v837
    %v913 = vunpack.c.h.b16 %v837
    %v914 = vunpack.c.l.b16 %v838
    %v915 = vunpack.c.h.b16 %v838
    %v916 = vunpack.c.l.b16 %v839
    %v917 = vunpack.c.h.b16 %v839
    %v918 = vunpack.c.l.b16 %v840
    %v919 = vunpack.c.h.b16 %v840
    %v920 = vunpack.c.l.b16 %v841
    %v921 = vunpack.c.h.b16 %v841
    %v922 = vunpack.c.l.b16 %v842
    %v923 = vunpack.c.h.b16 %v842
    %v924 = vunpack.c.l.b16 %v843
    %v925 = vunpack.c.h.b16 %v843
    %v926 = vunpack.c.l.b16 %v844
    %v927 = vunpack.c.h.b16 %v844
    %v928 = vunpack.c.l.b16 %v845
    %v929 = vunpack.c.h.b16 %v845
    %v930 = vunpack.c.l.b16 %v846
    %v931 = vunpack.c.h.b16 %v846
    %v932 = vunpack.c.l.b16 %v847
    %v933 = vunpack.c.h.b16 %v847
    %v934 = vunpack.c.l.b16 %v848
    %v935 = vunpack.c.h.b16 %v848
    %v936 = vunpack.c.l.b16 %v849
    %v937 = vunpack.c.h.b16 %v849
    %v938 = vunpack.c.l.b16 %v850
    %v939 = vunpack.c.h.b16 %v850
    %v940 = vunpack.c.l.b16 %v851
    %v941 = vunpack.c.h.b16 %v851
    %v942 = vunpack.c.l.b16 %v852
    %v943 = vunpack.c.h.b16 %v852
    %v944 = vunpack.c.l.b16 %v853
    %v945 = vunpack.c.h.b16 %v853
    %v946 = vunpack.c.l.b16 %v854
    %v947 = vunpack.c.h.b16 %v854
    %v948 = vunpack.c.l.b16 %v855
    %v949 = vunpack.c.h.b16 %v855
    %v950 = vunpack.c.l.b16 %v856
    %v951 = vunpack.c.h.b16 %v856
    %v952 = vunpack.c.l.b16 %v857
    %v953 = vunpack.c.h.b16 %v857
    %v954 = vpack.c.b16 %v894, %v890
    %v955 = vpack.c.b16 %v895, %v891
    %v956 = vpack.c.b16 %v896, %v892
    %v957 = vpack.c.b16 %v897, %v893
    %v958 = vpack.c.b16 %v902, %v898
    %v959 = vpack.c.b16 %v903, %v899
    %v960 = vpack.c.b16 %v904, %v900
    %v961 = vpack.c.b16 %v905, %v901
    %v962 = vpack.c.b16 %v910, %v906
    %v963 = vpack.c.b16 %v911, %v907
    %v964 = vpack.c.b16 %v912, %v908
    %v965 = vpack.c.b16 %v913, %v909
    %v966 = vpack.c.b16 %v918, %v914
    %v967 = vpack.c.b16 %v919, %v915
    %v968 = vpack.c.b16 %v920, %v916
    %v969 = vpack.c.b16 %v921, %v917
    %v970 = vpack.c.b16 %v926, %v922
    %v971 = vpack.c.b16 %v927, %v923
    %v972 = vpack.c.b16 %v928, %v924
    %v973 = vpack.c.b16 %v929, %v925
    %v974 = vpack.c.b16 %v934, %v930
    %v975 = vpack.c.b16 %v935, %v931
    %v976 = vpack.c.b16 %v936, %v932
    %v977 = vpack.c.b16 %v937, %v933
    %v978 = vpack.c.b16 %v942, %v938
    %v979 = vpack.c.b16 %v943, %v939
    %v980 = vpack.c.b16 %v944, %v940
    %v981 = vpack.c.b16 %v945, %v941
    %v982 = vpack.c.b16 %v950, %v946
    %v983 = vpack.c.b16 %v951, %v947
    %v984 = vpack.c.b16 %v952, %v948
    %v985 = vpack.c.b16 %v953, %v949
    %1018 = vmatprep.subr.bf16.mxu0 %v955
    %1019 = vmatpush1.bf16.msra.mxu0 %v954
    %1020 = vmatprep.subr.bf16.mxu0 %v959
    %1021 = vmatpush1.bf16.msra.mxu0 %v958
    %1022 = vmatprep.subr.bf16.mxu0 %v963
    %1023 = vmatpush1.bf16.msra.mxu0 %v962
    %1024 = vmatprep.subr.bf16.mxu0 %v967
    %1025 = vmatpush1.bf16.msra.mxu0 %v966
    %1026 = vmatprep.subr.bf16.mxu0 %v971
    %1027 = vmatpush1.bf16.msra.mxu0 %v970
    %1028 = vmatprep.subr.bf16.mxu0 %v975
    %1029 = vmatpush1.bf16.msra.mxu0 %v974
    %1030 = vmatprep.subr.bf16.mxu0 %v979
    %1031 = vmatpush1.bf16.msra.mxu0 %v978
    %1032 = vmatprep.subr.bf16.mxu0 %v983
    %1033 = vmatpush1.bf16.msra.mxu0 %v982
    %1034 = vmatprep.subr.bf16.mxu0 0
    %1035 = vmatpush1.bf16.msra.mxu0 0
    %1036 = vmatprep.subr.bf16.mxu0 0
    %1037 = vmatpush1.bf16.msra.mxu0 0
    %1038 = vmatprep.subr.bf16.mxu0 0
    %1039 = vmatpush1.bf16.msra.mxu0 0
    %1040 = vmatprep.subr.bf16.mxu0 0
    %1041 = vmatpush1.bf16.msra.mxu0 0
    %1042 = vmatprep.subr.bf16.mxu0 0
    %1043 = vmatpush1.bf16.msra.mxu0 0
    %1044 = vmatprep.subr.bf16.mxu0 0
    %1045 = vmatpush1.bf16.msra.mxu0 0
    %1046 = vmatprep.subr.bf16.mxu0 0
    %1047 = vmatpush1.bf16.msra.mxu0 0
    %1048 = vmatprep.subr.bf16.mxu0 0
    %1049 = vmatpush1.bf16.msra.mxu0 0
    %1050 = vmatprep.mubr.bf16.mxu0 0
    %1051 = vmatmul.mubr.bf16.gmra.mrb[0].mxu0 %v825
    %v1052 = vpop.f32.mrb[0].mxu0
    %v1053 = vadd.f32 0.0, %v1052
    %v1054 = vpop.f32.mrb[0].mxu0
    %v1055 = vadd.f32 0.0, %v1054
    %v1056 = vpop.f32.mrb[0].mxu0
    %v1057 = vpop.f32.mrb[0].mxu0
    %1058 = vdwg.mxu0
    %1059 = vmatprep.subr.bf16.mxu0 %v957
    %1060 = vmatpush1.bf16.msra.mxu0 %v956
    %1061 = vmatprep.subr.bf16.mxu0 %v961
    %1062 = vmatpush1.bf16.msra.mxu0 %v960
    %1063 = vmatprep.subr.bf16.mxu0 %v965
    %1064 = vmatpush1.bf16.msra.mxu0 %v964
    %1065 = vmatprep.subr.bf16.mxu0 %v969
    %1066 = vmatpush1.bf16.msra.mxu0 %v968
    %1067 = vmatprep.subr.bf16.mxu0 %v973
    %1068 = vmatpush1.bf16.msra.mxu0 %v972
    %1069 = vmatprep.subr.bf16.mxu0 %v977
    %1070 = vmatpush1.bf16.msra.mxu0 %v976
    %1071 = vmatprep.subr.bf16.mxu0 %v981
    %1072 = vmatpush1.bf16.msra.mxu0 %v980
    %1073 = vmatprep.subr.bf16.mxu0 %v985
    %1074 = vmatpush1.bf16.msra.mxu0 %v984
    %1075 = vmatprep.subr.bf16.mxu0 0
    %1076 = vmatpush1.bf16.msra.mxu0 0
    %1077 = vmatprep.subr.bf16.mxu0 0
    %1078 = vmatpush1.bf16.msra.mxu0 0
    %1079 = vmatprep.subr.bf16.mxu0 0
    %1080 = vmatpush1.bf16.msra.mxu0 0
    %1081 = vmatprep.subr.bf16.mxu0 0
    %1082 = vmatpush1.bf16.msra.mxu0 0
    %1083 = vmatprep.subr.bf16.mxu0 0
    %1084 = vmatpush1.bf16.msra.mxu0 0
    %1085 = vmatprep.subr.bf16.mxu0 0
    %1086 = vmatpush1.bf16.msra.mxu0 0
    %1087 = vmatprep.subr.bf16.mxu0 0
    %1088 = vmatpush1.bf16.msra.mxu0 0
    %1089 = vmatprep.subr.bf16.mxu0 0
    %1090 = vmatpush1.bf16.msra.mxu0 0
    %1091 = vmatprep.mubr.bf16.mxu0 0
    %1092 = vmatmul.mubr.bf16.gmra.mrb[0].mxu0 %v825
    %v1093 = vpop.f32.mrb[0].mxu0
    %v1094 = vadd.f32 0.0, %v1093
    %v1095 = vpop.f32.mrb[0].mxu0
    %v1096 = vadd.f32 0.0, %v1095
    %v1097 = vpop.f32.mrb[0].mxu0
    %v1098 = vpop.f32.mrb[0].mxu0
    %1099 = vdwg.mxu0
    %v1100 = vadd.f32 %v821, %v1053
    %v1101 = vadd.f32 %v822, %v1055
    %v1102 = vadd.f32 %v823, %v1094
    %v1103 = vadd.f32 %v824, %v1096
    %v1104 = vxor.u32 %v1100, 2147483648
    %v1105 = vmul.f32 %v1104, 1.442695
    %v1106 = vpow.pop %v1105
    %v1107 = vadd.f32 %v1106, 1.0
    %v1108 = vrcp.pop %v1107
    %v1109 = vmul.f32 1.0, %v1108
    %v1110 = vxor.u32 %v1101, 2147483648
    %v1111 = vmul.f32 %v1110, 1.442695
    %v1112 = vpow.pop %v1111
    %v1113 = vadd.f32 %v1112, 1.0
    %v1114 = vrcp.pop %v1113
    %v1115 = vmul.f32 1.0, %v1114
    %v1116 = vtanh.pop %v1102
    %v1117 = vxor.u32 %v1103, 2147483648
    %v1118 = vmul.f32 %v1117, 1.442695
    %v1119 = vpow.pop %v1118
    %v1120 = vadd.f32 %v1119, 1.0
    %v1121 = vrcp.pop %v1120
    %v1122 = vmul.f32 1.0, %v1121
    %v1123 = vmul.f32 %v1115, %v819
    %v1124 = vmul.f32 %v1109, %v1116
    %v1125 = vadd.f32 %v1123, %v1124
    %v1126 = vtanh.pop %v1125
    %v1127 = vmul.f32 %v1122, %v1126
    %1128 = vst [vmem:[#allocation3] sm:$0xff] %v1127
    %1129 = vst [vmem:[#allocation4] sm:$0xff] %v1125
    %s1130 = scalar_lea.vmem [#allocation14], 8
    %1131 = vst [vmem:[%s1130] sm:$0xff] %v1127
    %v1132 = vld [vmem:[#allocation3] sm:$0xff]
    %v1133 = vld [vmem:[#allocation4] sm:$0xff]
    %s1134 = scalar_lea.vmem [#allocation2], 64
    %v1135 = vld [vmem:[%s1134] sm:$0xff]
    %v1136 = vld [vmem:[%s1134 + $0x8] sm:$0xff]
    %v1137 = vld [vmem:[%s1134 + $0x10] sm:$0xff]
    %v1138 = vld [vmem:[%s1134 + $0x18] sm:$0xff]
    %v1139 = vpack.c.bf16 %v1132, %v1132
    %v1140 = vld [vmem:[#allocation10] sm:$0xff]
    %v1141 = vld [vmem:[#allocation10 + $0x8] sm:$0xff]
    %v1142 = vld [vmem:[#allocation10 + $0x10] sm:$0xff]
    %v1143 = vld [vmem:[#allocation10 + $0x18] sm:$0xff]
    %v1144 = vld [vmem:[#allocation10 + $0x20] sm:$0xff]
    %v1145 = vld [vmem:[#allocation10 + $0x28] sm:$0xff]
    %v1146 = vld [vmem:[#allocation10 + $0x30] sm:$0xff]
    %v1147 = vld [vmem:[#allocation10 + $0x38] sm:$0xff]
    %v1148 = vld [vmem:[#allocation10 + $0x40] sm:$0xff]
    %v1149 = vld [vmem:[#allocation10 + $0x48] sm:$0xff]
    %v1150 = vld [vmem:[#allocation10 + $0x50] sm:$0xff]
    %v1151 = vld [vmem:[#allocation10 + $0x58] sm:$0xff]
    %v1152 = vld [vmem:[#allocation10 + $0x60] sm:$0xff]
    %v1153 = vld [vmem:[#allocation10 + $0x68] sm:$0xff]
    %v1154 = vld [vmem:[#allocation10 + $0x70] sm:$0xff]
    %v1155 = vld [vmem:[#allocation10 + $0x78] sm:$0xff]
    %v1156 = vld [vmem:[#allocation10 + $0x80] sm:$0xff]
    %v1157 = vld [vmem:[#allocation10 + $0x88] sm:$0xff]
    %v1158 = vld [vmem:[#allocation10 + $0x90] sm:$0xff]
    %v1159 = vld [vmem:[#allocation10 + $0x98] sm:$0xff]
    %v1160 = vld [vmem:[#allocation10 + $0xa0] sm:$0xff]
    %v1161 = vld [vmem:[#allocation10 + $0xa8] sm:$0xff]
    %v1162 = vld [vmem:[#allocation10 + $0xb0] sm:$0xff]
    %v1163 = vld [vmem:[#allocation10 + $0xb8] sm:$0xff]
    %v1164 = vld [vmem:[#allocation10 + $0xc0] sm:$0xff]
    %v1165 = vld [vmem:[#allocation10 + $0xc8] sm:$0xff]
    %v1166 = vld [vmem:[#allocation10 + $0xd0] sm:$0xff]
    %v1167 = vld [vmem:[#allocation10 + $0xd8] sm:$0xff]
    %v1168 = vld [vmem:[#allocation10 + $0xe0] sm:$0xff]
    %v1169 = vld [vmem:[#allocation10 + $0xe8] sm:$0xff]
    %v1170 = vld [vmem:[#allocation10 + $0xf0] sm:$0xff]
    %v1171 = vld [vmem:[#allocation10 + $0xf8] sm:$0xff]
    %v1204 = vunpack.c.l.b16 %v1140
    %v1205 = vunpack.c.h.b16 %v1140
    %v1206 = vunpack.c.l.b16 %v1141
    %v1207 = vunpack.c.h.b16 %v1141
    %v1208 = vunpack.c.l.b16 %v1142
    %v1209 = vunpack.c.h.b16 %v1142
    %v1210 = vunpack.c.l.b16 %v1143
    %v1211 = vunpack.c.h.b16 %v1143
    %v1212 = vunpack.c.l.b16 %v1144
    %v1213 = vunpack.c.h.b16 %v1144
    %v1214 = vunpack.c.l.b16 %v1145
    %v1215 = vunpack.c.h.b16 %v1145
    %v1216 = vunpack.c.l.b16 %v1146
    %v1217 = vunpack.c.h.b16 %v1146
    %v1218 = vunpack.c.l.b16 %v1147
    %v1219 = vunpack.c.h.b16 %v1147
    %v1220 = vunpack.c.l.b16 %v1148
    %v1221 = vunpack.c.h.b16 %v1148
    %v1222 = vunpack.c.l.b16 %v1149
    %v1223 = vunpack.c.h.b16 %v1149
    %v1224 = vunpack.c.l.b16 %v1150
    %v1225 = vunpack.c.h.b16 %v1150
    %v1226 = vunpack.c.l.b16 %v1151
    %v1227 = vunpack.c.h.b16 %v1151
    %v1228 = vunpack.c.l.b16 %v1152
    %v1229 = vunpack.c.h.b16 %v1152
    %v1230 = vunpack.c.l.b16 %v1153
    %v1231 = vunpack.c.h.b16 %v1153
    %v1232 = vunpack.c.l.b16 %v1154
    %v1233 = vunpack.c.h.b16 %v1154
    %v1234 = vunpack.c.l.b16 %v1155
    %v1235 = vunpack.c.h.b16 %v1155
    %v1236 = vunpack.c.l.b16 %v1156
    %v1237 = vunpack.c.h.b16 %v1156
    %v1238 = vunpack.c.l.b16 %v1157
    %v1239 = vunpack.c.h.b16 %v1157
    %v1240 = vunpack.c.l.b16 %v1158
    %v1241 = vunpack.c.h.b16 %v1158
    %v1242 = vunpack.c.l.b16 %v1159
    %v1243 = vunpack.c.h.b16 %v1159
    %v1244 = vunpack.c.l.b16 %v1160
    %v1245 = vunpack.c.h.b16 %v1160
    %v1246 = vunpack.c.l.b16 %v1161
    %v1247 = vunpack.c.h.b16 %v1161
    %v1248 = vunpack.c.l.b16 %v1162
    %v1249 = vunpack.c.h.b16 %v1162
    %v1250 = vunpack.c.l.b16 %v1163
    %v1251 = vunpack.c.h.b16 %v1163
    %v1252 = vunpack.c.l.b16 %v1164
    %v1253 = vunpack.c.h.b16 %v1164
    %v1254 = vunpack.c.l.b16 %v1165
    %v1255 = vunpack.c.h.b16 %v1165
    %v1256 = vunpack.c.l.b16 %v1166
    %v1257 = vunpack.c.h.b16 %v1166
    %v1258 = vunpack.c.l.b16 %v1167
    %v1259 = vunpack.c.h.b16 %v1167
    %v1260 = vunpack.c.l.b16 %v1168
    %v1261 = vunpack.c.h.b16 %v1168
    %v1262 = vunpack.c.l.b16 %v1169
    %v1263 = vunpack.c.h.b16 %v1169
    %v1264 = vunpack.c.l.b16 %v1170
    %v1265 = vunpack.c.h.b16 %v1170
    %v1266 = vunpack.c.l.b16 %v1171
    %v1267 = vunpack.c.h.b16 %v1171
    %v1268 = vpack.c.b16 %v1208, %v1204
    %v1269 = vpack.c.b16 %v1209, %v1205
    %v1270 = vpack.c.b16 %v1210, %v1206
    %v1271 = vpack.c.b16 %v1211, %v1207
    %v1272 = vpack.c.b16 %v1216, %v1212
    %v1273 = vpack.c.b16 %v1217, %v1213
    %v1274 = vpack.c.b16 %v1218, %v1214
    %v1275 = vpack.c.b16 %v1219, %v1215
    %v1276 = vpack.c.b16 %v1224, %v1220
    %v1277 = vpack.c.b16 %v1225, %v1221
    %v1278 = vpack.c.b16 %v1226, %v1222
    %v1279 = vpack.c.b16 %v1227, %v1223
    %v1280 = vpack.c.b16 %v1232, %v1228
    %v1281 = vpack.c.b16 %v1233, %v1229
    %v1282 = vpack.c.b16 %v1234, %v1230
    %v1283 = vpack.c.b16 %v1235, %v1231
    %v1284 = vpack.c.b16 %v1240, %v1236
    %v1285 = vpack.c.b16 %v1241, %v1237
    %v1286 = vpack.c.b16 %v1242, %v1238
    %v1287 = vpack.c.b16 %v1243, %v1239
    %v1288 = vpack.c.b16 %v1248, %v1244
    %v1289 = vpack.c.b16 %v1249, %v1245
    %v1290 = vpack.c.b16 %v1250, %v1246
    %v1291 = vpack.c.b16 %v1251, %v1247
    %v1292 = vpack.c.b16 %v1256, %v1252
    %v1293 = vpack.c.b16 %v1257, %v1253
    %v1294 = vpack.c.b16 %v1258, %v1254
    %v1295 = vpack.c.b16 %v1259, %v1255
    %v1296 = vpack.c.b16 %v1264, %v1260
    %v1297 = vpack.c.b16 %v1265, %v1261
    %v1298 = vpack.c.b16 %v1266, %v1262
    %v1299 = vpack.c.b16 %v1267, %v1263
    %1332 = vmatprep.subr.bf16.mxu0 %v1269
    %1333 = vmatpush1.bf16.msra.mxu0 %v1268
    %1334 = vmatprep.subr.bf16.mxu0 %v1273
    %1335 = vmatpush1.bf16.msra.mxu0 %v1272
    %1336 = vmatprep.subr.bf16.mxu0 %v1277
    %1337 = vmatpush1.bf16.msra.mxu0 %v1276
    %1338 = vmatprep.subr.bf16.mxu0 %v1281
    %1339 = vmatpush1.bf16.msra.mxu0 %v1280
    %1340 = vmatprep.subr.bf16.mxu0 %v1285
    %1341 = vmatpush1.bf16.msra.mxu0 %v1284
    %1342 = vmatprep.subr.bf16.mxu0 %v1289
    %1343 = vmatpush1.bf16.msra.mxu0 %v1288
    %1344 = vmatprep.subr.bf16.mxu0 %v1293
    %1345 = vmatpush1.bf16.msra.mxu0 %v1292
    %1346 = vmatprep.subr.bf16.mxu0 %v1297
    %1347 = vmatpush1.bf16.msra.mxu0 %v1296
    %1348 = vmatprep.subr.bf16.mxu0 0
    %1349 = vmatpush1.bf16.msra.mxu0 0
    %1350 = vmatprep.subr.bf16.mxu0 0
    %1351 = vmatpush1.bf16.msra.mxu0 0
    %1352 = vmatprep.subr.bf16.mxu0 0
    %1353 = vmatpush1.bf16.msra.mxu0 0
    %1354 = vmatprep.subr.bf16.mxu0 0
    %1355 = vmatpush1.bf16.msra.mxu0 0
    %1356 = vmatprep.subr.bf16.mxu0 0
    %1357 = vmatpush1.bf16.msra.mxu0 0
    %1358 = vmatprep.subr.bf16.mxu0 0
    %1359 = vmatpush1.bf16.msra.mxu0 0
    %1360 = vmatprep.subr.bf16.mxu0 0
    %1361 = vmatpush1.bf16.msra.mxu0 0
    %1362 = vmatprep.subr.bf16.mxu0 0
    %1363 = vmatpush1.bf16.msra.mxu0 0
    %1364 = vmatprep.mubr.bf16.mxu0 0
    %1365 = vmatmul.mubr.bf16.gmra.mrb[0].mxu0 %v1139
    %v1366 = vpop.f32.mrb[0].mxu0
    %v1367 = vadd.f32 0.0, %v1366
    %v1368 = vpop.f32.mrb[0].mxu0
    %v1369 = vadd.f32 0.0, %v1368
    %v1370 = vpop.f32.mrb[0].mxu0
    %v1371 = vpop.f32.mrb[0].mxu0
    %1372 = vdwg.mxu0
    %1373 = vmatprep.subr.bf16.mxu0 %v1271
    %1374 = vmatpush1.bf16.msra.mxu0 %v1270
    %1375 = vmatprep.subr.bf16.mxu0 %v1275
    %1376 = vmatpush1.bf16.msra.mxu0 %v1274
    %1377 = vmatprep.subr.bf16.mxu0 %v1279
    %1378 = vmatpush1.bf16.msra.mxu0 %v1278
    %1379 = vmatprep.subr.bf16.mxu0 %v1283
    %1380 = vmatpush1.bf16.msra.mxu0 %v1282
    %1381 = vmatprep.subr.bf16.mxu0 %v1287
    %1382 = vmatpush1.bf16.msra.mxu0 %v1286
    %1383 = vmatprep.subr.bf16.mxu0 %v1291
    %1384 = vmatpush1.bf16.msra.mxu0 %v1290
    %1385 = vmatprep.subr.bf16.mxu0 %v1295
    %1386 = vmatpush1.bf16.msra.mxu0 %v1294
    %1387 = vmatprep.subr.bf16.mxu0 %v1299
    %1388 = vmatpush1.bf16.msra.mxu0 %v1298
    %1389 = vmatprep.subr.bf16.mxu0 0
    %1390 = vmatpush1.bf16.msra.mxu0 0
    %1391 = vmatprep.subr.bf16.mxu0 0
    %1392 = vmatpush1.bf16.msra.mxu0 0
    %1393 = vmatprep.subr.bf16.mxu0 0
    %1394 = vmatpush1.bf16.msra.mxu0 0
    %1395 = vmatprep.subr.bf16.mxu0 0
    %1396 = vmatpush1.bf16.msra.mxu0 0
    %1397 = vmatprep.subr.bf16.mxu0 0
    %1398 = vmatpush1.bf16.msra.mxu0 0
    %1399 = vmatprep.subr.bf16.mxu0 0
    %1400 = vmatpush1.bf16.msra.mxu0 0
    %1401 = vmatprep.subr.bf16.mxu0 0
    %1402 = vmatpush1.bf16.msra.mxu0 0
    %1403 = vmatprep.subr.bf16.mxu0 0
    %1404 = vmatpush1.bf16.msra.mxu0 0
    %1405 = vmatprep.mubr.bf16.mxu0 0
    %1406 = vmatmul.mubr.bf16.gmra.mrb[0].mxu0 %v1139
    %v1407 = vpop.f32.mrb[0].mxu0
    %v1408 = vadd.f32 0.0, %v1407
    %v1409 = vpop.f32.mrb[0].mxu0
    %v1410 = vadd.f32 0.0, %v1409
    %v1411 = vpop.f32.mrb[0].mxu0
    %v1412 = vpop.f32.mrb[0].mxu0
    %1413 = vdwg.mxu0
    %v1414 = vadd.f32 %v1135, %v1367
    %v1415 = vadd.f32 %v1136, %v1369
    %v1416 = vadd.f32 %v1137, %v1408
    %v1417 = vadd.f32 %v1138, %v1410
    %v1418 = vxor.u32 %v1414, 2147483648
    %v1419 = vmul.f32 %v1418, 1.442695
    %v1420 = vpow.pop %v1419
    %v1421 = vadd.f32 %v1420, 1.0
    %v1422 = vrcp.pop %v1421
    %v1423 = vmul.f32 1.0, %v1422
    %v1424 = vxor.u32 %v1415, 2147483648
    %v1425 = vmul.f32 %v1424, 1.442695
    %v1426 = vpow.pop %v1425
    %v1427 = vadd.f32 %v1426, 1.0
    %v1428 = vrcp.pop %v1427
    %v1429 = vmul.f32 1.0, %v1428
    %v1430 = vtanh.pop %v1416
    %v1431 = vxor.u32 %v1417, 2147483648
    %v1432 = vmul.f32 %v1431, 1.442695
    %v1433 = vpow.pop %v1432
    %v1434 = vadd.f32 %v1433, 1.0
    %v1435 = vrcp.pop %v1434
    %v1436 = vmul.f32 1.0, %v1435
    %v1437 = vmul.f32 %v1429, %v1133
    %v1438 = vmul.f32 %v1423, %v1430
    %v1439 = vadd.f32 %v1437, %v1438
    %v1440 = vtanh.pop %v1439
    %v1441 = vmul.f32 %v1436, %v1440
    %1442 = vst [vmem:[#allocation3] sm:$0xff] %v1441
    %1443 = vst [vmem:[#allocation4] sm:$0xff] %v1439
    %s1444 = scalar_lea.vmem [#allocation14], 16
    %1445 = vst [vmem:[%s1444] sm:$0xff] %v1441
    %v1446 = vld [vmem:[#allocation3] sm:$0xff]
    %v1447 = vld [vmem:[#allocation4] sm:$0xff]
    %s1448 = scalar_lea.vmem [#allocation2], 96
    %v1449 = vld [vmem:[%s1448] sm:$0xff]
    %v1450 = vld [vmem:[%s1448 + $0x8] sm:$0xff]
    %v1451 = vld [vmem:[%s1448 + $0x10] sm:$0xff]
    %v1452 = vld [vmem:[%s1448 + $0x18] sm:$0xff]
    %v1453 = vpack.c.bf16 %v1446, %v1446
    %v1454 = vld [vmem:[#allocation10] sm:$0xff]
    %v1455 = vld [vmem:[#allocation10 + $0x8] sm:$0xff]
    %v1456 = vld [vmem:[#allocation10 + $0x10] sm:$0xff]
    %v1457 = vld [vmem:[#allocation10 + $0x18] sm:$0xff]
    %v1458 = vld [vmem:[#allocation10 + $0x20] sm:$0xff]
    %v1459 = vld [vmem:[#allocation10 + $0x28] sm:$0xff]
    %v1460 = vld [vmem:[#allocation10 + $0x30] sm:$0xff]
    %v1461 = vld [vmem:[#allocation10 + $0x38] sm:$0xff]
    %v1462 = vld [vmem:[#allocation10 + $0x40] sm:$0xff]
    %v1463 = vld [vmem:[#allocation10 + $0x48] sm:$0xff]
    %v1464 = vld [vmem:[#allocation10 + $0x50] sm:$0xff]
    %v1465 = vld [vmem:[#allocation10 + $0x58] sm:$0xff]
    %v1466 = vld [vmem:[#allocation10 + $0x60] sm:$0xff]
    %v1467 = vld [vmem:[#allocation10 + $0x68] sm:$0xff]
    %v1468 = vld [vmem:[#allocation10 + $0x70] sm:$0xff]
    %v1469 = vld [vmem:[#allocation10 + $0x78] sm:$0xff]
    %v1470 = vld [vmem:[#allocation10 + $0x80] sm:$0xff]
    %v1471 = vld [vmem:[#allocation10 + $0x88] sm:$0xff]
    %v1472 = vld [vmem:[#allocation10 + $0x90] sm:$0xff]
    %v1473 = vld [vmem:[#allocation10 + $0x98] sm:$0xff]
    %v1474 = vld [vmem:[#allocation10 + $0xa0] sm:$0xff]
    %v1475 = vld [vmem:[#allocation10 + $0xa8] sm:$0xff]
    %v1476 = vld [vmem:[#allocation10 + $0xb0] sm:$0xff]
    %v1477 = vld [vmem:[#allocation10 + $0xb8] sm:$0xff]
    %v1478 = vld [vmem:[#allocation10 + $0xc0] sm:$0xff]
    %v1479 = vld [vmem:[#allocation10 + $0xc8] sm:$0xff]
    %v1480 = vld [vmem:[#allocation10 + $0xd0] sm:$0xff]
    %v1481 = vld [vmem:[#allocation10 + $0xd8] sm:$0xff]
    %v1482 = vld [vmem:[#allocation10 + $0xe0] sm:$0xff]
    %v1483 = vld [vmem:[#allocation10 + $0xe8] sm:$0xff]
    %v1484 = vld [vmem:[#allocation10 + $0xf0] sm:$0xff]
    %v1485 = vld [vmem:[#allocation10 + $0xf8] sm:$0xff]
    %v1518 = vunpack.c.l.b16 %v1454
    %v1519 = vunpack.c.h.b16 %v1454
    %v1520 = vunpack.c.l.b16 %v1455
    %v1521 = vunpack.c.h.b16 %v1455
    %v1522 = vunpack.c.l.b16 %v1456
    %v1523 = vunpack.c.h.b16 %v1456
    %v1524 = vunpack.c.l.b16 %v1457
    %v1525 = vunpack.c.h.b16 %v1457
    %v1526 = vunpack.c.l.b16 %v1458
    %v1527 = vunpack.c.h.b16 %v1458
    %v1528 = vunpack.c.l.b16 %v1459
    %v1529 = vunpack.c.h.b16 %v1459
    %v1530 = vunpack.c.l.b16 %v1460
    %v1531 = vunpack.c.h.b16 %v1460
    %v1532 = vunpack.c.l.b16 %v1461
    %v1533 = vunpack.c.h.b16 %v1461
    %v1534 = vunpack.c.l.b16 %v1462
    %v1535 = vunpack.c.h.b16 %v1462
    %v1536 = vunpack.c.l.b16 %v1463
    %v1537 = vunpack.c.h.b16 %v1463
    %v1538 = vunpack.c.l.b16 %v1464
    %v1539 = vunpack.c.h.b16 %v1464
    %v1540 = vunpack.c.l.b16 %v1465
    %v1541 = vunpack.c.h.b16 %v1465
    %v1542 = vunpack.c.l.b16 %v1466
    %v1543 = vunpack.c.h.b16 %v1466
    %v1544 = vunpack.c.l.b16 %v1467
    %v1545 = vunpack.c.h.b16 %v1467
    %v1546 = vunpack.c.l.b16 %v1468
    %v1547 = vunpack.c.h.b16 %v1468
    %v1548 = vunpack.c.l.b16 %v1469
    %v1549 = vunpack.c.h.b16 %v1469
    %v1550 = vunpack.c.l.b16 %v1470
    %v1551 = vunpack.c.h.b16 %v1470
    %v1552 = vunpack.c.l.b16 %v1471
    %v1553 = vunpack.c.h.b16 %v1471
    %v1554 = vunpack.c.l.b16 %v1472
    %v1555 = vunpack.c.h.b16 %v1472
    %v1556 = vunpack.c.l.b16 %v1473
    %v1557 = vunpack.c.h.b16 %v1473
    %v1558 = vunpack.c.l.b16 %v1474
    %v1559 = vunpack.c.h.b16 %v1474
    %v1560 = vunpack.c.l.b16 %v1475
    %v1561 = vunpack.c.h.b16 %v1475
    %v1562 = vunpack.c.l.b16 %v1476
    %v1563 = vunpack.c.h.b16 %v1476
    %v1564 = vunpack.c.l.b16 %v1477
    %v1565 = vunpack.c.h.b16 %v1477
    %v1566 = vunpack.c.l.b16 %v1478
    %v1567 = vunpack.c.h.b16 %v1478
    %v1568 = vunpack.c.l.b16 %v1479
    %v1569 = vunpack.c.h.b16 %v1479
    %v1570 = vunpack.c.l.b16 %v1480
    %v1571 = vunpack.c.h.b16 %v1480
    %v1572 = vunpack.c.l.b16 %v1481
    %v1573 = vunpack.c.h.b16 %v1481
    %v1574 = vunpack.c.l.b16 %v1482
    %v1575 = vunpack.c.h.b16 %v1482
    %v1576 = vunpack.c.l.b16 %v1483
    %v1577 = vunpack.c.h.b16 %v1483
    %v1578 = vunpack.c.l.b16 %v1484
    %v1579 = vunpack.c.h.b16 %v1484
    %v1580 = vunpack.c.l.b16 %v1485
    %v1581 = vunpack.c.h.b16 %v1485
    %v1582 = vpack.c.b16 %v1522, %v1518
    %v1583 = vpack.c.b16 %v1523, %v1519
    %v1584 = vpack.c.b16 %v1524, %v1520
    %v1585 = vpack.c.b16 %v1525, %v1521
    %v1586 = vpack.c.b16 %v1530, %v1526
    %v1587 = vpack.c.b16 %v1531, %v1527
    %v1588 = vpack.c.b16 %v1532, %v1528
    %v1589 = vpack.c.b16 %v1533, %v1529
    %v1590 = vpack.c.b16 %v1538, %v1534
    %v1591 = vpack.c.b16 %v1539, %v1535
    %v1592 = vpack.c.b16 %v1540, %v1536
    %v1593 = vpack.c.b16 %v1541, %v1537
    %v1594 = vpack.c.b16 %v1546, %v1542
    %v1595 = vpack.c.b16 %v1547, %v1543
    %v1596 = vpack.c.b16 %v1548, %v1544
    %v1597 = vpack.c.b16 %v1549, %v1545
    %v1598 = vpack.c.b16 %v1554, %v1550
    %v1599 = vpack.c.b16 %v1555, %v1551
    %v1600 = vpack.c.b16 %v1556, %v1552
    %v1601 = vpack.c.b16 %v1557, %v1553
    %v1602 = vpack.c.b16 %v1562, %v1558
    %v1603 = vpack.c.b16 %v1563, %v1559
    %v1604 = vpack.c.b16 %v1564, %v1560
    %v1605 = vpack.c.b16 %v1565, %v1561
    %v1606 = vpack.c.b16 %v1570, %v1566
    %v1607 = vpack.c.b16 %v1571, %v1567
    %v1608 = vpack.c.b16 %v1572, %v1568
    %v1609 = vpack.c.b16 %v1573, %v1569
    %v1610 = vpack.c.b16 %v1578, %v1574
    %v1611 = vpack.c.b16 %v1579, %v1575
    %v1612 = vpack.c.b16 %v1580, %v1576
    %v1613 = vpack.c.b16 %v1581, %v1577
    %1646 = vmatprep.subr.bf16.mxu0 %v1583
    %1647 = vmatpush1.bf16.msra.mxu0 %v1582
    %1648 = vmatprep.subr.bf16.mxu0 %v1587
    %1649 = vmatpush1.bf16.msra.mxu0 %v1586
    %1650 = vmatprep.subr.bf16.mxu0 %v1591
    %1651 = vmatpush1.bf16.msra.mxu0 %v1590
    %1652 = vmatprep.subr.bf16.mxu0 %v1595
    %1653 = vmatpush1.bf16.msra.mxu0 %v1594
    %1654 = vmatprep.subr.bf16.mxu0 %v1599
    %1655 = vmatpush1.bf16.msra.mxu0 %v1598
    %1656 = vmatprep.subr.bf16.mxu0 %v1603
    %1657 = vmatpush1.bf16.msra.mxu0 %v1602
    %1658 = vmatprep.subr.bf16.mxu0 %v1607
    %1659 = vmatpush1.bf16.msra.mxu0 %v1606
    %1660 = vmatprep.subr.bf16.mxu0 %v1611
    %1661 = vmatpush1.bf16.msra.mxu0 %v1610
    %1662 = vmatprep.subr.bf16.mxu0 0
    %1663 = vmatpush1.bf16.msra.mxu0 0
    %1664 = vmatprep.subr.bf16.mxu0 0
    %1665 = vmatpush1.bf16.msra.mxu0 0
    %1666 = vmatprep.subr.bf16.mxu0 0
    %1667 = vmatpush1.bf16.msra.mxu0 0
    %1668 = vmatprep.subr.bf16.mxu0 0
    %1669 = vmatpush1.bf16.msra.mxu0 0
    %1670 = vmatprep.subr.bf16.mxu0 0
    %1671 = vmatpush1.bf16.msra.mxu0 0
    %1672 = vmatprep.subr.bf16.mxu0 0
    %1673 = vmatpush1.bf16.msra.mxu0 0
    %1674 = vmatprep.subr.bf16.mxu0 0
    %1675 = vmatpush1.bf16.msra.mxu0 0
    %1676 = vmatprep.subr.bf16.mxu0 0
    %1677 = vmatpush1.bf16.msra.mxu0 0
    %1678 = vmatprep.mubr.bf16.mxu0 0
    %1679 = vmatmul.mubr.bf16.gmra.mrb[0].mxu0 %v1453
    %v1680 = vpop.f32.mrb[0].mxu0
    %v1681 = vadd.f32 0.0, %v1680
    %v1682 = vpop.f32.mrb[0].mxu0
    %v1683 = vadd.f32 0.0, %v1682
    %v1684 = vpop.f32.mrb[0].mxu0
    %v1685 = vpop.f32.mrb[0].mxu0
    %1686 = vdwg.mxu0
    %1687 = vmatprep.subr.bf16.mxu0 %v1585
    %1688 = vmatpush1.bf16.msra.mxu0 %v1584
    %1689 = vmatprep.subr.bf16.mxu0 %v1589
    %1690 = vmatpush1.bf16.msra.mxu0 %v1588
    %1691 = vmatprep.subr.bf16.mxu0 %v1593
    %1692 = vmatpush1.bf16.msra.mxu0 %v1592
    %1693 = vmatprep.subr.bf16.mxu0 %v1597
    %1694 = vmatpush1.bf16.msra.mxu0 %v1596
    %1695 = vmatprep.subr.bf16.mxu0 %v1601
    %1696 = vmatpush1.bf16.msra.mxu0 %v1600
    %1697 = vmatprep.subr.bf16.mxu0 %v1605
    %1698 = vmatpush1.bf16.msra.mxu0 %v1604
    %1699 = vmatprep.subr.bf16.mxu0 %v1609
    %1700 = vmatpush1.bf16.msra.mxu0 %v1608
    %1701 = vmatprep.subr.bf16.mxu0 %v1613
    %1702 = vmatpush1.bf16.msra.mxu0 %v1612
    %1703 = vmatprep.subr.bf16.mxu0 0
    %1704 = vmatpush1.bf16.msra.mxu0 0
    %1705 = vmatprep.subr.bf16.mxu0 0
    %1706 = vmatpush1.bf16.msra.mxu0 0
    %1707 = vmatprep.subr.bf16.mxu0 0
    %1708 = vmatpush1.bf16.msra.mxu0 0
    %1709 = vmatprep.subr.bf16.mxu0 0
    %1710 = vmatpush1.bf16.msra.mxu0 0
    %1711 = vmatprep.subr.bf16.mxu0 0
    %1712 = vmatpush1.bf16.msra.mxu0 0
    %1713 = vmatprep.subr.bf16.mxu0 0
    %1714 = vmatpush1.bf16.msra.mxu0 0
    %1715 = vmatprep.subr.bf16.mxu0 0
    %1716 = vmatpush1.bf16.msra.mxu0 0
    %1717 = vmatprep.subr.bf16.mxu0 0
    %1718 = vmatpush1.bf16.msra.mxu0 0
    %1719 = vmatprep.mubr.bf16.mxu0 0
    %1720 = vmatmul.mubr.bf16.gmra.mrb[0].mxu0 %v1453
    %v1721 = vpop.f32.mrb[0].mxu0
    %v1722 = vadd.f32 0.0, %v1721
    %v1723 = vpop.f32.mrb[0].mxu0
    %v1724 = vadd.f32 0.0, %v1723
    %v1725 = vpop.f32.mrb[0].mxu0
    %v1726 = vpop.f32.mrb[0].mxu0
    %1727 = vdwg.mxu0
    %v1728 = vadd.f32 %v1449, %v1681
    %v1729 = vadd.f32 %v1450, %v1683
    %v1730 = vadd.f32 %v1451, %v1722
    %v1731 = vadd.f32 %v1452, %v1724
    %v1732 = vxor.u32 %v1728, 2147483648
    %v1733 = vmul.f32 %v1732, 1.442695
    %v1734 = vpow.pop %v1733
    %v1735 = vadd.f32 %v1734, 1.0
    %v1736 = vrcp.pop %v1735
    %v1737 = vmul.f32 1.0, %v1736
    %v1738 = vxor.u32 %v1729, 2147483648
    %v1739 = vmul.f32 %v1738, 1.442695
    %v1740 = vpow.pop %v1739
    %v1741 = vadd.f32 %v1740, 1.0
    %v1742 = vrcp.pop %v1741
    %v1743 = vmul.f32 1.0, %v1742
    %v1744 = vtanh.pop %v1730
    %v1745 = vxor.u32 %v1731, 2147483648
    %v1746 = vmul.f32 %v1745, 1.442695
    %v1747 = vpow.pop %v1746
    %v1748 = vadd.f32 %v1747, 1.0
    %v1749 = vrcp.pop %v1748
    %v1750 = vmul.f32 1.0, %v1749
    %v1751 = vmul.f32 %v1743, %v1447
    %v1752 = vmul.f32 %v1737, %v1744
    %v1753 = vadd.f32 %v1751, %v1752
    %v1754 = vtanh.pop %v1753
    %v1755 = vmul.f32 %v1750, %v1754
    %1756 = vst [vmem:[#allocation3] sm:$0xff] %v1755
    %1757 = vst [vmem:[#allocation4] sm:$0xff] %v1753
    %s1758 = scalar_lea.vmem [#allocation14], 24
    %1759 = vst [vmem:[%s1758] sm:$0xff] %v1755
    %v1760 = vld [vmem:[#allocation3] sm:$0xff]
    %v1761 = vld [vmem:[#allocation4] sm:$0xff]
    %s1762 = scalar_lea.vmem [#allocation2], 128
    %v1763 = vld [vmem:[%s1762] sm:$0xff]
    %v1764 = vld [vmem:[%s1762 + $0x8] sm:$0xff]
    %v1765 = vld [vmem:[%s1762 + $0x10] sm:$0xff]
    %v1766 = vld [vmem:[%s1762 + $0x18] sm:$0xff]
    %v1767 = vpack.c.bf16 %v1760, %v1760
    %v1768 = vld [vmem:[#allocation10] sm:$0xff]
    %v1769 = vld [vmem:[#allocation10 + $0x8] sm:$0xff]
    %v1770 = vld [vmem:[#allocation10 + $0x10] sm:$0xff]
    %v1771 = vld [vmem:[#allocation10 + $0x18] sm:$0xff]
    %v1772 = vld [vmem:[#allocation10 + $0x20] sm:$0xff]
    %v1773 = vld [vmem:[#allocation10 + $0x28] sm:$0xff]
    %v1774 = vld [vmem:[#allocation10 + $0x30] sm:$0xff]
    %v1775 = vld [vmem:[#allocation10 + $0x38] sm:$0xff]
    %v1776 = vld [vmem:[#allocation10 + $0x40] sm:$0xff]
    %v1777 = vld [vmem:[#allocation10 + $0x48] sm:$0xff]
    %v1778 = vld [vmem:[#allocation10 + $0x50] sm:$0xff]
    %v1779 = vld [vmem:[#allocation10 + $0x58] sm:$0xff]
    %v1780 = vld [vmem:[#allocation10 + $0x60] sm:$0xff]
    %v1781 = vld [vmem:[#allocation10 + $0x68] sm:$0xff]
    %v1782 = vld [vmem:[#allocation10 + $0x70] sm:$0xff]
    %v1783 = vld [vmem:[#allocation10 + $0x78] sm:$0xff]
    %v1784 = vld [vmem:[#allocation10 + $0x80] sm:$0xff]
    %v1785 = vld [vmem:[#allocation10 + $0x88] sm:$0xff]
    %v1786 = vld [vmem:[#allocation10 + $0x90] sm:$0xff]
    %v1787 = vld [vmem:[#allocation10 + $0x98] sm:$0xff]
    %v1788 = vld [vmem:[#allocation10 + $0xa0] sm:$0xff]
    %v1789 = vld [vmem:[#allocation10 + $0xa8] sm:$0xff]
    %v1790 = vld [vmem:[#allocation10 + $0xb0] sm:$0xff]
    %v1791 = vld [vmem:[#allocation10 + $0xb8] sm:$0xff]
    %v1792 = vld [vmem:[#allocation10 + $0xc0] sm:$0xff]
    %v1793 = vld [vmem:[#allocation10 + $0xc8] sm:$0xff]
    %v1794 = vld [vmem:[#allocation10 + $0xd0] sm:$0xff]
    %v1795 = vld [vmem:[#allocation10 + $0xd8] sm:$0xff]
    %v1796 = vld [vmem:[#allocation10 + $0xe0] sm:$0xff]
    %v1797 = vld [vmem:[#allocation10 + $0xe8] sm:$0xff]
    %v1798 = vld [vmem:[#allocation10 + $0xf0] sm:$0xff]
    %v1799 = vld [vmem:[#allocation10 + $0xf8] sm:$0xff]
    %v1832 = vunpack.c.l.b16 %v1768
    %v1833 = vunpack.c.h.b16 %v1768
    %v1834 = vunpack.c.l.b16 %v1769
    %v1835 = vunpack.c.h.b16 %v1769
    %v1836 = vunpack.c.l.b16 %v1770
    %v1837 = vunpack.c.h.b16 %v1770
    %v1838 = vunpack.c.l.b16 %v1771
    %v1839 = vunpack.c.h.b16 %v1771
    %v1840 = vunpack.c.l.b16 %v1772
    %v1841 = vunpack.c.h.b16 %v1772
    %v1842 = vunpack.c.l.b16 %v1773
    %v1843 = vunpack.c.h.b16 %v1773
    %v1844 = vunpack.c.l.b16 %v1774
    %v1845 = vunpack.c.h.b16 %v1774
    %v1846 = vunpack.c.l.b16 %v1775
    %v1847 = vunpack.c.h.b16 %v1775
    %v1848 = vunpack.c.l.b16 %v1776
    %v1849 = vunpack.c.h.b16 %v1776
    %v1850 = vunpack.c.l.b16 %v1777
    %v1851 = vunpack.c.h.b16 %v1777
    %v1852 = vunpack.c.l.b16 %v1778
    %v1853 = vunpack.c.h.b16 %v1778
    %v1854 = vunpack.c.l.b16 %v1779
    %v1855 = vunpack.c.h.b16 %v1779
    %v1856 = vunpack.c.l.b16 %v1780
    %v1857 = vunpack.c.h.b16 %v1780
    %v1858 = vunpack.c.l.b16 %v1781
    %v1859 = vunpack.c.h.b16 %v1781
    %v1860 = vunpack.c.l.b16 %v1782
    %v1861 = vunpack.c.h.b16 %v1782
    %v1862 = vunpack.c.l.b16 %v1783
    %v1863 = vunpack.c.h.b16 %v1783
    %v1864 = vunpack.c.l.b16 %v1784
    %v1865 = vunpack.c.h.b16 %v1784
    %v1866 = vunpack.c.l.b16 %v1785
    %v1867 = vunpack.c.h.b16 %v1785
    %v1868 = vunpack.c.l.b16 %v1786
    %v1869 = vunpack.c.h.b16 %v1786
    %v1870 = vunpack.c.l.b16 %v1787
    %v1871 = vunpack.c.h.b16 %v1787
    %v1872 = vunpack.c.l.b16 %v1788
    %v1873 = vunpack.c.h.b16 %v1788
    %v1874 = vunpack.c.l.b16 %v1789
    %v1875 = vunpack.c.h.b16 %v1789
    %v1876 = vunpack.c.l.b16 %v1790
    %v1877 = vunpack.c.h.b16 %v1790
    %v1878 = vunpack.c.l.b16 %v1791
    %v1879 = vunpack.c.h.b16 %v1791
    %v1880 = vunpack.c.l.b16 %v1792
    %v1881 = vunpack.c.h.b16 %v1792
    %v1882 = vunpack.c.l.b16 %v1793
    %v1883 = vunpack.c.h.b16 %v1793
    %v1884 = vunpack.c.l.b16 %v1794
    %v1885 = vunpack.c.h.b16 %v1794
    %v1886 = vunpack.c.l.b16 %v1795
    %v1887 = vunpack.c.h.b16 %v1795
    %v1888 = vunpack.c.l.b16 %v1796
    %v1889 = vunpack.c.h.b16 %v1796
    %v1890 = vunpack.c.l.b16 %v1797
    %v1891 = vunpack.c.h.b16 %v1797
    %v1892 = vunpack.c.l.b16 %v1798
    %v1893 = vunpack.c.h.b16 %v1798
    %v1894 = vunpack.c.l.b16 %v1799
    %v1895 = vunpack.c.h.b16 %v1799
    %v1896 = vpack.c.b16 %v1836, %v1832
    %v1897 = vpack.c.b16 %v1837, %v1833
    %v1898 = vpack.c.b16 %v1838, %v1834
    %v1899 = vpack.c.b16 %v1839, %v1835
    %v1900 = vpack.c.b16 %v1844, %v1840
    %v1901 = vpack.c.b16 %v1845, %v1841
    %v1902 = vpack.c.b16 %v1846, %v1842
    %v1903 = vpack.c.b16 %v1847, %v1843
    %v1904 = vpack.c.b16 %v1852, %v1848
    %v1905 = vpack.c.b16 %v1853, %v1849
    %v1906 = vpack.c.b16 %v1854, %v1850
    %v1907 = vpack.c.b16 %v1855, %v1851
    %v1908 = vpack.c.b16 %v1860, %v1856
    %v1909 = vpack.c.b16 %v1861, %v1857
    %v1910 = vpack.c.b16 %v1862, %v1858
    %v1911 = vpack.c.b16 %v1863, %v1859
    %v1912 = vpack.c.b16 %v1868, %v1864
    %v1913 = vpack.c.b16 %v1869, %v1865
    %v1914 = vpack.c.b16 %v1870, %v1866
    %v1915 = vpack.c.b16 %v1871, %v1867
    %v1916 = vpack.c.b16 %v1876, %v1872
    %v1917 = vpack.c.b16 %v1877, %v1873
    %v1918 = vpack.c.b16 %v1878, %v1874
    %v1919 = vpack.c.b16 %v1879, %v1875
    %v1920 = vpack.c.b16 %v1884, %v1880
    %v1921 = vpack.c.b16 %v1885, %v1881
    %v1922 = vpack.c.b16 %v1886, %v1882
    %v1923 = vpack.c.b16 %v1887, %v1883
    %v1924 = vpack.c.b16 %v1892, %v1888
    %v1925 = vpack.c.b16 %v1893, %v1889
    %v1926 = vpack.c.b16 %v1894, %v1890
    %v1927 = vpack.c.b16 %v1895, %v1891
    %1960 = vmatprep.subr.bf16.mxu0 %v1897
    %1961 = vmatpush1.bf16.msra.mxu0 %v1896
    %1962 = vmatprep.subr.bf16.mxu0 %v1901
    %1963 = vmatpush1.bf16.msra.mxu0 %v1900
    %1964 = vmatprep.subr.bf16.mxu0 %v1905
    %1965 = vmatpush1.bf16.msra.mxu0 %v1904
    %1966 = vmatprep.subr.bf16.mxu0 %v1909
    %1967 = vmatpush1.bf16.msra.mxu0 %v1908
    %1968 = vmatprep.subr.bf16.mxu0 %v1913
    %1969 = vmatpush1.bf16.msra.mxu0 %v1912
    %1970 = vmatprep.subr.bf16.mxu0 %v1917
    %1971 = vmatpush1.bf16.msra.mxu0 %v1916
    %1972 = vmatprep.subr.bf16.mxu0 %v1921
    %1973 = vmatpush1.bf16.msra.mxu0 %v1920
    %1974 = vmatprep.subr.bf16.mxu0 %v1925
    %1975 = vmatpush1.bf16.msra.mxu0 %v1924
    %1976 = vmatprep.subr.bf16.mxu0 0
    %1977 = vmatpush1.bf16.msra.mxu0 0
    %1978 = vmatprep.subr.bf16.mxu0 0
    %1979 = vmatpush1.bf16.msra.mxu0 0
    %1980 = vmatprep.subr.bf16.mxu0 0
    %1981 = vmatpush1.bf16.msra.mxu0 0
    %1982 = vmatprep.subr.bf16.mxu0 0
    %1983 = vmatpush1.bf16.msra.mxu0 0
    %1984 = vmatprep.subr.bf16.mxu0 0
    %1985 = vmatpush1.bf16.msra.mxu0 0
    %1986 = vmatprep.subr.bf16.mxu0 0
    %1987 = vmatpush1.bf16.msra.mxu0 0
    %1988 = vmatprep.subr.bf16.mxu0 0
    %1989 = vmatpush1.bf16.msra.mxu0 0
    %1990 = vmatprep.subr.bf16.mxu0 0
    %1991 = vmatpush1.bf16.msra.mxu0 0
    %1992 = vmatprep.mubr.bf16.mxu0 0
    %1993 = vmatmul.mubr.bf16.gmra.mrb[0].mxu0 %v1767
    %v1994 = vpop.f32.mrb[0].mxu0
    %v1995 = vadd.f32 0.0, %v1994
    %v1996 = vpop.f32.mrb[0].mxu0
    %v1997 = vadd.f32 0.0, %v1996
    %v1998 = vpop.f32.mrb[0].mxu0
    %v1999 = vpop.f32.mrb[0].mxu0
    %2000 = vdwg.mxu0
    %2001 = vmatprep.subr.bf16.mxu0 %v1899
    %2002 = vmatpush1.bf16.msra.mxu0 %v1898
    %2003 = vmatprep.subr.bf16.mxu0 %v1903
    %2004 = vmatpush1.bf16.msra.mxu0 %v1902
    %2005 = vmatprep.subr.bf16.mxu0 %v1907
    %2006 = vmatpush1.bf16.msra.mxu0 %v1906
    %2007 = vmatprep.subr.bf16.mxu0 %v1911
    %2008 = vmatpush1.bf16.msra.mxu0 %v1910
    %2009 = vmatprep.subr.bf16.mxu0 %v1915
    %2010 = vmatpush1.bf16.msra.mxu0 %v1914
    %2011 = vmatprep.subr.bf16.mxu0 %v1919
    %2012 = vmatpush1.bf16.msra.mxu0 %v1918
    %2013 = vmatprep.subr.bf16.mxu0 %v1923
    %2014 = vmatpush1.bf16.msra.mxu0 %v1922
    %2015 = vmatprep.subr.bf16.mxu0 %v1927
    %2016 = vmatpush1.bf16.msra.mxu0 %v1926
    %2017 = vmatprep.subr.bf16.mxu0 0
    %2018 = vmatpush1.bf16.msra.mxu0 0
    %2019 = vmatprep.subr.bf16.mxu0 0
    %2020 = vmatpush1.bf16.msra.mxu0 0
    %2021 = vmatprep.subr.bf16.mxu0 0
    %2022 = vmatpush1.bf16.msra.mxu0 0
    %2023 = vmatprep.subr.bf16.mxu0 0
    %2024 = vmatpush1.bf16.msra.mxu0 0
    %2025 = vmatprep.subr.bf16.mxu0 0
    %2026 = vmatpush1.bf16.msra.mxu0 0
    %2027 = vmatprep.subr.bf16.mxu0 0
    %2028 = vmatpush1.bf16.msra.mxu0 0
    %2029 = vmatprep.subr.bf16.mxu0 0
    %2030 = vmatpush1.bf16.msra.mxu0 0
    %2031 = vmatprep.subr.bf16.mxu0 0
    %2032 = vmatpush1.bf16.msra.mxu0 0
    %2033 = vmatprep.mubr.bf16.mxu0 0
    %2034 = vmatmul.mubr.bf16.gmra.mrb[0].mxu0 %v1767
    %v2035 = vpop.f32.mrb[0].mxu0
    %v2036 = vadd.f32 0.0, %v2035
    %v2037 = vpop.f32.mrb[0].mxu0
    %v2038 = vadd.f32 0.0, %v2037
    %v2039 = vpop.f32.mrb[0].mxu0
    %v2040 = vpop.f32.mrb[0].mxu0
    %2041 = vdwg.mxu0
    %v2042 = vadd.f32 %v1763, %v1995
    %v2043 = vadd.f32 %v1764, %v1997
    %v2044 = vadd.f32 %v1765, %v2036
    %v2045 = vadd.f32 %v1766, %v2038
    %v2046 = vxor.u32 %v2042, 2147483648
    %v2047 = vmul.f32 %v2046, 1.442695
    %v2048 = vpow.pop %v2047
    %v2049 = vadd.f32 %v2048, 1.0
    %v2050 = vrcp.pop %v2049
    %v2051 = vmul.f32 1.0, %v2050
    %v2052 = vxor.u32 %v2043, 2147483648
    %v2053 = vmul.f32 %v2052, 1.442695
    %v2054 = vpow.pop %v2053
    %v2055 = vadd.f32 %v2054, 1.0
    %v2056 = vrcp.pop %v2055
    %v2057 = vmul.f32 1.0, %v2056
    %v2058 = vtanh.pop %v2044
    %v2059 = vxor.u32 %v2045, 2147483648
    %v2060 = vmul.f32 %v2059, 1.442695
    %v2061 = vpow.pop %v2060
    %v2062 = vadd.f32 %v2061, 1.0
    %v2063 = vrcp.pop %v2062
    %v2064 = vmul.f32 1.0, %v2063
    %v2065 = vmul.f32 %v2057, %v1761
    %v2066 = vmul.f32 %v2051, %v2058
    %v2067 = vadd.f32 %v2065, %v2066
    %v2068 = vtanh.pop %v2067
    %v2069 = vmul.f32 %v2064, %v2068
    %2070 = vst [vmem:[#allocation3] sm:$0xff] %v2069
    %2071 = vst [vmem:[#allocation4] sm:$0xff] %v2067
    %s2072 = scalar_lea.vmem [#allocation14], 32
    %2073 = vst [vmem:[%s2072] sm:$0xff] %v2069
    %v2074 = vld [vmem:[#allocation3] sm:$0xff]
    %v2075 = vld [vmem:[#allocation4] sm:$0xff]
    %s2076 = scalar_lea.vmem [#allocation2], 160
    %v2077 = vld [vmem:[%s2076] sm:$0xff]
    %v2078 = vld [vmem:[%s2076 + $0x8] sm:$0xff]
    %v2079 = vld [vmem:[%s2076 + $0x10] sm:$0xff]
    %v2080 = vld [vmem:[%s2076 + $0x18] sm:$0xff]
    %v2081 = vpack.c.bf16 %v2074, %v2074
    %v2082 = vld [vmem:[#allocation10] sm:$0xff]
    %v2083 = vld [vmem:[#allocation10 + $0x8] sm:$0xff]
    %v2084 = vld [vmem:[#allocation10 + $0x10] sm:$0xff]
    %v2085 = vld [vmem:[#allocation10 + $0x18] sm:$0xff]
    %v2086 = vld [vmem:[#allocation10 + $0x20] sm:$0xff]
    %v2087 = vld [vmem:[#allocation10 + $0x28] sm:$0xff]
    %v2088 = vld [vmem:[#allocation10 + $0x30] sm:$0xff]
    %v2089 = vld [vmem:[#allocation10 + $0x38] sm:$0xff]
    %v2090 = vld [vmem:[#allocation10 + $0x40] sm:$0xff]
    %v2091 = vld [vmem:[#allocation10 + $0x48] sm:$0xff]
    %v2092 = vld [vmem:[#allocation10 + $0x50] sm:$0xff]
    %v2093 = vld [vmem:[#allocation10 + $0x58] sm:$0xff]
    %v2094 = vld [vmem:[#allocation10 + $0x60] sm:$0xff]
    %v2095 = vld [vmem:[#allocation10 + $0x68] sm:$0xff]
    %v2096 = vld [vmem:[#allocation10 + $0x70] sm:$0xff]
    %v2097 = vld [vmem:[#allocation10 + $0x78] sm:$0xff]
    %v2098 = vld [vmem:[#allocation10 + $0x80] sm:$0xff]
    %v2099 = vld [vmem:[#allocation10 + $0x88] sm:$0xff]
    %v2100 = vld [vmem:[#allocation10 + $0x90] sm:$0xff]
    %v2101 = vld [vmem:[#allocation10 + $0x98] sm:$0xff]
    %v2102 = vld [vmem:[#allocation10 + $0xa0] sm:$0xff]
    %v2103 = vld [vmem:[#allocation10 + $0xa8] sm:$0xff]
    %v2104 = vld [vmem:[#allocation10 + $0xb0] sm:$0xff]
    %v2105 = vld [vmem:[#allocation10 + $0xb8] sm:$0xff]
    %v2106 = vld [vmem:[#allocation10 + $0xc0] sm:$0xff]
    %v2107 = vld [vmem:[#allocation10 + $0xc8] sm:$0xff]
    %v2108 = vld [vmem:[#allocation10 + $0xd0] sm:$0xff]
    %v2109 = vld [vmem:[#allocation10 + $0xd8] sm:$0xff]
    %v2110 = vld [vmem:[#allocation10 + $0xe0] sm:$0xff]
    %v2111 = vld [vmem:[#allocation10 + $0xe8] sm:$0xff]
    %v2112 = vld [vmem:[#allocation10 + $0xf0] sm:$0xff]
    %v2113 = vld [vmem:[#allocation10 + $0xf8] sm:$0xff]
    %v2146 = vunpack.c.l.b16 %v2082
    %v2147 = vunpack.c.h.b16 %v2082
    %v2148 = vunpack.c.l.b16 %v2083
    %v2149 = vunpack.c.h.b16 %v2083
    %v2150 = vunpack.c.l.b16 %v2084
    %v2151 = vunpack.c.h.b16 %v2084
    %v2152 = vunpack.c.l.b16 %v2085
    %v2153 = vunpack.c.h.b16 %v2085
    %v2154 = vunpack.c.l.b16 %v2086
    %v2155 = vunpack.c.h.b16 %v2086
    %v2156 = vunpack.c.l.b16 %v2087
    %v2157 = vunpack.c.h.b16 %v2087
    %v2158 = vunpack.c.l.b16 %v2088
    %v2159 = vunpack.c.h.b16 %v2088
    %v2160 = vunpack.c.l.b16 %v2089
    %v2161 = vunpack.c.h.b16 %v2089
    %v2162 = vunpack.c.l.b16 %v2090
    %v2163 = vunpack.c.h.b16 %v2090
    %v2164 = vunpack.c.l.b16 %v2091
    %v2165 = vunpack.c.h.b16 %v2091
    %v2166 = vunpack.c.l.b16 %v2092
    %v2167 = vunpack.c.h.b16 %v2092
    %v2168 = vunpack.c.l.b16 %v2093
    %v2169 = vunpack.c.h.b16 %v2093
    %v2170 = vunpack.c.l.b16 %v2094
    %v2171 = vunpack.c.h.b16 %v2094
    %v2172 = vunpack.c.l.b16 %v2095
    %v2173 = vunpack.c.h.b16 %v2095
    %v2174 = vunpack.c.l.b16 %v2096
    %v2175 = vunpack.c.h.b16 %v2096
    %v2176 = vunpack.c.l.b16 %v2097
    %v2177 = vunpack.c.h.b16 %v2097
    %v2178 = vunpack.c.l.b16 %v2098
    %v2179 = vunpack.c.h.b16 %v2098
    %v2180 = vunpack.c.l.b16 %v2099
    %v2181 = vunpack.c.h.b16 %v2099
    %v2182 = vunpack.c.l.b16 %v2100
    %v2183 = vunpack.c.h.b16 %v2100
    %v2184 = vunpack.c.l.b16 %v2101
    %v2185 = vunpack.c.h.b16 %v2101
    %v2186 = vunpack.c.l.b16 %v2102
    %v2187 = vunpack.c.h.b16 %v2102
    %v2188 = vunpack.c.l.b16 %v2103
    %v2189 = vunpack.c.h.b16 %v2103
    %v2190 = vunpack.c.l.b16 %v2104
    %v2191 = vunpack.c.h.b16 %v2104
    %v2192 = vunpack.c.l.b16 %v2105
    %v2193 = vunpack.c.h.b16 %v2105
    %v2194 = vunpack.c.l.b16 %v2106
    %v2195 = vunpack.c.h.b16 %v2106
    %v2196 = vunpack.c.l.b16 %v2107
    %v2197 = vunpack.c.h.b16 %v2107
    %v2198 = vunpack.c.l.b16 %v2108
    %v2199 = vunpack.c.h.b16 %v2108
    %v2200 = vunpack.c.l.b16 %v2109
    %v2201 = vunpack.c.h.b16 %v2109
    %v2202 = vunpack.c.l.b16 %v2110
    %v2203 = vunpack.c.h.b16 %v2110
    %v2204 = vunpack.c.l.b16 %v2111
    %v2205 = vunpack.c.h.b16 %v2111
    %v2206 = vunpack.c.l.b16 %v2112
    %v2207 = vunpack.c.h.b16 %v2112
    %v2208 = vunpack.c.l.b16 %v2113
    %v2209 = vunpack.c.h.b16 %v2113
    %v2210 = vpack.c.b16 %v2150, %v2146
    %v2211 = vpack.c.b16 %v2151, %v2147
    %v2212 = vpack.c.b16 %v2152, %v2148
    %v2213 = vpack.c.b16 %v2153, %v2149
    %v2214 = vpack.c.b16 %v2158, %v2154
    %v2215 = vpack.c.b16 %v2159, %v2155
    %v2216 = vpack.c.b16 %v2160, %v2156
    %v2217 = vpack.c.b16 %v2161, %v2157
    %v2218 = vpack.c.b16 %v2166, %v2162
    %v2219 = vpack.c.b16 %v2167, %v2163
    %v2220 = vpack.c.b16 %v2168, %v2164
    %v2221 = vpack.c.b16 %v2169, %v2165
    %v2222 = vpack.c.b16 %v2174, %v2170
    %v2223 = vpack.c.b16 %v2175, %v2171
    %v2224 = vpack.c.b16 %v2176, %v2172
    %v2225 = vpack.c.b16 %v2177, %v2173
    %v2226 = vpack.c.b16 %v2182, %v2178
    %v2227 = vpack.c.b16 %v2183, %v2179
    %v2228 = vpack.c.b16 %v2184, %v2180
    %v2229 = vpack.c.b16 %v2185, %v2181
    %v2230 = vpack.c.b16 %v2190, %v2186
    %v2231 = vpack.c.b16 %v2191, %v2187
    %v2232 = vpack.c.b16 %v2192, %v2188
    %v2233 = vpack.c.b16 %v2193, %v2189
    %v2234 = vpack.c.b16 %v2198, %v2194
    %v2235 = vpack.c.b16 %v2199, %v2195
    %v2236 = vpack.c.b16 %v2200, %v2196
    %v2237 = vpack.c.b16 %v2201, %v2197
    %v2238 = vpack.c.b16 %v2206, %v2202
    %v2239 = vpack.c.b16 %v2207, %v2203
    %v2240 = vpack.c.b16 %v2208, %v2204
    %v2241 = vpack.c.b16 %v2209, %v2205
    %2274 = vmatprep.subr.bf16.mxu0 %v2211
    %2275 = vmatpush1.bf16.msra.mxu0 %v2210
    %2276 = vmatprep.subr.bf16.mxu0 %v2215
    %2277 = vmatpush1.bf16.msra.mxu0 %v2214
    %2278 = vmatprep.subr.bf16.mxu0 %v2219
    %2279 = vmatpush1.bf16.msra.mxu0 %v2218
    %2280 = vmatprep.subr.bf16.mxu0 %v2223
    %2281 = vmatpush1.bf16.msra.mxu0 %v2222
    %2282 = vmatprep.subr.bf16.mxu0 %v2227
    %2283 = vmatpush1.bf16.msra.mxu0 %v2226
    %2284 = vmatprep.subr.bf16.mxu0 %v2231
    %2285 = vmatpush1.bf16.msra.mxu0 %v2230
    %2286 = vmatprep.subr.bf16.mxu0 %v2235
    %2287 = vmatpush1.bf16.msra.mxu0 %v2234
    %2288 = vmatprep.subr.bf16.mxu0 %v2239
    %2289 = vmatpush1.bf16.msra.mxu0 %v2238
    %2290 = vmatprep.subr.bf16.mxu0 0
    %2291 = vmatpush1.bf16.msra.mxu0 0
    %2292 = vmatprep.subr.bf16.mxu0 0
    %2293 = vmatpush1.bf16.msra.mxu0 0
    %2294 = vmatprep.subr.bf16.mxu0 0
    %2295 = vmatpush1.bf16.msra.mxu0 0
    %2296 = vmatprep.subr.bf16.mxu0 0
    %2297 = vmatpush1.bf16.msra.mxu0 0
    %2298 = vmatprep.subr.bf16.mxu0 0
    %2299 = vmatpush1.bf16.msra.mxu0 0
    %2300 = vmatprep.subr.bf16.mxu0 0
    %2301 = vmatpush1.bf16.msra.mxu0 0
    %2302 = vmatprep.subr.bf16.mxu0 0
    %2303 = vmatpush1.bf16.msra.mxu0 0
    %2304 = vmatprep.subr.bf16.mxu0 0
    %2305 = vmatpush1.bf16.msra.mxu0 0
    %2306 = vmatprep.mubr.bf16.mxu0 0
    %2307 = vmatmul.mubr.bf16.gmra.mrb[0].mxu0 %v2081
    %v2308 = vpop.f32.mrb[0].mxu0
    %v2309 = vadd.f32 0.0, %v2308
    %v2310 = vpop.f32.mrb[0].mxu0
    %v2311 = vadd.f32 0.0, %v2310
    %v2312 = vpop.f32.mrb[0].mxu0
    %v2313 = vpop.f32.mrb[0].mxu0
    %2314 = vdwg.mxu0
    %2315 = vmatprep.subr.bf16.mxu0 %v2213
    %2316 = vmatpush1.bf16.msra.mxu0 %v2212
    %2317 = vmatprep.subr.bf16.mxu0 %v2217
    %2318 = vmatpush1.bf16.msra.mxu0 %v2216
    %2319 = vmatprep.subr.bf16.mxu0 %v2221
    %2320 = vmatpush1.bf16.msra.mxu0 %v2220
    %2321 = vmatprep.subr.bf16.mxu0 %v2225
    %2322 = vmatpush1.bf16.msra.mxu0 %v2224
    %2323 = vmatprep.subr.bf16.mxu0 %v2229
    %2324 = vmatpush1.bf16.msra.mxu0 %v2228
    %2325 = vmatprep.subr.bf16.mxu0 %v2233
    %2326 = vmatpush1.bf16.msra.mxu0 %v2232
    %2327 = vmatprep.subr.bf16.mxu0 %v2237
    %2328 = vmatpush1.bf16.msra.mxu0 %v2236
    %2329 = vmatprep.subr.bf16.mxu0 %v2241
    %2330 = vmatpush1.bf16.msra.mxu0 %v2240
    %2331 = vmatprep.subr.bf16.mxu0 0
    %2332 = vmatpush1.bf16.msra.mxu0 0
    %2333 = vmatprep.subr.bf16.mxu0 0
    %2334 = vmatpush1.bf16.msra.mxu0 0
    %2335 = vmatprep.subr.bf16.mxu0 0
    %2336 = vmatpush1.bf16.msra.mxu0 0
    %2337 = vmatprep.subr.bf16.mxu0 0
    %2338 = vmatpush1.bf16.msra.mxu0 0
    %2339 = vmatprep.subr.bf16.mxu0 0
    %2340 = vmatpush1.bf16.msra.mxu0 0
    %2341 = vmatprep.subr.bf16.mxu0 0
    %2342 = vmatpush1.bf16.msra.mxu0 0
    %2343 = vmatprep.subr.bf16.mxu0 0
    %2344 = vmatpush1.bf16.msra.mxu0 0
    %2345 = vmatprep.subr.bf16.mxu0 0
    %2346 = vmatpush1.bf16.msra.mxu0 0
    %2347 = vmatprep.mubr.bf16.mxu0 0
    %2348 = vmatmul.mubr.bf16.gmra.mrb[0].mxu0 %v2081
    %v2349 = vpop.f32.mrb[0].mxu0
    %v2350 = vadd.f32 0.0, %v2349
    %v2351 = vpop.f32.mrb[0].mxu0
    %v2352 = vadd.f32 0.0, %v2351
    %v2353 = vpop.f32.mrb[0].mxu0
    %v2354 = vpop.f32.mrb[0].mxu0
    %2355 = vdwg.mxu0
    %v2356 = vadd.f32 %v2077, %v2309
    %v2357 = vadd.f32 %v2078, %v2311
    %v2358 = vadd.f32 %v2079, %v2350
    %v2359 = vadd.f32 %v2080, %v2352
    %v2360 = vxor.u32 %v2356, 2147483648
    %v2361 = vmul.f32 %v2360, 1.442695
    %v2362 = vpow.pop %v2361
    %v2363 = vadd.f32 %v2362, 1.0
    %v2364 = vrcp.pop %v2363
    %v2365 = vmul.f32 1.0, %v2364
    %v2366 = vxor.u32 %v2357, 2147483648
    %v2367 = vmul.f32 %v2366, 1.442695
    %v2368 = vpow.pop %v2367
    %v2369 = vadd.f32 %v2368, 1.0
    %v2370 = vrcp.pop %v2369
    %v2371 = vmul.f32 1.0, %v2370
    %v2372 = vtanh.pop %v2358
    %v2373 = vxor.u32 %v2359, 2147483648
    %v2374 = vmul.f32 %v2373, 1.442695
    %v2375 = vpow.pop %v2374
    %v2376 = vadd.f32 %v2375, 1.0
    %v2377 = vrcp.pop %v2376
    %v2378 = vmul.f32 1.0, %v2377
    %v2379 = vmul.f32 %v2371, %v2075
    %v2380 = vmul.f32 %v2365, %v2372
    %v2381 = vadd.f32 %v2379, %v2380
    %v2382 = vtanh.pop %v2381
    %v2383 = vmul.f32 %v2378, %v2382
    %2384 = vst [vmem:[#allocation3] sm:$0xff] %v2383
    %2385 = vst [vmem:[#allocation4] sm:$0xff] %v2381
    %s2386 = scalar_lea.vmem [#allocation14], 40
    %2387 = vst [vmem:[%s2386] sm:$0xff] %v2383
    %v2388 = vld [vmem:[#allocation3] sm:$0xff]
    %v2389 = vld [vmem:[#allocation4] sm:$0xff]
    %s2390 = scalar_lea.vmem [#allocation2], 192
    %v2391 = vld [vmem:[%s2390] sm:$0xff]
    %v2392 = vld [vmem:[%s2390 + $0x8] sm:$0xff]
    %v2393 = vld [vmem:[%s2390 + $0x10] sm:$0xff]
    %v2394 = vld [vmem:[%s2390 + $0x18] sm:$0xff]
    %v2395 = vpack.c.bf16 %v2388, %v2388
    %v2396 = vld [vmem:[#allocation10] sm:$0xff]
    %v2397 = vld [vmem:[#allocation10 + $0x8] sm:$0xff]
    %v2398 = vld [vmem:[#allocation10 + $0x10] sm:$0xff]
    %v2399 = vld [vmem:[#allocation10 + $0x18] sm:$0xff]
    %v2400 = vld [vmem:[#allocation10 + $0x20] sm:$0xff]
    %v2401 = vld [vmem:[#allocation10 + $0x28] sm:$0xff]
    %v2402 = vld [vmem:[#allocation10 + $0x30] sm:$0xff]
    %v2403 = vld [vmem:[#allocation10 + $0x38] sm:$0xff]
    %v2404 = vld [vmem:[#allocation10 + $0x40] sm:$0xff]
    %v2405 = vld [vmem:[#allocation10 + $0x48] sm:$0xff]
    %v2406 = vld [vmem:[#allocation10 + $0x50] sm:$0xff]
    %v2407 = vld [vmem:[#allocation10 + $0x58] sm:$0xff]
    %v2408 = vld [vmem:[#allocation10 + $0x60] sm:$0xff]
    %v2409 = vld [vmem:[#allocation10 + $0x68] sm:$0xff]
    %v2410 = vld [vmem:[#allocation10 + $0x70] sm:$0xff]
    %v2411 = vld [vmem:[#allocation10 + $0x78] sm:$0xff]
    %v2412 = vld [vmem:[#allocation10 + $0x80] sm:$0xff]
    %v2413 = vld [vmem:[#allocation10 + $0x88] sm:$0xff]
    %v2414 = vld [vmem:[#allocation10 + $0x90] sm:$0xff]
    %v2415 = vld [vmem:[#allocation10 + $0x98] sm:$0xff]
    %v2416 = vld [vmem:[#allocation10 + $0xa0] sm:$0xff]
    %v2417 = vld [vmem:[#allocation10 + $0xa8] sm:$0xff]
    %v2418 = vld [vmem:[#allocation10 + $0xb0] sm:$0xff]
    %v2419 = vld [vmem:[#allocation10 + $0xb8] sm:$0xff]
    %v2420 = vld [vmem:[#allocation10 + $0xc0] sm:$0xff]
    %v2421 = vld [vmem:[#allocation10 + $0xc8] sm:$0xff]
    %v2422 = vld [vmem:[#allocation10 + $0xd0] sm:$0xff]
    %v2423 = vld [vmem:[#allocation10 + $0xd8] sm:$0xff]
    %v2424 = vld [vmem:[#allocation10 + $0xe0] sm:$0xff]
    %v2425 = vld [vmem:[#allocation10 + $0xe8] sm:$0xff]
    %v2426 = vld [vmem:[#allocation10 + $0xf0] sm:$0xff]
    %v2427 = vld [vmem:[#allocation10 + $0xf8] sm:$0xff]
    %v2460 = vunpack.c.l.b16 %v2396
    %v2461 = vunpack.c.h.b16 %v2396
    %v2462 = vunpack.c.l.b16 %v2397
    %v2463 = vunpack.c.h.b16 %v2397
    %v2464 = vunpack.c.l.b16 %v2398
    %v2465 = vunpack.c.h.b16 %v2398
    %v2466 = vunpack.c.l.b16 %v2399
    %v2467 = vunpack.c.h.b16 %v2399
    %v2468 = vunpack.c.l.b16 %v2400
    %v2469 = vunpack.c.h.b16 %v2400
    %v2470 = vunpack.c.l.b16 %v2401
    %v2471 = vunpack.c.h.b16 %v2401
    %v2472 = vunpack.c.l.b16 %v2402
    %v2473 = vunpack.c.h.b16 %v2402
    %v2474 = vunpack.c.l.b16 %v2403
    %v2475 = vunpack.c.h.b16 %v2403
    %v2476 = vunpack.c.l.b16 %v2404
    %v2477 = vunpack.c.h.b16 %v2404
    %v2478 = vunpack.c.l.b16 %v2405
    %v2479 = vunpack.c.h.b16 %v2405
    %v2480 = vunpack.c.l.b16 %v2406
    %v2481 = vunpack.c.h.b16 %v2406
    %v2482 = vunpack.c.l.b16 %v2407
    %v2483 = vunpack.c.h.b16 %v2407
    %v2484 = vunpack.c.l.b16 %v2408
    %v2485 = vunpack.c.h.b16 %v2408
    %v2486 = vunpack.c.l.b16 %v2409
    %v2487 = vunpack.c.h.b16 %v2409
    %v2488 = vunpack.c.l.b16 %v2410
    %v2489 = vunpack.c.h.b16 %v2410
    %v2490 = vunpack.c.l.b16 %v2411
    %v2491 = vunpack.c.h.b16 %v2411
    %v2492 = vunpack.c.l.b16 %v2412
    %v2493 = vunpack.c.h.b16 %v2412
    %v2494 = vunpack.c.l.b16 %v2413
    %v2495 = vunpack.c.h.b16 %v2413
    %v2496 = vunpack.c.l.b16 %v2414
    %v2497 = vunpack.c.h.b16 %v2414
    %v2498 = vunpack.c.l.b16 %v2415
    %v2499 = vunpack.c.h.b16 %v2415
    %v2500 = vunpack.c.l.b16 %v2416
    %v2501 = vunpack.c.h.b16 %v2416
    %v2502 = vunpack.c.l.b16 %v2417
    %v2503 = vunpack.c.h.b16 %v2417
    %v2504 = vunpack.c.l.b16 %v2418
    %v2505 = vunpack.c.h.b16 %v2418
    %v2506 = vunpack.c.l.b16 %v2419
    %v2507 = vunpack.c.h.b16 %v2419
    %v2508 = vunpack.c.l.b16 %v2420
    %v2509 = vunpack.c.h.b16 %v2420
    %v2510 = vunpack.c.l.b16 %v2421
    %v2511 = vunpack.c.h.b16 %v2421
    %v2512 = vunpack.c.l.b16 %v2422
    %v2513 = vunpack.c.h.b16 %v2422
    %v2514 = vunpack.c.l.b16 %v2423
    %v2515 = vunpack.c.h.b16 %v2423
    %v2516 = vunpack.c.l.b16 %v2424
    %v2517 = vunpack.c.h.b16 %v2424
    %v2518 = vunpack.c.l.b16 %v2425
    %v2519 = vunpack.c.h.b16 %v2425
    %v2520 = vunpack.c.l.b16 %v2426
    %v2521 = vunpack.c.h.b16 %v2426
    %v2522 = vunpack.c.l.b16 %v2427
    %v2523 = vunpack.c.h.b16 %v2427
    %v2524 = vpack.c.b16 %v2464, %v2460
    %v2525 = vpack.c.b16 %v2465, %v2461
    %v2526 = vpack.c.b16 %v2466, %v2462
    %v2527 = vpack.c.b16 %v2467, %v2463
    %v2528 = vpack.c.b16 %v2472, %v2468
    %v2529 = vpack.c.b16 %v2473, %v2469
    %v2530 = vpack.c.b16 %v2474, %v2470
    %v2531 = vpack.c.b16 %v2475, %v2471
    %v2532 = vpack.c.b16 %v2480, %v2476
    %v2533 = vpack.c.b16 %v2481, %v2477
    %v2534 = vpack.c.b16 %v2482, %v2478
    %v2535 = vpack.c.b16 %v2483, %v2479
    %v2536 = vpack.c.b16 %v2488, %v2484
    %v2537 = vpack.c.b16 %v2489, %v2485
    %v2538 = vpack.c.b16 %v2490, %v2486
    %v2539 = vpack.c.b16 %v2491, %v2487
    %v2540 = vpack.c.b16 %v2496, %v2492
    %v2541 = vpack.c.b16 %v2497, %v2493
    %v2542 = vpack.c.b16 %v2498, %v2494
    %v2543 = vpack.c.b16 %v2499, %v2495
    %v2544 = vpack.c.b16 %v2504, %v2500
    %v2545 = vpack.c.b16 %v2505, %v2501
    %v2546 = vpack.c.b16 %v2506, %v2502
    %v2547 = vpack.c.b16 %v2507, %v2503
    %v2548 = vpack.c.b16 %v2512, %v2508
    %v2549 = vpack.c.b16 %v2513, %v2509
    %v2550 = vpack.c.b16 %v2514, %v2510
    %v2551 = vpack.c.b16 %v2515, %v2511
    %v2552 = vpack.c.b16 %v2520, %v2516
    %v2553 = vpack.c.b16 %v2521, %v2517
    %v2554 = vpack.c.b16 %v2522, %v2518
    %v2555 = vpack.c.b16 %v2523, %v2519
    %2588 = vmatprep.subr.bf16.mxu0 %v2525
    %2589 = vmatpush1.bf16.msra.mxu0 %v2524
    %2590 = vmatprep.subr.bf16.mxu0 %v2529
    %2591 = vmatpush1.bf16.msra.mxu0 %v2528
    %2592 = vmatprep.subr.bf16.mxu0 %v2533
    %2593 = vmatpush1.bf16.msra.mxu0 %v2532
    %2594 = vmatprep.subr.bf16.mxu0 %v2537
    %2595 = vmatpush1.bf16.msra.mxu0 %v2536
    %2596 = vmatprep.subr.bf16.mxu0 %v2541
    %2597 = vmatpush1.bf16.msra.mxu0 %v2540
    %2598 = vmatprep.subr.bf16.mxu0 %v2545
    %2599 = vmatpush1.bf16.msra.mxu0 %v2544
    %2600 = vmatprep.subr.bf16.mxu0 %v2549
    %2601 = vmatpush1.bf16.msra.mxu0 %v2548
    %2602 = vmatprep.subr.bf16.mxu0 %v2553
    %2603 = vmatpush1.bf16.msra.mxu0 %v2552
    %2604 = vmatprep.subr.bf16.mxu0 0
    %2605 = vmatpush1.bf16.msra.mxu0 0
    %2606 = vmatprep.subr.bf16.mxu0 0
    %2607 = vmatpush1.bf16.msra.mxu0 0
    %2608 = vmatprep.subr.bf16.mxu0 0
    %2609 = vmatpush1.bf16.msra.mxu0 0
    %2610 = vmatprep.subr.bf16.mxu0 0
    %2611 = vmatpush1.bf16.msra.mxu0 0
    %2612 = vmatprep.subr.bf16.mxu0 0
    %2613 = vmatpush1.bf16.msra.mxu0 0
    %2614 = vmatprep.subr.bf16.mxu0 0
    %2615 = vmatpush1.bf16.msra.mxu0 0
    %2616 = vmatprep.subr.bf16.mxu0 0
    %2617 = vmatpush1.bf16.msra.mxu0 0
    %2618 = vmatprep.subr.bf16.mxu0 0
    %2619 = vmatpush1.bf16.msra.mxu0 0
    %2620 = vmatprep.mubr.bf16.mxu0 0
    %2621 = vmatmul.mubr.bf16.gmra.mrb[0].mxu0 %v2395
    %v2622 = vpop.f32.mrb[0].mxu0
    %v2623 = vadd.f32 0.0, %v2622
    %v2624 = vpop.f32.mrb[0].mxu0
    %v2625 = vadd.f32 0.0, %v2624
    %v2626 = vpop.f32.mrb[0].mxu0
    %v2627 = vpop.f32.mrb[0].mxu0
    %2628 = vdwg.mxu0
    %2629 = vmatprep.subr.bf16.mxu0 %v2527
    %2630 = vmatpush1.bf16.msra.mxu0 %v2526
    %2631 = vmatprep.subr.bf16.mxu0 %v2531
    %2632 = vmatpush1.bf16.msra.mxu0 %v2530
    %2633 = vmatprep.subr.bf16.mxu0 %v2535
    %2634 = vmatpush1.bf16.msra.mxu0 %v2534
    %2635 = vmatprep.subr.bf16.mxu0 %v2539
    %2636 = vmatpush1.bf16.msra.mxu0 %v2538
    %2637 = vmatprep.subr.bf16.mxu0 %v2543
    %2638 = vmatpush1.bf16.msra.mxu0 %v2542
    %2639 = vmatprep.subr.bf16.mxu0 %v2547
    %2640 = vmatpush1.bf16.msra.mxu0 %v2546
    %2641 = vmatprep.subr.bf16.mxu0 %v2551
    %2642 = vmatpush1.bf16.msra.mxu0 %v2550
    %2643 = vmatprep.subr.bf16.mxu0 %v2555
    %2644 = vmatpush1.bf16.msra.mxu0 %v2554
    %2645 = vmatprep.subr.bf16.mxu0 0
    %2646 = vmatpush1.bf16.msra.mxu0 0
    %2647 = vmatprep.subr.bf16.mxu0 0
    %2648 = vmatpush1.bf16.msra.mxu0 0
    %2649 = vmatprep.subr.bf16.mxu0 0
    %2650 = vmatpush1.bf16.msra.mxu0 0
    %2651 = vmatprep.subr.bf16.mxu0 0
    %2652 = vmatpush1.bf16.msra.mxu0 0
    %2653 = vmatprep.subr.bf16.mxu0 0
    %2654 = vmatpush1.bf16.msra.mxu0 0
    %2655 = vmatprep.subr.bf16.mxu0 0
    %2656 = vmatpush1.bf16.msra.mxu0 0
    %2657 = vmatprep.subr.bf16.mxu0 0
    %2658 = vmatpush1.bf16.msra.mxu0 0
    %2659 = vmatprep.subr.bf16.mxu0 0
    %2660 = vmatpush1.bf16.msra.mxu0 0
    %2661 = vmatprep.mubr.bf16.mxu0 0
    %2662 = vmatmul.mubr.bf16.gmra.mrb[0].mxu0 %v2395
    %v2663 = vpop.f32.mrb[0].mxu0
    %v2664 = vadd.f32 0.0, %v2663
    %v2665 = vpop.f32.mrb[0].mxu0
    %v2666 = vadd.f32 0.0, %v2665
    %v2667 = vpop.f32.mrb[0].mxu0
    %v2668 = vpop.f32.mrb[0].mxu0
    %2669 = vdwg.mxu0
    %v2670 = vadd.f32 %v2391, %v2623
    %v2671 = vadd.f32 %v2392, %v2625
    %v2672 = vadd.f32 %v2393, %v2664
    %v2673 = vadd.f32 %v2394, %v2666
    %v2674 = vxor.u32 %v2670, 2147483648
    %v2675 = vmul.f32 %v2674, 1.442695
    %v2676 = vpow.pop %v2675
    %v2677 = vadd.f32 %v2676, 1.0
    %v2678 = vrcp.pop %v2677
    %v2679 = vmul.f32 1.0, %v2678
    %v2680 = vxor.u32 %v2671, 2147483648
    %v2681 = vmul.f32 %v2680, 1.442695
    %v2682 = vpow.pop %v2681
    %v2683 = vadd.f32 %v2682, 1.0
    %v2684 = vrcp.pop %v2683
    %v2685 = vmul.f32 1.0, %v2684
    %v2686 = vtanh.pop %v2672
    %v2687 = vxor.u32 %v2673, 2147483648
    %v2688 = vmul.f32 %v2687, 1.442695
    %v2689 = vpow.pop %v2688
    %v2690 = vadd.f32 %v2689, 1.0
    %v2691 = vrcp.pop %v2690
    %v2692 = vmul.f32 1.0, %v2691
    %v2693 = vmul.f32 %v2685, %v2389
    %v2694 = vmul.f32 %v2679, %v2686
    %v2695 = vadd.f32 %v2693, %v2694
    %v2696 = vtanh.pop %v2695
    %v2697 = vmul.f32 %v2692, %v2696
    %2698 = vst [vmem:[#allocation3] sm:$0xff] %v2697
    %2699 = vst [vmem:[#allocation4] sm:$0xff] %v2695
    %s2700 = scalar_lea.vmem [#allocation14], 48
    %2701 = vst [vmem:[%s2700] sm:$0xff] %v2697
    %v2702 = vld [vmem:[#allocation3] sm:$0xff]
    %v2703 = vld [vmem:[#allocation4] sm:$0xff]
    %s2704 = scalar_lea.vmem [#allocation2], 224
    %v2705 = vld [vmem:[%s2704] sm:$0xff]
    %v2706 = vld [vmem:[%s2704 + $0x8] sm:$0xff]
    %v2707 = vld [vmem:[%s2704 + $0x10] sm:$0xff]
    %v2708 = vld [vmem:[%s2704 + $0x18] sm:$0xff]
    %v2709 = vpack.c.bf16 %v2702, %v2702
    %v2710 = vld [vmem:[#allocation10] sm:$0xff]
    %v2711 = vld [vmem:[#allocation10 + $0x8] sm:$0xff]
    %v2712 = vld [vmem:[#allocation10 + $0x10] sm:$0xff]
    %v2713 = vld [vmem:[#allocation10 + $0x18] sm:$0xff]
    %v2714 = vld [vmem:[#allocation10 + $0x20] sm:$0xff]
    %v2715 = vld [vmem:[#allocation10 + $0x28] sm:$0xff]
    %v2716 = vld [vmem:[#allocation10 + $0x30] sm:$0xff]
    %v2717 = vld [vmem:[#allocation10 + $0x38] sm:$0xff]
    %v2718 = vld [vmem:[#allocation10 + $0x40] sm:$0xff]
    %v2719 = vld [vmem:[#allocation10 + $0x48] sm:$0xff]
    %v2720 = vld [vmem:[#allocation10 + $0x50] sm:$0xff]
    %v2721 = vld [vmem:[#allocation10 + $0x58] sm:$0xff]
    %v2722 = vld [vmem:[#allocation10 + $0x60] sm:$0xff]
    %v2723 = vld [vmem:[#allocation10 + $0x68] sm:$0xff]
    %v2724 = vld [vmem:[#allocation10 + $0x70] sm:$0xff]
    %v2725 = vld [vmem:[#allocation10 + $0x78] sm:$0xff]
    %v2726 = vld [vmem:[#allocation10 + $0x80] sm:$0xff]
    %v2727 = vld [vmem:[#allocation10 + $0x88] sm:$0xff]
    %v2728 = vld [vmem:[#allocation10 + $0x90] sm:$0xff]
    %v2729 = vld [vmem:[#allocation10 + $0x98] sm:$0xff]
    %v2730 = vld [vmem:[#allocation10 + $0xa0] sm:$0xff]
    %v2731 = vld [vmem:[#allocation10 + $0xa8] sm:$0xff]
    %v2732 = vld [vmem:[#allocation10 + $0xb0] sm:$0xff]
    %v2733 = vld [vmem:[#allocation10 + $0xb8] sm:$0xff]
    %v2734 = vld [vmem:[#allocation10 + $0xc0] sm:$0xff]
    %v2735 = vld [vmem:[#allocation10 + $0xc8] sm:$0xff]
    %v2736 = vld [vmem:[#allocation10 + $0xd0] sm:$0xff]
    %v2737 = vld [vmem:[#allocation10 + $0xd8] sm:$0xff]
    %v2738 = vld [vmem:[#allocation10 + $0xe0] sm:$0xff]
    %v2739 = vld [vmem:[#allocation10 + $0xe8] sm:$0xff]
    %v2740 = vld [vmem:[#allocation10 + $0xf0] sm:$0xff]
    %v2741 = vld [vmem:[#allocation10 + $0xf8] sm:$0xff]
    %v2774 = vunpack.c.l.b16 %v2710
    %v2775 = vunpack.c.h.b16 %v2710
    %v2776 = vunpack.c.l.b16 %v2711
    %v2777 = vunpack.c.h.b16 %v2711
    %v2778 = vunpack.c.l.b16 %v2712
    %v2779 = vunpack.c.h.b16 %v2712
    %v2780 = vunpack.c.l.b16 %v2713
    %v2781 = vunpack.c.h.b16 %v2713
    %v2782 = vunpack.c.l.b16 %v2714
    %v2783 = vunpack.c.h.b16 %v2714
    %v2784 = vunpack.c.l.b16 %v2715
    %v2785 = vunpack.c.h.b16 %v2715
    %v2786 = vunpack.c.l.b16 %v2716
    %v2787 = vunpack.c.h.b16 %v2716
    %v2788 = vunpack.c.l.b16 %v2717
    %v2789 = vunpack.c.h.b16 %v2717
    %v2790 = vunpack.c.l.b16 %v2718
    %v2791 = vunpack.c.h.b16 %v2718
    %v2792 = vunpack.c.l.b16 %v2719
    %v2793 = vunpack.c.h.b16 %v2719
    %v2794 = vunpack.c.l.b16 %v2720
    %v2795 = vunpack.c.h.b16 %v2720
    %v2796 = vunpack.c.l.b16 %v2721
    %v2797 = vunpack.c.h.b16 %v2721
    %v2798 = vunpack.c.l.b16 %v2722
    %v2799 = vunpack.c.h.b16 %v2722
    %v2800 = vunpack.c.l.b16 %v2723
    %v2801 = vunpack.c.h.b16 %v2723
    %v2802 = vunpack.c.l.b16 %v2724
    %v2803 = vunpack.c.h.b16 %v2724
    %v2804 = vunpack.c.l.b16 %v2725
    %v2805 = vunpack.c.h.b16 %v2725
    %v2806 = vunpack.c.l.b16 %v2726
    %v2807 = vunpack.c.h.b16 %v2726
    %v2808 = vunpack.c.l.b16 %v2727
    %v2809 = vunpack.c.h.b16 %v2727
    %v2810 = vunpack.c.l.b16 %v2728
    %v2811 = vunpack.c.h.b16 %v2728
    %v2812 = vunpack.c.l.b16 %v2729
    %v2813 = vunpack.c.h.b16 %v2729
    %v2814 = vunpack.c.l.b16 %v2730
    %v2815 = vunpack.c.h.b16 %v2730
    %v2816 = vunpack.c.l.b16 %v2731
    %v2817 = vunpack.c.h.b16 %v2731
    %v2818 = vunpack.c.l.b16 %v2732
    %v2819 = vunpack.c.h.b16 %v2732
    %v2820 = vunpack.c.l.b16 %v2733
    %v2821 = vunpack.c.h.b16 %v2733
    %v2822 = vunpack.c.l.b16 %v2734
    %v2823 = vunpack.c.h.b16 %v2734
    %v2824 = vunpack.c.l.b16 %v2735
    %v2825 = vunpack.c.h.b16 %v2735
    %v2826 = vunpack.c.l.b16 %v2736
    %v2827 = vunpack.c.h.b16 %v2736
    %v2828 = vunpack.c.l.b16 %v2737
    %v2829 = vunpack.c.h.b16 %v2737
    %v2830 = vunpack.c.l.b16 %v2738
    %v2831 = vunpack.c.h.b16 %v2738
    %v2832 = vunpack.c.l.b16 %v2739
    %v2833 = vunpack.c.h.b16 %v2739
    %v2834 = vunpack.c.l.b16 %v2740
    %v2835 = vunpack.c.h.b16 %v2740
    %v2836 = vunpack.c.l.b16 %v2741
    %v2837 = vunpack.c.h.b16 %v2741
    %v2838 = vpack.c.b16 %v2778, %v2774
    %v2839 = vpack.c.b16 %v2779, %v2775
    %v2840 = vpack.c.b16 %v2780, %v2776
    %v2841 = vpack.c.b16 %v2781, %v2777
    %v2842 = vpack.c.b16 %v2786, %v2782
    %v2843 = vpack.c.b16 %v2787, %v2783
    %v2844 = vpack.c.b16 %v2788, %v2784
    %v2845 = vpack.c.b16 %v2789, %v2785
    %v2846 = vpack.c.b16 %v2794, %v2790
    %v2847 = vpack.c.b16 %v2795, %v2791
    %v2848 = vpack.c.b16 %v2796, %v2792
    %v2849 = vpack.c.b16 %v2797, %v2793
    %v2850 = vpack.c.b16 %v2802, %v2798
    %v2851 = vpack.c.b16 %v2803, %v2799
    %v2852 = vpack.c.b16 %v2804, %v2800
    %v2853 = vpack.c.b16 %v2805, %v2801
    %v2854 = vpack.c.b16 %v2810, %v2806
    %v2855 = vpack.c.b16 %v2811, %v2807
    %v2856 = vpack.c.b16 %v2812, %v2808
    %v2857 = vpack.c.b16 %v2813, %v2809
    %v2858 = vpack.c.b16 %v2818, %v2814
    %v2859 = vpack.c.b16 %v2819, %v2815
    %v2860 = vpack.c.b16 %v2820, %v2816
    %v2861 = vpack.c.b16 %v2821, %v2817
    %v2862 = vpack.c.b16 %v2826, %v2822
    %v2863 = vpack.c.b16 %v2827, %v2823
    %v2864 = vpack.c.b16 %v2828, %v2824
    %v2865 = vpack.c.b16 %v2829, %v2825
    %v2866 = vpack.c.b16 %v2834, %v2830
    %v2867 = vpack.c.b16 %v2835, %v2831
    %v2868 = vpack.c.b16 %v2836, %v2832
    %v2869 = vpack.c.b16 %v2837, %v2833
    %2902 = vmatprep.subr.bf16.mxu0 %v2839
    %2903 = vmatpush1.bf16.msra.mxu0 %v2838
    %2904 = vmatprep.subr.bf16.mxu0 %v2843
    %2905 = vmatpush1.bf16.msra.mxu0 %v2842
    %2906 = vmatprep.subr.bf16.mxu0 %v2847
    %2907 = vmatpush1.bf16.msra.mxu0 %v2846
    %2908 = vmatprep.subr.bf16.mxu0 %v2851
    %2909 = vmatpush1.bf16.msra.mxu0 %v2850
    %2910 = vmatprep.subr.bf16.mxu0 %v2855
    %2911 = vmatpush1.bf16.msra.mxu0 %v2854
    %2912 = vmatprep.subr.bf16.mxu0 %v2859
    %2913 = vmatpush1.bf16.msra.mxu0 %v2858
    %2914 = vmatprep.subr.bf16.mxu0 %v2863
    %2915 = vmatpush1.bf16.msra.mxu0 %v2862
    %2916 = vmatprep.subr.bf16.mxu0 %v2867
    %2917 = vmatpush1.bf16.msra.mxu0 %v2866
    %2918 = vmatprep.subr.bf16.mxu0 0
    %2919 = vmatpush1.bf16.msra.mxu0 0
    %2920 = vmatprep.subr.bf16.mxu0 0
    %2921 = vmatpush1.bf16.msra.mxu0 0
    %2922 = vmatprep.subr.bf16.mxu0 0
    %2923 = vmatpush1.bf16.msra.mxu0 0
    %2924 = vmatprep.subr.bf16.mxu0 0
    %2925 = vmatpush1.bf16.msra.mxu0 0
    %2926 = vmatprep.subr.bf16.mxu0 0
    %2927 = vmatpush1.bf16.msra.mxu0 0
    %2928 = vmatprep.subr.bf16.mxu0 0
    %2929 = vmatpush1.bf16.msra.mxu0 0
    %2930 = vmatprep.subr.bf16.mxu0 0
    %2931 = vmatpush1.bf16.msra.mxu0 0
    %2932 = vmatprep.subr.bf16.mxu0 0
    %2933 = vmatpush1.bf16.msra.mxu0 0
    %2934 = vmatprep.mubr.bf16.mxu0 0
    %2935 = vmatmul.mubr.bf16.gmra.mrb[0].mxu0 %v2709
    %v2936 = vpop.f32.mrb[0].mxu0
    %v2937 = vadd.f32 0.0, %v2936
    %v2938 = vpop.f32.mrb[0].mxu0
    %v2939 = vadd.f32 0.0, %v2938
    %v2940 = vpop.f32.mrb[0].mxu0
    %v2941 = vpop.f32.mrb[0].mxu0
    %2942 = vdwg.mxu0
    %2943 = vmatprep.subr.bf16.mxu0 %v2841
    %2944 = vmatpush1.bf16.msra.mxu0 %v2840
    %2945 = vmatprep.subr.bf16.mxu0 %v2845
    %2946 = vmatpush1.bf16.msra.mxu0 %v2844
    %2947 = vmatprep.subr.bf16.mxu0 %v2849
    %2948 = vmatpush1.bf16.msra.mxu0 %v2848
    %2949 = vmatprep.subr.bf16.mxu0 %v2853
    %2950 = vmatpush1.bf16.msra.mxu0 %v2852
    %2951 = vmatprep.subr.bf16.mxu0 %v2857
    %2952 = vmatpush1.bf16.msra.mxu0 %v2856
    %2953 = vmatprep.subr.bf16.mxu0 %v2861
    %2954 = vmatpush1.bf16.msra.mxu0 %v2860
    %2955 = vmatprep.subr.bf16.mxu0 %v2865
    %2956 = vmatpush1.bf16.msra.mxu0 %v2864
    %2957 = vmatprep.subr.bf16.mxu0 %v2869
    %2958 = vmatpush1.bf16.msra.mxu0 %v2868
    %2959 = vmatprep.subr.bf16.mxu0 0
    %2960 = vmatpush1.bf16.msra.mxu0 0
    %2961 = vmatprep.subr.bf16.mxu0 0
    %2962 = vmatpush1.bf16.msra.mxu0 0
    %2963 = vmatprep.subr.bf16.mxu0 0
    %2964 = vmatpush1.bf16.msra.mxu0 0
    %2965 = vmatprep.subr.bf16.mxu0 0
    %2966 = vmatpush1.bf16.msra.mxu0 0
    %2967 = vmatprep.subr.bf16.mxu0 0
    %2968 = vmatpush1.bf16.msra.mxu0 0
    %2969 = vmatprep.subr.bf16.mxu0 0
    %2970 = vmatpush1.bf16.msra.mxu0 0
    %2971 = vmatprep.subr.bf16.mxu0 0
    %2972 = vmatpush1.bf16.msra.mxu0 0
    %2973 = vmatprep.subr.bf16.mxu0 0
    %2974 = vmatpush1.bf16.msra.mxu0 0
    %2975 = vmatprep.mubr.bf16.mxu0 0
    %2976 = vmatmul.mubr.bf16.gmra.mrb[0].mxu0 %v2709
    %v2977 = vpop.f32.mrb[0].mxu0
    %v2978 = vadd.f32 0.0, %v2977
    %v2979 = vpop.f32.mrb[0].mxu0
    %v2980 = vadd.f32 0.0, %v2979
    %v2981 = vpop.f32.mrb[0].mxu0
    %v2982 = vpop.f32.mrb[0].mxu0
    %2983 = vdwg.mxu0
    %v2984 = vadd.f32 %v2705, %v2937
    %v2985 = vadd.f32 %v2706, %v2939
    %v2986 = vadd.f32 %v2707, %v2978
    %v2987 = vadd.f32 %v2708, %v2980
    %v2988 = vxor.u32 %v2984, 2147483648
    %v2989 = vmul.f32 %v2988, 1.442695
    %v2990 = vpow.pop %v2989
    %v2991 = vadd.f32 %v2990, 1.0
    %v2992 = vrcp.pop %v2991
    %v2993 = vmul.f32 1.0, %v2992
    %v2994 = vxor.u32 %v2985, 2147483648
    %v2995 = vmul.f32 %v2994, 1.442695
    %v2996 = vpow.pop %v2995
    %v2997 = vadd.f32 %v2996, 1.0
    %v2998 = vrcp.pop %v2997
    %v2999 = vmul.f32 1.0, %v2998
    %v3000 = vtanh.pop %v2986
    %v3001 = vxor.u32 %v2987, 2147483648
    %v3002 = vmul.f32 %v3001, 1.442695
    %v3003 = vpow.pop %v3002
    %v3004 = vadd.f32 %v3003, 1.0
    %v3005 = vrcp.pop %v3004
    %v3006 = vmul.f32 1.0, %v3005
    %v3007 = vmul.f32 %v2999, %v2703
    %v3008 = vmul.f32 %v2993, %v3000
    %v3009 = vadd.f32 %v3007, %v3008
    %v3010 = vtanh.pop %v3009
    %v3011 = vmul.f32 %v3006, %v3010
    %3012 = vst [vmem:[#allocation3] sm:$0xff] %v3011
    %3013 = vst [vmem:[#allocation4] sm:$0xff] %v3009
    %s3014 = scalar_lea.vmem [#allocation14], 56
    %3015 = vst [vmem:[%s3014] sm:$0xff] %v3011
    %v3016 = vld [vmem:[#allocation3] sm:$0xff]
    %3017 = vst [vmem:[#allocation15] sm:$0xff] %v3016
    %v3018 = vld [vmem:[#allocation4] sm:$0xff]
    %3019 = vst [vmem:[#allocation17] sm:$0xff] %v3018
    %v3020 = vld [vmem:[#allocation14] sm:$0xff]
    %v3021 = vld [vmem:[#allocation14 + $0x8] sm:$0xff]
    %v3022 = vld [vmem:[#allocation14 + $0x10] sm:$0xff]
    %v3023 = vld [vmem:[#allocation14 + $0x18] sm:$0xff]
    %v3024 = vld [vmem:[#allocation14 + $0x20] sm:$0xff]
    %v3025 = vld [vmem:[#allocation14 + $0x28] sm:$0xff]
    %v3026 = vld [vmem:[#allocation14 + $0x30] sm:$0xff]
    %v3027 = vld [vmem:[#allocation14 + $0x38] sm:$0xff]
    %v3028 = vpack.c.bf16 %v3021, %v3020
    %v3029 = vpack.c.bf16 %v3023, %v3022
    %v3030 = vpack.c.bf16 %v3025, %v3024
    %v3031 = vpack.c.bf16 %v3027, %v3026
    %v3032 = vld [vmem:[#allocation11] sm:$0xff]
    %v3033 = vld [vmem:[#allocation11 + $0x8] sm:$0xff]
    %v3034 = vld [vmem:[#allocation11 + $0x10] sm:$0xff]
    %v3035 = vld [vmem:[#allocation11 + $0x18] sm:$0xff]
    %v3036 = vld [vmem:[#allocation11 + $0x20] sm:$0xff]
    %v3037 = vld [vmem:[#allocation11 + $0x28] sm:$0xff]
    %v3038 = vld [vmem:[#allocation11 + $0x30] sm:$0xff]
    %v3039 = vld [vmem:[#allocation11 + $0x38] sm:$0xff]
    %v3040 = vld [vmem:[#allocation11 + $0x40] sm:$0xff]
    %v3041 = vld [vmem:[#allocation11 + $0x48] sm:$0xff]
    %v3042 = vld [vmem:[#allocation11 + $0x50] sm:$0xff]
    %v3043 = vld [vmem:[#allocation11 + $0x58] sm:$0xff]
    %v3044 = vld [vmem:[#allocation11 + $0x60] sm:$0xff]
    %v3045 = vld [vmem:[#allocation11 + $0x68] sm:$0xff]
    %v3046 = vld [vmem:[#allocation11 + $0x70] sm:$0xff]
    %v3047 = vld [vmem:[#allocation11 + $0x78] sm:$0xff]
    %v3048 = vld [vmem:[#allocation11 + $0x80] sm:$0xff]
    %v3049 = vld [vmem:[#allocation11 + $0x88] sm:$0xff]
    %v3050 = vld [vmem:[#allocation11 + $0x90] sm:$0xff]
    %v3051 = vld [vmem:[#allocation11 + $0x98] sm:$0xff]
    %v3052 = vld [vmem:[#allocation11 + $0xa0] sm:$0xff]
    %v3053 = vld [vmem:[#allocation11 + $0xa8] sm:$0xff]
    %v3054 = vld [vmem:[#allocation11 + $0xb0] sm:$0xff]
    %v3055 = vld [vmem:[#allocation11 + $0xb8] sm:$0xff]
    %v3056 = vld [vmem:[#allocation11 + $0xc0] sm:$0xff]
    %v3057 = vld [vmem:[#allocation11 + $0xc8] sm:$0xff]
    %v3058 = vld [vmem:[#allocation11 + $0xd0] sm:$0xff]
    %v3059 = vld [vmem:[#allocation11 + $0xd8] sm:$0xff]
    %v3060 = vld [vmem:[#allocation11 + $0xe0] sm:$0xff]
    %v3061 = vld [vmem:[#allocation11 + $0xe8] sm:$0xff]
    %v3062 = vld [vmem:[#allocation11 + $0xf0] sm:$0xff]
    %v3063 = vld [vmem:[#allocation11 + $0xf8] sm:$0xff]
    %v3064 = vld [vmem:[%s6] sm:$0xf]
    %v3066 = vlaneseq
    %v3067 = vshrl.u32 %v3066, 7
    %v3068 = vsub.s32 0, %v3067
    %v3069 = vrot.slane %v3064, %v3068
    %v3070 = vlaneseq
    %v3071 = vshrl.u32 %v3070, 7
    %v3072 = vsub.s32 1, %v3071
    %v3073 = vrot.slane %v3064, %v3072
    %v3074 = vlaneseq
    %v3075 = vshrl.u32 %v3074, 7
    %v3076 = vsub.s32 2, %v3075
    %v3077 = vrot.slane %v3064, %v3076
    %v3078 = vlaneseq
    %v3079 = vshrl.u32 %v3078, 7
    %v3080 = vsub.s32 3, %v3079
    %v3081 = vrot.slane %v3064, %v3080
    %v3118 = vunpack.c.l.b16 %v3032
    %v3119 = vunpack.c.h.b16 %v3032
    %v3120 = vunpack.c.l.b16 %v3033
    %v3121 = vunpack.c.h.b16 %v3033
    %v3122 = vunpack.c.l.b16 %v3034
    %v3123 = vunpack.c.h.b16 %v3034
    %v3124 = vunpack.c.l.b16 %v3035
    %v3125 = vunpack.c.h.b16 %v3035
    %v3126 = vunpack.c.l.b16 %v3036
    %v3127 = vunpack.c.h.b16 %v3036
    %v3128 = vunpack.c.l.b16 %v3037
    %v3129 = vunpack.c.h.b16 %v3037
    %v3130 = vunpack.c.l.b16 %v3038
    %v3131 = vunpack.c.h.b16 %v3038
    %v3132 = vunpack.c.l.b16 %v3039
    %v3133 = vunpack.c.h.b16 %v3039
    %v3134 = vunpack.c.l.b16 %v3040
    %v3135 = vunpack.c.h.b16 %v3040
    %v3136 = vunpack.c.l.b16 %v3041
    %v3137 = vunpack.c.h.b16 %v3041
    %v3138 = vunpack.c.l.b16 %v3042
    %v3139 = vunpack.c.h.b16 %v3042
    %v3140 = vunpack.c.l.b16 %v3043
    %v3141 = vunpack.c.h.b16 %v3043
    %v3142 = vunpack.c.l.b16 %v3044
    %v3143 = vunpack.c.h.b16 %v3044
    %v3144 = vunpack.c.l.b16 %v3045
    %v3145 = vunpack.c.h.b16 %v3045
    %v3146 = vunpack.c.l.b16 %v3046
    %v3147 = vunpack.c.h.b16 %v3046
    %v3148 = vunpack.c.l.b16 %v3047
    %v3149 = vunpack.c.h.b16 %v3047
    %v3150 = vunpack.c.l.b16 %v3048
    %v3151 = vunpack.c.h.b16 %v3048
    %v3152 = vunpack.c.l.b16 %v3049
    %v3153 = vunpack.c.h.b16 %v3049
    %v3154 = vunpack.c.l.b16 %v3050
    %v3155 = vunpack.c.h.b16 %v3050
    %v3156 = vunpack.c.l.b16 %v3051
    %v3157 = vunpack.c.h.b16 %v3051
    %v3158 = vunpack.c.l.b16 %v3052
    %v3159 = vunpack.c.h.b16 %v3052
    %v3160 = vunpack.c.l.b16 %v3053
    %v3161 = vunpack.c.h.b16 %v3053
    %v3162 = vunpack.c.l.b16 %v3054
    %v3163 = vunpack.c.h.b16 %v3054
    %v3164 = vunpack.c.l.b16 %v3055
    %v3165 = vunpack.c.h.b16 %v3055
    %v3166 = vunpack.c.l.b16 %v3056
    %v3167 = vunpack.c.h.b16 %v3056
    %v3168 = vunpack.c.l.b16 %v3057
    %v3169 = vunpack.c.h.b16 %v3057
    %v3170 = vunpack.c.l.b16 %v3058
    %v3171 = vunpack.c.h.b16 %v3058
    %v3172 = vunpack.c.l.b16 %v3059
    %v3173 = vunpack.c.h.b16 %v3059
    %v3174 = vunpack.c.l.b16 %v3060
    %v3175 = vunpack.c.h.b16 %v3060
    %v3176 = vunpack.c.l.b16 %v3061
    %v3177 = vunpack.c.h.b16 %v3061
    %v3178 = vunpack.c.l.b16 %v3062
    %v3179 = vunpack.c.h.b16 %v3062
    %v3180 = vunpack.c.l.b16 %v3063
    %v3181 = vunpack.c.h.b16 %v3063
    %v3182 = vpack.c.b16 %v3122, %v3118
    %v3183 = vpack.c.b16 %v3123, %v3119
    %v3184 = vpack.c.b16 %v3124, %v3120
    %v3185 = vpack.c.b16 %v3125, %v3121
    %v3186 = vpack.c.b16 %v3130, %v3126
    %v3187 = vpack.c.b16 %v3131, %v3127
    %v3188 = vpack.c.b16 %v3132, %v3128
    %v3189 = vpack.c.b16 %v3133, %v3129
    %v3190 = vpack.c.b16 %v3138, %v3134
    %v3191 = vpack.c.b16 %v3139, %v3135
    %v3192 = vpack.c.b16 %v3140, %v3136
    %v3193 = vpack.c.b16 %v3141, %v3137
    %v3194 = vpack.c.b16 %v3146, %v3142
    %v3195 = vpack.c.b16 %v3147, %v3143
    %v3196 = vpack.c.b16 %v3148, %v3144
    %v3197 = vpack.c.b16 %v3149, %v3145
    %v3198 = vpack.c.b16 %v3154, %v3150
    %v3199 = vpack.c.b16 %v3155, %v3151
    %v3200 = vpack.c.b16 %v3156, %v3152
    %v3201 = vpack.c.b16 %v3157, %v3153
    %v3202 = vpack.c.b16 %v3162, %v3158
    %v3203 = vpack.c.b16 %v3163, %v3159
    %v3204 = vpack.c.b16 %v3164, %v3160
    %v3205 = vpack.c.b16 %v3165, %v3161
    %v3206 = vpack.c.b16 %v3170, %v3166
    %v3207 = vpack.c.b16 %v3171, %v3167
    %v3208 = vpack.c.b16 %v3172, %v3168
    %v3209 = vpack.c.b16 %v3173, %v3169
    %v3210 = vpack.c.b16 %v3178, %v3174
    %v3211 = vpack.c.b16 %v3179, %v3175
    %v3212 = vpack.c.b16 %v3180, %v3176
    %v3213 = vpack.c.b16 %v3181, %v3177
    %3246 = vmatprep.subr.bf16.mxu0 %v3183
    %3247 = vmatpush1.bf16.msra.mxu0 %v3182
    %3248 = vmatprep.subr.bf16.mxu0 %v3187
    %3249 = vmatpush1.bf16.msra.mxu0 %v3186
    %3250 = vmatprep.subr.bf16.mxu0 %v3191
    %3251 = vmatpush1.bf16.msra.mxu0 %v3190
    %3252 = vmatprep.subr.bf16.mxu0 %v3195
    %3253 = vmatpush1.bf16.msra.mxu0 %v3194
    %3254 = vmatprep.subr.bf16.mxu0 %v3199
    %3255 = vmatpush1.bf16.msra.mxu0 %v3198
    %3256 = vmatprep.subr.bf16.mxu0 %v3203
    %3257 = vmatpush1.bf16.msra.mxu0 %v3202
    %3258 = vmatprep.subr.bf16.mxu0 %v3207
    %3259 = vmatpush1.bf16.msra.mxu0 %v3206
    %3260 = vmatprep.subr.bf16.mxu0 %v3211
    %3261 = vmatpush1.bf16.msra.mxu0 %v3210
    %3262 = vmatprep.subr.bf16.mxu0 0
    %3263 = vmatpush1.bf16.msra.mxu0 0
    %3264 = vmatprep.subr.bf16.mxu0 0
    %3265 = vmatpush1.bf16.msra.mxu0 0
    %3266 = vmatprep.subr.bf16.mxu0 0
    %3267 = vmatpush1.bf16.msra.mxu0 0
    %3268 = vmatprep.subr.bf16.mxu0 0
    %3269 = vmatpush1.bf16.msra.mxu0 0
    %3270 = vmatprep.subr.bf16.mxu0 0
    %3271 = vmatpush1.bf16.msra.mxu0 0
    %3272 = vmatprep.subr.bf16.mxu0 0
    %3273 = vmatpush1.bf16.msra.mxu0 0
    %3274 = vmatprep.subr.bf16.mxu0 0
    %3275 = vmatpush1.bf16.msra.mxu0 0
    %3276 = vmatprep.subr.bf16.mxu0 0
    %3277 = vmatpush1.bf16.msra.mxu0 0
    %3278 = vmatprep.mubr.bf16.mxu0 0
    %3279 = vmatmul.mubr.bf16.gmra.mrb[0].mxu0 %v3028
    %v3280 = vpop.f32.mrb[0].mxu0
    %v3281 = vadd.f32 %v3069, %v3280
    %v3282 = vpop.f32.mrb[0].mxu0
    %v3283 = vadd.f32 %v3073, %v3282
    %v3284 = vpop.f32.mrb[0].mxu0
    %v3285 = vadd.f32 %v3069, %v3284
    %v3286 = vpop.f32.mrb[0].mxu0
    %v3287 = vadd.f32 %v3073, %v3286
    %3288 = vmatprep.mubr.bf16.mxu0 0
    %3289 = vmatmul.mubr.bf16.gmra.mrb[0].mxu0 %v3029
    %v3290 = vpop.f32.mrb[0].mxu0
    %v3291 = vadd.f32 %v3069, %v3290
    %v3292 = vpop.f32.mrb[0].mxu0
    %v3293 = vadd.f32 %v3073, %v3292
    %v3294 = vpop.f32.mrb[0].mxu0
    %v3295 = vadd.f32 %v3069, %v3294
    %v3296 = vpop.f32.mrb[0].mxu0
    %v3297 = vadd.f32 %v3073, %v3296
    %3298 = vmatprep.mubr.bf16.mxu0 0
    %3299 = vmatmul.mubr.bf16.gmra.mrb[0].mxu0 %v3030
    %v3300 = vpop.f32.mrb[0].mxu0
    %v3301 = vadd.f32 %v3069, %v3300
    %v3302 = vpop.f32.mrb[0].mxu0
    %v3303 = vadd.f32 %v3073, %v3302
    %v3304 = vpop.f32.mrb[0].mxu0
    %v3305 = vadd.f32 %v3069, %v3304
    %v3306 = vpop.f32.mrb[0].mxu0
    %v3307 = vadd.f32 %v3073, %v3306
    %3308 = vmatprep.mubr.bf16.mxu0 0
    %3309 = vmatmul.mubr.bf16.gmra.mrb[0].mxu0 %v3031
    %v3310 = vpop.f32.mrb[0].mxu0
    %v3311 = vadd.f32 %v3069, %v3310
    %v3312 = vpop.f32.mrb[0].mxu0
    %v3313 = vadd.f32 %v3073, %v3312
    %v3314 = vpop.f32.mrb[0].mxu0
    %v3315 = vadd.f32 %v3069, %v3314
    %v3316 = vpop.f32.mrb[0].mxu0
    %v3317 = vadd.f32 %v3073, %v3316
    %3318 = vdwg.mxu0
    %3319 = vmatprep.subr.bf16.mxu0 %v3185
    %3320 = vmatpush1.bf16.msra.mxu0 %v3184
    %3321 = vmatprep.subr.bf16.mxu0 %v3189
    %3322 = vmatpush1.bf16.msra.mxu0 %v3188
    %3323 = vmatprep.subr.bf16.mxu0 %v3193
    %3324 = vmatpush1.bf16.msra.mxu0 %v3192
    %3325 = vmatprep.subr.bf16.mxu0 %v3197
    %3326 = vmatpush1.bf16.msra.mxu0 %v3196
    %3327 = vmatprep.subr.bf16.mxu0 %v3201
    %3328 = vmatpush1.bf16.msra.mxu0 %v3200
    %3329 = vmatprep.subr.bf16.mxu0 %v3205
    %3330 = vmatpush1.bf16.msra.mxu0 %v3204
    %3331 = vmatprep.subr.bf16.mxu0 %v3209
    %3332 = vmatpush1.bf16.msra.mxu0 %v3208
    %3333 = vmatprep.subr.bf16.mxu0 %v3213
    %3334 = vmatpush1.bf16.msra.mxu0 %v3212
    %3335 = vmatprep.subr.bf16.mxu0 0
    %3336 = vmatpush1.bf16.msra.mxu0 0
    %3337 = vmatprep.subr.bf16.mxu0 0
    %3338 = vmatpush1.bf16.msra.mxu0 0
    %3339 = vmatprep.subr.bf16.mxu0 0
    %3340 = vmatpush1.bf16.msra.mxu0 0
    %3341 = vmatprep.subr.bf16.mxu0 0
    %3342 = vmatpush1.bf16.msra.mxu0 0
    %3343 = vmatprep.subr.bf16.mxu0 0
    %3344 = vmatpush1.bf16.msra.mxu0 0
    %3345 = vmatprep.subr.bf16.mxu0 0
    %3346 = vmatpush1.bf16.msra.mxu0 0
    %3347 = vmatprep.subr.bf16.mxu0 0
    %3348 = vmatpush1.bf16.msra.mxu0 0
    %3349 = vmatprep.subr.bf16.mxu0 0
    %3350 = vmatpush1.bf16.msra.mxu0 0
    %3351 = vmatprep.mubr.bf16.mxu0 0
    %3352 = vmatmul.mubr.bf16.gmra.mrb[0].mxu0 %v3028
    %v3353 = vpop.f32.mrb[0].mxu0
    %v3354 = vadd.f32 %v3077, %v3353
    %v3355 = vpop.f32.mrb[0].mxu0
    %v3356 = vadd.f32 %v3081, %v3355
    %v3357 = vpop.f32.mrb[0].mxu0
    %v3358 = vadd.f32 %v3077, %v3357
    %v3359 = vpop.f32.mrb[0].mxu0
    %v3360 = vadd.f32 %v3081, %v3359
    %3361 = vmatprep.mubr.bf16.mxu0 0
    %3362 = vmatmul.mubr.bf16.gmra.mrb[0].mxu0 %v3029
    %v3363 = vpop.f32.mrb[0].mxu0
    %v3364 = vadd.f32 %v3077, %v3363
    %v3365 = vpop.f32.mrb[0].mxu0
    %v3366 = vadd.f32 %v3081, %v3365
    %v3367 = vpop.f32.mrb[0].mxu0
    %v3368 = vadd.f32 %v3077, %v3367
    %v3369 = vpop.f32.mrb[0].mxu0
    %v3370 = vadd.f32 %v3081, %v3369
    %3371 = vmatprep.mubr.bf16.mxu0 0
    %3372 = vmatmul.mubr.bf16.gmra.mrb[0].mxu0 %v3030
    %v3373 = vpop.f32.mrb[0].mxu0
    %v3374 = vadd.f32 %v3077, %v3373
    %v3375 = vpop.f32.mrb[0].mxu0
    %v3376 = vadd.f32 %v3081, %v3375
    %v3377 = vpop.f32.mrb[0].mxu0
    %v3378 = vadd.f32 %v3077, %v3377
    %v3379 = vpop.f32.mrb[0].mxu0
    %v3380 = vadd.f32 %v3081, %v3379
    %3381 = vmatprep.mubr.bf16.mxu0 0
    %3382 = vmatmul.mubr.bf16.gmra.mrb[0].mxu0 %v3031
    %v3383 = vpop.f32.mrb[0].mxu0
    %v3384 = vadd.f32 %v3077, %v3383
    %v3385 = vpop.f32.mrb[0].mxu0
    %v3386 = vadd.f32 %v3081, %v3385
    %v3387 = vpop.f32.mrb[0].mxu0
    %v3388 = vadd.f32 %v3077, %v3387
    %v3389 = vpop.f32.mrb[0].mxu0
    %v3390 = vadd.f32 %v3081, %v3389
    %3391 = vdwg.mxu0
    %3392 = vst [vmem:[#allocation2] sm:$0xff] %v3281
    %3393 = vst [vmem:[#allocation2 + $0x8] sm:$0xff] %v3283
    %3394 = vst [vmem:[#allocation2 + $0x10] sm:$0xff] %v3354
    %3395 = vst [vmem:[#allocation2 + $0x18] sm:$0xff] %v3356
    %3396 = vst [vmem:[#allocation2 + $0x20] sm:$0xff] %v3285
    %3397 = vst [vmem:[#allocation2 + $0x28] sm:$0xff] %v3287
    %3398 = vst [vmem:[#allocation2 + $0x30] sm:$0xff] %v3358
    %3399 = vst [vmem:[#allocation2 + $0x38] sm:$0xff] %v3360
    %3400 = vst [vmem:[#allocation2 + $0x40] sm:$0xff] %v3291
    %3401 = vst [vmem:[#allocation2 + $0x48] sm:$0xff] %v3293
    %3402 = vst [vmem:[#allocation2 + $0x50] sm:$0xff] %v3364
    %3403 = vst [vmem:[#allocation2 + $0x58] sm:$0xff] %v3366
    %3404 = vst [vmem:[#allocation2 + $0x60] sm:$0xff] %v3295
    %3405 = vst [vmem:[#allocation2 + $0x68] sm:$0xff] %v3297
    %3406 = vst [vmem:[#allocation2 + $0x70] sm:$0xff] %v3368
    %3407 = vst [vmem:[#allocation2 + $0x78] sm:$0xff] %v3370
    %3408 = vst [vmem:[#allocation2 + $0x80] sm:$0xff] %v3301
    %3409 = vst [vmem:[#allocation2 + $0x88] sm:$0xff] %v3303
    %3410 = vst [vmem:[#allocation2 + $0x90] sm:$0xff] %v3374
    %3411 = vst [vmem:[#allocation2 + $0x98] sm:$0xff] %v3376
    %3412 = vst [vmem:[#allocation2 + $0xa0] sm:$0xff] %v3305
    %3413 = vst [vmem:[#allocation2 + $0xa8] sm:$0xff] %v3307
    %3414 = vst [vmem:[#allocation2 + $0xb0] sm:$0xff] %v3378
    %3415 = vst [vmem:[#allocation2 + $0xb8] sm:$0xff] %v3380
    %3416 = vst [vmem:[#allocation2 + $0xc0] sm:$0xff] %v3311
    %3417 = vst [vmem:[#allocation2 + $0xc8] sm:$0xff] %v3313
    %3418 = vst [vmem:[#allocation2 + $0xd0] sm:$0xff] %v3384
    %3419 = vst [vmem:[#allocation2 + $0xd8] sm:$0xff] %v3386
    %3420 = vst [vmem:[#allocation2 + $0xe0] sm:$0xff] %v3315
    %3421 = vst [vmem:[#allocation2 + $0xe8] sm:$0xff] %v3317
    %3422 = vst [vmem:[#allocation2 + $0xf0] sm:$0xff] %v3388
    %3423 = vst [vmem:[#allocation2 + $0xf8] sm:$0xff] %v3390
    %3424 = vst [vmem:[#allocation3] sm:$0xff] 0.0
    %3425 = vst [vmem:[#allocation4] sm:$0xff] 0.0
    %v3426 = vld [vmem:[#allocation3] sm:$0xff]
    %v3427 = vld [vmem:[#allocation4] sm:$0xff]
    %v3428 = vld [vmem:[#allocation2] sm:$0xff]
    %v3429 = vld [vmem:[#allocation2 + $0x8] sm:$0xff]
    %v3430 = vld [vmem:[#allocation2 + $0x10] sm:$0xff]
    %v3431 = vld [vmem:[#allocation2 + $0x18] sm:$0xff]
    %v3432 = vpack.c.bf16 %v3426, %v3426
    %v3433 = vld [vmem:[#allocation13] sm:$0xff]
    %v3434 = vld [vmem:[#allocation13 + $0x8] sm:$0xff]
    %v3435 = vld [vmem:[#allocation13 + $0x10] sm:$0xff]
    %v3436 = vld [vmem:[#allocation13 + $0x18] sm:$0xff]
    %v3437 = vld [vmem:[#allocation13 + $0x20] sm:$0xff]
    %v3438 = vld [vmem:[#allocation13 + $0x28] sm:$0xff]
    %v3439 = vld [vmem:[#allocation13 + $0x30] sm:$0xff]
    %v3440 = vld [vmem:[#allocation13 + $0x38] sm:$0xff]
    %v3441 = vld [vmem:[#allocation13 + $0x40] sm:$0xff]
    %v3442 = vld [vmem:[#allocation13 + $0x48] sm:$0xff]
    %v3443 = vld [vmem:[#allocation13 + $0x50] sm:$0xff]
    %v3444 = vld [vmem:[#allocation13 + $0x58] sm:$0xff]
    %v3445 = vld [vmem:[#allocation13 + $0x60] sm:$0xff]
    %v3446 = vld [vmem:[#allocation13 + $0x68] sm:$0xff]
    %v3447 = vld [vmem:[#allocation13 + $0x70] sm:$0xff]
    %v3448 = vld [vmem:[#allocation13 + $0x78] sm:$0xff]
    %v3449 = vld [vmem:[#allocation13 + $0x80] sm:$0xff]
    %v3450 = vld [vmem:[#allocation13 + $0x88] sm:$0xff]
    %v3451 = vld [vmem:[#allocation13 + $0x90] sm:$0xff]
    %v3452 = vld [vmem:[#allocation13 + $0x98] sm:$0xff]
    %v3453 = vld [vmem:[#allocation13 + $0xa0] sm:$0xff]
    %v3454 = vld [vmem:[#allocation13 + $0xa8] sm:$0xff]
    %v3455 = vld [vmem:[#allocation13 + $0xb0] sm:$0xff]
    %v3456 = vld [vmem:[#allocation13 + $0xb8] sm:$0xff]
    %v3457 = vld [vmem:[#allocation13 + $0xc0] sm:$0xff]
    %v3458 = vld [vmem:[#allocation13 + $0xc8] sm:$0xff]
    %v3459 = vld [vmem:[#allocation13 + $0xd0] sm:$0xff]
    %v3460 = vld [vmem:[#allocation13 + $0xd8] sm:$0xff]
    %v3461 = vld [vmem:[#allocation13 + $0xe0] sm:$0xff]
    %v3462 = vld [vmem:[#allocation13 + $0xe8] sm:$0xff]
    %v3463 = vld [vmem:[#allocation13 + $0xf0] sm:$0xff]
    %v3464 = vld [vmem:[#allocation13 + $0xf8] sm:$0xff]
    %v3497 = vunpack.c.l.b16 %v3433
    %v3498 = vunpack.c.h.b16 %v3433
    %v3499 = vunpack.c.l.b16 %v3434
    %v3500 = vunpack.c.h.b16 %v3434
    %v3501 = vunpack.c.l.b16 %v3435
    %v3502 = vunpack.c.h.b16 %v3435
    %v3503 = vunpack.c.l.b16 %v3436
    %v3504 = vunpack.c.h.b16 %v3436
    %v3505 = vunpack.c.l.b16 %v3437
    %v3506 = vunpack.c.h.b16 %v3437
    %v3507 = vunpack.c.l.b16 %v3438
    %v3508 = vunpack.c.h.b16 %v3438
    %v3509 = vunpack.c.l.b16 %v3439
    %v3510 = vunpack.c.h.b16 %v3439
    %v3511 = vunpack.c.l.b16 %v3440
    %v3512 = vunpack.c.h.b16 %v3440
    %v3513 = vunpack.c.l.b16 %v3441
    %v3514 = vunpack.c.h.b16 %v3441
    %v3515 = vunpack.c.l.b16 %v3442
    %v3516 = vunpack.c.h.b16 %v3442
    %v3517 = vunpack.c.l.b16 %v3443
    %v3518 = vunpack.c.h.b16 %v3443
    %v3519 = vunpack.c.l.b16 %v3444
    %v3520 = vunpack.c.h.b16 %v3444
    %v3521 = vunpack.c.l.b16 %v3445
    %v3522 = vunpack.c.h.b16 %v3445
    %v3523 = vunpack.c.l.b16 %v3446
    %v3524 = vunpack.c.h.b16 %v3446
    %v3525 = vunpack.c.l.b16 %v3447
    %v3526 = vunpack.c.h.b16 %v3447
    %v3527 = vunpack.c.l.b16 %v3448
    %v3528 = vunpack.c.h.b16 %v3448
    %v3529 = vunpack.c.l.b16 %v3449
    %v3530 = vunpack.c.h.b16 %v3449
    %v3531 = vunpack.c.l.b16 %v3450
    %v3532 = vunpack.c.h.b16 %v3450
    %v3533 = vunpack.c.l.b16 %v3451
    %v3534 = vunpack.c.h.b16 %v3451
    %v3535 = vunpack.c.l.b16 %v3452
    %v3536 = vunpack.c.h.b16 %v3452
    %v3537 = vunpack.c.l.b16 %v3453
    %v3538 = vunpack.c.h.b16 %v3453
    %v3539 = vunpack.c.l.b16 %v3454
    %v3540 = vunpack.c.h.b16 %v3454
    %v3541 = vunpack.c.l.b16 %v3455
    %v3542 = vunpack.c.h.b16 %v3455
    %v3543 = vunpack.c.l.b16 %v3456
    %v3544 = vunpack.c.h.b16 %v3456
    %v3545 = vunpack.c.l.b16 %v3457
    %v3546 = vunpack.c.h.b16 %v3457
    %v3547 = vunpack.c.l.b16 %v3458
    %v3548 = vunpack.c.h.b16 %v3458
    %v3549 = vunpack.c.l.b16 %v3459
    %v3550 = vunpack.c.h.b16 %v3459
    %v3551 = vunpack.c.l.b16 %v3460
    %v3552 = vunpack.c.h.b16 %v3460
    %v3553 = vunpack.c.l.b16 %v3461
    %v3554 = vunpack.c.h.b16 %v3461
    %v3555 = vunpack.c.l.b16 %v3462
    %v3556 = vunpack.c.h.b16 %v3462
    %v3557 = vunpack.c.l.b16 %v3463
    %v3558 = vunpack.c.h.b16 %v3463
    %v3559 = vunpack.c.l.b16 %v3464
    %v3560 = vunpack.c.h.b16 %v3464
    %v3561 = vpack.c.b16 %v3501, %v3497
    %v3562 = vpack.c.b16 %v3502, %v3498
    %v3563 = vpack.c.b16 %v3503, %v3499
    %v3564 = vpack.c.b16 %v3504, %v3500
    %v3565 = vpack.c.b16 %v3509, %v3505
    %v3566 = vpack.c.b16 %v3510, %v3506
    %v3567 = vpack.c.b16 %v3511, %v3507
    %v3568 = vpack.c.b16 %v3512, %v3508
    %v3569 = vpack.c.b16 %v3517, %v3513
    %v3570 = vpack.c.b16 %v3518, %v3514
    %v3571 = vpack.c.b16 %v3519, %v3515
    %v3572 = vpack.c.b16 %v3520, %v3516
    %v3573 = vpack.c.b16 %v3525, %v3521
    %v3574 = vpack.c.b16 %v3526, %v3522
    %v3575 = vpack.c.b16 %v3527, %v3523
    %v3576 = vpack.c.b16 %v3528, %v3524
    %v3577 = vpack.c.b16 %v3533, %v3529
    %v3578 = vpack.c.b16 %v3534, %v3530
    %v3579 = vpack.c.b16 %v3535, %v3531
    %v3580 = vpack.c.b16 %v3536, %v3532
    %v3581 = vpack.c.b16 %v3541, %v3537
    %v3582 = vpack.c.b16 %v3542, %v3538
    %v3583 = vpack.c.b16 %v3543, %v3539
    %v3584 = vpack.c.b16 %v3544, %v3540
    %v3585 = vpack.c.b16 %v3549, %v3545
    %v3586 = vpack.c.b16 %v3550, %v3546
    %v3587 = vpack.c.b16 %v3551, %v3547
    %v3588 = vpack.c.b16 %v3552, %v3548
    %v3589 = vpack.c.b16 %v3557, %v3553
    %v3590 = vpack.c.b16 %v3558, %v3554
    %v3591 = vpack.c.b16 %v3559, %v3555
    %v3592 = vpack.c.b16 %v3560, %v3556
    %3625 = vmatprep.subr.bf16.mxu0 %v3562
    %3626 = vmatpush1.bf16.msra.mxu0 %v3561
    %3627 = vmatprep.subr.bf16.mxu0 %v3566
    %3628 = vmatpush1.bf16.msra.mxu0 %v3565
    %3629 = vmatprep.subr.bf16.mxu0 %v3570
    %3630 = vmatpush1.bf16.msra.mxu0 %v3569
    %3631 = vmatprep.subr.bf16.mxu0 %v3574
    %3632 = vmatpush1.bf16.msra.mxu0 %v3573
    %3633 = vmatprep.subr.bf16.mxu0 %v3578
    %3634 = vmatpush1.bf16.msra.mxu0 %v3577
    %3635 = vmatprep.subr.bf16.mxu0 %v3582
    %3636 = vmatpush1.bf16.msra.mxu0 %v3581
    %3637 = vmatprep.subr.bf16.mxu0 %v3586
    %3638 = vmatpush1.bf16.msra.mxu0 %v3585
    %3639 = vmatprep.subr.bf16.mxu0 %v3590
    %3640 = vmatpush1.bf16.msra.mxu0 %v3589
    %3641 = vmatprep.subr.bf16.mxu0 0
    %3642 = vmatpush1.bf16.msra.mxu0 0
    %3643 = vmatprep.subr.bf16.mxu0 0
    %3644 = vmatpush1.bf16.msra.mxu0 0
    %3645 = vmatprep.subr.bf16.mxu0 0
    %3646 = vmatpush1.bf16.msra.mxu0 0
    %3647 = vmatprep.subr.bf16.mxu0 0
    %3648 = vmatpush1.bf16.msra.mxu0 0
    %3649 = vmatprep.subr.bf16.mxu0 0
    %3650 = vmatpush1.bf16.msra.mxu0 0
    %3651 = vmatprep.subr.bf16.mxu0 0
    %3652 = vmatpush1.bf16.msra.mxu0 0
    %3653 = vmatprep.subr.bf16.mxu0 0
    %3654 = vmatpush1.bf16.msra.mxu0 0
    %3655 = vmatprep.subr.bf16.mxu0 0
    %3656 = vmatpush1.bf16.msra.mxu0 0
    %3657 = vmatprep.mubr.bf16.mxu0 0
    %3658 = vmatmul.mubr.bf16.gmra.mrb[0].mxu0 %v3432
    %v3659 = vpop.f32.mrb[0].mxu0
    %v3660 = vadd.f32 0.0, %v3659
    %v3661 = vpop.f32.mrb[0].mxu0
    %v3662 = vadd.f32 0.0, %v3661
    %v3663 = vpop.f32.mrb[0].mxu0
    %v3664 = vpop.f32.mrb[0].mxu0
    %3665 = vdwg.mxu0
    %3666 = vmatprep.subr.bf16.mxu0 %v3564
    %3667 = vmatpush1.bf16.msra.mxu0 %v3563
    %3668 = vmatprep.subr.bf16.mxu0 %v3568
    %3669 = vmatpush1.bf16.msra.mxu0 %v3567
    %3670 = vmatprep.subr.bf16.mxu0 %v3572
    %3671 = vmatpush1.bf16.msra.mxu0 %v3571
    %3672 = vmatprep.subr.bf16.mxu0 %v3576
    %3673 = vmatpush1.bf16.msra.mxu0 %v3575
    %3674 = vmatprep.subr.bf16.mxu0 %v3580
    %3675 = vmatpush1.bf16.msra.mxu0 %v3579
    %3676 = vmatprep.subr.bf16.mxu0 %v3584
    %3677 = vmatpush1.bf16.msra.mxu0 %v3583
    %3678 = vmatprep.subr.bf16.mxu0 %v3588
    %3679 = vmatpush1.bf16.msra.mxu0 %v3587
    %3680 = vmatprep.subr.bf16.mxu0 %v3592
    %3681 = vmatpush1.bf16.msra.mxu0 %v3591
    %3682 = vmatprep.subr.bf16.mxu0 0
    %3683 = vmatpush1.bf16.msra.mxu0 0
    %3684 = vmatprep.subr.bf16.mxu0 0
    %3685 = vmatpush1.bf16.msra.mxu0 0
    %3686 = vmatprep.subr.bf16.mxu0 0
    %3687 = vmatpush1.bf16.msra.mxu0 0
    %3688 = vmatprep.subr.bf16.mxu0 0
    %3689 = vmatpush1.bf16.msra.mxu0 0
    %3690 = vmatprep.subr.bf16.mxu0 0
    %3691 = vmatpush1.bf16.msra.mxu0 0
    %3692 = vmatprep.subr.bf16.mxu0 0
    %3693 = vmatpush1.bf16.msra.mxu0 0
    %3694 = vmatprep.subr.bf16.mxu0 0
    %3695 = vmatpush1.bf16.msra.mxu0 0
    %3696 = vmatprep.subr.bf16.mxu0 0
    %3697 = vmatpush1.bf16.msra.mxu0 0
    %3698 = vmatprep.mubr.bf16.mxu0 0
    %3699 = vmatmul.mubr.bf16.gmra.mrb[0].mxu0 %v3432
    %v3700 = vpop.f32.mrb[0].mxu0
    %v3701 = vadd.f32 0.0, %v3700
    %v3702 = vpop.f32.mrb[0].mxu0
    %v3703 = vadd.f32 0.0, %v3702
    %v3704 = vpop.f32.mrb[0].mxu0
    %v3705 = vpop.f32.mrb[0].mxu0
    %3706 = vdwg.mxu0
    %v3707 = vadd.f32 %v3428, %v3660
    %v3708 = vadd.f32 %v3429, %v3662
    %v3709 = vadd.f32 %v3430, %v3701
    %v3710 = vadd.f32 %v3431, %v3703
    %v3711 = vxor.u32 %v3707, 2147483648
    %v3712 = vmul.f32 %v3711, 1.442695
    %v3713 = vpow.pop %v3712
    %v3714 = vadd.f32 %v3713, 1.0
    %v3715 = vrcp.pop %v3714
    %v3716 = vmul.f32 1.0, %v3715
    %v3717 = vxor.u32 %v3708, 2147483648
    %v3718 = vmul.f32 %v3717, 1.442695
    %v3719 = vpow.pop %v3718
    %v3720 = vadd.f32 %v3719, 1.0
    %v3721 = vrcp.pop %v3720
    %v3722 = vmul.f32 1.0, %v3721
    %v3723 = vtanh.pop %v3709
    %v3724 = vxor.u32 %v3710, 2147483648
    %v3725 = vmul.f32 %v3724, 1.442695
    %v3726 = vpow.pop %v3725
    %v3727 = vadd.f32 %v3726, 1.0
    %v3728 = vrcp.pop %v3727
    %v3729 = vmul.f32 1.0, %v3728
    %v3730 = vmul.f32 %v3722, %v3427
    %v3731 = vmul.f32 %v3716, %v3723
    %v3732 = vadd.f32 %v3730, %v3731
    %v3733 = vtanh.pop %v3732
    %v3734 = vmul.f32 %v3729, %v3733
    %3735 = vst [vmem:[#allocation3] sm:$0xff] %v3734
    %3736 = vst [vmem:[#allocation4] sm:$0xff] %v3732
    %3737 = vst [vmem:[#allocation14] sm:$0xff] %v3734
    %v3738 = vld [vmem:[#allocation3] sm:$0xff]
    %v3739 = vld [vmem:[#allocation4] sm:$0xff]
    %v3740 = vld [vmem:[%s820] sm:$0xff]
    %v3741 = vld [vmem:[%s820 + $0x8] sm:$0xff]
    %v3742 = vld [vmem:[%s820 + $0x10] sm:$0xff]
    %v3743 = vld [vmem:[%s820 + $0x18] sm:$0xff]
    %v3744 = vpack.c.bf16 %v3738, %v3738
    %v3745 = vld [vmem:[#allocation13] sm:$0xff]
    %v3746 = vld [vmem:[#allocation13 + $0x8] sm:$0xff]
    %v3747 = vld [vmem:[#allocation13 + $0x10] sm:$0xff]
    %v3748 = vld [vmem:[#allocation13 + $0x18] sm:$0xff]
    %v3749 = vld [vmem:[#allocation13 + $0x20] sm:$0xff]
    %v3750 = vld [vmem:[#allocation13 + $0x28] sm:$0xff]
    %v3751 = vld [vmem:[#allocation13 + $0x30] sm:$0xff]
    %v3752 = vld [vmem:[#allocation13 + $0x38] sm:$0xff]
    %v3753 = vld [vmem:[#allocation13 + $0x40] sm:$0xff]
    %v3754 = vld [vmem:[#allocation13 + $0x48] sm:$0xff]
    %v3755 = vld [vmem:[#allocation13 + $0x50] sm:$0xff]
    %v3756 = vld [vmem:[#allocation13 + $0x58] sm:$0xff]
    %v3757 = vld [vmem:[#allocation13 + $0x60] sm:$0xff]
    %v3758 = vld [vmem:[#allocation13 + $0x68] sm:$0xff]
    %v3759 = vld [vmem:[#allocation13 + $0x70] sm:$0xff]
    %v3760 = vld [vmem:[#allocation13 + $0x78] sm:$0xff]
    %v3761 = vld [vmem:[#allocation13 + $0x80] sm:$0xff]
    %v3762 = vld [vmem:[#allocation13 + $0x88] sm:$0xff]
    %v3763 = vld [vmem:[#allocation13 + $0x90] sm:$0xff]
    %v3764 = vld [vmem:[#allocation13 + $0x98] sm:$0xff]
    %v3765 = vld [vmem:[#allocation13 + $0xa0] sm:$0xff]
    %v3766 = vld [vmem:[#allocation13 + $0xa8] sm:$0xff]
    %v3767 = vld [vmem:[#allocation13 + $0xb0] sm:$0xff]
    %v3768 = vld [vmem:[#allocation13 + $0xb8] sm:$0xff]
    %v3769 = vld [vmem:[#allocation13 + $0xc0] sm:$0xff]
    %v3770 = vld [vmem:[#allocation13 + $0xc8] sm:$0xff]
    %v3771 = vld [vmem:[#allocation13 + $0xd0] sm:$0xff]
    %v3772 = vld [vmem:[#allocation13 + $0xd8] sm:$0xff]
    %v3773 = vld [vmem:[#allocation13 + $0xe0] sm:$0xff]
    %v3774 = vld [vmem:[#allocation13 + $0xe8] sm:$0xff]
    %v3775 = vld [vmem:[#allocation13 + $0xf0] sm:$0xff]
    %v3776 = vld [vmem:[#allocation13 + $0xf8] sm:$0xff]
    %v3809 = vunpack.c.l.b16 %v3745
    %v3810 = vunpack.c.h.b16 %v3745
    %v3811 = vunpack.c.l.b16 %v3746
    %v3812 = vunpack.c.h.b16 %v3746
    %v3813 = vunpack.c.l.b16 %v3747
    %v3814 = vunpack.c.h.b16 %v3747
    %v3815 = vunpack.c.l.b16 %v3748
    %v3816 = vunpack.c.h.b16 %v3748
    %v3817 = vunpack.c.l.b16 %v3749
    %v3818 = vunpack.c.h.b16 %v3749
    %v3819 = vunpack.c.l.b16 %v3750
    %v3820 = vunpack.c.h.b16 %v3750
    %v3821 = vunpack.c.l.b16 %v3751
    %v3822 = vunpack.c.h.b16 %v3751
    %v3823 = vunpack.c.l.b16 %v3752
    %v3824 = vunpack.c.h.b16 %v3752
    %v3825 = vunpack.c.l.b16 %v3753
    %v3826 = vunpack.c.h.b16 %v3753
    %v3827 = vunpack.c.l.b16 %v3754
    %v3828 = vunpack.c.h.b16 %v3754
    %v3829 = vunpack.c.l.b16 %v3755
    %v3830 = vunpack.c.h.b16 %v3755
    %v3831 = vunpack.c.l.b16 %v3756
    %v3832 = vunpack.c.h.b16 %v3756
    %v3833 = vunpack.c.l.b16 %v3757
    %v3834 = vunpack.c.h.b16 %v3757
    %v3835 = vunpack.c.l.b16 %v3758
    %v3836 = vunpack.c.h.b16 %v3758
    %v3837 = vunpack.c.l.b16 %v3759
    %v3838 = vunpack.c.h.b16 %v3759
    %v3839 = vunpack.c.l.b16 %v3760
    %v3840 = vunpack.c.h.b16 %v3760
    %v3841 = vunpack.c.l.b16 %v3761
    %v3842 = vunpack.c.h.b16 %v3761
    %v3843 = vunpack.c.l.b16 %v3762
    %v3844 = vunpack.c.h.b16 %v3762
    %v3845 = vunpack.c.l.b16 %v3763
    %v3846 = vunpack.c.h.b16 %v3763
    %v3847 = vunpack.c.l.b16 %v3764
    %v3848 = vunpack.c.h.b16 %v3764
    %v3849 = vunpack.c.l.b16 %v3765
    %v3850 = vunpack.c.h.b16 %v3765
    %v3851 = vunpack.c.l.b16 %v3766
    %v3852 = vunpack.c.h.b16 %v3766
    %v3853 = vunpack.c.l.b16 %v3767
    %v3854 = vunpack.c.h.b16 %v3767
    %v3855 = vunpack.c.l.b16 %v3768
    %v3856 = vunpack.c.h.b16 %v3768
    %v3857 = vunpack.c.l.b16 %v3769
    %v3858 = vunpack.c.h.b16 %v3769
    %v3859 = vunpack.c.l.b16 %v3770
    %v3860 = vunpack.c.h.b16 %v3770
    %v3861 = vunpack.c.l.b16 %v3771
    %v3862 = vunpack.c.h.b16 %v3771
    %v3863 = vunpack.c.l.b16 %v3772
    %v3864 = vunpack.c.h.b16 %v3772
    %v3865 = vunpack.c.l.b16 %v3773
    %v3866 = vunpack.c.h.b16 %v3773
    %v3867 = vunpack.c.l.b16 %v3774
    %v3868 = vunpack.c.h.b16 %v3774
    %v3869 = vunpack.c.l.b16 %v3775
    %v3870 = vunpack.c.h.b16 %v3775
    %v3871 = vunpack.c.l.b16 %v3776
    %v3872 = vunpack.c.h.b16 %v3776
    %v3873 = vpack.c.b16 %v3813, %v3809
    %v3874 = vpack.c.b16 %v3814, %v3810
    %v3875 = vpack.c.b16 %v3815, %v3811
    %v3876 = vpack.c.b16 %v3816, %v3812
    %v3877 = vpack.c.b16 %v3821, %v3817
    %v3878 = vpack.c.b16 %v3822, %v3818
    %v3879 = vpack.c.b16 %v3823, %v3819
    %v3880 = vpack.c.b16 %v3824, %v3820
    %v3881 = vpack.c.b16 %v3829, %v3825
    %v3882 = vpack.c.b16 %v3830, %v3826
    %v3883 = vpack.c.b16 %v3831, %v3827
    %v3884 = vpack.c.b16 %v3832, %v3828
    %v3885 = vpack.c.b16 %v3837, %v3833
    %v3886 = vpack.c.b16 %v3838, %v3834
    %v3887 = vpack.c.b16 %v3839, %v3835
    %v3888 = vpack.c.b16 %v3840, %v3836
    %v3889 = vpack.c.b16 %v3845, %v3841
    %v3890 = vpack.c.b16 %v3846, %v3842
    %v3891 = vpack.c.b16 %v3847, %v3843
    %v3892 = vpack.c.b16 %v3848, %v3844
    %v3893 = vpack.c.b16 %v3853, %v3849
    %v3894 = vpack.c.b16 %v3854, %v3850
    %v3895 = vpack.c.b16 %v3855, %v3851
    %v3896 = vpack.c.b16 %v3856, %v3852
    %v3897 = vpack.c.b16 %v3861, %v3857
    %v3898 = vpack.c.b16 %v3862, %v3858
    %v3899 = vpack.c.b16 %v3863, %v3859
    %v3900 = vpack.c.b16 %v3864, %v3860
    %v3901 = vpack.c.b16 %v3869, %v3865
    %v3902 = vpack.c.b16 %v3870, %v3866
    %v3903 = vpack.c.b16 %v3871, %v3867
    %v3904 = vpack.c.b16 %v3872, %v3868
    %3937 = vmatprep.subr.bf16.mxu0 %v3874
    %3938 = vmatpush1.bf16.msra.mxu0 %v3873
    %3939 = vmatprep.subr.bf16.mxu0 %v3878
    %3940 = vmatpush1.bf16.msra.mxu0 %v3877
    %3941 = vmatprep.subr.bf16.mxu0 %v3882
    %3942 = vmatpush1.bf16.msra.mxu0 %v3881
    %3943 = vmatprep.subr.bf16.mxu0 %v3886
    %3944 = vmatpush1.bf16.msra.mxu0 %v3885
    %3945 = vmatprep.subr.bf16.mxu0 %v3890
    %3946 = vmatpush1.bf16.msra.mxu0 %v3889
    %3947 = vmatprep.subr.bf16.mxu0 %v3894
    %3948 = vmatpush1.bf16.msra.mxu0 %v3893
    %3949 = vmatprep.subr.bf16.mxu0 %v3898
    %3950 = vmatpush1.bf16.msra.mxu0 %v3897
    %3951 = vmatprep.subr.bf16.mxu0 %v3902
    %3952 = vmatpush1.bf16.msra.mxu0 %v3901
    %3953 = vmatprep.subr.bf16.mxu0 0
    %3954 = vmatpush1.bf16.msra.mxu0 0
    %3955 = vmatprep.subr.bf16.mxu0 0
    %3956 = vmatpush1.bf16.msra.mxu0 0
    %3957 = vmatprep.subr.bf16.mxu0 0
    %3958 = vmatpush1.bf16.msra.mxu0 0
    %3959 = vmatprep.subr.bf16.mxu0 0
    %3960 = vmatpush1.bf16.msra.mxu0 0
    %3961 = vmatprep.subr.bf16.mxu0 0
    %3962 = vmatpush1.bf16.msra.mxu0 0
    %3963 = vmatprep.subr.bf16.mxu0 0
    %3964 = vmatpush1.bf16.msra.mxu0 0
    %3965 = vmatprep.subr.bf16.mxu0 0
    %3966 = vmatpush1.bf16.msra.mxu0 0
    %3967 = vmatprep.subr.bf16.mxu0 0
    %3968 = vmatpush1.bf16.msra.mxu0 0
    %3969 = vmatprep.mubr.bf16.mxu0 0
    %3970 = vmatmul.mubr.bf16.gmra.mrb[0].mxu0 %v3744
    %v3971 = vpop.f32.mrb[0].mxu0
    %v3972 = vadd.f32 0.0, %v3971
    %v3973 = vpop.f32.mrb[0].mxu0
    %v3974 = vadd.f32 0.0, %v3973
    %v3975 = vpop.f32.mrb[0].mxu0
    %v3976 = vpop.f32.mrb[0].mxu0
    %3977 = vdwg.mxu0
    %3978 = vmatprep.subr.bf16.mxu0 %v3876
    %3979 = vmatpush1.bf16.msra.mxu0 %v3875
    %3980 = vmatprep.subr.bf16.mxu0 %v3880
    %3981 = vmatpush1.bf16.msra.mxu0 %v3879
    %3982 = vmatprep.subr.bf16.mxu0 %v3884
    %3983 = vmatpush1.bf16.msra.mxu0 %v3883
    %3984 = vmatprep.subr.bf16.mxu0 %v3888
    %3985 = vmatpush1.bf16.msra.mxu0 %v3887
    %3986 = vmatprep.subr.bf16.mxu0 %v3892
    %3987 = vmatpush1.bf16.msra.mxu0 %v3891
    %3988 = vmatprep.subr.bf16.mxu0 %v3896
    %3989 = vmatpush1.bf16.msra.mxu0 %v3895
    %3990 = vmatprep.subr.bf16.mxu0 %v3900
    %3991 = vmatpush1.bf16.msra.mxu0 %v3899
    %3992 = vmatprep.subr.bf16.mxu0 %v3904
    %3993 = vmatpush1.bf16.msra.mxu0 %v3903
    %3994 = vmatprep.subr.bf16.mxu0 0
    %3995 = vmatpush1.bf16.msra.mxu0 0
    %3996 = vmatprep.subr.bf16.mxu0 0
    %3997 = vmatpush1.bf16.msra.mxu0 0
    %3998 = vmatprep.subr.bf16.mxu0 0
    %3999 = vmatpush1.bf16.msra.mxu0 0
    %4000 = vmatprep.subr.bf16.mxu0 0
    %4001 = vmatpush1.bf16.msra.mxu0 0
    %4002 = vmatprep.subr.bf16.mxu0 0
    %4003 = vmatpush1.bf16.msra.mxu0 0
    %4004 = vmatprep.subr.bf16.mxu0 0
    %4005 = vmatpush1.bf16.msra.mxu0 0
    %4006 = vmatprep.subr.bf16.mxu0 0
    %4007 = vmatpush1.bf16.msra.mxu0 0
    %4008 = vmatprep.subr.bf16.mxu0 0
    %4009 = vmatpush1.bf16.msra.mxu0 0
    %4010 = vmatprep.mubr.bf16.mxu0 0
    %4011 = vmatmul.mubr.bf16.gmra.mrb[0].mxu0 %v3744
    %v4012 = vpop.f32.mrb[0].mxu0
    %v4013 = vadd.f32 0.0, %v4012
    %v4014 = vpop.f32.mrb[0].mxu0
    %v4015 = vadd.f32 0.0, %v4014
    %v4016 = vpop.f32.mrb[0].mxu0
    %v4017 = vpop.f32.mrb[0].mxu0
    %4018 = vdwg.mxu0
    %v4019 = vadd.f32 %v3740, %v3972
    %v4020 = vadd.f32 %v3741, %v3974
    %v4021 = vadd.f32 %v3742, %v4013
    %v4022 = vadd.f32 %v3743, %v4015
    %v4023 = vxor.u32 %v4019, 2147483648
    %v4024 = vmul.f32 %v4023, 1.442695
    %v4025 = vpow.pop %v4024
    %v4026 = vadd.f32 %v4025, 1.0
    %v4027 = vrcp.pop %v4026
    %v4028 = vmul.f32 1.0, %v4027
    %v4029 = vxor.u32 %v4020, 2147483648
    %v4030 = vmul.f32 %v4029, 1.442695
    %v4031 = vpow.pop %v4030
    %v4032 = vadd.f32 %v4031, 1.0
    %v4033 = vrcp.pop %v4032
    %v4034 = vmul.f32 1.0, %v4033
    %v4035 = vtanh.pop %v4021
    %v4036 = vxor.u32 %v4022, 2147483648
    %v4037 = vmul.f32 %v4036, 1.442695
    %v4038 = vpow.pop %v4037
    %v4039 = vadd.f32 %v4038, 1.0
    %v4040 = vrcp.pop %v4039
    %v4041 = vmul.f32 1.0, %v4040
    %v4042 = vmul.f32 %v4034, %v3739
    %v4043 = vmul.f32 %v4028, %v4035
    %v4044 = vadd.f32 %v4042, %v4043
    %v4045 = vtanh.pop %v4044
    %v4046 = vmul.f32 %v4041, %v4045
    %4047 = vst [vmem:[#allocation3] sm:$0xff] %v4046
    %4048 = vst [vmem:[#allocation4] sm:$0xff] %v4044
    %4049 = vst [vmem:[%s1130] sm:$0xff] %v4046
    %v4050 = vld [vmem:[#allocation3] sm:$0xff]
    %v4051 = vld [vmem:[#allocation4] sm:$0xff]
    %v4052 = vld [vmem:[%s1134] sm:$0xff]
    %v4053 = vld [vmem:[%s1134 + $0x8] sm:$0xff]
    %v4054 = vld [vmem:[%s1134 + $0x10] sm:$0xff]
    %v4055 = vld [vmem:[%s1134 + $0x18] sm:$0xff]
    %v4056 = vpack.c.bf16 %v4050, %v4050
    %v4057 = vld [vmem:[#allocation13] sm:$0xff]
    %v4058 = vld [vmem:[#allocation13 + $0x8] sm:$0xff]
    %v4059 = vld [vmem:[#allocation13 + $0x10] sm:$0xff]
    %v4060 = vld [vmem:[#allocation13 + $0x18] sm:$0xff]
    %v4061 = vld [vmem:[#allocation13 + $0x20] sm:$0xff]
    %v4062 = vld [vmem:[#allocation13 + $0x28] sm:$0xff]
    %v4063 = vld [vmem:[#allocation13 + $0x30] sm:$0xff]
    %v4064 = vld [vmem:[#allocation13 + $0x38] sm:$0xff]
    %v4065 = vld [vmem:[#allocation13 + $0x40] sm:$0xff]
    %v4066 = vld [vmem:[#allocation13 + $0x48] sm:$0xff]
    %v4067 = vld [vmem:[#allocation13 + $0x50] sm:$0xff]
    %v4068 = vld [vmem:[#allocation13 + $0x58] sm:$0xff]
    %v4069 = vld [vmem:[#allocation13 + $0x60] sm:$0xff]
    %v4070 = vld [vmem:[#allocation13 + $0x68] sm:$0xff]
    %v4071 = vld [vmem:[#allocation13 + $0x70] sm:$0xff]
    %v4072 = vld [vmem:[#allocation13 + $0x78] sm:$0xff]
    %v4073 = vld [vmem:[#allocation13 + $0x80] sm:$0xff]
    %v4074 = vld [vmem:[#allocation13 + $0x88] sm:$0xff]
    %v4075 = vld [vmem:[#allocation13 + $0x90] sm:$0xff]
    %v4076 = vld [vmem:[#allocation13 + $0x98] sm:$0xff]
    %v4077 = vld [vmem:[#allocation13 + $0xa0] sm:$0xff]
    %v4078 = vld [vmem:[#allocation13 + $0xa8] sm:$0xff]
    %v4079 = vld [vmem:[#allocation13 + $0xb0] sm:$0xff]
    %v4080 = vld [vmem:[#allocation13 + $0xb8] sm:$0xff]
    %v4081 = vld [vmem:[#allocation13 + $0xc0] sm:$0xff]
    %v4082 = vld [vmem:[#allocation13 + $0xc8] sm:$0xff]
    %v4083 = vld [vmem:[#allocation13 + $0xd0] sm:$0xff]
    %v4084 = vld [vmem:[#allocation13 + $0xd8] sm:$0xff]
    %v4085 = vld [vmem:[#allocation13 + $0xe0] sm:$0xff]
    %v4086 = vld [vmem:[#allocation13 + $0xe8] sm:$0xff]
    %v4087 = vld [vmem:[#allocation13 + $0xf0] sm:$0xff]
    %v4088 = vld [vmem:[#allocation13 + $0xf8] sm:$0xff]
    %v4121 = vunpack.c.l.b16 %v4057
    %v4122 = vunpack.c.h.b16 %v4057
    %v4123 = vunpack.c.l.b16 %v4058
    %v4124 = vunpack.c.h.b16 %v4058
    %v4125 = vunpack.c.l.b16 %v4059
    %v4126 = vunpack.c.h.b16 %v4059
    %v4127 = vunpack.c.l.b16 %v4060
    %v4128 = vunpack.c.h.b16 %v4060
    %v4129 = vunpack.c.l.b16 %v4061
    %v4130 = vunpack.c.h.b16 %v4061
    %v4131 = vunpack.c.l.b16 %v4062
    %v4132 = vunpack.c.h.b16 %v4062
    %v4133 = vunpack.c.l.b16 %v4063
    %v4134 = vunpack.c.h.b16 %v4063
    %v4135 = vunpack.c.l.b16 %v4064
    %v4136 = vunpack.c.h.b16 %v4064
    %v4137 = vunpack.c.l.b16 %v4065
    %v4138 = vunpack.c.h.b16 %v4065
    %v4139 = vunpack.c.l.b16 %v4066
    %v4140 = vunpack.c.h.b16 %v4066
    %v4141 = vunpack.c.l.b16 %v4067
    %v4142 = vunpack.c.h.b16 %v4067
    %v4143 = vunpack.c.l.b16 %v4068
    %v4144 = vunpack.c.h.b16 %v4068
    %v4145 = vunpack.c.l.b16 %v4069
    %v4146 = vunpack.c.h.b16 %v4069
    %v4147 = vunpack.c.l.b16 %v4070
    %v4148 = vunpack.c.h.b16 %v4070
    %v4149 = vunpack.c.l.b16 %v4071
    %v4150 = vunpack.c.h.b16 %v4071
    %v4151 = vunpack.c.l.b16 %v4072
    %v4152 = vunpack.c.h.b16 %v4072
    %v4153 = vunpack.c.l.b16 %v4073
    %v4154 = vunpack.c.h.b16 %v4073
    %v4155 = vunpack.c.l.b16 %v4074
    %v4156 = vunpack.c.h.b16 %v4074
    %v4157 = vunpack.c.l.b16 %v4075
    %v4158 = vunpack.c.h.b16 %v4075
    %v4159 = vunpack.c.l.b16 %v4076
    %v4160 = vunpack.c.h.b16 %v4076
    %v4161 = vunpack.c.l.b16 %v4077
    %v4162 = vunpack.c.h.b16 %v4077
    %v4163 = vunpack.c.l.b16 %v4078
    %v4164 = vunpack.c.h.b16 %v4078
    %v4165 = vunpack.c.l.b16 %v4079
    %v4166 = vunpack.c.h.b16 %v4079
    %v4167 = vunpack.c.l.b16 %v4080
    %v4168 = vunpack.c.h.b16 %v4080
    %v4169 = vunpack.c.l.b16 %v4081
    %v4170 = vunpack.c.h.b16 %v4081
    %v4171 = vunpack.c.l.b16 %v4082
    %v4172 = vunpack.c.h.b16 %v4082
    %v4173 = vunpack.c.l.b16 %v4083
    %v4174 = vunpack.c.h.b16 %v4083
    %v4175 = vunpack.c.l.b16 %v4084
    %v4176 = vunpack.c.h.b16 %v4084
    %v4177 = vunpack.c.l.b16 %v4085
    %v4178 = vunpack.c.h.b16 %v4085
    %v4179 = vunpack.c.l.b16 %v4086
    %v4180 = vunpack.c.h.b16 %v4086
    %v4181 = vunpack.c.l.b16 %v4087
    %v4182 = vunpack.c.h.b16 %v4087
    %v4183 = vunpack.c.l.b16 %v4088
    %v4184 = vunpack.c.h.b16 %v4088
    %v4185 = vpack.c.b16 %v4125, %v4121
    %v4186 = vpack.c.b16 %v4126, %v4122
    %v4187 = vpack.c.b16 %v4127, %v4123
    %v4188 = vpack.c.b16 %v4128, %v4124
    %v4189 = vpack.c.b16 %v4133, %v4129
    %v4190 = vpack.c.b16 %v4134, %v4130
    %v4191 = vpack.c.b16 %v4135, %v4131
    %v4192 = vpack.c.b16 %v4136, %v4132
    %v4193 = vpack.c.b16 %v4141, %v4137
    %v4194 = vpack.c.b16 %v4142, %v4138
    %v4195 = vpack.c.b16 %v4143, %v4139
    %v4196 = vpack.c.b16 %v4144, %v4140
    %v4197 = vpack.c.b16 %v4149, %v4145
    %v4198 = vpack.c.b16 %v4150, %v4146
    %v4199 = vpack.c.b16 %v4151, %v4147
    %v4200 = vpack.c.b16 %v4152, %v4148
    %v4201 = vpack.c.b16 %v4157, %v4153
    %v4202 = vpack.c.b16 %v4158, %v4154
    %v4203 = vpack.c.b16 %v4159, %v4155
    %v4204 = vpack.c.b16 %v4160, %v4156
    %v4205 = vpack.c.b16 %v4165, %v4161
    %v4206 = vpack.c.b16 %v4166, %v4162
    %v4207 = vpack.c.b16 %v4167, %v4163
    %v4208 = vpack.c.b16 %v4168, %v4164
    %v4209 = vpack.c.b16 %v4173, %v4169
    %v4210 = vpack.c.b16 %v4174, %v4170
    %v4211 = vpack.c.b16 %v4175, %v4171
    %v4212 = vpack.c.b16 %v4176, %v4172
    %v4213 = vpack.c.b16 %v4181, %v4177
    %v4214 = vpack.c.b16 %v4182, %v4178
    %v4215 = vpack.c.b16 %v4183, %v4179
    %v4216 = vpack.c.b16 %v4184, %v4180
    %4249 = vmatprep.subr.bf16.mxu0 %v4186
    %4250 = vmatpush1.bf16.msra.mxu0 %v4185
    %4251 = vmatprep.subr.bf16.mxu0 %v4190
    %4252 = vmatpush1.bf16.msra.mxu0 %v4189
    %4253 = vmatprep.subr.bf16.mxu0 %v4194
    %4254 = vmatpush1.bf16.msra.mxu0 %v4193
    %4255 = vmatprep.subr.bf16.mxu0 %v4198
    %4256 = vmatpush1.bf16.msra.mxu0 %v4197
    %4257 = vmatprep.subr.bf16.mxu0 %v4202
    %4258 = vmatpush1.bf16.msra.mxu0 %v4201
    %4259 = vmatprep.subr.bf16.mxu0 %v4206
    %4260 = vmatpush1.bf16.msra.mxu0 %v4205
    %4261 = vmatprep.subr.bf16.mxu0 %v4210
    %4262 = vmatpush1.bf16.msra.mxu0 %v4209
    %4263 = vmatprep.subr.bf16.mxu0 %v4214
    %4264 = vmatpush1.bf16.msra.mxu0 %v4213
    %4265 = vmatprep.subr.bf16.mxu0 0
    %4266 = vmatpush1.bf16.msra.mxu0 0
    %4267 = vmatprep.subr.bf16.mxu0 0
    %4268 = vmatpush1.bf16.msra.mxu0 0
    %4269 = vmatprep.subr.bf16.mxu0 0
    %4270 = vmatpush1.bf16.msra.mxu0 0
    %4271 = vmatprep.subr.bf16.mxu0 0
    %4272 = vmatpush1.bf16.msra.mxu0 0
    %4273 = vmatprep.subr.bf16.mxu0 0
    %4274 = vmatpush1.bf16.msra.mxu0 0
    %4275 = vmatprep.subr.bf16.mxu0 0
    %4276 = vmatpush1.bf16.msra.mxu0 0
    %4277 = vmatprep.subr.bf16.mxu0 0
    %4278 = vmatpush1.bf16.msra.mxu0 0
    %4279 = vmatprep.subr.bf16.mxu0 0
    %4280 = vmatpush1.bf16.msra.mxu0 0
    %4281 = vmatprep.mubr.bf16.mxu0 0
    %4282 = vmatmul.mubr.bf16.gmra.mrb[0].mxu0 %v4056
    %v4283 = vpop.f32.mrb[0].mxu0
    %v4284 = vadd.f32 0.0, %v4283
    %v4285 = vpop.f32.mrb[0].mxu0
    %v4286 = vadd.f32 0.0, %v4285
    %v4287 = vpop.f32.mrb[0].mxu0
    %v4288 = vpop.f32.mrb[0].mxu0
    %4289 = vdwg.mxu0
    %4290 = vmatprep.subr.bf16.mxu0 %v4188
    %4291 = vmatpush1.bf16.msra.mxu0 %v4187
    %4292 = vmatprep.subr.bf16.mxu0 %v4192
    %4293 = vmatpush1.bf16.msra.mxu0 %v4191
    %4294 = vmatprep.subr.bf16.mxu0 %v4196
    %4295 = vmatpush1.bf16.msra.mxu0 %v4195
    %4296 = vmatprep.subr.bf16.mxu0 %v4200
    %4297 = vmatpush1.bf16.msra.mxu0 %v4199
    %4298 = vmatprep.subr.bf16.mxu0 %v4204
    %4299 = vmatpush1.bf16.msra.mxu0 %v4203
    %4300 = vmatprep.subr.bf16.mxu0 %v4208
    %4301 = vmatpush1.bf16.msra.mxu0 %v4207
    %4302 = vmatprep.subr.bf16.mxu0 %v4212
    %4303 = vmatpush1.bf16.msra.mxu0 %v4211
    %4304 = vmatprep.subr.bf16.mxu0 %v4216
    %4305 = vmatpush1.bf16.msra.mxu0 %v4215
    %4306 = vmatprep.subr.bf16.mxu0 0
    %4307 = vmatpush1.bf16.msra.mxu0 0
    %4308 = vmatprep.subr.bf16.mxu0 0
    %4309 = vmatpush1.bf16.msra.mxu0 0
    %4310 = vmatprep.subr.bf16.mxu0 0
    %4311 = vmatpush1.bf16.msra.mxu0 0
    %4312 = vmatprep.subr.bf16.mxu0 0
    %4313 = vmatpush1.bf16.msra.mxu0 0
    %4314 = vmatprep.subr.bf16.mxu0 0
    %4315 = vmatpush1.bf16.msra.mxu0 0
    %4316 = vmatprep.subr.bf16.mxu0 0
    %4317 = vmatpush1.bf16.msra.mxu0 0
    %4318 = vmatprep.subr.bf16.mxu0 0
    %4319 = vmatpush1.bf16.msra.mxu0 0
    %4320 = vmatprep.subr.bf16.mxu0 0
    %4321 = vmatpush1.bf16.msra.mxu0 0
    %4322 = vmatprep.mubr.bf16.mxu0 0
    %4323 = vmatmul.mubr.bf16.gmra.mrb[0].mxu0 %v4056
    %v4324 = vpop.f32.mrb[0].mxu0
    %v4325 = vadd.f32 0.0, %v4324
    %v4326 = vpop.f32.mrb[0].mxu0
    %v4327 = vadd.f32 0.0, %v4326
    %v4328 = vpop.f32.mrb[0].mxu0
    %v4329 = vpop.f32.mrb[0].mxu0
    %4330 = vdwg.mxu0
    %v4331 = vadd.f32 %v4052, %v4284
    %v4332 = vadd.f32 %v4053, %v4286
    %v4333 = vadd.f32 %v4054, %v4325
    %v4334 = vadd.f32 %v4055, %v4327
    %v4335 = vxor.u32 %v4331, 2147483648
    %v4336 = vmul.f32 %v4335, 1.442695
    %v4337 = vpow.pop %v4336
    %v4338 = vadd.f32 %v4337, 1.0
    %v4339 = vrcp.pop %v4338
    %v4340 = vmul.f32 1.0, %v4339
    %v4341 = vxor.u32 %v4332, 2147483648
    %v4342 = vmul.f32 %v4341, 1.442695
    %v4343 = vpow.pop %v4342
    %v4344 = vadd.f32 %v4343, 1.0
    %v4345 = vrcp.pop %v4344
    %v4346 = vmul.f32 1.0, %v4345
    %v4347 = vtanh.pop %v4333
    %v4348 = vxor.u32 %v4334, 2147483648
    %v4349 = vmul.f32 %v4348, 1.442695
    %v4350 = vpow.pop %v4349
    %v4351 = vadd.f32 %v4350, 1.0
    %v4352 = vrcp.pop %v4351
    %v4353 = vmul.f32 1.0, %v4352
    %v4354 = vmul.f32 %v4346, %v4051
    %v4355 = vmul.f32 %v4340, %v4347
    %v4356 = vadd.f32 %v4354, %v4355
    %v4357 = vtanh.pop %v4356
    %v4358 = vmul.f32 %v4353, %v4357
    %4359 = vst [vmem:[#allocation3] sm:$0xff] %v4358
    %4360 = vst [vmem:[#allocation4] sm:$0xff] %v4356
    %4361 = vst [vmem:[%s1444] sm:$0xff] %v4358
    %v4362 = vld [vmem:[#allocation3] sm:$0xff]
    %v4363 = vld [vmem:[#allocation4] sm:$0xff]
    %v4364 = vld [vmem:[%s1448] sm:$0xff]
    %v4365 = vld [vmem:[%s1448 + $0x8] sm:$0xff]
    %v4366 = vld [vmem:[%s1448 + $0x10] sm:$0xff]
    %v4367 = vld [vmem:[%s1448 + $0x18] sm:$0xff]
    %v4368 = vpack.c.bf16 %v4362, %v4362
    %v4369 = vld [vmem:[#allocation13] sm:$0xff]
    %v4370 = vld [vmem:[#allocation13 + $0x8] sm:$0xff]
    %v4371 = vld [vmem:[#allocation13 + $0x10] sm:$0xff]
    %v4372 = vld [vmem:[#allocation13 + $0x18] sm:$0xff]
    %v4373 = vld [vmem:[#allocation13 + $0x20] sm:$0xff]
    %v4374 = vld [vmem:[#allocation13 + $0x28] sm:$0xff]
    %v4375 = vld [vmem:[#allocation13 + $0x30] sm:$0xff]
    %v4376 = vld [vmem:[#allocation13 + $0x38] sm:$0xff]
    %v4377 = vld [vmem:[#allocation13 + $0x40] sm:$0xff]
    %v4378 = vld [vmem:[#allocation13 + $0x48] sm:$0xff]
    %v4379 = vld [vmem:[#allocation13 + $0x50] sm:$0xff]
    %v4380 = vld [vmem:[#allocation13 + $0x58] sm:$0xff]
    %v4381 = vld [vmem:[#allocation13 + $0x60] sm:$0xff]
    %v4382 = vld [vmem:[#allocation13 + $0x68] sm:$0xff]
    %v4383 = vld [vmem:[#allocation13 + $0x70] sm:$0xff]
    %v4384 = vld [vmem:[#allocation13 + $0x78] sm:$0xff]
    %v4385 = vld [vmem:[#allocation13 + $0x80] sm:$0xff]
    %v4386 = vld [vmem:[#allocation13 + $0x88] sm:$0xff]
    %v4387 = vld [vmem:[#allocation13 + $0x90] sm:$0xff]
    %v4388 = vld [vmem:[#allocation13 + $0x98] sm:$0xff]
    %v4389 = vld [vmem:[#allocation13 + $0xa0] sm:$0xff]
    %v4390 = vld [vmem:[#allocation13 + $0xa8] sm:$0xff]
    %v4391 = vld [vmem:[#allocation13 + $0xb0] sm:$0xff]
    %v4392 = vld [vmem:[#allocation13 + $0xb8] sm:$0xff]
    %v4393 = vld [vmem:[#allocation13 + $0xc0] sm:$0xff]
    %v4394 = vld [vmem:[#allocation13 + $0xc8] sm:$0xff]
    %v4395 = vld [vmem:[#allocation13 + $0xd0] sm:$0xff]
    %v4396 = vld [vmem:[#allocation13 + $0xd8] sm:$0xff]
    %v4397 = vld [vmem:[#allocation13 + $0xe0] sm:$0xff]
    %v4398 = vld [vmem:[#allocation13 + $0xe8] sm:$0xff]
    %v4399 = vld [vmem:[#allocation13 + $0xf0] sm:$0xff]
    %v4400 = vld [vmem:[#allocation13 + $0xf8] sm:$0xff]
    %v4433 = vunpack.c.l.b16 %v4369
    %v4434 = vunpack.c.h.b16 %v4369
    %v4435 = vunpack.c.l.b16 %v4370
    %v4436 = vunpack.c.h.b16 %v4370
    %v4437 = vunpack.c.l.b16 %v4371
    %v4438 = vunpack.c.h.b16 %v4371
    %v4439 = vunpack.c.l.b16 %v4372
    %v4440 = vunpack.c.h.b16 %v4372
    %v4441 = vunpack.c.l.b16 %v4373
    %v4442 = vunpack.c.h.b16 %v4373
    %v4443 = vunpack.c.l.b16 %v4374
    %v4444 = vunpack.c.h.b16 %v4374
    %v4445 = vunpack.c.l.b16 %v4375
    %v4446 = vunpack.c.h.b16 %v4375
    %v4447 = vunpack.c.l.b16 %v4376
    %v4448 = vunpack.c.h.b16 %v4376
    %v4449 = vunpack.c.l.b16 %v4377
    %v4450 = vunpack.c.h.b16 %v4377
    %v4451 = vunpack.c.l.b16 %v4378
    %v4452 = vunpack.c.h.b16 %v4378
    %v4453 = vunpack.c.l.b16 %v4379
    %v4454 = vunpack.c.h.b16 %v4379
    %v4455 = vunpack.c.l.b16 %v4380
    %v4456 = vunpack.c.h.b16 %v4380
    %v4457 = vunpack.c.l.b16 %v4381
    %v4458 = vunpack.c.h.b16 %v4381
    %v4459 = vunpack.c.l.b16 %v4382
    %v4460 = vunpack.c.h.b16 %v4382
    %v4461 = vunpack.c.l.b16 %v4383
    %v4462 = vunpack.c.h.b16 %v4383
    %v4463 = vunpack.c.l.b16 %v4384
    %v4464 = vunpack.c.h.b16 %v4384
    %v4465 = vunpack.c.l.b16 %v4385
    %v4466 = vunpack.c.h.b16 %v4385
    %v4467 = vunpack.c.l.b16 %v4386
    %v4468 = vunpack.c.h.b16 %v4386
    %v4469 = vunpack.c.l.b16 %v4387
    %v4470 = vunpack.c.h.b16 %v4387
    %v4471 = vunpack.c.l.b16 %v4388
    %v4472 = vunpack.c.h.b16 %v4388
    %v4473 = vunpack.c.l.b16 %v4389
    %v4474 = vunpack.c.h.b16 %v4389
    %v4475 = vunpack.c.l.b16 %v4390
    %v4476 = vunpack.c.h.b16 %v4390
    %v4477 = vunpack.c.l.b16 %v4391
    %v4478 = vunpack.c.h.b16 %v4391
    %v4479 = vunpack.c.l.b16 %v4392
    %v4480 = vunpack.c.h.b16 %v4392
    %v4481 = vunpack.c.l.b16 %v4393
    %v4482 = vunpack.c.h.b16 %v4393
    %v4483 = vunpack.c.l.b16 %v4394
    %v4484 = vunpack.c.h.b16 %v4394
    %v4485 = vunpack.c.l.b16 %v4395
    %v4486 = vunpack.c.h.b16 %v4395
    %v4487 = vunpack.c.l.b16 %v4396
    %v4488 = vunpack.c.h.b16 %v4396
    %v4489 = vunpack.c.l.b16 %v4397
    %v4490 = vunpack.c.h.b16 %v4397
    %v4491 = vunpack.c.l.b16 %v4398
    %v4492 = vunpack.c.h.b16 %v4398
    %v4493 = vunpack.c.l.b16 %v4399
    %v4494 = vunpack.c.h.b16 %v4399
    %v4495 = vunpack.c.l.b16 %v4400
    %v4496 = vunpack.c.h.b16 %v4400
    %v4497 = vpack.c.b16 %v4437, %v4433
    %v4498 = vpack.c.b16 %v4438, %v4434
    %v4499 = vpack.c.b16 %v4439, %v4435
    %v4500 = vpack.c.b16 %v4440, %v4436
    %v4501 = vpack.c.b16 %v4445, %v4441
    %v4502 = vpack.c.b16 %v4446, %v4442
    %v4503 = vpack.c.b16 %v4447, %v4443
    %v4504 = vpack.c.b16 %v4448, %v4444
    %v4505 = vpack.c.b16 %v4453, %v4449
    %v4506 = vpack.c.b16 %v4454, %v4450
    %v4507 = vpack.c.b16 %v4455, %v4451
    %v4508 = vpack.c.b16 %v4456, %v4452
    %v4509 = vpack.c.b16 %v4461, %v4457
    %v4510 = vpack.c.b16 %v4462, %v4458
    %v4511 = vpack.c.b16 %v4463, %v4459
    %v4512 = vpack.c.b16 %v4464, %v4460
    %v4513 = vpack.c.b16 %v4469, %v4465
    %v4514 = vpack.c.b16 %v4470, %v4466
    %v4515 = vpack.c.b16 %v4471, %v4467
    %v4516 = vpack.c.b16 %v4472, %v4468
    %v4517 = vpack.c.b16 %v4477, %v4473
    %v4518 = vpack.c.b16 %v4478, %v4474
    %v4519 = vpack.c.b16 %v4479, %v4475
    %v4520 = vpack.c.b16 %v4480, %v4476
    %v4521 = vpack.c.b16 %v4485, %v4481
    %v4522 = vpack.c.b16 %v4486, %v4482
    %v4523 = vpack.c.b16 %v4487, %v4483
    %v4524 = vpack.c.b16 %v4488, %v4484
    %v4525 = vpack.c.b16 %v4493, %v4489
    %v4526 = vpack.c.b16 %v4494, %v4490
    %v4527 = vpack.c.b16 %v4495, %v4491
    %v4528 = vpack.c.b16 %v4496, %v4492
    %4561 = vmatprep.subr.bf16.mxu0 %v4498
    %4562 = vmatpush1.bf16.msra.mxu0 %v4497
    %4563 = vmatprep.subr.bf16.mxu0 %v4502
    %4564 = vmatpush1.bf16.msra.mxu0 %v4501
    %4565 = vmatprep.subr.bf16.mxu0 %v4506
    %4566 = vmatpush1.bf16.msra.mxu0 %v4505
    %4567 = vmatprep.subr.bf16.mxu0 %v4510
    %4568 = vmatpush1.bf16.msra.mxu0 %v4509
    %4569 = vmatprep.subr.bf16.mxu0 %v4514
    %4570 = vmatpush1.bf16.msra.mxu0 %v4513
    %4571 = vmatprep.subr.bf16.mxu0 %v4518
    %4572 = vmatpush1.bf16.msra.mxu0 %v4517
    %4573 = vmatprep.subr.bf16.mxu0 %v4522
    %4574 = vmatpush1.bf16.msra.mxu0 %v4521
    %4575 = vmatprep.subr.bf16.mxu0 %v4526
    %4576 = vmatpush1.bf16.msra.mxu0 %v4525
    %4577 = vmatprep.subr.bf16.mxu0 0
    %4578 = vmatpush1.bf16.msra.mxu0 0
    %4579 = vmatprep.subr.bf16.mxu0 0
    %4580 = vmatpush1.bf16.msra.mxu0 0
    %4581 = vmatprep.subr.bf16.mxu0 0
    %4582 = vmatpush1.bf16.msra.mxu0 0
    %4583 = vmatprep.subr.bf16.mxu0 0
    %4584 = vmatpush1.bf16.msra.mxu0 0
    %4585 = vmatprep.subr.bf16.mxu0 0
    %4586 = vmatpush1.bf16.msra.mxu0 0
    %4587 = vmatprep.subr.bf16.mxu0 0
    %4588 = vmatpush1.bf16.msra.mxu0 0
    %4589 = vmatprep.subr.bf16.mxu0 0
    %4590 = vmatpush1.bf16.msra.mxu0 0
    %4591 = vmatprep.subr.bf16.mxu0 0
    %4592 = vmatpush1.bf16.msra.mxu0 0
    %4593 = vmatprep.mubr.bf16.mxu0 0
    %4594 = vmatmul.mubr.bf16.gmra.mrb[0].mxu0 %v4368
    %v4595 = vpop.f32.mrb[0].mxu0
    %v4596 = vadd.f32 0.0, %v4595
    %v4597 = vpop.f32.mrb[0].mxu0
    %v4598 = vadd.f32 0.0, %v4597
    %v4599 = vpop.f32.mrb[0].mxu0
    %v4600 = vpop.f32.mrb[0].mxu0
    %4601 = vdwg.mxu0
    %4602 = vmatprep.subr.bf16.mxu0 %v4500
    %4603 = vmatpush1.bf16.msra.mxu0 %v4499
    %4604 = vmatprep.subr.bf16.mxu0 %v4504
    %4605 = vmatpush1.bf16.msra.mxu0 %v4503
    %4606 = vmatprep.subr.bf16.mxu0 %v4508
    %4607 = vmatpush1.bf16.msra.mxu0 %v4507
    %4608 = vmatprep.subr.bf16.mxu0 %v4512
    %4609 = vmatpush1.bf16.msra.mxu0 %v4511
    %4610 = vmatprep.subr.bf16.mxu0 %v4516
    %4611 = vmatpush1.bf16.msra.mxu0 %v4515
    %4612 = vmatprep.subr.bf16.mxu0 %v4520
    %4613 = vmatpush1.bf16.msra.mxu0 %v4519
    %4614 = vmatprep.subr.bf16.mxu0 %v4524
    %4615 = vmatpush1.bf16.msra.mxu0 %v4523
    %4616 = vmatprep.subr.bf16.mxu0 %v4528
    %4617 = vmatpush1.bf16.msra.mxu0 %v4527
    %4618 = vmatprep.subr.bf16.mxu0 0
    %4619 = vmatpush1.bf16.msra.mxu0 0
    %4620 = vmatprep.subr.bf16.mxu0 0
    %4621 = vmatpush1.bf16.msra.mxu0 0
    %4622 = vmatprep.subr.bf16.mxu0 0
    %4623 = vmatpush1.bf16.msra.mxu0 0
    %4624 = vmatprep.subr.bf16.mxu0 0
    %4625 = vmatpush1.bf16.msra.mxu0 0
    %4626 = vmatprep.subr.bf16.mxu0 0
    %4627 = vmatpush1.bf16.msra.mxu0 0
    %4628 = vmatprep.subr.bf16.mxu0 0
    %4629 = vmatpush1.bf16.msra.mxu0 0
    %4630 = vmatprep.subr.bf16.mxu0 0
    %4631 = vmatpush1.bf16.msra.mxu0 0
    %4632 = vmatprep.subr.bf16.mxu0 0
    %4633 = vmatpush1.bf16.msra.mxu0 0
    %4634 = vmatprep.mubr.bf16.mxu0 0
    %4635 = vmatmul.mubr.bf16.gmra.mrb[0].mxu0 %v4368
    %v4636 = vpop.f32.mrb[0].mxu0
    %v4637 = vadd.f32 0.0, %v4636
    %v4638 = vpop.f32.mrb[0].mxu0
    %v4639 = vadd.f32 0.0, %v4638
    %v4640 = vpop.f32.mrb[0].mxu0
    %v4641 = vpop.f32.mrb[0].mxu0
    %4642 = vdwg.mxu0
    %v4643 = vadd.f32 %v4364, %v4596
    %v4644 = vadd.f32 %v4365, %v4598
    %v4645 = vadd.f32 %v4366, %v4637
    %v4646 = vadd.f32 %v4367, %v4639
    %v4647 = vxor.u32 %v4643, 2147483648
    %v4648 = vmul.f32 %v4647, 1.442695
    %v4649 = vpow.pop %v4648
    %v4650 = vadd.f32 %v4649, 1.0
    %v4651 = vrcp.pop %v4650
    %v4652 = vmul.f32 1.0, %v4651
    %v4653 = vxor.u32 %v4644, 2147483648
    %v4654 = vmul.f32 %v4653, 1.442695
    %v4655 = vpow.pop %v4654
    %v4656 = vadd.f32 %v4655, 1.0
    %v4657 = vrcp.pop %v4656
    %v4658 = vmul.f32 1.0, %v4657
    %v4659 = vtanh.pop %v4645
    %v4660 = vxor.u32 %v4646, 2147483648
    %v4661 = vmul.f32 %v4660, 1.442695
    %v4662 = vpow.pop %v4661
    %v4663 = vadd.f32 %v4662, 1.0
    %v4664 = vrcp.pop %v4663
    %v4665 = vmul.f32 1.0, %v4664
    %v4666 = vmul.f32 %v4658, %v4363
    %v4667 = vmul.f32 %v4652, %v4659
    %v4668 = vadd.f32 %v4666, %v4667
    %v4669 = vtanh.pop %v4668
    %v4670 = vmul.f32 %v4665, %v4669
    %4671 = vst [vmem:[#allocation3] sm:$0xff] %v4670
    %4672 = vst [vmem:[#allocation4] sm:$0xff] %v4668
    %4673 = vst [vmem:[%s1758] sm:$0xff] %v4670
    %v4674 = vld [vmem:[#allocation3] sm:$0xff]
    %v4675 = vld [vmem:[#allocation4] sm:$0xff]
    %v4676 = vld [vmem:[%s1762] sm:$0xff]
    %v4677 = vld [vmem:[%s1762 + $0x8] sm:$0xff]
    %v4678 = vld [vmem:[%s1762 + $0x10] sm:$0xff]
    %v4679 = vld [vmem:[%s1762 + $0x18] sm:$0xff]
    %v4680 = vpack.c.bf16 %v4674, %v4674
    %v4681 = vld [vmem:[#allocation13] sm:$0xff]
    %v4682 = vld [vmem:[#allocation13 + $0x8] sm:$0xff]
    %v4683 = vld [vmem:[#allocation13 + $0x10] sm:$0xff]
    %v4684 = vld [vmem:[#allocation13 + $0x18] sm:$0xff]
    %v4685 = vld [vmem:[#allocation13 + $0x20] sm:$0xff]
    %v4686 = vld [vmem:[#allocation13 + $0x28] sm:$0xff]
    %v4687 = vld [vmem:[#allocation13 + $0x30] sm:$0xff]
    %v4688 = vld [vmem:[#allocation13 + $0x38] sm:$0xff]
    %v4689 = vld [vmem:[#allocation13 + $0x40] sm:$0xff]
    %v4690 = vld [vmem:[#allocation13 + $0x48] sm:$0xff]
    %v4691 = vld [vmem:[#allocation13 + $0x50] sm:$0xff]
    %v4692 = vld [vmem:[#allocation13 + $0x58] sm:$0xff]
    %v4693 = vld [vmem:[#allocation13 + $0x60] sm:$0xff]
    %v4694 = vld [vmem:[#allocation13 + $0x68] sm:$0xff]
    %v4695 = vld [vmem:[#allocation13 + $0x70] sm:$0xff]
    %v4696 = vld [vmem:[#allocation13 + $0x78] sm:$0xff]
    %v4697 = vld [vmem:[#allocation13 + $0x80] sm:$0xff]
    %v4698 = vld [vmem:[#allocation13 + $0x88] sm:$0xff]
    %v4699 = vld [vmem:[#allocation13 + $0x90] sm:$0xff]
    %v4700 = vld [vmem:[#allocation13 + $0x98] sm:$0xff]
    %v4701 = vld [vmem:[#allocation13 + $0xa0] sm:$0xff]
    %v4702 = vld [vmem:[#allocation13 + $0xa8] sm:$0xff]
    %v4703 = vld [vmem:[#allocation13 + $0xb0] sm:$0xff]
    %v4704 = vld [vmem:[#allocation13 + $0xb8] sm:$0xff]
    %v4705 = vld [vmem:[#allocation13 + $0xc0] sm:$0xff]
    %v4706 = vld [vmem:[#allocation13 + $0xc8] sm:$0xff]
    %v4707 = vld [vmem:[#allocation13 + $0xd0] sm:$0xff]
    %v4708 = vld [vmem:[#allocation13 + $0xd8] sm:$0xff]
    %v4709 = vld [vmem:[#allocation13 + $0xe0] sm:$0xff]
    %v4710 = vld [vmem:[#allocation13 + $0xe8] sm:$0xff]
    %v4711 = vld [vmem:[#allocation13 + $0xf0] sm:$0xff]
    %v4712 = vld [vmem:[#allocation13 + $0xf8] sm:$0xff]
    %v4745 = vunpack.c.l.b16 %v4681
    %v4746 = vunpack.c.h.b16 %v4681
    %v4747 = vunpack.c.l.b16 %v4682
    %v4748 = vunpack.c.h.b16 %v4682
    %v4749 = vunpack.c.l.b16 %v4683
    %v4750 = vunpack.c.h.b16 %v4683
    %v4751 = vunpack.c.l.b16 %v4684
    %v4752 = vunpack.c.h.b16 %v4684
    %v4753 = vunpack.c.l.b16 %v4685
    %v4754 = vunpack.c.h.b16 %v4685
    %v4755 = vunpack.c.l.b16 %v4686
    %v4756 = vunpack.c.h.b16 %v4686
    %v4757 = vunpack.c.l.b16 %v4687
    %v4758 = vunpack.c.h.b16 %v4687
    %v4759 = vunpack.c.l.b16 %v4688
    %v4760 = vunpack.c.h.b16 %v4688
    %v4761 = vunpack.c.l.b16 %v4689
    %v4762 = vunpack.c.h.b16 %v4689
    %v4763 = vunpack.c.l.b16 %v4690
    %v4764 = vunpack.c.h.b16 %v4690
    %v4765 = vunpack.c.l.b16 %v4691
    %v4766 = vunpack.c.h.b16 %v4691
    %v4767 = vunpack.c.l.b16 %v4692
    %v4768 = vunpack.c.h.b16 %v4692
    %v4769 = vunpack.c.l.b16 %v4693
    %v4770 = vunpack.c.h.b16 %v4693
    %v4771 = vunpack.c.l.b16 %v4694
    %v4772 = vunpack.c.h.b16 %v4694
    %v4773 = vunpack.c.l.b16 %v4695
    %v4774 = vunpack.c.h.b16 %v4695
    %v4775 = vunpack.c.l.b16 %v4696
    %v4776 = vunpack.c.h.b16 %v4696
    %v4777 = vunpack.c.l.b16 %v4697
    %v4778 = vunpack.c.h.b16 %v4697
    %v4779 = vunpack.c.l.b16 %v4698
    %v4780 = vunpack.c.h.b16 %v4698
    %v4781 = vunpack.c.l.b16 %v4699
    %v4782 = vunpack.c.h.b16 %v4699
    %v4783 = vunpack.c.l.b16 %v4700
    %v4784 = vunpack.c.h.b16 %v4700
    %v4785 = vunpack.c.l.b16 %v4701
    %v4786 = vunpack.c.h.b16 %v4701
    %v4787 = vunpack.c.l.b16 %v4702
    %v4788 = vunpack.c.h.b16 %v4702
    %v4789 = vunpack.c.l.b16 %v4703
    %v4790 = vunpack.c.h.b16 %v4703
    %v4791 = vunpack.c.l.b16 %v4704
    %v4792 = vunpack.c.h.b16 %v4704
    %v4793 = vunpack.c.l.b16 %v4705
    %v4794 = vunpack.c.h.b16 %v4705
    %v4795 = vunpack.c.l.b16 %v4706
    %v4796 = vunpack.c.h.b16 %v4706
    %v4797 = vunpack.c.l.b16 %v4707
    %v4798 = vunpack.c.h.b16 %v4707
    %v4799 = vunpack.c.l.b16 %v4708
    %v4800 = vunpack.c.h.b16 %v4708
    %v4801 = vunpack.c.l.b16 %v4709
    %v4802 = vunpack.c.h.b16 %v4709
    %v4803 = vunpack.c.l.b16 %v4710
    %v4804 = vunpack.c.h.b16 %v4710
    %v4805 = vunpack.c.l.b16 %v4711
    %v4806 = vunpack.c.h.b16 %v4711
    %v4807 = vunpack.c.l.b16 %v4712
    %v4808 = vunpack.c.h.b16 %v4712
    %v4809 = vpack.c.b16 %v4749, %v4745
    %v4810 = vpack.c.b16 %v4750, %v4746
    %v4811 = vpack.c.b16 %v4751, %v4747
    %v4812 = vpack.c.b16 %v4752, %v4748
    %v4813 = vpack.c.b16 %v4757, %v4753
    %v4814 = vpack.c.b16 %v4758, %v4754
    %v4815 = vpack.c.b16 %v4759, %v4755
    %v4816 = vpack.c.b16 %v4760, %v4756
    %v4817 = vpack.c.b16 %v4765, %v4761
    %v4818 = vpack.c.b16 %v4766, %v4762
    %v4819 = vpack.c.b16 %v4767, %v4763
    %v4820 = vpack.c.b16 %v4768, %v4764
    %v4821 = vpack.c.b16 %v4773, %v4769
    %v4822 = vpack.c.b16 %v4774, %v4770
    %v4823 = vpack.c.b16 %v4775, %v4771
    %v4824 = vpack.c.b16 %v4776, %v4772
    %v4825 = vpack.c.b16 %v4781, %v4777
    %v4826 = vpack.c.b16 %v4782, %v4778
    %v4827 = vpack.c.b16 %v4783, %v4779
    %v4828 = vpack.c.b16 %v4784, %v4780
    %v4829 = vpack.c.b16 %v4789, %v4785
    %v4830 = vpack.c.b16 %v4790, %v4786
    %v4831 = vpack.c.b16 %v4791, %v4787
    %v4832 = vpack.c.b16 %v4792, %v4788
    %v4833 = vpack.c.b16 %v4797, %v4793
    %v4834 = vpack.c.b16 %v4798, %v4794
    %v4835 = vpack.c.b16 %v4799, %v4795
    %v4836 = vpack.c.b16 %v4800, %v4796
    %v4837 = vpack.c.b16 %v4805, %v4801
    %v4838 = vpack.c.b16 %v4806, %v4802
    %v4839 = vpack.c.b16 %v4807, %v4803
    %v4840 = vpack.c.b16 %v4808, %v4804
    %4873 = vmatprep.subr.bf16.mxu0 %v4810
    %4874 = vmatpush1.bf16.msra.mxu0 %v4809
    %4875 = vmatprep.subr.bf16.mxu0 %v4814
    %4876 = vmatpush1.bf16.msra.mxu0 %v4813
    %4877 = vmatprep.subr.bf16.mxu0 %v4818
    %4878 = vmatpush1.bf16.msra.mxu0 %v4817
    %4879 = vmatprep.subr.bf16.mxu0 %v4822
    %4880 = vmatpush1.bf16.msra.mxu0 %v4821
    %4881 = vmatprep.subr.bf16.mxu0 %v4826
    %4882 = vmatpush1.bf16.msra.mxu0 %v4825
    %4883 = vmatprep.subr.bf16.mxu0 %v4830
    %4884 = vmatpush1.bf16.msra.mxu0 %v4829
    %4885 = vmatprep.subr.bf16.mxu0 %v4834
    %4886 = vmatpush1.bf16.msra.mxu0 %v4833
    %4887 = vmatprep.subr.bf16.mxu0 %v4838
    %4888 = vmatpush1.bf16.msra.mxu0 %v4837
    %4889 = vmatprep.subr.bf16.mxu0 0
    %4890 = vmatpush1.bf16.msra.mxu0 0
    %4891 = vmatprep.subr.bf16.mxu0 0
    %4892 = vmatpush1.bf16.msra.mxu0 0
    %4893 = vmatprep.subr.bf16.mxu0 0
    %4894 = vmatpush1.bf16.msra.mxu0 0
    %4895 = vmatprep.subr.bf16.mxu0 0
    %4896 = vmatpush1.bf16.msra.mxu0 0
    %4897 = vmatprep.subr.bf16.mxu0 0
    %4898 = vmatpush1.bf16.msra.mxu0 0
    %4899 = vmatprep.subr.bf16.mxu0 0
    %4900 = vmatpush1.bf16.msra.mxu0 0
    %4901 = vmatprep.subr.bf16.mxu0 0
    %4902 = vmatpush1.bf16.msra.mxu0 0
    %4903 = vmatprep.subr.bf16.mxu0 0
    %4904 = vmatpush1.bf16.msra.mxu0 0
    %4905 = vmatprep.mubr.bf16.mxu0 0
    %4906 = vmatmul.mubr.bf16.gmra.mrb[0].mxu0 %v4680
    %v4907 = vpop.f32.mrb[0].mxu0
    %v4908 = vadd.f32 0.0, %v4907
    %v4909 = vpop.f32.mrb[0].mxu0
    %v4910 = vadd.f32 0.0, %v4909
    %v4911 = vpop.f32.mrb[0].mxu0
    %v4912 = vpop.f32.mrb[0].mxu0
    %4913 = vdwg.mxu0
    %4914 = vmatprep.subr.bf16.mxu0 %v4812
    %4915 = vmatpush1.bf16.msra.mxu0 %v4811
    %4916 = vmatprep.subr.bf16.mxu0 %v4816
    %4917 = vmatpush1.bf16.msra.mxu0 %v4815
    %4918 = vmatprep.subr.bf16.mxu0 %v4820
    %4919 = vmatpush1.bf16.msra.mxu0 %v4819
    %4920 = vmatprep.subr.bf16.mxu0 %v4824
    %4921 = vmatpush1.bf16.msra.mxu0 %v4823
    %4922 = vmatprep.subr.bf16.mxu0 %v4828
    %4923 = vmatpush1.bf16.msra.mxu0 %v4827
    %4924 = vmatprep.subr.bf16.mxu0 %v4832
    %4925 = vmatpush1.bf16.msra.mxu0 %v4831
    %4926 = vmatprep.subr.bf16.mxu0 %v4836
    %4927 = vmatpush1.bf16.msra.mxu0 %v4835
    %4928 = vmatprep.subr.bf16.mxu0 %v4840
    %4929 = vmatpush1.bf16.msra.mxu0 %v4839
    %4930 = vmatprep.subr.bf16.mxu0 0
    %4931 = vmatpush1.bf16.msra.mxu0 0
    %4932 = vmatprep.subr.bf16.mxu0 0
    %4933 = vmatpush1.bf16.msra.mxu0 0
    %4934 = vmatprep.subr.bf16.mxu0 0
    %4935 = vmatpush1.bf16.msra.mxu0 0
    %4936 = vmatprep.subr.bf16.mxu0 0
    %4937 = vmatpush1.bf16.msra.mxu0 0
    %4938 = vmatprep.subr.bf16.mxu0 0
    %4939 = vmatpush1.bf16.msra.mxu0 0
    %4940 = vmatprep.subr.bf16.mxu0 0
    %4941 = vmatpush1.bf16.msra.mxu0 0
    %4942 = vmatprep.subr.bf16.mxu0 0
    %4943 = vmatpush1.bf16.msra.mxu0 0
    %4944 = vmatprep.subr.bf16.mxu0 0
    %4945 = vmatpush1.bf16.msra.mxu0 0
    %4946 = vmatprep.mubr.bf16.mxu0 0
    %4947 = vmatmul.mubr.bf16.gmra.mrb[0].mxu0 %v4680
    %v4948 = vpop.f32.mrb[0].mxu0
    %v4949 = vadd.f32 0.0, %v4948
    %v4950 = vpop.f32.mrb[0].mxu0
    %v4951 = vadd.f32 0.0, %v4950
    %v4952 = vpop.f32.mrb[0].mxu0
    %v4953 = vpop.f32.mrb[0].mxu0
    %4954 = vdwg.mxu0
    %v4955 = vadd.f32 %v4676, %v4908
    %v4956 = vadd.f32 %v4677, %v4910
    %v4957 = vadd.f32 %v4678, %v4949
    %v4958 = vadd.f32 %v4679, %v4951
    %v4959 = vxor.u32 %v4955, 2147483648
    %v4960 = vmul.f32 %v4959, 1.442695
    %v4961 = vpow.pop %v4960
    %v4962 = vadd.f32 %v4961, 1.0
    %v4963 = vrcp.pop %v4962
    %v4964 = vmul.f32 1.0, %v4963
    %v4965 = vxor.u32 %v4956, 2147483648
    %v4966 = vmul.f32 %v4965, 1.442695
    %v4967 = vpow.pop %v4966
    %v4968 = vadd.f32 %v4967, 1.0
    %v4969 = vrcp.pop %v4968
    %v4970 = vmul.f32 1.0, %v4969
    %v4971 = vtanh.pop %v4957
    %v4972 = vxor.u32 %v4958, 2147483648
    %v4973 = vmul.f32 %v4972, 1.442695
    %v4974 = vpow.pop %v4973
    %v4975 = vadd.f32 %v4974, 1.0
    %v4976 = vrcp.pop %v4975
    %v4977 = vmul.f32 1.0, %v4976
    %v4978 = vmul.f32 %v4970, %v4675
    %v4979 = vmul.f32 %v4964, %v4971
    %v4980 = vadd.f32 %v4978, %v4979
    %v4981 = vtanh.pop %v4980
    %v4982 = vmul.f32 %v4977, %v4981
    %4983 = vst [vmem:[#allocation3] sm:$0xff] %v4982
    %4984 = vst [vmem:[#allocation4] sm:$0xff] %v4980
    %4985 = vst [vmem:[%s2072] sm:$0xff] %v4982
    %v4986 = vld [vmem:[#allocation3] sm:$0xff]
    %v4987 = vld [vmem:[#allocation4] sm:$0xff]
    %v4988 = vld [vmem:[%s2076] sm:$0xff]
    %v4989 = vld [vmem:[%s2076 + $0x8] sm:$0xff]
    %v4990 = vld [vmem:[%s2076 + $0x10] sm:$0xff]
    %v4991 = vld [vmem:[%s2076 + $0x18] sm:$0xff]
    %v4992 = vpack.c.bf16 %v4986, %v4986
    %v4993 = vld [vmem:[#allocation13] sm:$0xff]
    %v4994 = vld [vmem:[#allocation13 + $0x8] sm:$0xff]
    %v4995 = vld [vmem:[#allocation13 + $0x10] sm:$0xff]
    %v4996 = vld [vmem:[#allocation13 + $0x18] sm:$0xff]
    %v4997 = vld [vmem:[#allocation13 + $0x20] sm:$0xff]
    %v4998 = vld [vmem:[#allocation13 + $0x28] sm:$0xff]
    %v4999 = vld [vmem:[#allocation13 + $0x30] sm:$0xff]
    %v5000 = vld [vmem:[#allocation13 + $0x38] sm:$0xff]
    %v5001 = vld [vmem:[#allocation13 + $0x40] sm:$0xff]
    %v5002 = vld [vmem:[#allocation13 + $0x48] sm:$0xff]
    %v5003 = vld [vmem:[#allocation13 + $0x50] sm:$0xff]
    %v5004 = vld [vmem:[#allocation13 + $0x58] sm:$0xff]
    %v5005 = vld [vmem:[#allocation13 + $0x60] sm:$0xff]
    %v5006 = vld [vmem:[#allocation13 + $0x68] sm:$0xff]
    %v5007 = vld [vmem:[#allocation13 + $0x70] sm:$0xff]
    %v5008 = vld [vmem:[#allocation13 + $0x78] sm:$0xff]
    %v5009 = vld [vmem:[#allocation13 + $0x80] sm:$0xff]
    %v5010 = vld [vmem:[#allocation13 + $0x88] sm:$0xff]
    %v5011 = vld [vmem:[#allocation13 + $0x90] sm:$0xff]
    %v5012 = vld [vmem:[#allocation13 + $0x98] sm:$0xff]
    %v5013 = vld [vmem:[#allocation13 + $0xa0] sm:$0xff]
    %v5014 = vld [vmem:[#allocation13 + $0xa8] sm:$0xff]
    %v5015 = vld [vmem:[#allocation13 + $0xb0] sm:$0xff]
    %v5016 = vld [vmem:[#allocation13 + $0xb8] sm:$0xff]
    %v5017 = vld [vmem:[#allocation13 + $0xc0] sm:$0xff]
    %v5018 = vld [vmem:[#allocation13 + $0xc8] sm:$0xff]
    %v5019 = vld [vmem:[#allocation13 + $0xd0] sm:$0xff]
    %v5020 = vld [vmem:[#allocation13 + $0xd8] sm:$0xff]
    %v5021 = vld [vmem:[#allocation13 + $0xe0] sm:$0xff]
    %v5022 = vld [vmem:[#allocation13 + $0xe8] sm:$0xff]
    %v5023 = vld [vmem:[#allocation13 + $0xf0] sm:$0xff]
    %v5024 = vld [vmem:[#allocation13 + $0xf8] sm:$0xff]
    %v5057 = vunpack.c.l.b16 %v4993
    %v5058 = vunpack.c.h.b16 %v4993
    %v5059 = vunpack.c.l.b16 %v4994
    %v5060 = vunpack.c.h.b16 %v4994
    %v5061 = vunpack.c.l.b16 %v4995
    %v5062 = vunpack.c.h.b16 %v4995
    %v5063 = vunpack.c.l.b16 %v4996
    %v5064 = vunpack.c.h.b16 %v4996
    %v5065 = vunpack.c.l.b16 %v4997
    %v5066 = vunpack.c.h.b16 %v4997
    %v5067 = vunpack.c.l.b16 %v4998
    %v5068 = vunpack.c.h.b16 %v4998
    %v5069 = vunpack.c.l.b16 %v4999
    %v5070 = vunpack.c.h.b16 %v4999
    %v5071 = vunpack.c.l.b16 %v5000
    %v5072 = vunpack.c.h.b16 %v5000
    %v5073 = vunpack.c.l.b16 %v5001
    %v5074 = vunpack.c.h.b16 %v5001
    %v5075 = vunpack.c.l.b16 %v5002
    %v5076 = vunpack.c.h.b16 %v5002
    %v5077 = vunpack.c.l.b16 %v5003
    %v5078 = vunpack.c.h.b16 %v5003
    %v5079 = vunpack.c.l.b16 %v5004
    %v5080 = vunpack.c.h.b16 %v5004
    %v5081 = vunpack.c.l.b16 %v5005
    %v5082 = vunpack.c.h.b16 %v5005
    %v5083 = vunpack.c.l.b16 %v5006
    %v5084 = vunpack.c.h.b16 %v5006
    %v5085 = vunpack.c.l.b16 %v5007
    %v5086 = vunpack.c.h.b16 %v5007
    %v5087 = vunpack.c.l.b16 %v5008
    %v5088 = vunpack.c.h.b16 %v5008
    %v5089 = vunpack.c.l.b16 %v5009
    %v5090 = vunpack.c.h.b16 %v5009
    %v5091 = vunpack.c.l.b16 %v5010
    %v5092 = vunpack.c.h.b16 %v5010
    %v5093 = vunpack.c.l.b16 %v5011
    %v5094 = vunpack.c.h.b16 %v5011
    %v5095 = vunpack.c.l.b16 %v5012
    %v5096 = vunpack.c.h.b16 %v5012
    %v5097 = vunpack.c.l.b16 %v5013
    %v5098 = vunpack.c.h.b16 %v5013
    %v5099 = vunpack.c.l.b16 %v5014
    %v5100 = vunpack.c.h.b16 %v5014
    %v5101 = vunpack.c.l.b16 %v5015
    %v5102 = vunpack.c.h.b16 %v5015
    %v5103 = vunpack.c.l.b16 %v5016
    %v5104 = vunpack.c.h.b16 %v5016
    %v5105 = vunpack.c.l.b16 %v5017
    %v5106 = vunpack.c.h.b16 %v5017
    %v5107 = vunpack.c.l.b16 %v5018
    %v5108 = vunpack.c.h.b16 %v5018
    %v5109 = vunpack.c.l.b16 %v5019
    %v5110 = vunpack.c.h.b16 %v5019
    %v5111 = vunpack.c.l.b16 %v5020
    %v5112 = vunpack.c.h.b16 %v5020
    %v5113 = vunpack.c.l.b16 %v5021
    %v5114 = vunpack.c.h.b16 %v5021
    %v5115 = vunpack.c.l.b16 %v5022
    %v5116 = vunpack.c.h.b16 %v5022
    %v5117 = vunpack.c.l.b16 %v5023
    %v5118 = vunpack.c.h.b16 %v5023
    %v5119 = vunpack.c.l.b16 %v5024
    %v5120 = vunpack.c.h.b16 %v5024
    %v5121 = vpack.c.b16 %v5061, %v5057
    %v5122 = vpack.c.b16 %v5062, %v5058
    %v5123 = vpack.c.b16 %v5063, %v5059
    %v5124 = vpack.c.b16 %v5064, %v5060
    %v5125 = vpack.c.b16 %v5069, %v5065
    %v5126 = vpack.c.b16 %v5070, %v5066
    %v5127 = vpack.c.b16 %v5071, %v5067
    %v5128 = vpack.c.b16 %v5072, %v5068
    %v5129 = vpack.c.b16 %v5077, %v5073
    %v5130 = vpack.c.b16 %v5078, %v5074
    %v5131 = vpack.c.b16 %v5079, %v5075
    %v5132 = vpack.c.b16 %v5080, %v5076
    %v5133 = vpack.c.b16 %v5085, %v5081
    %v5134 = vpack.c.b16 %v5086, %v5082
    %v5135 = vpack.c.b16 %v5087, %v5083
    %v5136 = vpack.c.b16 %v5088, %v5084
    %v5137 = vpack.c.b16 %v5093, %v5089
    %v5138 = vpack.c.b16 %v5094, %v5090
    %v5139 = vpack.c.b16 %v5095, %v5091
    %v5140 = vpack.c.b16 %v5096, %v5092
    %v5141 = vpack.c.b16 %v5101, %v5097
    %v5142 = vpack.c.b16 %v5102, %v5098
    %v5143 = vpack.c.b16 %v5103, %v5099
    %v5144 = vpack.c.b16 %v5104, %v5100
    %v5145 = vpack.c.b16 %v5109, %v5105
    %v5146 = vpack.c.b16 %v5110, %v5106
    %v5147 = vpack.c.b16 %v5111, %v5107
    %v5148 = vpack.c.b16 %v5112, %v5108
    %v5149 = vpack.c.b16 %v5117, %v5113
    %v5150 = vpack.c.b16 %v5118, %v5114
    %v5151 = vpack.c.b16 %v5119, %v5115
    %v5152 = vpack.c.b16 %v5120, %v5116
    %5185 = vmatprep.subr.bf16.mxu0 %v5122
    %5186 = vmatpush1.bf16.msra.mxu0 %v5121
    %5187 = vmatprep.subr.bf16.mxu0 %v5126
    %5188 = vmatpush1.bf16.msra.mxu0 %v5125
    %5189 = vmatprep.subr.bf16.mxu0 %v5130
    %5190 = vmatpush1.bf16.msra.mxu0 %v5129
    %5191 = vmatprep.subr.bf16.mxu0 %v5134
    %5192 = vmatpush1.bf16.msra.mxu0 %v5133
    %5193 = vmatprep.subr.bf16.mxu0 %v5138
    %5194 = vmatpush1.bf16.msra.mxu0 %v5137
    %5195 = vmatprep.subr.bf16.mxu0 %v5142
    %5196 = vmatpush1.bf16.msra.mxu0 %v5141
    %5197 = vmatprep.subr.bf16.mxu0 %v5146
    %5198 = vmatpush1.bf16.msra.mxu0 %v5145
    %5199 = vmatprep.subr.bf16.mxu0 %v5150
    %5200 = vmatpush1.bf16.msra.mxu0 %v5149
    %5201 = vmatprep.subr.bf16.mxu0 0
    %5202 = vmatpush1.bf16.msra.mxu0 0
    %5203 = vmatprep.subr.bf16.mxu0 0
    %5204 = vmatpush1.bf16.msra.mxu0 0
    %5205 = vmatprep.subr.bf16.mxu0 0
    %5206 = vmatpush1.bf16.msra.mxu0 0
    %5207 = vmatprep.subr.bf16.mxu0 0
    %5208 = vmatpush1.bf16.msra.mxu0 0
    %5209 = vmatprep.subr.bf16.mxu0 0
    %5210 = vmatpush1.bf16.msra.mxu0 0
    %5211 = vmatprep.subr.bf16.mxu0 0
    %5212 = vmatpush1.bf16.msra.mxu0 0
    %5213 = vmatprep.subr.bf16.mxu0 0
    %5214 = vmatpush1.bf16.msra.mxu0 0
    %5215 = vmatprep.subr.bf16.mxu0 0
    %5216 = vmatpush1.bf16.msra.mxu0 0
    %5217 = vmatprep.mubr.bf16.mxu0 0
    %5218 = vmatmul.mubr.bf16.gmra.mrb[0].mxu0 %v4992
    %v5219 = vpop.f32.mrb[0].mxu0
    %v5220 = vadd.f32 0.0, %v5219
    %v5221 = vpop.f32.mrb[0].mxu0
    %v5222 = vadd.f32 0.0, %v5221
    %v5223 = vpop.f32.mrb[0].mxu0
    %v5224 = vpop.f32.mrb[0].mxu0
    %5225 = vdwg.mxu0
    %5226 = vmatprep.subr.bf16.mxu0 %v5124
    %5227 = vmatpush1.bf16.msra.mxu0 %v5123
    %5228 = vmatprep.subr.bf16.mxu0 %v5128
    %5229 = vmatpush1.bf16.msra.mxu0 %v5127
    %5230 = vmatprep.subr.bf16.mxu0 %v5132
    %5231 = vmatpush1.bf16.msra.mxu0 %v5131
    %5232 = vmatprep.subr.bf16.mxu0 %v5136
    %5233 = vmatpush1.bf16.msra.mxu0 %v5135
    %5234 = vmatprep.subr.bf16.mxu0 %v5140
    %5235 = vmatpush1.bf16.msra.mxu0 %v5139
    %5236 = vmatprep.subr.bf16.mxu0 %v5144
    %5237 = vmatpush1.bf16.msra.mxu0 %v5143
    %5238 = vmatprep.subr.bf16.mxu0 %v5148
    %5239 = vmatpush1.bf16.msra.mxu0 %v5147
    %5240 = vmatprep.subr.bf16.mxu0 %v5152
    %5241 = vmatpush1.bf16.msra.mxu0 %v5151
    %5242 = vmatprep.subr.bf16.mxu0 0
    %5243 = vmatpush1.bf16.msra.mxu0 0
    %5244 = vmatprep.subr.bf16.mxu0 0
    %5245 = vmatpush1.bf16.msra.mxu0 0
    %5246 = vmatprep.subr.bf16.mxu0 0
    %5247 = vmatpush1.bf16.msra.mxu0 0
    %5248 = vmatprep.subr.bf16.mxu0 0
    %5249 = vmatpush1.bf16.msra.mxu0 0
    %5250 = vmatprep.subr.bf16.mxu0 0
    %5251 = vmatpush1.bf16.msra.mxu0 0
    %5252 = vmatprep.subr.bf16.mxu0 0
    %5253 = vmatpush1.bf16.msra.mxu0 0
    %5254 = vmatprep.subr.bf16.mxu0 0
    %5255 = vmatpush1.bf16.msra.mxu0 0
    %5256 = vmatprep.subr.bf16.mxu0 0
    %5257 = vmatpush1.bf16.msra.mxu0 0
    %5258 = vmatprep.mubr.bf16.mxu0 0
    %5259 = vmatmul.mubr.bf16.gmra.mrb[0].mxu0 %v4992
    %v5260 = vpop.f32.mrb[0].mxu0
    %v5261 = vadd.f32 0.0, %v5260
    %v5262 = vpop.f32.mrb[0].mxu0
    %v5263 = vadd.f32 0.0, %v5262
    %v5264 = vpop.f32.mrb[0].mxu0
    %v5265 = vpop.f32.mrb[0].mxu0
    %5266 = vdwg.mxu0
    %v5267 = vadd.f32 %v4988, %v5220
    %v5268 = vadd.f32 %v4989, %v5222
    %v5269 = vadd.f32 %v4990, %v5261
    %v5270 = vadd.f32 %v4991, %v5263
    %v5271 = vxor.u32 %v5267, 2147483648
    %v5272 = vmul.f32 %v5271, 1.442695
    %v5273 = vpow.pop %v5272
    %v5274 = vadd.f32 %v5273, 1.0
    %v5275 = vrcp.pop %v5274
    %v5276 = vmul.f32 1.0, %v5275
    %v5277 = vxor.u32 %v5268, 2147483648
    %v5278 = vmul.f32 %v5277, 1.442695
    %v5279 = vpow.pop %v5278
    %v5280 = vadd.f32 %v5279, 1.0
    %v5281 = vrcp.pop %v5280
    %v5282 = vmul.f32 1.0, %v5281
    %v5283 = vtanh.pop %v5269
    %v5284 = vxor.u32 %v5270, 2147483648
    %v5285 = vmul.f32 %v5284, 1.442695
    %v5286 = vpow.pop %v5285
    %v5287 = vadd.f32 %v5286, 1.0
    %v5288 = vrcp.pop %v5287
    %v5289 = vmul.f32 1.0, %v5288
    %v5290 = vmul.f32 %v5282, %v4987
    %v5291 = vmul.f32 %v5276, %v5283
    %v5292 = vadd.f32 %v5290, %v5291
    %v5293 = vtanh.pop %v5292
    %v5294 = vmul.f32 %v5289, %v5293
    %5295 = vst [vmem:[#allocation3] sm:$0xff] %v5294
    %5296 = vst [vmem:[#allocation4] sm:$0xff] %v5292
    %5297 = vst [vmem:[%s2386] sm:$0xff] %v5294
    %v5298 = vld [vmem:[#allocation3] sm:$0xff]
    %v5299 = vld [vmem:[#allocation4] sm:$0xff]
    %v5300 = vld [vmem:[%s2390] sm:$0xff]
    %v5301 = vld [vmem:[%s2390 + $0x8] sm:$0xff]
    %v5302 = vld [vmem:[%s2390 + $0x10] sm:$0xff]
    %v5303 = vld [vmem:[%s2390 + $0x18] sm:$0xff]
    %v5304 = vpack.c.bf16 %v5298, %v5298
    %v5305 = vld [vmem:[#allocation13] sm:$0xff]
    %v5306 = vld [vmem:[#allocation13 + $0x8] sm:$0xff]
    %v5307 = vld [vmem:[#allocation13 + $0x10] sm:$0xff]
    %v5308 = vld [vmem:[#allocation13 + $0x18] sm:$0xff]
    %v5309 = vld [vmem:[#allocation13 + $0x20] sm:$0xff]
    %v5310 = vld [vmem:[#allocation13 + $0x28] sm:$0xff]
    %v5311 = vld [vmem:[#allocation13 + $0x30] sm:$0xff]
    %v5312 = vld [vmem:[#allocation13 + $0x38] sm:$0xff]
    %v5313 = vld [vmem:[#allocation13 + $0x40] sm:$0xff]
    %v5314 = vld [vmem:[#allocation13 + $0x48] sm:$0xff]
    %v5315 = vld [vmem:[#allocation13 + $0x50] sm:$0xff]
    %v5316 = vld [vmem:[#allocation13 + $0x58] sm:$0xff]
    %v5317 = vld [vmem:[#allocation13 + $0x60] sm:$0xff]
    %v5318 = vld [vmem:[#allocation13 + $0x68] sm:$0xff]
    %v5319 = vld [vmem:[#allocation13 + $0x70] sm:$0xff]
    %v5320 = vld [vmem:[#allocation13 + $0x78] sm:$0xff]
    %v5321 = vld [vmem:[#allocation13 + $0x80] sm:$0xff]
    %v5322 = vld [vmem:[#allocation13 + $0x88] sm:$0xff]
    %v5323 = vld [vmem:[#allocation13 + $0x90] sm:$0xff]
    %v5324 = vld [vmem:[#allocation13 + $0x98] sm:$0xff]
    %v5325 = vld [vmem:[#allocation13 + $0xa0] sm:$0xff]
    %v5326 = vld [vmem:[#allocation13 + $0xa8] sm:$0xff]
    %v5327 = vld [vmem:[#allocation13 + $0xb0] sm:$0xff]
    %v5328 = vld [vmem:[#allocation13 + $0xb8] sm:$0xff]
    %v5329 = vld [vmem:[#allocation13 + $0xc0] sm:$0xff]
    %v5330 = vld [vmem:[#allocation13 + $0xc8] sm:$0xff]
    %v5331 = vld [vmem:[#allocation13 + $0xd0] sm:$0xff]
    %v5332 = vld [vmem:[#allocation13 + $0xd8] sm:$0xff]
    %v5333 = vld [vmem:[#allocation13 + $0xe0] sm:$0xff]
    %v5334 = vld [vmem:[#allocation13 + $0xe8] sm:$0xff]
    %v5335 = vld [vmem:[#allocation13 + $0xf0] sm:$0xff]
    %v5336 = vld [vmem:[#allocation13 + $0xf8] sm:$0xff]
    %v5369 = vunpack.c.l.b16 %v5305
    %v5370 = vunpack.c.h.b16 %v5305
    %v5371 = vunpack.c.l.b16 %v5306
    %v5372 = vunpack.c.h.b16 %v5306
    %v5373 = vunpack.c.l.b16 %v5307
    %v5374 = vunpack.c.h.b16 %v5307
    %v5375 = vunpack.c.l.b16 %v5308
    %v5376 = vunpack.c.h.b16 %v5308
    %v5377 = vunpack.c.l.b16 %v5309
    %v5378 = vunpack.c.h.b16 %v5309
    %v5379 = vunpack.c.l.b16 %v5310
    %v5380 = vunpack.c.h.b16 %v5310
    %v5381 = vunpack.c.l.b16 %v5311
    %v5382 = vunpack.c.h.b16 %v5311
    %v5383 = vunpack.c.l.b16 %v5312
    %v5384 = vunpack.c.h.b16 %v5312
    %v5385 = vunpack.c.l.b16 %v5313
    %v5386 = vunpack.c.h.b16 %v5313
    %v5387 = vunpack.c.l.b16 %v5314
    %v5388 = vunpack.c.h.b16 %v5314
    %v5389 = vunpack.c.l.b16 %v5315
    %v5390 = vunpack.c.h.b16 %v5315
    %v5391 = vunpack.c.l.b16 %v5316
    %v5392 = vunpack.c.h.b16 %v5316
    %v5393 = vunpack.c.l.b16 %v5317
    %v5394 = vunpack.c.h.b16 %v5317
    %v5395 = vunpack.c.l.b16 %v5318
    %v5396 = vunpack.c.h.b16 %v5318
    %v5397 = vunpack.c.l.b16 %v5319
    %v5398 = vunpack.c.h.b16 %v5319
    %v5399 = vunpack.c.l.b16 %v5320
    %v5400 = vunpack.c.h.b16 %v5320
    %v5401 = vunpack.c.l.b16 %v5321
    %v5402 = vunpack.c.h.b16 %v5321
    %v5403 = vunpack.c.l.b16 %v5322
    %v5404 = vunpack.c.h.b16 %v5322
    %v5405 = vunpack.c.l.b16 %v5323
    %v5406 = vunpack.c.h.b16 %v5323
    %v5407 = vunpack.c.l.b16 %v5324
    %v5408 = vunpack.c.h.b16 %v5324
    %v5409 = vunpack.c.l.b16 %v5325
    %v5410 = vunpack.c.h.b16 %v5325
    %v5411 = vunpack.c.l.b16 %v5326
    %v5412 = vunpack.c.h.b16 %v5326
    %v5413 = vunpack.c.l.b16 %v5327
    %v5414 = vunpack.c.h.b16 %v5327
    %v5415 = vunpack.c.l.b16 %v5328
    %v5416 = vunpack.c.h.b16 %v5328
    %v5417 = vunpack.c.l.b16 %v5329
    %v5418 = vunpack.c.h.b16 %v5329
    %v5419 = vunpack.c.l.b16 %v5330
    %v5420 = vunpack.c.h.b16 %v5330
    %v5421 = vunpack.c.l.b16 %v5331
    %v5422 = vunpack.c.h.b16 %v5331
    %v5423 = vunpack.c.l.b16 %v5332
    %v5424 = vunpack.c.h.b16 %v5332
    %v5425 = vunpack.c.l.b16 %v5333
    %v5426 = vunpack.c.h.b16 %v5333
    %v5427 = vunpack.c.l.b16 %v5334
    %v5428 = vunpack.c.h.b16 %v5334
    %v5429 = vunpack.c.l.b16 %v5335
    %v5430 = vunpack.c.h.b16 %v5335
    %v5431 = vunpack.c.l.b16 %v5336
    %v5432 = vunpack.c.h.b16 %v5336
    %v5433 = vpack.c.b16 %v5373, %v5369
    %v5434 = vpack.c.b16 %v5374, %v5370
    %v5435 = vpack.c.b16 %v5375, %v5371
    %v5436 = vpack.c.b16 %v5376, %v5372
    %v5437 = vpack.c.b16 %v5381, %v5377
    %v5438 = vpack.c.b16 %v5382, %v5378
    %v5439 = vpack.c.b16 %v5383, %v5379
    %v5440 = vpack.c.b16 %v5384, %v5380
    %v5441 = vpack.c.b16 %v5389, %v5385
    %v5442 = vpack.c.b16 %v5390, %v5386
    %v5443 = vpack.c.b16 %v5391, %v5387
    %v5444 = vpack.c.b16 %v5392, %v5388
    %v5445 = vpack.c.b16 %v5397, %v5393
    %v5446 = vpack.c.b16 %v5398, %v5394
    %v5447 = vpack.c.b16 %v5399, %v5395
    %v5448 = vpack.c.b16 %v5400, %v5396
    %v5449 = vpack.c.b16 %v5405, %v5401
    %v5450 = vpack.c.b16 %v5406, %v5402
    %v5451 = vpack.c.b16 %v5407, %v5403
    %v5452 = vpack.c.b16 %v5408, %v5404
    %v5453 = vpack.c.b16 %v5413, %v5409
    %v5454 = vpack.c.b16 %v5414, %v5410
    %v5455 = vpack.c.b16 %v5415, %v5411
    %v5456 = vpack.c.b16 %v5416, %v5412
    %v5457 = vpack.c.b16 %v5421, %v5417
    %v5458 = vpack.c.b16 %v5422, %v5418
    %v5459 = vpack.c.b16 %v5423, %v5419
    %v5460 = vpack.c.b16 %v5424, %v5420
    %v5461 = vpack.c.b16 %v5429, %v5425
    %v5462 = vpack.c.b16 %v5430, %v5426
    %v5463 = vpack.c.b16 %v5431, %v5427
    %v5464 = vpack.c.b16 %v5432, %v5428
    %5497 = vmatprep.subr.bf16.mxu0 %v5434
    %5498 = vmatpush1.bf16.msra.mxu0 %v5433
    %5499 = vmatprep.subr.bf16.mxu0 %v5438
    %5500 = vmatpush1.bf16.msra.mxu0 %v5437
    %5501 = vmatprep.subr.bf16.mxu0 %v5442
    %5502 = vmatpush1.bf16.msra.mxu0 %v5441
    %5503 = vmatprep.subr.bf16.mxu0 %v5446
    %5504 = vmatpush1.bf16.msra.mxu0 %v5445
    %5505 = vmatprep.subr.bf16.mxu0 %v5450
    %5506 = vmatpush1.bf16.msra.mxu0 %v5449
    %5507 = vmatprep.subr.bf16.mxu0 %v5454
    %5508 = vmatpush1.bf16.msra.mxu0 %v5453
    %5509 = vmatprep.subr.bf16.mxu0 %v5458
    %5510 = vmatpush1.bf16.msra.mxu0 %v5457
    %5511 = vmatprep.subr.bf16.mxu0 %v5462
    %5512 = vmatpush1.bf16.msra.mxu0 %v5461
    %5513 = vmatprep.subr.bf16.mxu0 0
    %5514 = vmatpush1.bf16.msra.mxu0 0
    %5515 = vmatprep.subr.bf16.mxu0 0
    %5516 = vmatpush1.bf16.msra.mxu0 0
    %5517 = vmatprep.subr.bf16.mxu0 0
    %5518 = vmatpush1.bf16.msra.mxu0 0
    %5519 = vmatprep.subr.bf16.mxu0 0
    %5520 = vmatpush1.bf16.msra.mxu0 0
    %5521 = vmatprep.subr.bf16.mxu0 0
    %5522 = vmatpush1.bf16.msra.mxu0 0
    %5523 = vmatprep.subr.bf16.mxu0 0
    %5524 = vmatpush1.bf16.msra.mxu0 0
    %5525 = vmatprep.subr.bf16.mxu0 0
    %5526 = vmatpush1.bf16.msra.mxu0 0
    %5527 = vmatprep.subr.bf16.mxu0 0
    %5528 = vmatpush1.bf16.msra.mxu0 0
    %5529 = vmatprep.mubr.bf16.mxu0 0
    %5530 = vmatmul.mubr.bf16.gmra.mrb[0].mxu0 %v5304
    %v5531 = vpop.f32.mrb[0].mxu0
    %v5532 = vadd.f32 0.0, %v5531
    %v5533 = vpop.f32.mrb[0].mxu0
    %v5534 = vadd.f32 0.0, %v5533
    %v5535 = vpop.f32.mrb[0].mxu0
    %v5536 = vpop.f32.mrb[0].mxu0
    %5537 = vdwg.mxu0
    %5538 = vmatprep.subr.bf16.mxu0 %v5436
    %5539 = vmatpush1.bf16.msra.mxu0 %v5435
    %5540 = vmatprep.subr.bf16.mxu0 %v5440
    %5541 = vmatpush1.bf16.msra.mxu0 %v5439
    %5542 = vmatprep.subr.bf16.mxu0 %v5444
    %5543 = vmatpush1.bf16.msra.mxu0 %v5443
    %5544 = vmatprep.subr.bf16.mxu0 %v5448
    %5545 = vmatpush1.bf16.msra.mxu0 %v5447
    %5546 = vmatprep.subr.bf16.mxu0 %v5452
    %5547 = vmatpush1.bf16.msra.mxu0 %v5451
    %5548 = vmatprep.subr.bf16.mxu0 %v5456
    %5549 = vmatpush1.bf16.msra.mxu0 %v5455
    %5550 = vmatprep.subr.bf16.mxu0 %v5460
    %5551 = vmatpush1.bf16.msra.mxu0 %v5459
    %5552 = vmatprep.subr.bf16.mxu0 %v5464
    %5553 = vmatpush1.bf16.msra.mxu0 %v5463
    %5554 = vmatprep.subr.bf16.mxu0 0
    %5555 = vmatpush1.bf16.msra.mxu0 0
    %5556 = vmatprep.subr.bf16.mxu0 0
    %5557 = vmatpush1.bf16.msra.mxu0 0
    %5558 = vmatprep.subr.bf16.mxu0 0
    %5559 = vmatpush1.bf16.msra.mxu0 0
    %5560 = vmatprep.subr.bf16.mxu0 0
    %5561 = vmatpush1.bf16.msra.mxu0 0
    %5562 = vmatprep.subr.bf16.mxu0 0
    %5563 = vmatpush1.bf16.msra.mxu0 0
    %5564 = vmatprep.subr.bf16.mxu0 0
    %5565 = vmatpush1.bf16.msra.mxu0 0
    %5566 = vmatprep.subr.bf16.mxu0 0
    %5567 = vmatpush1.bf16.msra.mxu0 0
    %5568 = vmatprep.subr.bf16.mxu0 0
    %5569 = vmatpush1.bf16.msra.mxu0 0
    %5570 = vmatprep.mubr.bf16.mxu0 0
    %5571 = vmatmul.mubr.bf16.gmra.mrb[0].mxu0 %v5304
    %v5572 = vpop.f32.mrb[0].mxu0
    %v5573 = vadd.f32 0.0, %v5572
    %v5574 = vpop.f32.mrb[0].mxu0
    %v5575 = vadd.f32 0.0, %v5574
    %v5576 = vpop.f32.mrb[0].mxu0
    %v5577 = vpop.f32.mrb[0].mxu0
    %5578 = vdwg.mxu0
    %v5579 = vadd.f32 %v5300, %v5532
    %v5580 = vadd.f32 %v5301, %v5534
    %v5581 = vadd.f32 %v5302, %v5573
    %v5582 = vadd.f32 %v5303, %v5575
    %v5583 = vxor.u32 %v5579, 2147483648
    %v5584 = vmul.f32 %v5583, 1.442695
    %v5585 = vpow.pop %v5584
    %v5586 = vadd.f32 %v5585, 1.0
    %v5587 = vrcp.pop %v5586
    %v5588 = vmul.f32 1.0, %v5587
    %v5589 = vxor.u32 %v5580, 2147483648
    %v5590 = vmul.f32 %v5589, 1.442695
    %v5591 = vpow.pop %v5590
    %v5592 = vadd.f32 %v5591, 1.0
    %v5593 = vrcp.pop %v5592
    %v5594 = vmul.f32 1.0, %v5593
    %v5595 = vtanh.pop %v5581
    %v5596 = vxor.u32 %v5582, 2147483648
    %v5597 = vmul.f32 %v5596, 1.442695
    %v5598 = vpow.pop %v5597
    %v5599 = vadd.f32 %v5598, 1.0
    %v5600 = vrcp.pop %v5599
    %v5601 = vmul.f32 1.0, %v5600
    %v5602 = vmul.f32 %v5594, %v5299
    %v5603 = vmul.f32 %v5588, %v5595
    %v5604 = vadd.f32 %v5602, %v5603
    %v5605 = vtanh.pop %v5604
    %v5606 = vmul.f32 %v5601, %v5605
    %5607 = vst [vmem:[#allocation3] sm:$0xff] %v5606
    %5608 = vst [vmem:[#allocation4] sm:$0xff] %v5604
    %5609 = vst [vmem:[%s2700] sm:$0xff] %v5606
    %v5610 = vld [vmem:[#allocation3] sm:$0xff]
    %v5611 = vld [vmem:[#allocation4] sm:$0xff]
    %v5612 = vld [vmem:[%s2704] sm:$0xff]
    %v5613 = vld [vmem:[%s2704 + $0x8] sm:$0xff]
    %v5614 = vld [vmem:[%s2704 + $0x10] sm:$0xff]
    %v5615 = vld [vmem:[%s2704 + $0x18] sm:$0xff]
    %v5616 = vpack.c.bf16 %v5610, %v5610
    %v5617 = vld [vmem:[#allocation13] sm:$0xff]
    %v5618 = vld [vmem:[#allocation13 + $0x8] sm:$0xff]
    %v5619 = vld [vmem:[#allocation13 + $0x10] sm:$0xff]
    %v5620 = vld [vmem:[#allocation13 + $0x18] sm:$0xff]
    %v5621 = vld [vmem:[#allocation13 + $0x20] sm:$0xff]
    %v5622 = vld [vmem:[#allocation13 + $0x28] sm:$0xff]
    %v5623 = vld [vmem:[#allocation13 + $0x30] sm:$0xff]
    %v5624 = vld [vmem:[#allocation13 + $0x38] sm:$0xff]
    %v5625 = vld [vmem:[#allocation13 + $0x40] sm:$0xff]
    %v5626 = vld [vmem:[#allocation13 + $0x48] sm:$0xff]
    %v5627 = vld [vmem:[#allocation13 + $0x50] sm:$0xff]
    %v5628 = vld [vmem:[#allocation13 + $0x58] sm:$0xff]
    %v5629 = vld [vmem:[#allocation13 + $0x60] sm:$0xff]
    %v5630 = vld [vmem:[#allocation13 + $0x68] sm:$0xff]
    %v5631 = vld [vmem:[#allocation13 + $0x70] sm:$0xff]
    %v5632 = vld [vmem:[#allocation13 + $0x78] sm:$0xff]
    %v5633 = vld [vmem:[#allocation13 + $0x80] sm:$0xff]
    %v5634 = vld [vmem:[#allocation13 + $0x88] sm:$0xff]
    %v5635 = vld [vmem:[#allocation13 + $0x90] sm:$0xff]
    %v5636 = vld [vmem:[#allocation13 + $0x98] sm:$0xff]
    %v5637 = vld [vmem:[#allocation13 + $0xa0] sm:$0xff]
    %v5638 = vld [vmem:[#allocation13 + $0xa8] sm:$0xff]
    %v5639 = vld [vmem:[#allocation13 + $0xb0] sm:$0xff]
    %v5640 = vld [vmem:[#allocation13 + $0xb8] sm:$0xff]
    %v5641 = vld [vmem:[#allocation13 + $0xc0] sm:$0xff]
    %v5642 = vld [vmem:[#allocation13 + $0xc8] sm:$0xff]
    %v5643 = vld [vmem:[#allocation13 + $0xd0] sm:$0xff]
    %v5644 = vld [vmem:[#allocation13 + $0xd8] sm:$0xff]
    %v5645 = vld [vmem:[#allocation13 + $0xe0] sm:$0xff]
    %v5646 = vld [vmem:[#allocation13 + $0xe8] sm:$0xff]
    %v5647 = vld [vmem:[#allocation13 + $0xf0] sm:$0xff]
    %v5648 = vld [vmem:[#allocation13 + $0xf8] sm:$0xff]
    %v5681 = vunpack.c.l.b16 %v5617
    %v5682 = vunpack.c.h.b16 %v5617
    %v5683 = vunpack.c.l.b16 %v5618
    %v5684 = vunpack.c.h.b16 %v5618
    %v5685 = vunpack.c.l.b16 %v5619
    %v5686 = vunpack.c.h.b16 %v5619
    %v5687 = vunpack.c.l.b16 %v5620
    %v5688 = vunpack.c.h.b16 %v5620
    %v5689 = vunpack.c.l.b16 %v5621
    %v5690 = vunpack.c.h.b16 %v5621
    %v5691 = vunpack.c.l.b16 %v5622
    %v5692 = vunpack.c.h.b16 %v5622
    %v5693 = vunpack.c.l.b16 %v5623
    %v5694 = vunpack.c.h.b16 %v5623
    %v5695 = vunpack.c.l.b16 %v5624
    %v5696 = vunpack.c.h.b16 %v5624
    %v5697 = vunpack.c.l.b16 %v5625
    %v5698 = vunpack.c.h.b16 %v5625
    %v5699 = vunpack.c.l.b16 %v5626
    %v5700 = vunpack.c.h.b16 %v5626
    %v5701 = vunpack.c.l.b16 %v5627
    %v5702 = vunpack.c.h.b16 %v5627
    %v5703 = vunpack.c.l.b16 %v5628
    %v5704 = vunpack.c.h.b16 %v5628
    %v5705 = vunpack.c.l.b16 %v5629
    %v5706 = vunpack.c.h.b16 %v5629
    %v5707 = vunpack.c.l.b16 %v5630
    %v5708 = vunpack.c.h.b16 %v5630
    %v5709 = vunpack.c.l.b16 %v5631
    %v5710 = vunpack.c.h.b16 %v5631
    %v5711 = vunpack.c.l.b16 %v5632
    %v5712 = vunpack.c.h.b16 %v5632
    %v5713 = vunpack.c.l.b16 %v5633
    %v5714 = vunpack.c.h.b16 %v5633
    %v5715 = vunpack.c.l.b16 %v5634
    %v5716 = vunpack.c.h.b16 %v5634
    %v5717 = vunpack.c.l.b16 %v5635
    %v5718 = vunpack.c.h.b16 %v5635
    %v5719 = vunpack.c.l.b16 %v5636
    %v5720 = vunpack.c.h.b16 %v5636
    %v5721 = vunpack.c.l.b16 %v5637
    %v5722 = vunpack.c.h.b16 %v5637
    %v5723 = vunpack.c.l.b16 %v5638
    %v5724 = vunpack.c.h.b16 %v5638
    %v5725 = vunpack.c.l.b16 %v5639
    %v5726 = vunpack.c.h.b16 %v5639
    %v5727 = vunpack.c.l.b16 %v5640
    %v5728 = vunpack.c.h.b16 %v5640
    %v5729 = vunpack.c.l.b16 %v5641
    %v5730 = vunpack.c.h.b16 %v5641
    %v5731 = vunpack.c.l.b16 %v5642
    %v5732 = vunpack.c.h.b16 %v5642
    %v5733 = vunpack.c.l.b16 %v5643
    %v5734 = vunpack.c.h.b16 %v5643
    %v5735 = vunpack.c.l.b16 %v5644
    %v5736 = vunpack.c.h.b16 %v5644
    %v5737 = vunpack.c.l.b16 %v5645
    %v5738 = vunpack.c.h.b16 %v5645
    %v5739 = vunpack.c.l.b16 %v5646
    %v5740 = vunpack.c.h.b16 %v5646
    %v5741 = vunpack.c.l.b16 %v5647
    %v5742 = vunpack.c.h.b16 %v5647
    %v5743 = vunpack.c.l.b16 %v5648
    %v5744 = vunpack.c.h.b16 %v5648
    %v5745 = vpack.c.b16 %v5685, %v5681
    %v5746 = vpack.c.b16 %v5686, %v5682
    %v5747 = vpack.c.b16 %v5687, %v5683
    %v5748 = vpack.c.b16 %v5688, %v5684
    %v5749 = vpack.c.b16 %v5693, %v5689
    %v5750 = vpack.c.b16 %v5694, %v5690
    %v5751 = vpack.c.b16 %v5695, %v5691
    %v5752 = vpack.c.b16 %v5696, %v5692
    %v5753 = vpack.c.b16 %v5701, %v5697
    %v5754 = vpack.c.b16 %v5702, %v5698
    %v5755 = vpack.c.b16 %v5703, %v5699
    %v5756 = vpack.c.b16 %v5704, %v5700
    %v5757 = vpack.c.b16 %v5709, %v5705
    %v5758 = vpack.c.b16 %v5710, %v5706
    %v5759 = vpack.c.b16 %v5711, %v5707
    %v5760 = vpack.c.b16 %v5712, %v5708
    %v5761 = vpack.c.b16 %v5717, %v5713
    %v5762 = vpack.c.b16 %v5718, %v5714
    %v5763 = vpack.c.b16 %v5719, %v5715
    %v5764 = vpack.c.b16 %v5720, %v5716
    %v5765 = vpack.c.b16 %v5725, %v5721
    %v5766 = vpack.c.b16 %v5726, %v5722
    %v5767 = vpack.c.b16 %v5727, %v5723
    %v5768 = vpack.c.b16 %v5728, %v5724
    %v5769 = vpack.c.b16 %v5733, %v5729
    %v5770 = vpack.c.b16 %v5734, %v5730
    %v5771 = vpack.c.b16 %v5735, %v5731
    %v5772 = vpack.c.b16 %v5736, %v5732
    %v5773 = vpack.c.b16 %v5741, %v5737
    %v5774 = vpack.c.b16 %v5742, %v5738
    %v5775 = vpack.c.b16 %v5743, %v5739
    %v5776 = vpack.c.b16 %v5744, %v5740
    %5809 = vmatprep.subr.bf16.mxu0 %v5746
    %5810 = vmatpush1.bf16.msra.mxu0 %v5745
    %5811 = vmatprep.subr.bf16.mxu0 %v5750
    %5812 = vmatpush1.bf16.msra.mxu0 %v5749
    %5813 = vmatprep.subr.bf16.mxu0 %v5754
    %5814 = vmatpush1.bf16.msra.mxu0 %v5753
    %5815 = vmatprep.subr.bf16.mxu0 %v5758
    %5816 = vmatpush1.bf16.msra.mxu0 %v5757
    %5817 = vmatprep.subr.bf16.mxu0 %v5762
    %5818 = vmatpush1.bf16.msra.mxu0 %v5761
    %5819 = vmatprep.subr.bf16.mxu0 %v5766
    %5820 = vmatpush1.bf16.msra.mxu0 %v5765
    %5821 = vmatprep.subr.bf16.mxu0 %v5770
    %5822 = vmatpush1.bf16.msra.mxu0 %v5769
    %5823 = vmatprep.subr.bf16.mxu0 %v5774
    %5824 = vmatpush1.bf16.msra.mxu0 %v5773
    %5825 = vmatprep.subr.bf16.mxu0 0
    %5826 = vmatpush1.bf16.msra.mxu0 0
    %5827 = vmatprep.subr.bf16.mxu0 0
    %5828 = vmatpush1.bf16.msra.mxu0 0
    %5829 = vmatprep.subr.bf16.mxu0 0
    %5830 = vmatpush1.bf16.msra.mxu0 0
    %5831 = vmatprep.subr.bf16.mxu0 0
    %5832 = vmatpush1.bf16.msra.mxu0 0
    %5833 = vmatprep.subr.bf16.mxu0 0
    %5834 = vmatpush1.bf16.msra.mxu0 0
    %5835 = vmatprep.subr.bf16.mxu0 0
    %5836 = vmatpush1.bf16.msra.mxu0 0
    %5837 = vmatprep.subr.bf16.mxu0 0
    %5838 = vmatpush1.bf16.msra.mxu0 0
    %5839 = vmatprep.subr.bf16.mxu0 0
    %5840 = vmatpush1.bf16.msra.mxu0 0
    %5841 = vmatprep.mubr.bf16.mxu0 0
    %5842 = vmatmul.mubr.bf16.gmra.mrb[0].mxu0 %v5616
    %v5843 = vpop.f32.mrb[0].mxu0
    %v5844 = vadd.f32 0.0, %v5843
    %v5845 = vpop.f32.mrb[0].mxu0
    %v5846 = vadd.f32 0.0, %v5845
    %v5847 = vpop.f32.mrb[0].mxu0
    %v5848 = vpop.f32.mrb[0].mxu0
    %5849 = vdwg.mxu0
    %5850 = vmatprep.subr.bf16.mxu0 %v5748
    %5851 = vmatpush1.bf16.msra.mxu0 %v5747
    %5852 = vmatprep.subr.bf16.mxu0 %v5752
    %5853 = vmatpush1.bf16.msra.mxu0 %v5751
    %5854 = vmatprep.subr.bf16.mxu0 %v5756
    %5855 = vmatpush1.bf16.msra.mxu0 %v5755
    %5856 = vmatprep.subr.bf16.mxu0 %v5760
    %5857 = vmatpush1.bf16.msra.mxu0 %v5759
    %5858 = vmatprep.subr.bf16.mxu0 %v5764
    %5859 = vmatpush1.bf16.msra.mxu0 %v5763
    %5860 = vmatprep.subr.bf16.mxu0 %v5768
    %5861 = vmatpush1.bf16.msra.mxu0 %v5767
    %5862 = vmatprep.subr.bf16.mxu0 %v5772
    %5863 = vmatpush1.bf16.msra.mxu0 %v5771
    %5864 = vmatprep.subr.bf16.mxu0 %v5776
    %5865 = vmatpush1.bf16.msra.mxu0 %v5775
    %5866 = vmatprep.subr.bf16.mxu0 0
    %5867 = vmatpush1.bf16.msra.mxu0 0
    %5868 = vmatprep.subr.bf16.mxu0 0
    %5869 = vmatpush1.bf16.msra.mxu0 0
    %5870 = vmatprep.subr.bf16.mxu0 0
    %5871 = vmatpush1.bf16.msra.mxu0 0
    %5872 = vmatprep.subr.bf16.mxu0 0
    %5873 = vmatpush1.bf16.msra.mxu0 0
    %5874 = vmatprep.subr.bf16.mxu0 0
    %5875 = vmatpush1.bf16.msra.mxu0 0
    %5876 = vmatprep.subr.bf16.mxu0 0
    %5877 = vmatpush1.bf16.msra.mxu0 0
    %5878 = vmatprep.subr.bf16.mxu0 0
    %5879 = vmatpush1.bf16.msra.mxu0 0
    %5880 = vmatprep.subr.bf16.mxu0 0
    %5881 = vmatpush1.bf16.msra.mxu0 0
    %5882 = vmatprep.mubr.bf16.mxu0 0
    %5883 = vmatmul.mubr.bf16.gmra.mrb[0].mxu0 %v5616
    %v5884 = vpop.f32.mrb[0].mxu0
    %v5885 = vadd.f32 0.0, %v5884
    %v5886 = vpop.f32.mrb[0].mxu0
    %v5887 = vadd.f32 0.0, %v5886
    %v5888 = vpop.f32.mrb[0].mxu0
    %v5889 = vpop.f32.mrb[0].mxu0
    %5890 = vdwg.mxu0
    %v5891 = vadd.f32 %v5612, %v5844
    %v5892 = vadd.f32 %v5613, %v5846
    %v5893 = vadd.f32 %v5614, %v5885
    %v5894 = vadd.f32 %v5615, %v5887
    %v5895 = vxor.u32 %v5891, 2147483648
    %v5896 = vmul.f32 %v5895, 1.442695
    %v5897 = vpow.pop %v5896
    %v5898 = vadd.f32 %v5897, 1.0
    %v5899 = vrcp.pop %v5898
    %v5900 = vmul.f32 1.0, %v5899
    %v5901 = vxor.u32 %v5892, 2147483648
    %v5902 = vmul.f32 %v5901, 1.442695
    %v5903 = vpow.pop %v5902
    %v5904 = vadd.f32 %v5903, 1.0
    %v5905 = vrcp.pop %v5904
    %v5906 = vmul.f32 1.0, %v5905
    %v5907 = vtanh.pop %v5893
    %v5908 = vxor.u32 %v5894, 2147483648
    %v5909 = vmul.f32 %v5908, 1.442695
    %v5910 = vpow.pop %v5909
    %v5911 = vadd.f32 %v5910, 1.0
    %v5912 = vrcp.pop %v5911
    %v5913 = vmul.f32 1.0, %v5912
    %v5914 = vmul.f32 %v5906, %v5611
    %v5915 = vmul.f32 %v5900, %v5907
    %v5916 = vadd.f32 %v5914, %v5915
    %v5917 = vtanh.pop %v5916
    %v5918 = vmul.f32 %v5913, %v5917
    %5919 = vst [vmem:[#allocation3] sm:$0xff] %v5918
    %5920 = vst [vmem:[#allocation4] sm:$0xff] %v5916
    %5921 = vst [vmem:[%s3014] sm:$0xff] %v5918
    %v5922 = vld [vmem:[#allocation3] sm:$0xff]
    %s5923 = scalar_lea.vmem [#allocation15], 8
    %5924 = vst [vmem:[%s5923] sm:$0xff] %v5922
    %v5925 = vld [vmem:[#allocation4] sm:$0xff]
    %s5926 = scalar_lea.vmem [#allocation17], 8
    %5927 = vst [vmem:[%s5926] sm:$0xff] %v5925
    // Predicated region
    $region50: #{tpu_custom_call.1} parent=1 // pred_check
      _
    $region51: #{tpu_custom_call.1} parent=1 // pred_check_branch
      %5929 = sbr.rel (0) target = $region53
    $region52: #{tpu_custom_call.1} parent=1 // pred_region
      %s5931 = ssub.s32 1024, 1024
      %5932 = vsyncadd [#allocation7], %s5931
      %s5933 = sshll.u32 [#allocation14], 4
      %s5934 = int_to_ptr.vmem [resolvable:$true] %s5933
      %5939 = dma.vmem_to_hbm [thread:$0]  %s5934, 1024, %s7, [#allocation7], 128, 128, 8
    $region53: #{tpu_custom_call.1} parent=1 // pred_fallthru
      _
    // Predicated region
    $region54: #{tpu_custom_call.1} parent=1 // pred_check
      _
    $region55: #{tpu_custom_call.1} parent=1 // pred_check_branch
      %5941 = sbr.rel (0) target = $region57
    $region56: #{tpu_custom_call.1} parent=1 // pred_region
      %s5943 = ssub.s32 256, 256
      %5944 = vsyncadd [#allocation16], %s5943
      %s5945 = sshll.u32 [#allocation15], 4
      %s5946 = int_to_ptr.vmem [resolvable:$true] %s5945
      %5951 = dma.vmem_to_hbm [thread:$0]  %s5946, 256, %s8, [#allocation16], 128, 128, 8
    $region57: #{tpu_custom_call.1} parent=1 // pred_fallthru
      _
    // Predicated region
    $region58: #{tpu_custom_call.1} parent=1 // pred_check
      _
    $region59: #{tpu_custom_call.1} parent=1 // pred_check_branch
      %5953 = sbr.rel (0) target = $region61
    $region60: #{tpu_custom_call.1} parent=1 // pred_region
      %s5955 = ssub.s32 256, 256
      %5956 = vsyncadd [#allocation16], %s5955
      %s5957 = sshll.u32 [#allocation17], 4
      %s5958 = int_to_ptr.vmem [resolvable:$true] %s5957
      %5963 = dma.vmem_to_hbm [thread:$0]  %s5958, 256, %s9, [#allocation16], 128, 128, 8
    $region61: #{tpu_custom_call.1} parent=1 // pred_fallthru
      _
    // Predicated region
    $region62: #{tpu_custom_call.1} parent=1 // pred_check
      _
    $region63: #{tpu_custom_call.1} parent=1 // pred_check_branch
      %5965 = sbr.rel (0) target = $region65
    $region64: #{tpu_custom_call.1} parent=1 // pred_region
      %5966 = dma.done [#allocation7], 1024
    $region65: #{tpu_custom_call.1} parent=1 // pred_fallthru
      _
    // Predicated region
    $region66: #{tpu_custom_call.1} parent=1 // pred_check
      _
    $region67: #{tpu_custom_call.1} parent=1 // pred_check_branch
      %5968 = sbr.rel (0) target = $region69
    $region68: #{tpu_custom_call.1} parent=1 // pred_region
      %5969 = dma.done [#allocation16], 256
    $region69: #{tpu_custom_call.1} parent=1 // pred_fallthru
      _
    // Predicated region
    $region70: #{tpu_custom_call.1} parent=1 // pred_check
      _
    $region71: #{tpu_custom_call.1} parent=1 // pred_check_branch
      %5971 = sbr.rel (0) target = $region73
    $region72: #{tpu_custom_call.1} parent=1 // pred_region
      %5972 = dma.done [#allocation16], 256
    $region73: #{tpu_custom_call.1} parent=1 // pred_fallthru
      _
    %5973 = vsyncpa [#allocation6], 1
    %5974 = vsyncpa [#allocation9], 1
    %5975 = vsyncpa [#allocation12], 1
    %5976 = vsyncpa [#allocation7], 1
    %5977 = vsyncpa [#allocation16], 1

</llo_original>
